<compile_context>
chip_gen: v6e
topology: v6e:2x2x1
jax: 0.10.0
libtpu: 0.0.40
codegen_flags: <defaults>
</compile_context>

<pallas_src>
import math

import jax
import jax.numpy as jnp
from jax import lax
from jax.experimental import pallas as pl
from jax.experimental.pallas import tpu as pltpu

# ---- module-level constants (globals referenced by models.py) -----------
VOCAB_SIZE = 72          # len(vocab)
EMBEDDING_SIZE = 32      # embedding_size
TEXT_MAX_LEN = 8         # text_max_len
IMAGE_HEIGHT = 4
IMAGE_WIDTH = 20
BATCH = 2                # forward hard-codes xx.view(2, -1)

D_IN = TEXT_MAX_LEN * EMBEDDING_SIZE     # 256
FC_HIDDEN1 = 1024
FC_HIDDEN2 = 2048
FC_OUT = 5440
BN_EPS = 1e-5

TILE_N = 512                                              # fc3 output tile width
FC_OUT_PAD = pl.cdiv(FC_OUT, 2 * TILE_N) * (2 * TILE_N)   # 6144 -> 12 even steps


# ------------------------- kernel helpers ---------------------------------
def _nk_dot(x, w):
    """x:(B,K) @ w:(N,K)^T -> (B,N) on the MXU with f32 accumulation."""
    return lax.dot_general(x, w, (((1,), (1,)), ((), ())),
                           preferred_element_type=jnp.float32)


def _bn_relu(y, bn):
    """nn.BatchNorm1d (training mode, biased batch stats) + ReLU.

    bn: (2, N) packed per-feature params; row 0 = gamma, row 1 = beta.
    The preceding Linear bias is omitted upstream: it is exactly cancelled
    by the mean subtraction here (exact, not an approximation).
    """
    mean = jnp.mean(y, axis=0, keepdims=True)
    var = jnp.mean(jnp.square(y - mean), axis=0, keepdims=True)
    y = (y - mean) * lax.rsqrt(var + BN_EPS) * bn[0:1, :] + bn[1:2, :]
    return jnp.maximum(y, 0.0)


# ------------------------- Pallas kernels ----------------------------------
def _prelude_kernel(x_ref, w1_ref, bn1_ref, w2_ref, bn2_ref, lw_ref, lb_ref,
                    h2_ref, xxnew_ref):
    """Single-launch fused: h2 = relu(bn2(relu(bn1(x@W1^T))@W2^T)),
    xx_new = x @ lin_W^T + lin_b.  All weights resident in VMEM (~9.3 MiB)."""
    x = x_ref[...]                                              # (B, 256)
    h1 = _bn_relu(_nk_dot(x, w1_ref[...]), bn1_ref[...])        # (B, 1024)
    h2_ref[...] = _bn_relu(_nk_dot(h1, w2_ref[...]), bn2_ref[...])   # (B, 2048)
    # 'embed content force': xx.view(2,-1) == xxx since B is hard-coded to 2.
    xxnew_ref[...] = _nk_dot(x, lw_ref[...]) + lb_ref[...]      # (B, 256)


def _fc3_kernel(h2_ref, w_ref, b_ref, o_ref):
    """One contiguous (TILE_N, K) weight tile of fc3: o = h2 @ W_tile^T + b."""
    o_ref[...] = _nk_dot(h2_ref[...], w_ref[...]) + b_ref[...]


# ------------------------- kernel wrappers ---------------------------------
def _mlp_prelude(xxx, p):
    return pl.pallas_call(
        _prelude_kernel,
        out_shape=(jax.ShapeDtypeStruct((BATCH, FC_HIDDEN2), jnp.float32),
                   jax.ShapeDtypeStruct((BATCH, D_IN), jnp.float32)),
        compiler_params=pltpu.CompilerParams(
            vmem_limit_bytes=32 * 1024 * 1024),
    )(xxx, p["fc1_wT"], p["bn1"], p["fc2_wT"], p["bn2"],
      p["lin_wT"], p["lin_b"])


def _fc3_streamed(h2, p):
    """Weight-streaming fc3: grid over contiguous 512-wide output tiles."""
    out = pl.pallas_call(
        _fc3_kernel,
        out_shape=jax.ShapeDtypeStruct((BATCH, FC_OUT_PAD), jnp.float32),
        grid_spec=pltpu.PrefetchScalarGridSpec(
            num_scalar_prefetch=0,
            grid=(FC_OUT_PAD // TILE_N,),                        # 12 even steps
            in_specs=[
                pl.BlockSpec((BATCH, FC_HIDDEN2), lambda j: (0, 0)),   # h2 resident
                pl.BlockSpec((TILE_N, FC_HIDDEN2), lambda j: (j, 0)),  # contiguous W tile
                pl.BlockSpec((1, TILE_N), lambda j: (0, j)),           # bias tile
            ],
            out_specs=pl.BlockSpec((BATCH, TILE_N), lambda j: (0, j)),
        ),
        compiler_params=pltpu.CompilerParams(
            dimension_semantics=("parallel",),                   # shards on v7x
            vmem_limit_bytes=32 * 1024 * 1024),
    )(h2, p["fc3_wT"], p["fc3_b"])
    return out[:, :FC_OUT]


# ------------------------- parameters --------------------------------------
def _linear_init(key, fan_in, fan_out):
    """PyTorch nn.Linear default init; weight kept in PyTorch (out, in) layout."""
    kw, kb = jax.random.split(key)
    bound = 1.0 / math.sqrt(fan_in)
    w = jax.random.uniform(kw, (fan_out, fan_in), jnp.float32, -bound, bound)
    b = jax.random.uniform(kb, (fan_out,), jnp.float32, -bound, bound)
    return w, b


def init_params(key):
    keys = jax.random.split(key, 6)
    p = {}
    # nn.Embedding default init: N(0, 1)
    p["embed"] = jax.random.normal(keys[0], (VOCAB_SIZE, EMBEDDING_SIZE),
                                   jnp.float32)

    w1, b1 = _linear_init(keys[1], D_IN, FC_HIDDEN1)
    w2, b2 = _linear_init(keys[2], FC_HIDDEN1, FC_HIDDEN2)
    w3, b3 = _linear_init(keys[3], FC_HIDDEN2, FC_OUT)
    lw, lb = _linear_init(keys[4], D_IN, D_IN)
    lw1, lb1 = _linear_init(keys[5], EMBEDDING_SIZE, D_IN)   # self.linear1 (unused in forward)

    p["fc1_wT"] = w1                                         # (1024, 256)  (N,K)
    p["fc2_wT"] = w2                                         # (2048, 1024)
    # BN gamma/beta packed into one (2, N) array per layer.
    p["bn1"] = jnp.stack([jnp.ones((FC_HIDDEN1,), jnp.float32),
                          jnp.zeros((FC_HIDDEN1,), jnp.float32)])
    p["bn2"] = jnp.stack([jnp.ones((FC_HIDDEN2,), jnp.float32),
                          jnp.zeros((FC_HIDDEN2,), jnp.float32)])
    # fc3 padded ONCE here (outside the hot path) to an even streaming grid.
    p["fc3_wT"] = jnp.pad(w3, ((0, FC_OUT_PAD - FC_OUT), (0, 0)))  # (6144, 2048)
    p["fc3_b"] = jnp.pad(b3, (0, FC_OUT_PAD - FC_OUT)).reshape(1, FC_OUT_PAD)
    p["lin_wT"] = lw                                         # (256, 256)
    p["lin_b"] = lb.reshape(1, D_IN)
    # fc1/fc2 Linear biases are exactly cancelled by BatchNorm's mean
    # subtraction; kept only for parameter parity with the PyTorch module.
    p["fc1_b"] = b1
    p["fc2_b"] = b2
    p["lin1_wT"] = lw1
    p["lin1_b"] = lb1
    return p


# ------------------------- forward ------------------------------------------
def text_encoder_fc_forward(params, x):
    B, L = x.shape
    E = EMBEDDING_SIZE

    # xx = self.embed(x) -- tiny embedding gather; pure data movement (glue).
    xx = jnp.take(params["embed"], x, axis=0)            # (B, L, E)
    xxx = xx.reshape(B, L * E)                            # (B, 256)

    # Launch 1: fc1+BN+ReLU, fc2+BN+ReLU, and the 'embed content force' linear.
    h2, xx_new_flat = _mlp_prelude(xxx, params)
    xx_new = xx_new_flat.reshape(B, L, E)

    # Launch 2: weight-streamed fc3 -> (B, 5440).
    out = _fc3_streamed(h2, params)

    # Build final_res (repeat / concat / permute: pure data movement, glue).
    ts = xx_new.shape[1]
    width_reps = max(1, IMAGE_WIDTH // ts)
    repeated = jnp.repeat(xx_new, width_reps, axis=1)     # (B, ts*width_reps, E)
    pieces = [repeated]
    padding_reps = IMAGE_WIDTH % ts
    if padding_reps:
        pad_embed = params["embed"][2]                    # embedding of padding char id 2
        pieces.append(jnp.broadcast_to(pad_embed, (B, padding_reps, E)))
    res = jnp.concatenate(pieces, axis=1)                 # (B, W, E)
    res = jnp.transpose(res, (0, 2, 1))[:, :, None, :]    # (B, E, 1, W)
    final_res = jnp.broadcast_to(
        res, (B, E, IMAGE_HEIGHT, res.shape[-1]))         # cat([res]*H, dim=2)
    return out, final_res


# ------------------------- main ----------------------------------------------
if __name__ == "__main__":
    key = jax.random.PRNGKey(0)
    pkey, xkey = jax.random.split(key)
    params = init_params(pkey)
    x = jax.random.randint(xkey, (BATCH, TEXT_MAX_LEN), 0, VOCAB_SIZE,
                           dtype=jnp.int32)

    out, final_res = jax.jit(text_encoder_fc_forward)(params, x)
    jax.block_until_ready((out, final_res))

    W_expected = (TEXT_MAX_LEN * max(1, IMAGE_WIDTH // TEXT_MAX_LEN)
                  + IMAGE_WIDTH % TEXT_MAX_LEN)
    assert out.shape == (BATCH, FC_OUT), out.shape
    assert final_res.shape == (BATCH, EMBEDDING_SIZE, IMAGE_HEIGHT, W_expected), \
        final_res.shape
    assert bool(jnp.all(jnp.isfinite(out))) and bool(jnp.all(jnp.isfinite(final_res)))
    print("KERNEL_OK")
</pallas_src>

<mosaic_0001>
module attributes {stable_mosaic.version = 11 : i64} {
  func.func @_prelude_kernel(%arg0: memref<2x256xf32, #tpu.memory_space<vmem>>, %arg1: memref<1024x256xf32, #tpu.memory_space<vmem>>, %arg2: memref<2x1024xf32, #tpu.memory_space<vmem>>, %arg3: memref<2048x1024xf32, #tpu.memory_space<vmem>>, %arg4: memref<2x2048xf32, #tpu.memory_space<vmem>>, %arg5: memref<256x256xf32, #tpu.memory_space<vmem>>, %arg6: memref<1x256xf32, #tpu.memory_space<vmem>>, %arg7: memref<2x2048xf32, #tpu.memory_space<vmem>>, %arg8: memref<2x256xf32, #tpu.memory_space<vmem>>) attributes {dimension_semantics = [], scalar_prefetch = 0 : i64, scratch_operands = 0 : i64, tpu.core_type = #tpu.core_type<tc>} {
    %c0 = arith.constant 0 : index
    %c0_0 = arith.constant 0 : index
    %0 = vector.load %arg0[%c0, %c0_0] : memref<2x256xf32, #tpu.memory_space<vmem>>, vector<2x256xf32>
    %c0_1 = arith.constant 0 : index
    %c0_2 = arith.constant 0 : index
    %1 = vector.load %arg1[%c0_1, %c0_2] : memref<1024x256xf32, #tpu.memory_space<vmem>>, vector<1024x256xf32>
    %cst = arith.constant dense<0.000000e+00> : vector<2x1024xf32>
    %2 = tpu.matmul %0, %1, %cst {dimension_numbers = #tpu.dot_dimension_numbers<[1], [1], [0], [0], [0, 0, 1, 0], [], []>} : vector<2x256xf32>, vector<1024x256xf32>, vector<2x1024xf32> -> vector<2x1024xf32>
    %c0_3 = arith.constant 0 : index
    %c0_4 = arith.constant 0 : index
    %3 = vector.load %arg2[%c0_3, %c0_4] : memref<2x1024xf32, #tpu.memory_space<vmem>>, vector<2x1024xf32>
    %cst_5 = arith.constant dense<0.000000e+00> : vector<1024xf32>
    %4 = vector.multi_reduction <add>, %2, %cst_5 [0] : vector<2x1024xf32> to vector<1024xf32>
    %5 = vector.shape_cast %4 : vector<1024xf32> to vector<1x1024xf32>
    %cst_6 = arith.constant 2.000000e+00 : f32
    %6 = vector.broadcast %cst_6 : f32 to vector<1x1024xf32>
    %7 = arith.divf %5, %6 : vector<1x1024xf32>
    %8 = vector.broadcast %7 : vector<1x1024xf32> to vector<2x1024xf32>
    %9 = arith.subf %2, %8 : vector<2x1024xf32>
    %10 = arith.mulf %9, %9 : vector<2x1024xf32>
    %cst_7 = arith.constant dense<0.000000e+00> : vector<1024xf32>
    %11 = vector.multi_reduction <add>, %10, %cst_7 [0] : vector<2x1024xf32> to vector<1024xf32>
    %12 = vector.shape_cast %11 : vector<1024xf32> to vector<1x1024xf32>
    %cst_8 = arith.constant 2.000000e+00 : f32
    %13 = vector.broadcast %cst_8 : f32 to vector<1x1024xf32>
    %14 = arith.divf %12, %13 : vector<1x1024xf32>
    %15 = vector.broadcast %7 : vector<1x1024xf32> to vector<2x1024xf32>
    %16 = arith.subf %2, %15 : vector<2x1024xf32>
    %cst_9 = arith.constant 9.99999974E-6 : f32
    %17 = vector.broadcast %cst_9 : f32 to vector<1x1024xf32>
    %18 = arith.addf %14, %17 : vector<1x1024xf32>
    %19 = math.rsqrt %18 : vector<1x1024xf32>
    %20 = vector.broadcast %19 : vector<1x1024xf32> to vector<2x1024xf32>
    %21 = arith.mulf %16, %20 : vector<2x1024xf32>
    %22 = vector.extract_strided_slice %3 {offsets = [0, 0], sizes = [1, 1024], strides = [1, 1]} : vector<2x1024xf32> to vector<1x1024xf32>
    %23 = vector.broadcast %22 : vector<1x1024xf32> to vector<2x1024xf32>
    %24 = arith.mulf %21, %23 : vector<2x1024xf32>
    %25 = vector.extract_strided_slice %3 {offsets = [1, 0], sizes = [1, 1024], strides = [1, 1]} : vector<2x1024xf32> to vector<1x1024xf32>
    %26 = vector.broadcast %25 : vector<1x1024xf32> to vector<2x1024xf32>
    %27 = arith.addf %24, %26 : vector<2x1024xf32>
    %cst_10 = arith.constant 0.000000e+00 : f32
    %28 = vector.broadcast %cst_10 : f32 to vector<2x1024xf32>
    %29 = arith.maximumf %27, %28 : vector<2x1024xf32>
    %c0_11 = arith.constant 0 : index
    %c0_12 = arith.constant 0 : index
    %30 = vector.load %arg3[%c0_11, %c0_12] : memref<2048x1024xf32, #tpu.memory_space<vmem>>, vector<2048x1024xf32>
    %cst_13 = arith.constant dense<0.000000e+00> : vector<2x2048xf32>
    %31 = tpu.matmul %29, %30, %cst_13 {dimension_numbers = #tpu.dot_dimension_numbers<[1], [1], [0], [0], [0, 0, 1, 0], [], []>} : vector<2x1024xf32>, vector<2048x1024xf32>, vector<2x2048xf32> -> vector<2x2048xf32>
    %c0_14 = arith.constant 0 : index
    %c0_15 = arith.constant 0 : index
    %32 = vector.load %arg4[%c0_14, %c0_15] : memref<2x2048xf32, #tpu.memory_space<vmem>>, vector<2x2048xf32>
    %cst_16 = arith.constant dense<0.000000e+00> : vector<2048xf32>
    %33 = vector.multi_reduction <add>, %31, %cst_16 [0] : vector<2x2048xf32> to vector<2048xf32>
    %34 = vector.shape_cast %33 : vector<2048xf32> to vector<1x2048xf32>
    %cst_17 = arith.constant 2.000000e+00 : f32
    %35 = vector.broadcast %cst_17 : f32 to vector<1x2048xf32>
    %36 = arith.divf %34, %35 : vector<1x2048xf32>
    %37 = vector.broadcast %36 : vector<1x2048xf32> to vector<2x2048xf32>
    %38 = arith.subf %31, %37 : vector<2x2048xf32>
    %39 = arith.mulf %38, %38 : vector<2x2048xf32>
    %cst_18 = arith.constant dense<0.000000e+00> : vector<2048xf32>
    %40 = vector.multi_reduction <add>, %39, %cst_18 [0] : vector<2x2048xf32> to vector<2048xf32>
    %41 = vector.shape_cast %40 : vector<2048xf32> to vector<1x2048xf32>
    %cst_19 = arith.constant 2.000000e+00 : f32
    %42 = vector.broadcast %cst_19 : f32 to vector<1x2048xf32>
    %43 = arith.divf %41, %42 : vector<1x2048xf32>
    %44 = vector.broadcast %36 : vector<1x2048xf32> to vector<2x2048xf32>
    %45 = arith.subf %31, %44 : vector<2x2048xf32>
    %cst_20 = arith.constant 9.99999974E-6 : f32
    %46 = vector.broadcast %cst_20 : f32 to vector<1x2048xf32>
    %47 = arith.addf %43, %46 : vector<1x2048xf32>
    %48 = math.rsqrt %47 : vector<1x2048xf32>
    %49 = vector.broadcast %48 : vector<1x2048xf32> to vector<2x2048xf32>
    %50 = arith.mulf %45, %49 : vector<2x2048xf32>
    %51 = vector.extract_strided_slice %32 {offsets = [0, 0], sizes = [1, 2048], strides = [1, 1]} : vector<2x2048xf32> to vector<1x2048xf32>
    %52 = vector.broadcast %51 : vector<1x2048xf32> to vector<2x2048xf32>
    %53 = arith.mulf %50, %52 : vector<2x2048xf32>
    %54 = vector.extract_strided_slice %32 {offsets = [1, 0], sizes = [1, 2048], strides = [1, 1]} : vector<2x2048xf32> to vector<1x2048xf32>
    %55 = vector.broadcast %54 : vector<1x2048xf32> to vector<2x2048xf32>
    %56 = arith.addf %53, %55 : vector<2x2048xf32>
    %cst_21 = arith.constant 0.000000e+00 : f32
    %57 = vector.broadcast %cst_21 : f32 to vector<2x2048xf32>
    %58 = arith.maximumf %56, %57 : vector<2x2048xf32>
    %c0_22 = arith.constant 0 : index
    %c0_23 = arith.constant 0 : index
    %59 = vector.load %arg7[%c0_22, %c0_23] : memref<2x2048xf32, #tpu.memory_space<vmem>>, vector<2x2048xf32>
    tpu.vector_store %arg7[%c0_22, %c0_23], %58 {strides = array<i32>} : memref<2x2048xf32, #tpu.memory_space<vmem>>, vector<2x2048xf32>,
    %c0_24 = arith.constant 0 : index
    %c0_25 = arith.constant 0 : index
    %60 = vector.load %arg5[%c0_24, %c0_25] : memref<256x256xf32, #tpu.memory_space<vmem>>, vector<256x256xf32>
    %cst_26 = arith.constant dense<0.000000e+00> : vector<2x256xf32>
    %61 = tpu.matmul %0, %60, %cst_26 {dimension_numbers = #tpu.dot_dimension_numbers<[1], [1], [0], [0], [0, 0, 1, 0], [], []>} : vector<2x256xf32>, vector<256x256xf32>, vector<2x256xf32> -> vector<2x256xf32>
    %c0_27 = arith.constant 0 : index
    %c0_28 = arith.constant 0 : index
    %62 = vector.load %arg6[%c0_27, %c0_28] : memref<1x256xf32, #tpu.memory_space<vmem>>, vector<1x256xf32>
    %63 = vector.broadcast %62 : vector<1x256xf32> to vector<2x256xf32>
    %64 = arith.addf %61, %63 : vector<2x256xf32>
    %c0_29 = arith.constant 0 : index
    %c0_30 = arith.constant 0 : index
    %65 = vector.load %arg8[%c0_29, %c0_30] : memref<2x256xf32, #tpu.memory_space<vmem>>, vector<2x256xf32>
    tpu.vector_store %arg8[%c0_29, %c0_30], %64 {strides = array<i32>} : memref<2x256xf32, #tpu.memory_space<vmem>>, vector<2x256xf32>,
    return
  }
}

module attributes {stable_mosaic.version = 11 : i64} {
  func.func @_fc3_kernel(%arg0: i32, %arg1: memref<2x2048xf32, #tpu.memory_space<vmem>>, %arg2: memref<512x2048xf32, #tpu.memory_space<vmem>>, %arg3: memref<1x512xf32, #tpu.memory_space<vmem>>, %arg4: memref<2x512xf32, #tpu.memory_space<vmem>>) attributes {dimension_semantics = [#tpu.dimension_semantics<parallel>], iteration_bounds = array<i64: 12>, scalar_prefetch = 0 : i64, scratch_operands = 0 : i64, tpu.core_type = #tpu.core_type<tc>, window_params = [{pipeline_mode = #tpu.pipeline_mode<synchronous>, transform_indices = @transform_0, window_bounds = array<i64: 2, 2048>}, {transform_indices = @transform_1, window_bounds = array<i64: 512, 2048>}, {transform_indices = @transform_2, window_bounds = array<i64: 1, 512>}, {transform_indices = @transform_3, window_bounds = array<i64: 2, 512>}]} {
    %c0 = arith.constant 0 : index
    %c0_0 = arith.constant 0 : index
    %0 = vector.load %arg1[%c0, %c0_0] : memref<2x2048xf32, #tpu.memory_space<vmem>>, vector<2x2048xf32>
    %c0_1 = arith.constant 0 : index
    %c0_2 = arith.constant 0 : index
    %1 = vector.load %arg2[%c0_1, %c0_2] : memref<512x2048xf32, #tpu.memory_space<vmem>>, vector<512x2048xf32>
    %cst = arith.constant dense<0.000000e+00> : vector<2x512xf32>
    %2 = tpu.matmul %0, %1, %cst {dimension_numbers = #tpu.dot_dimension_numbers<[1], [1], [0], [0], [0, 0, 1, 0], [], []>} : vector<2x2048xf32>, vector<512x2048xf32>, vector<2x512xf32> -> vector<2x512xf32>
    %c0_3 = arith.constant 0 : index
    %c0_4 = arith.constant 0 : index
    %3 = vector.load %arg3[%c0_3, %c0_4] : memref<1x512xf32, #tpu.memory_space<vmem>>, vector<1x512xf32>
    %4 = vector.broadcast %3 : vector<1x512xf32> to vector<2x512xf32>
    %5 = arith.addf %2, %4 : vector<2x512xf32>
    %c0_5 = arith.constant 0 : index
    %c0_6 = arith.constant 0 : index
    %6 = vector.load %arg4[%c0_5, %c0_6] : memref<2x512xf32, #tpu.memory_space<vmem>>, vector<2x512xf32>
    tpu.vector_store %arg4[%c0_5, %c0_6], %5 {strides = array<i32>} : memref<2x512xf32, #tpu.memory_space<vmem>>, vector<2x512xf32>,
    return
  }
  func.func @transform_0(%arg0: i32) -> (i32, i32) {
    %c0_i32 = arith.constant 0 : i32
    %c0_i32_0 = arith.constant 0 : i32
    %c0_i32_1 = arith.constant 0 : i32
    return %c0_i32, %c0_i32_0 : i32, i32
  }
  func.func @transform_1(%arg0: i32) -> (i32, i32) {
    %c0_i32 = arith.constant 0 : i32
    %c0_i32_0 = arith.constant 0 : i32
    return %arg0, %c0_i32 : i32, i32
  }
  func.func @transform_2(%arg0: i32) -> (i32, i32) {
    %c0_i32 = arith.constant 0 : i32
    %c0_i32_0 = arith.constant 0 : i32
    return %c0_i32, %arg0 : i32, i32
  }
  func.func @transform_3(%arg0: i32) -> (i32, i32) {
    %c0_i32 = arith.constant 0 : i32
    %c0_i32_0 = arith.constant 0 : i32
    return %c0_i32, %arg0 : i32, i32
  }
}

</mosaic_0001>

<llo_original>
// kernel: text_encoder_fc_forward.2
$region0: #{text_encoder_fc_forward.2}
  #allocation0 [shape = 'u32[]', space=smem, size = 0x4, offset = 0x4, fixed_abs, tag = 'smem constant byte address 0x4 - core index']
  #allocation1 [shape = 'u32[144,128]{1,0:T(1,128)}', space=vmem, size = 0x12000, scoped, tag = 'internal scratch']
  %s0 = inlined_call_operand.vmem [shape: f32[2,256], index: 0, kind: input, shape index: {}]
  %s1 = inlined_call_operand.hbm [shape: f32[1024,256], index: 1, kind: input, shape index: {}]
  %s2 = inlined_call_operand.hbm [shape: f32[2,1024], index: 2, kind: input, shape index: {}]
  %s3 = inlined_call_operand.hbm [shape: f32[2048,1024], index: 3, kind: input, shape index: {}]
  %s4 = inlined_call_operand.hbm [shape: f32[2,2048], index: 4, kind: input, shape index: {}]
  %s5 = inlined_call_operand.hbm [shape: f32[256,256], index: 5, kind: input, shape index: {}]
  %s6 = inlined_call_operand.hbm [shape: f32[1,256], index: 6, kind: input, shape index: {}]
  %s7 = inlined_call_operand.vmem [shape: f32[2,2048], index: 7, kind: output, shape index: {0}]
  %s8 = inlined_call_operand.vmem [shape: f32[2,256], index: 8, kind: output, shape index: {1}]
  %9 = xla_tuple %s7, %s8
  %s10 = sld [smem:[#allocation0]]
  $region70: #{text_encoder_fc_forward.2} parent=0
    _
  %s12 = ssub.s32 1, %s10
  %s13 = scalar_select 0, %s12, %s10
  $region1: #{text_encoder_fc_forward.2} parent=0
    #allocation2 [shape = 'u8[1048576]{0}', space=vmem, size = 0x100000, scoped, tag = 'input window, operand 1, single buffered']
    #allocation3 [shape = 's32[1]{0}', space=sflag, size = 0x4, scoped, tag = 'scoped memory for text_encoder_fc_forward.2']
    #allocation4 [shape = 'u8[8192]{0}', space=vmem, size = 0x2000, scoped, tag = 'input window, operand 2, single buffered']
    #allocation5 [shape = 's32[1]{0}', space=sflag, size = 0x4, scoped, tag = 'scoped memory for text_encoder_fc_forward.2']
    #allocation6 [shape = 'u8[8388608]{0}', space=vmem, size = 0x800000, scoped, tag = 'input window, operand 3, single buffered']
    #allocation7 [shape = 'u8[16384]{0}', space=vmem, size = 0x4000, scoped, tag = 'input window, operand 4, single buffered']
    #allocation8 [shape = 's32[1]{0}', space=sflag, size = 0x4, scoped, tag = 'scoped memory for text_encoder_fc_forward.2']
    #allocation9 [shape = 'u8[262144]{0}', space=vmem, size = 0x40000, scoped, tag = 'input window, operand 5, single buffered']
    #allocation10 [shape = 'u8[1024]{0}', space=vmem, size = 0x400, scoped, tag = 'input window, operand 6, single buffered']
    #allocation11 [shape = 's32[1]{0}', space=sflag, size = 0x4, scoped, tag = 'scoped memory for text_encoder_fc_forward.2']
    %14 = vsyncpa [#allocation3], 0
    %15 = vsyncpa [#allocation5], 0
    %16 = vsyncpa [#allocation8], 0
    %17 = vsyncpa [#allocation11], 0
    // Predicated region
    $region2: #{text_encoder_fc_forward.2} parent=1 // pred_check
      _
    $region3: #{text_encoder_fc_forward.2} parent=1 // pred_check_branch
      %19 = sbr.rel (0) target = $region5
    $region4: #{text_encoder_fc_forward.2} parent=1 // pred_region
      _
    $region5: #{text_encoder_fc_forward.2} parent=1 // pred_fallthru
      _
    // Predicated region
    $region6: #{text_encoder_fc_forward.2} parent=1 // pred_check
      _
    $region7: #{text_encoder_fc_forward.2} parent=1 // pred_check_branch
      %21 = sbr.rel (0) target = $region9
    $region8: #{text_encoder_fc_forward.2} parent=1 // pred_region
      %s23 = ssub.s32 32768, 32768
      %24 = vsyncadd [#allocation3], %s23
      %s25 = sshll.u32 [#allocation2], 4
      %s26 = int_to_ptr.vmem [resolvable:$true] %s25
      %31 = dma.hbm_to_vmem [thread:$0]  %s1, 32768, %s26, [#allocation3], 256, 256, 16
    $region9: #{text_encoder_fc_forward.2} parent=1 // pred_fallthru
      _
    // Predicated region
    $region10: #{text_encoder_fc_forward.2} parent=1 // pred_check
      _
    $region11: #{text_encoder_fc_forward.2} parent=1 // pred_check_branch
      %33 = sbr.rel (0) target = $region13
    $region12: #{text_encoder_fc_forward.2} parent=1 // pred_region
      %s35 = ssub.s32 256, 256
      %36 = vsyncadd [#allocation5], %s35
      %s38 = sshll.u32 [#allocation4], 4
      %s39 = int_to_ptr.vmem [resolvable:$true] %s38
      %41 = dma.hbm_to_vmem [thread:$0]  %s2, 256, %s39, [#allocation5]
    $region13: #{text_encoder_fc_forward.2} parent=1 // pred_fallthru
      _
    // Predicated region
    $region14: #{text_encoder_fc_forward.2} parent=1 // pred_check
      _
    $region15: #{text_encoder_fc_forward.2} parent=1 // pred_check_branch
      %43 = sbr.rel (0) target = $region17
    $region16: #{text_encoder_fc_forward.2} parent=1 // pred_region
      %s45 = ssub.s32 262144, 262144
      %46 = vsyncadd [#allocation5], %s45
      %s47 = sshll.u32 [#allocation6], 4
      %s48 = int_to_ptr.vmem [resolvable:$true] %s47
      %53 = dma.hbm_to_vmem [thread:$0]  %s3, 262144, %s48, [#allocation5], 1024, 1024, 64
    $region17: #{text_encoder_fc_forward.2} parent=1 // pred_fallthru
      _
    // Predicated region
    $region18: #{text_encoder_fc_forward.2} parent=1 // pred_check
      _
    $region19: #{text_encoder_fc_forward.2} parent=1 // pred_check_branch
      %55 = sbr.rel (0) target = $region21
    $region20: #{text_encoder_fc_forward.2} parent=1 // pred_region
      %s57 = ssub.s32 512, 512
      %58 = vsyncadd [#allocation8], %s57
      %s60 = sshll.u32 [#allocation7], 4
      %s61 = int_to_ptr.vmem [resolvable:$true] %s60
      %63 = dma.hbm_to_vmem [thread:$0]  %s4, 512, %s61, [#allocation8]
    $region21: #{text_encoder_fc_forward.2} parent=1 // pred_fallthru
      _
    // Predicated region
    $region22: #{text_encoder_fc_forward.2} parent=1 // pred_check
      _
    $region23: #{text_encoder_fc_forward.2} parent=1 // pred_check_branch
      %65 = sbr.rel (0) target = $region25
    $region24: #{text_encoder_fc_forward.2} parent=1 // pred_region
      %s67 = ssub.s32 8192, 8192
      %68 = vsyncadd [#allocation8], %s67
      %s69 = sshll.u32 [#allocation9], 4
      %s70 = int_to_ptr.vmem [resolvable:$true] %s69
      %75 = dma.hbm_to_vmem [thread:$0]  %s5, 8192, %s70, [#allocation8], 256, 256, 16
    $region25: #{text_encoder_fc_forward.2} parent=1 // pred_fallthru
      _
    // Predicated region
    $region26: #{text_encoder_fc_forward.2} parent=1 // pred_check
      _
    $region27: #{text_encoder_fc_forward.2} parent=1 // pred_check_branch
      %77 = sbr.rel (0) target = $region29
    $region28: #{text_encoder_fc_forward.2} parent=1 // pred_region
      %s79 = ssub.s32 32, 32
      %80 = vsyncadd [#allocation11], %s79
      %s82 = sshll.u32 [#allocation10], 4
      %s83 = int_to_ptr.vmem [resolvable:$true] %s82
      %85 = dma.hbm_to_vmem [thread:$0]  %s6, 32, %s83, [#allocation11]
    $region29: #{text_encoder_fc_forward.2} parent=1 // pred_fallthru
      _
    // Predicated region
    $region30: #{text_encoder_fc_forward.2} parent=1 // pred_check
      _
    $region31: #{text_encoder_fc_forward.2} parent=1 // pred_check_branch
      %87 = sbr.rel (0) target = $region33
    $region32: #{text_encoder_fc_forward.2} parent=1 // pred_region
      %88 = dma.done [#allocation3], 32768
    $region33: #{text_encoder_fc_forward.2} parent=1 // pred_fallthru
      _
    // Predicated region
    $region34: #{text_encoder_fc_forward.2} parent=1 // pred_check
      _
    $region35: #{text_encoder_fc_forward.2} parent=1 // pred_check_branch
      %90 = sbr.rel (0) target = $region37
    $region36: #{text_encoder_fc_forward.2} parent=1 // pred_region
      %91 = dma.done [#allocation5], 256
    $region37: #{text_encoder_fc_forward.2} parent=1 // pred_fallthru
      _
    // Predicated region
    $region38: #{text_encoder_fc_forward.2} parent=1 // pred_check
      _
    $region39: #{text_encoder_fc_forward.2} parent=1 // pred_check_branch
      %93 = sbr.rel (0) target = $region41
    $region40: #{text_encoder_fc_forward.2} parent=1 // pred_region
      %94 = dma.done [#allocation5], 262144
    $region41: #{text_encoder_fc_forward.2} parent=1 // pred_fallthru
      _
    // Predicated region
    $region42: #{text_encoder_fc_forward.2} parent=1 // pred_check
      _
    $region43: #{text_encoder_fc_forward.2} parent=1 // pred_check_branch
      %96 = sbr.rel (0) target = $region45
    $region44: #{text_encoder_fc_forward.2} parent=1 // pred_region
      %97 = dma.done [#allocation8], 512
    $region45: #{text_encoder_fc_forward.2} parent=1 // pred_fallthru
      _
    // Predicated region
    $region46: #{text_encoder_fc_forward.2} parent=1 // pred_check
      _
    $region47: #{text_encoder_fc_forward.2} parent=1 // pred_check_branch
      %99 = sbr.rel (0) target = $region49
    $region48: #{text_encoder_fc_forward.2} parent=1 // pred_region
      %100 = dma.done [#allocation8], 8192
    $region49: #{text_encoder_fc_forward.2} parent=1 // pred_fallthru
      _
    // Predicated region
    $region50: #{text_encoder_fc_forward.2} parent=1 // pred_check
      _
    $region51: #{text_encoder_fc_forward.2} parent=1 // pred_check_branch
      %102 = sbr.rel (0) target = $region53
    $region52: #{text_encoder_fc_forward.2} parent=1 // pred_region
      %103 = dma.done [#allocation11], 32
    $region53: #{text_encoder_fc_forward.2} parent=1 // pred_fallthru
      _
    %v104 = vld [vmem:[%s0] sm:$0xf]
    %v105 = vld [vmem:[#allocation2] sm:$0xff]
    %v106 = vld [vmem:[#allocation2 + $0x8] sm:$0xff]
    %v107 = vld [vmem:[#allocation2 + $0x10] sm:$0xff]
    %v108 = vld [vmem:[#allocation2 + $0x18] sm:$0xff]
    %v109 = vld [vmem:[#allocation2 + $0x20] sm:$0xff]
    %v110 = vld [vmem:[#allocation2 + $0x28] sm:$0xff]
    %v111 = vld [vmem:[#allocation2 + $0x30] sm:$0xff]
    %v112 = vld [vmem:[#allocation2 + $0x38] sm:$0xff]
    %v113 = vld [vmem:[#allocation2 + $0x40] sm:$0xff]
    %v114 = vld [vmem:[#allocation2 + $0x48] sm:$0xff]
    %v115 = vld [vmem:[#allocation2 + $0x50] sm:$0xff]
    %v116 = vld [vmem:[#allocation2 + $0x58] sm:$0xff]
    %v117 = vld [vmem:[#allocation2 + $0x60] sm:$0xff]
    %v118 = vld [vmem:[#allocation2 + $0x68] sm:$0xff]
    %v119 = vld [vmem:[#allocation2 + $0x70] sm:$0xff]
    %v120 = vld [vmem:[#allocation2 + $0x78] sm:$0xff]
    %v121 = vld [vmem:[#allocation2 + $0x80] sm:$0xff]
    %v122 = vld [vmem:[#allocation2 + $0x88] sm:$0xff]
    %v123 = vld [vmem:[#allocation2 + $0x90] sm:$0xff]
    %v124 = vld [vmem:[#allocation2 + $0x98] sm:$0xff]
    %v125 = vld [vmem:[#allocation2 + $0xa0] sm:$0xff]
    %v126 = vld [vmem:[#allocation2 + $0xa8] sm:$0xff]
    %v127 = vld [vmem:[#allocation2 + $0xb0] sm:$0xff]
    %v128 = vld [vmem:[#allocation2 + $0xb8] sm:$0xff]
    %v129 = vld [vmem:[#allocation2 + $0xc0] sm:$0xff]
    %v130 = vld [vmem:[#allocation2 + $0xc8] sm:$0xff]
    %v131 = vld [vmem:[#allocation2 + $0xd0] sm:$0xff]
    %v132 = vld [vmem:[#allocation2 + $0xd8] sm:$0xff]
    %v133 = vld [vmem:[#allocation2 + $0xe0] sm:$0xff]
    %v134 = vld [vmem:[#allocation2 + $0xe8] sm:$0xff]
    %v135 = vld [vmem:[#allocation2 + $0xf0] sm:$0xff]
    %v136 = vld [vmem:[#allocation2 + $0xf8] sm:$0xff]
    %v137 = vld [vmem:[#allocation2 + $0x100] sm:$0xff]
    %v138 = vld [vmem:[#allocation2 + $0x108] sm:$0xff]
    %v139 = vld [vmem:[#allocation2 + $0x110] sm:$0xff]
    %v140 = vld [vmem:[#allocation2 + $0x118] sm:$0xff]
    %v141 = vld [vmem:[#allocation2 + $0x120] sm:$0xff]
    %v142 = vld [vmem:[#allocation2 + $0x128] sm:$0xff]
    %v143 = vld [vmem:[#allocation2 + $0x130] sm:$0xff]
    %v144 = vld [vmem:[#allocation2 + $0x138] sm:$0xff]
    %v145 = vld [vmem:[#allocation2 + $0x140] sm:$0xff]
    %v146 = vld [vmem:[#allocation2 + $0x148] sm:$0xff]
    %v147 = vld [vmem:[#allocation2 + $0x150] sm:$0xff]
    %v148 = vld [vmem:[#allocation2 + $0x158] sm:$0xff]
    %v149 = vld [vmem:[#allocation2 + $0x160] sm:$0xff]
    %v150 = vld [vmem:[#allocation2 + $0x168] sm:$0xff]
    %v151 = vld [vmem:[#allocation2 + $0x170] sm:$0xff]
    %v152 = vld [vmem:[#allocation2 + $0x178] sm:$0xff]
    %v153 = vld [vmem:[#allocation2 + $0x180] sm:$0xff]
    %v154 = vld [vmem:[#allocation2 + $0x188] sm:$0xff]
    %v155 = vld [vmem:[#allocation2 + $0x190] sm:$0xff]
    %v156 = vld [vmem:[#allocation2 + $0x198] sm:$0xff]
    %v157 = vld [vmem:[#allocation2 + $0x1a0] sm:$0xff]
    %v158 = vld [vmem:[#allocation2 + $0x1a8] sm:$0xff]
    %v159 = vld [vmem:[#allocation2 + $0x1b0] sm:$0xff]
    %v160 = vld [vmem:[#allocation2 + $0x1b8] sm:$0xff]
    %v161 = vld [vmem:[#allocation2 + $0x1c0] sm:$0xff]
    %v162 = vld [vmem:[#allocation2 + $0x1c8] sm:$0xff]
    %v163 = vld [vmem:[#allocation2 + $0x1d0] sm:$0xff]
    %v164 = vld [vmem:[#allocation2 + $0x1d8] sm:$0xff]
    %v165 = vld [vmem:[#allocation2 + $0x1e0] sm:$0xff]
    %v166 = vld [vmem:[#allocation2 + $0x1e8] sm:$0xff]
    %v167 = vld [vmem:[#allocation2 + $0x1f0] sm:$0xff]
    %v168 = vld [vmem:[#allocation2 + $0x1f8] sm:$0xff]
    %v169 = vld [vmem:[#allocation2 + $0x200] sm:$0xff]
    %v170 = vld [vmem:[#allocation2 + $0x208] sm:$0xff]
    %v171 = vld [vmem:[#allocation2 + $0x210] sm:$0xff]
    %v172 = vld [vmem:[#allocation2 + $0x218] sm:$0xff]
    %v173 = vld [vmem:[#allocation2 + $0x220] sm:$0xff]
    %v174 = vld [vmem:[#allocation2 + $0x228] sm:$0xff]
    %v175 = vld [vmem:[#allocation2 + $0x230] sm:$0xff]
    %v176 = vld [vmem:[#allocation2 + $0x238] sm:$0xff]
    %v177 = vld [vmem:[#allocation2 + $0x240] sm:$0xff]
    %v178 = vld [vmem:[#allocation2 + $0x248] sm:$0xff]
    %v179 = vld [vmem:[#allocation2 + $0x250] sm:$0xff]
    %v180 = vld [vmem:[#allocation2 + $0x258] sm:$0xff]
    %v181 = vld [vmem:[#allocation2 + $0x260] sm:$0xff]
    %v182 = vld [vmem:[#allocation2 + $0x268] sm:$0xff]
    %v183 = vld [vmem:[#allocation2 + $0x270] sm:$0xff]
    %v184 = vld [vmem:[#allocation2 + $0x278] sm:$0xff]
    %v185 = vld [vmem:[#allocation2 + $0x280] sm:$0xff]
    %v186 = vld [vmem:[#allocation2 + $0x288] sm:$0xff]
    %v187 = vld [vmem:[#allocation2 + $0x290] sm:$0xff]
    %v188 = vld [vmem:[#allocation2 + $0x298] sm:$0xff]
    %v189 = vld [vmem:[#allocation2 + $0x2a0] sm:$0xff]
    %v190 = vld [vmem:[#allocation2 + $0x2a8] sm:$0xff]
    %v191 = vld [vmem:[#allocation2 + $0x2b0] sm:$0xff]
    %v192 = vld [vmem:[#allocation2 + $0x2b8] sm:$0xff]
    %v193 = vld [vmem:[#allocation2 + $0x2c0] sm:$0xff]
    %v194 = vld [vmem:[#allocation2 + $0x2c8] sm:$0xff]
    %v195 = vld [vmem:[#allocation2 + $0x2d0] sm:$0xff]
    %v196 = vld [vmem:[#allocation2 + $0x2d8] sm:$0xff]
    %v197 = vld [vmem:[#allocation2 + $0x2e0] sm:$0xff]
    %v198 = vld [vmem:[#allocation2 + $0x2e8] sm:$0xff]
    %v199 = vld [vmem:[#allocation2 + $0x2f0] sm:$0xff]
    %v200 = vld [vmem:[#allocation2 + $0x2f8] sm:$0xff]
    %v201 = vld [vmem:[#allocation2 + $0x300] sm:$0xff]
    %v202 = vld [vmem:[#allocation2 + $0x308] sm:$0xff]
    %v203 = vld [vmem:[#allocation2 + $0x310] sm:$0xff]
    %v204 = vld [vmem:[#allocation2 + $0x318] sm:$0xff]
    %v205 = vld [vmem:[#allocation2 + $0x320] sm:$0xff]
    %v206 = vld [vmem:[#allocation2 + $0x328] sm:$0xff]
    %v207 = vld [vmem:[#allocation2 + $0x330] sm:$0xff]
    %v208 = vld [vmem:[#allocation2 + $0x338] sm:$0xff]
    %v209 = vld [vmem:[#allocation2 + $0x340] sm:$0xff]
    %v210 = vld [vmem:[#allocation2 + $0x348] sm:$0xff]
    %v211 = vld [vmem:[#allocation2 + $0x350] sm:$0xff]
    %v212 = vld [vmem:[#allocation2 + $0x358] sm:$0xff]
    %v213 = vld [vmem:[#allocation2 + $0x360] sm:$0xff]
    %v214 = vld [vmem:[#allocation2 + $0x368] sm:$0xff]
    %v215 = vld [vmem:[#allocation2 + $0x370] sm:$0xff]
    %v216 = vld [vmem:[#allocation2 + $0x378] sm:$0xff]
    %v217 = vld [vmem:[#allocation2 + $0x380] sm:$0xff]
    %v218 = vld [vmem:[#allocation2 + $0x388] sm:$0xff]
    %v219 = vld [vmem:[#allocation2 + $0x390] sm:$0xff]
    %v220 = vld [vmem:[#allocation2 + $0x398] sm:$0xff]
    %v221 = vld [vmem:[#allocation2 + $0x3a0] sm:$0xff]
    %v222 = vld [vmem:[#allocation2 + $0x3a8] sm:$0xff]
    %v223 = vld [vmem:[#allocation2 + $0x3b0] sm:$0xff]
    %v224 = vld [vmem:[#allocation2 + $0x3b8] sm:$0xff]
    %v225 = vld [vmem:[#allocation2 + $0x3c0] sm:$0xff]
    %v226 = vld [vmem:[#allocation2 + $0x3c8] sm:$0xff]
    %v227 = vld [vmem:[#allocation2 + $0x3d0] sm:$0xff]
    %v228 = vld [vmem:[#allocation2 + $0x3d8] sm:$0xff]
    %v229 = vld [vmem:[#allocation2 + $0x3e0] sm:$0xff]
    %v230 = vld [vmem:[#allocation2 + $0x3e8] sm:$0xff]
    %v231 = vld [vmem:[#allocation2 + $0x3f0] sm:$0xff]
    %v232 = vld [vmem:[#allocation2 + $0x3f8] sm:$0xff]
    %v233 = vld [vmem:[#allocation2 + $0x400] sm:$0xff]
    %v234 = vld [vmem:[#allocation2 + $0x408] sm:$0xff]
    %v235 = vld [vmem:[#allocation2 + $0x410] sm:$0xff]
    %v236 = vld [vmem:[#allocation2 + $0x418] sm:$0xff]
    %v237 = vld [vmem:[#allocation2 + $0x420] sm:$0xff]
    %v238 = vld [vmem:[#allocation2 + $0x428] sm:$0xff]
    %v239 = vld [vmem:[#allocation2 + $0x430] sm:$0xff]
    %v240 = vld [vmem:[#allocation2 + $0x438] sm:$0xff]
    %v241 = vld [vmem:[#allocation2 + $0x440] sm:$0xff]
    %v242 = vld [vmem:[#allocation2 + $0x448] sm:$0xff]
    %v243 = vld [vmem:[#allocation2 + $0x450] sm:$0xff]
    %v244 = vld [vmem:[#allocation2 + $0x458] sm:$0xff]
    %v245 = vld [vmem:[#allocation2 + $0x460] sm:$0xff]
    %v246 = vld [vmem:[#allocation2 + $0x468] sm:$0xff]
    %v247 = vld [vmem:[#allocation2 + $0x470] sm:$0xff]
    %v248 = vld [vmem:[#allocation2 + $0x478] sm:$0xff]
    %v249 = vld [vmem:[#allocation2 + $0x480] sm:$0xff]
    %v250 = vld [vmem:[#allocation2 + $0x488] sm:$0xff]
    %v251 = vld [vmem:[#allocation2 + $0x490] sm:$0xff]
    %v252 = vld [vmem:[#allocation2 + $0x498] sm:$0xff]
    %v253 = vld [vmem:[#allocation2 + $0x4a0] sm:$0xff]
    %v254 = vld [vmem:[#allocation2 + $0x4a8] sm:$0xff]
    %v255 = vld [vmem:[#allocation2 + $0x4b0] sm:$0xff]
    %v256 = vld [vmem:[#allocation2 + $0x4b8] sm:$0xff]
    %v257 = vld [vmem:[#allocation2 + $0x4c0] sm:$0xff]
    %v258 = vld [vmem:[#allocation2 + $0x4c8] sm:$0xff]
    %v259 = vld [vmem:[#allocation2 + $0x4d0] sm:$0xff]
    %v260 = vld [vmem:[#allocation2 + $0x4d8] sm:$0xff]
    %v261 = vld [vmem:[#allocation2 + $0x4e0] sm:$0xff]
    %v262 = vld [vmem:[#allocation2 + $0x4e8] sm:$0xff]
    %v263 = vld [vmem:[#allocation2 + $0x4f0] sm:$0xff]
    %v264 = vld [vmem:[#allocation2 + $0x4f8] sm:$0xff]
    %v265 = vld [vmem:[#allocation2 + $0x500] sm:$0xff]
    %v266 = vld [vmem:[#allocation2 + $0x508] sm:$0xff]
    %v267 = vld [vmem:[#allocation2 + $0x510] sm:$0xff]
    %v268 = vld [vmem:[#allocation2 + $0x518] sm:$0xff]
    %v269 = vld [vmem:[#allocation2 + $0x520] sm:$0xff]
    %v270 = vld [vmem:[#allocation2 + $0x528] sm:$0xff]
    %v271 = vld [vmem:[#allocation2 + $0x530] sm:$0xff]
    %v272 = vld [vmem:[#allocation2 + $0x538] sm:$0xff]
    %v273 = vld [vmem:[#allocation2 + $0x540] sm:$0xff]
    %v274 = vld [vmem:[#allocation2 + $0x548] sm:$0xff]
    %v275 = vld [vmem:[#allocation2 + $0x550] sm:$0xff]
    %v276 = vld [vmem:[#allocation2 + $0x558] sm:$0xff]
    %v277 = vld [vmem:[#allocation2 + $0x560] sm:$0xff]
    %v278 = vld [vmem:[#allocation2 + $0x568] sm:$0xff]
    %v279 = vld [vmem:[#allocation2 + $0x570] sm:$0xff]
    %v280 = vld [vmem:[#allocation2 + $0x578] sm:$0xff]
    %v281 = vld [vmem:[#allocation2 + $0x580] sm:$0xff]
    %v282 = vld [vmem:[#allocation2 + $0x588] sm:$0xff]
    %v283 = vld [vmem:[#allocation2 + $0x590] sm:$0xff]
    %v284 = vld [vmem:[#allocation2 + $0x598] sm:$0xff]
    %v285 = vld [vmem:[#allocation2 + $0x5a0] sm:$0xff]
    %v286 = vld [vmem:[#allocation2 + $0x5a8] sm:$0xff]
    %v287 = vld [vmem:[#allocation2 + $0x5b0] sm:$0xff]
    %v288 = vld [vmem:[#allocation2 + $0x5b8] sm:$0xff]
    %v289 = vld [vmem:[#allocation2 + $0x5c0] sm:$0xff]
    %v290 = vld [vmem:[#allocation2 + $0x5c8] sm:$0xff]
    %v291 = vld [vmem:[#allocation2 + $0x5d0] sm:$0xff]
    %v292 = vld [vmem:[#allocation2 + $0x5d8] sm:$0xff]
    %v293 = vld [vmem:[#allocation2 + $0x5e0] sm:$0xff]
    %v294 = vld [vmem:[#allocation2 + $0x5e8] sm:$0xff]
    %v295 = vld [vmem:[#allocation2 + $0x5f0] sm:$0xff]
    %v296 = vld [vmem:[#allocation2 + $0x5f8] sm:$0xff]
    %v297 = vld [vmem:[#allocation2 + $0x600] sm:$0xff]
    %v298 = vld [vmem:[#allocation2 + $0x608] sm:$0xff]
    %v299 = vld [vmem:[#allocation2 + $0x610] sm:$0xff]
    %v300 = vld [vmem:[#allocation2 + $0x618] sm:$0xff]
    %v301 = vld [vmem:[#allocation2 + $0x620] sm:$0xff]
    %v302 = vld [vmem:[#allocation2 + $0x628] sm:$0xff]
    %v303 = vld [vmem:[#allocation2 + $0x630] sm:$0xff]
    %v304 = vld [vmem:[#allocation2 + $0x638] sm:$0xff]
    %v305 = vld [vmem:[#allocation2 + $0x640] sm:$0xff]
    %v306 = vld [vmem:[#allocation2 + $0x648] sm:$0xff]
    %v307 = vld [vmem:[#allocation2 + $0x650] sm:$0xff]
    %v308 = vld [vmem:[#allocation2 + $0x658] sm:$0xff]
    %v309 = vld [vmem:[#allocation2 + $0x660] sm:$0xff]
    %v310 = vld [vmem:[#allocation2 + $0x668] sm:$0xff]
    %v311 = vld [vmem:[#allocation2 + $0x670] sm:$0xff]
    %v312 = vld [vmem:[#allocation2 + $0x678] sm:$0xff]
    %v313 = vld [vmem:[#allocation2 + $0x680] sm:$0xff]
    %v314 = vld [vmem:[#allocation2 + $0x688] sm:$0xff]
    %v315 = vld [vmem:[#allocation2 + $0x690] sm:$0xff]
    %v316 = vld [vmem:[#allocation2 + $0x698] sm:$0xff]
    %v317 = vld [vmem:[#allocation2 + $0x6a0] sm:$0xff]
    %v318 = vld [vmem:[#allocation2 + $0x6a8] sm:$0xff]
    %v319 = vld [vmem:[#allocation2 + $0x6b0] sm:$0xff]
    %v320 = vld [vmem:[#allocation2 + $0x6b8] sm:$0xff]
    %v321 = vld [vmem:[#allocation2 + $0x6c0] sm:$0xff]
    %v322 = vld [vmem:[#allocation2 + $0x6c8] sm:$0xff]
    %v323 = vld [vmem:[#allocation2 + $0x6d0] sm:$0xff]
    %v324 = vld [vmem:[#allocation2 + $0x6d8] sm:$0xff]
    %v325 = vld [vmem:[#allocation2 + $0x6e0] sm:$0xff]
    %v326 = vld [vmem:[#allocation2 + $0x6e8] sm:$0xff]
    %v327 = vld [vmem:[#allocation2 + $0x6f0] sm:$0xff]
    %v328 = vld [vmem:[#allocation2 + $0x6f8] sm:$0xff]
    %v329 = vld [vmem:[#allocation2 + $0x700] sm:$0xff]
    %v330 = vld [vmem:[#allocation2 + $0x708] sm:$0xff]
    %v331 = vld [vmem:[#allocation2 + $0x710] sm:$0xff]
    %v332 = vld [vmem:[#allocation2 + $0x718] sm:$0xff]
    %v333 = vld [vmem:[#allocation2 + $0x720] sm:$0xff]
    %v334 = vld [vmem:[#allocation2 + $0x728] sm:$0xff]
    %v335 = vld [vmem:[#allocation2 + $0x730] sm:$0xff]
    %v336 = vld [vmem:[#allocation2 + $0x738] sm:$0xff]
    %v337 = vld [vmem:[#allocation2 + $0x740] sm:$0xff]
    %v338 = vld [vmem:[#allocation2 + $0x748] sm:$0xff]
    %v339 = vld [vmem:[#allocation2 + $0x750] sm:$0xff]
    %v340 = vld [vmem:[#allocation2 + $0x758] sm:$0xff]
    %v341 = vld [vmem:[#allocation2 + $0x760] sm:$0xff]
    %v342 = vld [vmem:[#allocation2 + $0x768] sm:$0xff]
    %v343 = vld [vmem:[#allocation2 + $0x770] sm:$0xff]
    %v344 = vld [vmem:[#allocation2 + $0x778] sm:$0xff]
    %v345 = vld [vmem:[#allocation2 + $0x780] sm:$0xff]
    %v346 = vld [vmem:[#allocation2 + $0x788] sm:$0xff]
    %v347 = vld [vmem:[#allocation2 + $0x790] sm:$0xff]
    %v348 = vld [vmem:[#allocation2 + $0x798] sm:$0xff]
    %v349 = vld [vmem:[#allocation2 + $0x7a0] sm:$0xff]
    %v350 = vld [vmem:[#allocation2 + $0x7a8] sm:$0xff]
    %v351 = vld [vmem:[#allocation2 + $0x7b0] sm:$0xff]
    %v352 = vld [vmem:[#allocation2 + $0x7b8] sm:$0xff]
    %v353 = vld [vmem:[#allocation2 + $0x7c0] sm:$0xff]
    %v354 = vld [vmem:[#allocation2 + $0x7c8] sm:$0xff]
    %v355 = vld [vmem:[#allocation2 + $0x7d0] sm:$0xff]
    %v356 = vld [vmem:[#allocation2 + $0x7d8] sm:$0xff]
    %v357 = vld [vmem:[#allocation2 + $0x7e0] sm:$0xff]
    %v358 = vld [vmem:[#allocation2 + $0x7e8] sm:$0xff]
    %v359 = vld [vmem:[#allocation2 + $0x7f0] sm:$0xff]
    %v360 = vld [vmem:[#allocation2 + $0x7f8] sm:$0xff]
    %v363 = vunpack.c.l.s4 1983009808
    %v364 = vunpack.c.0.s8 %v363
    %v365 = vlaneseq
    %v366 = vshrl.u32 %v365, 7
    %v367 = vsub.s32 %v364, %v366
    %v368 = vrot.slane %v104, %v367
    %v369 = vcombine.high %v368, %v368
    %372 = vmatprep.subr.mxu0 %v136
    %373 = vmatpush1.xpose.msra.mxu0 %v135
    %374 = vmatprep.subr.mxu0 %v134
    %375 = vmatpush1.xpose.msra.mxu0 %v133
    %376 = vmatprep.subr.mxu0 %v132
    %377 = vmatpush1.xpose.msra.mxu0 %v131
    %378 = vmatprep.subr.mxu0 %v130
    %379 = vmatpush1.xpose.msra.mxu0 %v129
    %380 = vmatprep.subr.mxu0 %v128
    %381 = vmatpush1.xpose.msra.mxu0 %v127
    %382 = vmatprep.subr.mxu0 %v126
    %383 = vmatpush1.xpose.msra.mxu0 %v125
    %384 = vmatprep.subr.mxu0 %v124
    %385 = vmatpush1.xpose.msra.mxu0 %v123
    %386 = vmatprep.subr.mxu0 %v122
    %387 = vmatpush1.xpose.msra.mxu0 %v121
    %388 = vmatprep.subr.mxu0 %v120
    %389 = vmatpush1.xpose.msra.mxu0 %v119
    %390 = vmatprep.subr.mxu0 %v118
    %391 = vmatpush1.xpose.msra.mxu0 %v117
    %392 = vmatprep.subr.mxu0 %v116
    %393 = vmatpush1.xpose.msra.mxu0 %v115
    %394 = vmatprep.subr.mxu0 %v114
    %395 = vmatpush1.xpose.msra.mxu0 %v113
    %396 = vmatprep.subr.mxu0 %v112
    %397 = vmatpush1.xpose.msra.mxu0 %v111
    %398 = vmatprep.subr.mxu0 %v110
    %399 = vmatpush1.xpose.msra.mxu0 %v109
    %400 = vmatprep.subr.mxu0 %v108
    %401 = vmatpush1.xpose.msra.mxu0 %v107
    %402 = vmatprep.subr.mxu0 %v106
    %403 = vmatpush1.xpose.msra.mxu0 %v105
    %404 = vmatprep.subr.mxu0 %v168
    %405 = vmatpush2.xpose.msra.mxu0 %v167
    %406 = vmatprep.subr.mxu0 %v166
    %407 = vmatpush2.xpose.msra.mxu0 %v165
    %408 = vmatprep.subr.mxu0 %v164
    %409 = vmatpush2.xpose.msra.mxu0 %v163
    %410 = vmatprep.subr.mxu0 %v162
    %411 = vmatpush2.xpose.msra.mxu0 %v161
    %412 = vmatprep.subr.mxu0 %v160
    %413 = vmatpush2.xpose.msra.mxu0 %v159
    %414 = vmatprep.subr.mxu0 %v158
    %415 = vmatpush2.xpose.msra.mxu0 %v157
    %416 = vmatprep.subr.mxu0 %v156
    %417 = vmatpush2.xpose.msra.mxu0 %v155
    %418 = vmatprep.subr.mxu0 %v154
    %419 = vmatpush2.xpose.msra.mxu0 %v153
    %420 = vmatprep.subr.mxu0 %v152
    %421 = vmatpush2.xpose.msra.mxu0 %v151
    %422 = vmatprep.subr.mxu0 %v150
    %423 = vmatpush2.xpose.msra.mxu0 %v149
    %424 = vmatprep.subr.mxu0 %v148
    %425 = vmatpush2.xpose.msra.mxu0 %v147
    %426 = vmatprep.subr.mxu0 %v146
    %427 = vmatpush2.xpose.msra.mxu0 %v145
    %428 = vmatprep.subr.mxu0 %v144
    %429 = vmatpush2.xpose.msra.mxu0 %v143
    %430 = vmatprep.subr.mxu0 %v142
    %431 = vmatpush2.xpose.msra.mxu0 %v141
    %432 = vmatprep.subr.mxu0 %v140
    %433 = vmatpush2.xpose.msra.mxu0 %v139
    %434 = vmatprep.subr.mxu0 %v138
    %435 = vmatpush2.xpose.msra.mxu0 %v137
    %436 = vmatprep.mubr.f32.mxu0 %v369
    %437 = vmatmul.mubr.f32.gmra.mxu0 %v368
    %v438 = vpop.f32.mrf.mxu0
    %v439 = vadd.f32 0.0, %v438
    %v440 = vpop.f32.mrf.mxu0
    %v441 = vadd.f32 0.0, %v440
    %442 = vdwg.mxu0
    %443 = vmatprep.subr.mxu0 %v200
    %444 = vmatpush1.xpose.msra.mxu0 %v199
    %445 = vmatprep.subr.mxu0 %v198
    %446 = vmatpush1.xpose.msra.mxu0 %v197
    %447 = vmatprep.subr.mxu0 %v196
    %448 = vmatpush1.xpose.msra.mxu0 %v195
    %449 = vmatprep.subr.mxu0 %v194
    %450 = vmatpush1.xpose.msra.mxu0 %v193
    %451 = vmatprep.subr.mxu0 %v192
    %452 = vmatpush1.xpose.msra.mxu0 %v191
    %453 = vmatprep.subr.mxu0 %v190
    %454 = vmatpush1.xpose.msra.mxu0 %v189
    %455 = vmatprep.subr.mxu0 %v188
    %456 = vmatpush1.xpose.msra.mxu0 %v187
    %457 = vmatprep.subr.mxu0 %v186
    %458 = vmatpush1.xpose.msra.mxu0 %v185
    %459 = vmatprep.subr.mxu0 %v184
    %460 = vmatpush1.xpose.msra.mxu0 %v183
    %461 = vmatprep.subr.mxu0 %v182
    %462 = vmatpush1.xpose.msra.mxu0 %v181
    %463 = vmatprep.subr.mxu0 %v180
    %464 = vmatpush1.xpose.msra.mxu0 %v179
    %465 = vmatprep.subr.mxu0 %v178
    %466 = vmatpush1.xpose.msra.mxu0 %v177
    %467 = vmatprep.subr.mxu0 %v176
    %468 = vmatpush1.xpose.msra.mxu0 %v175
    %469 = vmatprep.subr.mxu0 %v174
    %470 = vmatpush1.xpose.msra.mxu0 %v173
    %471 = vmatprep.subr.mxu0 %v172
    %472 = vmatpush1.xpose.msra.mxu0 %v171
    %473 = vmatprep.subr.mxu0 %v170
    %474 = vmatpush1.xpose.msra.mxu0 %v169
    %475 = vmatprep.subr.mxu0 %v232
    %476 = vmatpush2.xpose.msra.mxu0 %v231
    %477 = vmatprep.subr.mxu0 %v230
    %478 = vmatpush2.xpose.msra.mxu0 %v229
    %479 = vmatprep.subr.mxu0 %v228
    %480 = vmatpush2.xpose.msra.mxu0 %v227
    %481 = vmatprep.subr.mxu0 %v226
    %482 = vmatpush2.xpose.msra.mxu0 %v225
    %483 = vmatprep.subr.mxu0 %v224
    %484 = vmatpush2.xpose.msra.mxu0 %v223
    %485 = vmatprep.subr.mxu0 %v222
    %486 = vmatpush2.xpose.msra.mxu0 %v221
    %487 = vmatprep.subr.mxu0 %v220
    %488 = vmatpush2.xpose.msra.mxu0 %v219
    %489 = vmatprep.subr.mxu0 %v218
    %490 = vmatpush2.xpose.msra.mxu0 %v217
    %491 = vmatprep.subr.mxu0 %v216
    %492 = vmatpush2.xpose.msra.mxu0 %v215
    %493 = vmatprep.subr.mxu0 %v214
    %494 = vmatpush2.xpose.msra.mxu0 %v213
    %495 = vmatprep.subr.mxu0 %v212
    %496 = vmatpush2.xpose.msra.mxu0 %v211
    %497 = vmatprep.subr.mxu0 %v210
    %498 = vmatpush2.xpose.msra.mxu0 %v209
    %499 = vmatprep.subr.mxu0 %v208
    %500 = vmatpush2.xpose.msra.mxu0 %v207
    %501 = vmatprep.subr.mxu0 %v206
    %502 = vmatpush2.xpose.msra.mxu0 %v205
    %503 = vmatprep.subr.mxu0 %v204
    %504 = vmatpush2.xpose.msra.mxu0 %v203
    %505 = vmatprep.subr.mxu0 %v202
    %506 = vmatpush2.xpose.msra.mxu0 %v201
    %507 = vmatprep.mubr.f32.mxu0 %v369
    %508 = vmatmul.mubr.f32.gmra.mxu0 %v368
    %v509 = vpop.f32.mrf.mxu0
    %v510 = vadd.f32 0.0, %v509
    %v511 = vpop.f32.mrf.mxu0
    %v512 = vadd.f32 0.0, %v511
    %513 = vdwg.mxu0
    %514 = vmatprep.subr.mxu0 %v264
    %515 = vmatpush1.xpose.msra.mxu0 %v263
    %516 = vmatprep.subr.mxu0 %v262
    %517 = vmatpush1.xpose.msra.mxu0 %v261
    %518 = vmatprep.subr.mxu0 %v260
    %519 = vmatpush1.xpose.msra.mxu0 %v259
    %520 = vmatprep.subr.mxu0 %v258
    %521 = vmatpush1.xpose.msra.mxu0 %v257
    %522 = vmatprep.subr.mxu0 %v256
    %523 = vmatpush1.xpose.msra.mxu0 %v255
    %524 = vmatprep.subr.mxu0 %v254
    %525 = vmatpush1.xpose.msra.mxu0 %v253
    %526 = vmatprep.subr.mxu0 %v252
    %527 = vmatpush1.xpose.msra.mxu0 %v251
    %528 = vmatprep.subr.mxu0 %v250
    %529 = vmatpush1.xpose.msra.mxu0 %v249
    %530 = vmatprep.subr.mxu0 %v248
    %531 = vmatpush1.xpose.msra.mxu0 %v247
    %532 = vmatprep.subr.mxu0 %v246
    %533 = vmatpush1.xpose.msra.mxu0 %v245
    %534 = vmatprep.subr.mxu0 %v244
    %535 = vmatpush1.xpose.msra.mxu0 %v243
    %536 = vmatprep.subr.mxu0 %v242
    %537 = vmatpush1.xpose.msra.mxu0 %v241
    %538 = vmatprep.subr.mxu0 %v240
    %539 = vmatpush1.xpose.msra.mxu0 %v239
    %540 = vmatprep.subr.mxu0 %v238
    %541 = vmatpush1.xpose.msra.mxu0 %v237
    %542 = vmatprep.subr.mxu0 %v236
    %543 = vmatpush1.xpose.msra.mxu0 %v235
    %544 = vmatprep.subr.mxu0 %v234
    %545 = vmatpush1.xpose.msra.mxu0 %v233
    %546 = vmatprep.subr.mxu0 %v296
    %547 = vmatpush2.xpose.msra.mxu0 %v295
    %548 = vmatprep.subr.mxu0 %v294
    %549 = vmatpush2.xpose.msra.mxu0 %v293
    %550 = vmatprep.subr.mxu0 %v292
    %551 = vmatpush2.xpose.msra.mxu0 %v291
    %552 = vmatprep.subr.mxu0 %v290
    %553 = vmatpush2.xpose.msra.mxu0 %v289
    %554 = vmatprep.subr.mxu0 %v288
    %555 = vmatpush2.xpose.msra.mxu0 %v287
    %556 = vmatprep.subr.mxu0 %v286
    %557 = vmatpush2.xpose.msra.mxu0 %v285
    %558 = vmatprep.subr.mxu0 %v284
    %559 = vmatpush2.xpose.msra.mxu0 %v283
    %560 = vmatprep.subr.mxu0 %v282
    %561 = vmatpush2.xpose.msra.mxu0 %v281
    %562 = vmatprep.subr.mxu0 %v280
    %563 = vmatpush2.xpose.msra.mxu0 %v279
    %564 = vmatprep.subr.mxu0 %v278
    %565 = vmatpush2.xpose.msra.mxu0 %v277
    %566 = vmatprep.subr.mxu0 %v276
    %567 = vmatpush2.xpose.msra.mxu0 %v275
    %568 = vmatprep.subr.mxu0 %v274
    %569 = vmatpush2.xpose.msra.mxu0 %v273
    %570 = vmatprep.subr.mxu0 %v272
    %571 = vmatpush2.xpose.msra.mxu0 %v271
    %572 = vmatprep.subr.mxu0 %v270
    %573 = vmatpush2.xpose.msra.mxu0 %v269
    %574 = vmatprep.subr.mxu0 %v268
    %575 = vmatpush2.xpose.msra.mxu0 %v267
    %576 = vmatprep.subr.mxu0 %v266
    %577 = vmatpush2.xpose.msra.mxu0 %v265
    %578 = vmatprep.mubr.f32.mxu0 %v369
    %579 = vmatmul.mubr.f32.gmra.mxu0 %v368
    %v580 = vpop.f32.mrf.mxu0
    %v581 = vadd.f32 0.0, %v580
    %v582 = vpop.f32.mrf.mxu0
    %v583 = vadd.f32 0.0, %v582
    %584 = vdwg.mxu0
    %585 = vmatprep.subr.mxu0 %v328
    %586 = vmatpush1.xpose.msra.mxu0 %v327
    %587 = vmatprep.subr.mxu0 %v326
    %588 = vmatpush1.xpose.msra.mxu0 %v325
    %589 = vmatprep.subr.mxu0 %v324
    %590 = vmatpush1.xpose.msra.mxu0 %v323
    %591 = vmatprep.subr.mxu0 %v322
    %592 = vmatpush1.xpose.msra.mxu0 %v321
    %593 = vmatprep.subr.mxu0 %v320
    %594 = vmatpush1.xpose.msra.mxu0 %v319
    %595 = vmatprep.subr.mxu0 %v318
    %596 = vmatpush1.xpose.msra.mxu0 %v317
    %597 = vmatprep.subr.mxu0 %v316
    %598 = vmatpush1.xpose.msra.mxu0 %v315
    %599 = vmatprep.subr.mxu0 %v314
    %600 = vmatpush1.xpose.msra.mxu0 %v313
    %601 = vmatprep.subr.mxu0 %v312
    %602 = vmatpush1.xpose.msra.mxu0 %v311
    %603 = vmatprep.subr.mxu0 %v310
    %604 = vmatpush1.xpose.msra.mxu0 %v309
    %605 = vmatprep.subr.mxu0 %v308
    %606 = vmatpush1.xpose.msra.mxu0 %v307
    %607 = vmatprep.subr.mxu0 %v306
    %608 = vmatpush1.xpose.msra.mxu0 %v305
    %609 = vmatprep.subr.mxu0 %v304
    %610 = vmatpush1.xpose.msra.mxu0 %v303
    %611 = vmatprep.subr.mxu0 %v302
    %612 = vmatpush1.xpose.msra.mxu0 %v301
    %613 = vmatprep.subr.mxu0 %v300
    %614 = vmatpush1.xpose.msra.mxu0 %v299
    %615 = vmatprep.subr.mxu0 %v298
    %616 = vmatpush1.xpose.msra.mxu0 %v297
    %617 = vmatprep.subr.mxu0 %v360
    %618 = vmatpush2.xpose.msra.mxu0 %v359
    %619 = vmatprep.subr.mxu0 %v358
    %620 = vmatpush2.xpose.msra.mxu0 %v357
    %621 = vmatprep.subr.mxu0 %v356
    %622 = vmatpush2.xpose.msra.mxu0 %v355
    %623 = vmatprep.subr.mxu0 %v354
    %624 = vmatpush2.xpose.msra.mxu0 %v353
    %625 = vmatprep.subr.mxu0 %v352
    %626 = vmatpush2.xpose.msra.mxu0 %v351
    %627 = vmatprep.subr.mxu0 %v350
    %628 = vmatpush2.xpose.msra.mxu0 %v349
    %629 = vmatprep.subr.mxu0 %v348
    %630 = vmatpush2.xpose.msra.mxu0 %v347
    %631 = vmatprep.subr.mxu0 %v346
    %632 = vmatpush2.xpose.msra.mxu0 %v345
    %633 = vmatprep.subr.mxu0 %v344
    %634 = vmatpush2.xpose.msra.mxu0 %v343
    %635 = vmatprep.subr.mxu0 %v342
    %636 = vmatpush2.xpose.msra.mxu0 %v341
    %637 = vmatprep.subr.mxu0 %v340
    %638 = vmatpush2.xpose.msra.mxu0 %v339
    %639 = vmatprep.subr.mxu0 %v338
    %640 = vmatpush2.xpose.msra.mxu0 %v337
    %641 = vmatprep.subr.mxu0 %v336
    %642 = vmatpush2.xpose.msra.mxu0 %v335
    %643 = vmatprep.subr.mxu0 %v334
    %644 = vmatpush2.xpose.msra.mxu0 %v333
    %645 = vmatprep.subr.mxu0 %v332
    %646 = vmatpush2.xpose.msra.mxu0 %v331
    %647 = vmatprep.subr.mxu0 %v330
    %648 = vmatpush2.xpose.msra.mxu0 %v329
    %649 = vmatprep.mubr.f32.mxu0 %v369
    %650 = vmatmul.mubr.f32.gmra.mxu0 %v368
    %v651 = vpop.f32.mrf.mxu0
    %v652 = vadd.f32 0.0, %v651
    %v653 = vpop.f32.mrf.mxu0
    %v654 = vadd.f32 0.0, %v653
    %655 = vdwg.mxu0
    %v656 = vld [vmem:[#allocation4] sm:$0xff]
    %v657 = vld [vmem:[#allocation4 + $0x8] sm:$0xff]
    %vm658 = vcmask 1041408
    %v659 = vsel %vm658, %v439, 0.0
    %v660 = vrot.slane %v659, 4
    %v661 = vadd.f32 %v659, %v660
    %v662 = vrot.slane %v661, 2
    %v663 = vadd.f32 %v661, %v662
    %v664 = vrot.slane %v663, 1
    %v665 = vadd.f32 %v663, %v664
    %v666 = vsel %vm658, %v441, 0.0
    %v667 = vrot.slane %v666, 4
    %v668 = vadd.f32 %v666, %v667
    %v669 = vrot.slane %v668, 2
    %v670 = vadd.f32 %v668, %v669
    %v671 = vrot.slane %v670, 1
    %v672 = vadd.f32 %v670, %v671
    %v673 = vsel %vm658, %v510, 0.0
    %v674 = vrot.slane %v673, 4
    %v675 = vadd.f32 %v673, %v674
    %v676 = vrot.slane %v675, 2
    %v677 = vadd.f32 %v675, %v676
    %v678 = vrot.slane %v677, 1
    %v679 = vadd.f32 %v677, %v678
    %v680 = vsel %vm658, %v512, 0.0
    %v681 = vrot.slane %v680, 4
    %v682 = vadd.f32 %v680, %v681
    %v683 = vrot.slane %v682, 2
    %v684 = vadd.f32 %v682, %v683
    %v685 = vrot.slane %v684, 1
    %v686 = vadd.f32 %v684, %v685
    %v687 = vsel %vm658, %v581, 0.0
    %v688 = vrot.slane %v687, 4
    %v689 = vadd.f32 %v687, %v688
    %v690 = vrot.slane %v689, 2
    %v691 = vadd.f32 %v689, %v690
    %v692 = vrot.slane %v691, 1
    %v693 = vadd.f32 %v691, %v692
    %v694 = vsel %vm658, %v583, 0.0
    %v695 = vrot.slane %v694, 4
    %v696 = vadd.f32 %v694, %v695
    %v697 = vrot.slane %v696, 2
    %v698 = vadd.f32 %v696, %v697
    %v699 = vrot.slane %v698, 1
    %v700 = vadd.f32 %v698, %v699
    %v701 = vsel %vm658, %v652, 0.0
    %v702 = vrot.slane %v701, 4
    %v703 = vadd.f32 %v701, %v702
    %v704 = vrot.slane %v703, 2
    %v705 = vadd.f32 %v703, %v704
    %v706 = vrot.slane %v705, 1
    %v707 = vadd.f32 %v705, %v706
    %v708 = vsel %vm658, %v654, 0.0
    %v709 = vrot.slane %v708, 4
    %v710 = vadd.f32 %v708, %v709
    %v711 = vrot.slane %v710, 2
    %v712 = vadd.f32 %v710, %v711
    %v713 = vrot.slane %v712, 1
    %v714 = vadd.f32 %v712, %v713
    %v715 = vrcp.pop 2.0
    %v716 = vmul.f32 %v665, %v715
    %v717 = vmul.f32 %v672, %v715
    %v718 = vmul.f32 %v679, %v715
    %v719 = vmul.f32 %v686, %v715
    %v720 = vmul.f32 %v693, %v715
    %v721 = vmul.f32 %v700, %v715
    %v722 = vmul.f32 %v707, %v715
    %v723 = vmul.f32 %v714, %v715
    %v724 = vsub.f32 %v439, %v716
    %v725 = vsub.f32 %v441, %v717
    %v726 = vsub.f32 %v510, %v718
    %v727 = vsub.f32 %v512, %v719
    %v728 = vsub.f32 %v581, %v720
    %v729 = vsub.f32 %v583, %v721
    %v730 = vsub.f32 %v652, %v722
    %v731 = vsub.f32 %v654, %v723
    %v732 = vmul.f32 %v724, %v724
    %v733 = vmul.f32 %v725, %v725
    %v734 = vmul.f32 %v726, %v726
    %v735 = vmul.f32 %v727, %v727
    %v736 = vmul.f32 %v728, %v728
    %v737 = vmul.f32 %v729, %v729
    %v738 = vmul.f32 %v730, %v730
    %v739 = vmul.f32 %v731, %v731
    %v740 = vsel %vm658, %v732, 0.0
    %v741 = vrot.slane %v740, 4
    %v742 = vadd.f32 %v740, %v741
    %v743 = vrot.slane %v742, 2
    %v744 = vadd.f32 %v742, %v743
    %v745 = vrot.slane %v744, 1
    %v746 = vadd.f32 %v744, %v745
    %v747 = vsel %vm658, %v733, 0.0
    %v748 = vrot.slane %v747, 4
    %v749 = vadd.f32 %v747, %v748
    %v750 = vrot.slane %v749, 2
    %v751 = vadd.f32 %v749, %v750
    %v752 = vrot.slane %v751, 1
    %v753 = vadd.f32 %v751, %v752
    %v754 = vsel %vm658, %v734, 0.0
    %v755 = vrot.slane %v754, 4
    %v756 = vadd.f32 %v754, %v755
    %v757 = vrot.slane %v756, 2
    %v758 = vadd.f32 %v756, %v757
    %v759 = vrot.slane %v758, 1
    %v760 = vadd.f32 %v758, %v759
    %v761 = vsel %vm658, %v735, 0.0
    %v762 = vrot.slane %v761, 4
    %v763 = vadd.f32 %v761, %v762
    %v764 = vrot.slane %v763, 2
    %v765 = vadd.f32 %v763, %v764
    %v766 = vrot.slane %v765, 1
    %v767 = vadd.f32 %v765, %v766
    %v768 = vsel %vm658, %v736, 0.0
    %v769 = vrot.slane %v768, 4
    %v770 = vadd.f32 %v768, %v769
    %v771 = vrot.slane %v770, 2
    %v772 = vadd.f32 %v770, %v771
    %v773 = vrot.slane %v772, 1
    %v774 = vadd.f32 %v772, %v773
    %v775 = vsel %vm658, %v737, 0.0
    %v776 = vrot.slane %v775, 4
    %v777 = vadd.f32 %v775, %v776
    %v778 = vrot.slane %v777, 2
    %v779 = vadd.f32 %v777, %v778
    %v780 = vrot.slane %v779, 1
    %v781 = vadd.f32 %v779, %v780
    %v782 = vsel %vm658, %v738, 0.0
    %v783 = vrot.slane %v782, 4
    %v784 = vadd.f32 %v782, %v783
    %v785 = vrot.slane %v784, 2
    %v786 = vadd.f32 %v784, %v785
    %v787 = vrot.slane %v786, 1
    %v788 = vadd.f32 %v786, %v787
    %v789 = vsel %vm658, %v739, 0.0
    %v790 = vrot.slane %v789, 4
    %v791 = vadd.f32 %v789, %v790
    %v792 = vrot.slane %v791, 2
    %v793 = vadd.f32 %v791, %v792
    %v794 = vrot.slane %v793, 1
    %v795 = vadd.f32 %v793, %v794
    %v796 = vmul.f32 %v746, %v715
    %v797 = vmul.f32 %v753, %v715
    %v798 = vmul.f32 %v760, %v715
    %v799 = vmul.f32 %v767, %v715
    %v800 = vmul.f32 %v774, %v715
    %v801 = vmul.f32 %v781, %v715
    %v802 = vmul.f32 %v788, %v715
    %v803 = vmul.f32 %v795, %v715
    %v804 = vadd.f32 %v796, 1e-05
    %v805 = vadd.f32 %v797, 1e-05
    %v806 = vadd.f32 %v798, 1e-05
    %v807 = vadd.f32 %v799, 1e-05
    %v808 = vadd.f32 %v800, 1e-05
    %v809 = vadd.f32 %v801, 1e-05
    %v810 = vadd.f32 %v802, 1e-05
    %v811 = vadd.f32 %v803, 1e-05
    %v812 = vrsqrt.pop %v804
    %v813 = vrsqrt.pop %v805
    %v814 = vrsqrt.pop %v806
    %v815 = vrsqrt.pop %v807
    %v816 = vrsqrt.pop %v808
    %v817 = vrsqrt.pop %v809
    %v818 = vrsqrt.pop %v810
    %v819 = vrsqrt.pop %v811
    %v820 = vmul.f32 %v724, %v812
    %v821 = vmul.f32 %v725, %v813
    %v822 = vmul.f32 %v726, %v814
    %v823 = vmul.f32 %v727, %v815
    %v824 = vmul.f32 %v728, %v816
    %v825 = vmul.f32 %v729, %v817
    %v826 = vmul.f32 %v730, %v818
    %v827 = vmul.f32 %v731, %v819
    %v830 = vlaneseq
    %v831 = vshrl.u32 %v830, 7
    %v832 = vsub.s32 0, %v831
    %v833 = vrot.slane %v656, %v832
    %v834 = vlaneseq
    %v835 = vshrl.u32 %v834, 7
    %v836 = vsub.s32 2, %v835
    %v837 = vrot.slane %v656, %v836
    %v838 = vlaneseq
    %v839 = vshrl.u32 %v838, 7
    %v840 = vsub.s32 4, %v839
    %v841 = vrot.slane %v656, %v840
    %v842 = vlaneseq
    %v843 = vshrl.u32 %v842, 7
    %v844 = vsub.s32 6, %v843
    %v845 = vrot.slane %v656, %v844
    %v846 = vlaneseq
    %v847 = vshrl.u32 %v846, 7
    %v848 = vsub.s32 0, %v847
    %v849 = vrot.slane %v657, %v848
    %v850 = vlaneseq
    %v851 = vshrl.u32 %v850, 7
    %v852 = vsub.s32 2, %v851
    %v853 = vrot.slane %v657, %v852
    %v854 = vlaneseq
    %v855 = vshrl.u32 %v854, 7
    %v856 = vsub.s32 4, %v855
    %v857 = vrot.slane %v657, %v856
    %v858 = vlaneseq
    %v859 = vshrl.u32 %v858, 7
    %v860 = vsub.s32 6, %v859
    %v861 = vrot.slane %v657, %v860
    %v870 = vlaneseq
    %v871 = vshrl.u32 %v870, 7
    %v872 = vsub.s32 0, %v871
    %v873 = vrot.slane %v833, %v872
    %v874 = vlaneseq
    %v875 = vshrl.u32 %v874, 7
    %v876 = vsub.s32 0, %v875
    %v877 = vrot.slane %v837, %v876
    %v878 = vlaneseq
    %v879 = vshrl.u32 %v878, 7
    %v880 = vsub.s32 0, %v879
    %v881 = vrot.slane %v841, %v880
    %v882 = vlaneseq
    %v883 = vshrl.u32 %v882, 7
    %v884 = vsub.s32 0, %v883
    %v885 = vrot.slane %v845, %v884
    %v886 = vlaneseq
    %v887 = vshrl.u32 %v886, 7
    %v888 = vsub.s32 0, %v887
    %v889 = vrot.slane %v849, %v888
    %v890 = vlaneseq
    %v891 = vshrl.u32 %v890, 7
    %v892 = vsub.s32 0, %v891
    %v893 = vrot.slane %v853, %v892
    %v894 = vlaneseq
    %v895 = vshrl.u32 %v894, 7
    %v896 = vsub.s32 0, %v895
    %v897 = vrot.slane %v857, %v896
    %v898 = vlaneseq
    %v899 = vshrl.u32 %v898, 7
    %v900 = vsub.s32 0, %v899
    %v901 = vrot.slane %v861, %v900
    %v902 = vmul.f32 %v820, %v873
    %v903 = vmul.f32 %v821, %v877
    %v904 = vmul.f32 %v822, %v881
    %v905 = vmul.f32 %v823, %v885
    %v906 = vmul.f32 %v824, %v889
    %v907 = vmul.f32 %v825, %v893
    %v908 = vmul.f32 %v826, %v897
    %v909 = vmul.f32 %v827, %v901
    %v910 = vlaneseq
    %v911 = vshrl.u32 %v910, 7
    %v912 = vsub.s32 1, %v911
    %v913 = vrot.slane %v656, %v912
    %v914 = vlaneseq
    %v915 = vshrl.u32 %v914, 7
    %v916 = vsub.s32 3, %v915
    %v917 = vrot.slane %v656, %v916
    %v918 = vlaneseq
    %v919 = vshrl.u32 %v918, 7
    %v920 = vsub.s32 5, %v919
    %v921 = vrot.slane %v656, %v920
    %v922 = vlaneseq
    %v923 = vshrl.u32 %v922, 7
    %v924 = vsub.s32 7, %v923
    %v925 = vrot.slane %v656, %v924
    %v926 = vlaneseq
    %v927 = vshrl.u32 %v926, 7
    %v928 = vsub.s32 1, %v927
    %v929 = vrot.slane %v657, %v928
    %v930 = vlaneseq
    %v931 = vshrl.u32 %v930, 7
    %v932 = vsub.s32 3, %v931
    %v933 = vrot.slane %v657, %v932
    %v934 = vlaneseq
    %v935 = vshrl.u32 %v934, 7
    %v936 = vsub.s32 5, %v935
    %v937 = vrot.slane %v657, %v936
    %v938 = vlaneseq
    %v939 = vshrl.u32 %v938, 7
    %v940 = vsub.s32 7, %v939
    %v941 = vrot.slane %v657, %v940
    %v950 = vlaneseq
    %v951 = vshrl.u32 %v950, 7
    %v952 = vsub.s32 1, %v951
    %v953 = vrot.slane %v913, %v952
    %v954 = vlaneseq
    %v955 = vshrl.u32 %v954, 7
    %v956 = vsub.s32 1, %v955
    %v957 = vrot.slane %v917, %v956
    %v958 = vlaneseq
    %v959 = vshrl.u32 %v958, 7
    %v960 = vsub.s32 1, %v959
    %v961 = vrot.slane %v921, %v960
    %v962 = vlaneseq
    %v963 = vshrl.u32 %v962, 7
    %v964 = vsub.s32 1, %v963
    %v965 = vrot.slane %v925, %v964
    %v966 = vlaneseq
    %v967 = vshrl.u32 %v966, 7
    %v968 = vsub.s32 1, %v967
    %v969 = vrot.slane %v929, %v968
    %v970 = vlaneseq
    %v971 = vshrl.u32 %v970, 7
    %v972 = vsub.s32 1, %v971
    %v973 = vrot.slane %v933, %v972
    %v974 = vlaneseq
    %v975 = vshrl.u32 %v974, 7
    %v976 = vsub.s32 1, %v975
    %v977 = vrot.slane %v937, %v976
    %v978 = vlaneseq
    %v979 = vshrl.u32 %v978, 7
    %v980 = vsub.s32 1, %v979
    %v981 = vrot.slane %v941, %v980
    %v982 = vadd.f32 %v902, %v953
    %v983 = vadd.f32 %v903, %v957
    %v984 = vadd.f32 %v904, %v961
    %v985 = vadd.f32 %v905, %v965
    %v986 = vadd.f32 %v906, %v969
    %v987 = vadd.f32 %v907, %v973
    %v988 = vadd.f32 %v908, %v977
    %v989 = vadd.f32 %v909, %v981
    %v990 = vmax.f32 %v982, 0.0
    %v991 = vmax.f32 %v983, 0.0
    %v992 = vmax.f32 %v984, 0.0
    %v993 = vmax.f32 %v985, 0.0
    %v994 = vmax.f32 %v986, 0.0
    %v995 = vmax.f32 %v987, 0.0
    %v996 = vmax.f32 %v988, 0.0
    %v997 = vmax.f32 %v989, 0.0
    %v998 = vld [vmem:[#allocation6] sm:$0xff]
    %v999 = vld [vmem:[#allocation6 + $0x8] sm:$0xff]
    %v1000 = vld [vmem:[#allocation6 + $0x10] sm:$0xff]
    %v1001 = vld [vmem:[#allocation6 + $0x18] sm:$0xff]
    %v1002 = vld [vmem:[#allocation6 + $0x20] sm:$0xff]
    %v1003 = vld [vmem:[#allocation6 + $0x28] sm:$0xff]
    %v1004 = vld [vmem:[#allocation6 + $0x30] sm:$0xff]
    %v1005 = vld [vmem:[#allocation6 + $0x38] sm:$0xff]
    %v1006 = vld [vmem:[#allocation6 + $0x40] sm:$0xff]
    %v1007 = vld [vmem:[#allocation6 + $0x48] sm:$0xff]
    %v1008 = vld [vmem:[#allocation6 + $0x50] sm:$0xff]
    %v1009 = vld [vmem:[#allocation6 + $0x58] sm:$0xff]
    %v1010 = vld [vmem:[#allocation6 + $0x60] sm:$0xff]
    %v1011 = vld [vmem:[#allocation6 + $0x68] sm:$0xff]
    %v1012 = vld [vmem:[#allocation6 + $0x70] sm:$0xff]
    %v1013 = vld [vmem:[#allocation6 + $0x78] sm:$0xff]
    %v1014 = vld [vmem:[#allocation6 + $0x80] sm:$0xff]
    %v1015 = vld [vmem:[#allocation6 + $0x88] sm:$0xff]
    %v1016 = vld [vmem:[#allocation6 + $0x90] sm:$0xff]
    %v1017 = vld [vmem:[#allocation6 + $0x98] sm:$0xff]
    %v1018 = vld [vmem:[#allocation6 + $0xa0] sm:$0xff]
    %v1019 = vld [vmem:[#allocation6 + $0xa8] sm:$0xff]
    %v1020 = vld [vmem:[#allocation6 + $0xb0] sm:$0xff]
    %v1021 = vld [vmem:[#allocation6 + $0xb8] sm:$0xff]
    %v1022 = vld [vmem:[#allocation6 + $0xc0] sm:$0xff]
    %v1023 = vld [vmem:[#allocation6 + $0xc8] sm:$0xff]
    %v1024 = vld [vmem:[#allocation6 + $0xd0] sm:$0xff]
    %v1025 = vld [vmem:[#allocation6 + $0xd8] sm:$0xff]
    %v1026 = vld [vmem:[#allocation6 + $0xe0] sm:$0xff]
    %v1027 = vld [vmem:[#allocation6 + $0xe8] sm:$0xff]
    %v1028 = vld [vmem:[#allocation6 + $0xf0] sm:$0xff]
    %v1029 = vld [vmem:[#allocation6 + $0xf8] sm:$0xff]
    %v1030 = vld [vmem:[#allocation6 + $0x100] sm:$0xff]
    %v1031 = vld [vmem:[#allocation6 + $0x108] sm:$0xff]
    %v1032 = vld [vmem:[#allocation6 + $0x110] sm:$0xff]
    %v1033 = vld [vmem:[#allocation6 + $0x118] sm:$0xff]
    %v1034 = vld [vmem:[#allocation6 + $0x120] sm:$0xff]
    %v1035 = vld [vmem:[#allocation6 + $0x128] sm:$0xff]
    %v1036 = vld [vmem:[#allocation6 + $0x130] sm:$0xff]
    %v1037 = vld [vmem:[#allocation6 + $0x138] sm:$0xff]
    %v1038 = vld [vmem:[#allocation6 + $0x140] sm:$0xff]
    %v1039 = vld [vmem:[#allocation6 + $0x148] sm:$0xff]
    %v1040 = vld [vmem:[#allocation6 + $0x150] sm:$0xff]
    %v1041 = vld [vmem:[#allocation6 + $0x158] sm:$0xff]
    %v1042 = vld [vmem:[#allocation6 + $0x160] sm:$0xff]
    %v1043 = vld [vmem:[#allocation6 + $0x168] sm:$0xff]
    %v1044 = vld [vmem:[#allocation6 + $0x170] sm:$0xff]
    %v1045 = vld [vmem:[#allocation6 + $0x178] sm:$0xff]
    %v1046 = vld [vmem:[#allocation6 + $0x180] sm:$0xff]
    %v1047 = vld [vmem:[#allocation6 + $0x188] sm:$0xff]
    %v1048 = vld [vmem:[#allocation6 + $0x190] sm:$0xff]
    %v1049 = vld [vmem:[#allocation6 + $0x198] sm:$0xff]
    %v1050 = vld [vmem:[#allocation6 + $0x1a0] sm:$0xff]
    %v1051 = vld [vmem:[#allocation6 + $0x1a8] sm:$0xff]
    %v1052 = vld [vmem:[#allocation6 + $0x1b0] sm:$0xff]
    %v1053 = vld [vmem:[#allocation6 + $0x1b8] sm:$0xff]
    %v1054 = vld [vmem:[#allocation6 + $0x1c0] sm:$0xff]
    %v1055 = vld [vmem:[#allocation6 + $0x1c8] sm:$0xff]
    %v1056 = vld [vmem:[#allocation6 + $0x1d0] sm:$0xff]
    %v1057 = vld [vmem:[#allocation6 + $0x1d8] sm:$0xff]
    %v1058 = vld [vmem:[#allocation6 + $0x1e0] sm:$0xff]
    %v1059 = vld [vmem:[#allocation6 + $0x1e8] sm:$0xff]
    %v1060 = vld [vmem:[#allocation6 + $0x1f0] sm:$0xff]
    %v1061 = vld [vmem:[#allocation6 + $0x1f8] sm:$0xff]
    %v1062 = vld [vmem:[#allocation6 + $0x200] sm:$0xff]
    %v1063 = vld [vmem:[#allocation6 + $0x208] sm:$0xff]
    %v1064 = vld [vmem:[#allocation6 + $0x210] sm:$0xff]
    %v1065 = vld [vmem:[#allocation6 + $0x218] sm:$0xff]
    %v1066 = vld [vmem:[#allocation6 + $0x220] sm:$0xff]
    %v1067 = vld [vmem:[#allocation6 + $0x228] sm:$0xff]
    %v1068 = vld [vmem:[#allocation6 + $0x230] sm:$0xff]
    %v1069 = vld [vmem:[#allocation6 + $0x238] sm:$0xff]
    %v1070 = vld [vmem:[#allocation6 + $0x240] sm:$0xff]
    %v1071 = vld [vmem:[#allocation6 + $0x248] sm:$0xff]
    %v1072 = vld [vmem:[#allocation6 + $0x250] sm:$0xff]
    %v1073 = vld [vmem:[#allocation6 + $0x258] sm:$0xff]
    %v1074 = vld [vmem:[#allocation6 + $0x260] sm:$0xff]
    %v1075 = vld [vmem:[#allocation6 + $0x268] sm:$0xff]
    %v1076 = vld [vmem:[#allocation6 + $0x270] sm:$0xff]
    %v1077 = vld [vmem:[#allocation6 + $0x278] sm:$0xff]
    %v1078 = vld [vmem:[#allocation6 + $0x280] sm:$0xff]
    %v1079 = vld [vmem:[#allocation6 + $0x288] sm:$0xff]
    %v1080 = vld [vmem:[#allocation6 + $0x290] sm:$0xff]
    %v1081 = vld [vmem:[#allocation6 + $0x298] sm:$0xff]
    %v1082 = vld [vmem:[#allocation6 + $0x2a0] sm:$0xff]
    %v1083 = vld [vmem:[#allocation6 + $0x2a8] sm:$0xff]
    %v1084 = vld [vmem:[#allocation6 + $0x2b0] sm:$0xff]
    %v1085 = vld [vmem:[#allocation6 + $0x2b8] sm:$0xff]
    %v1086 = vld [vmem:[#allocation6 + $0x2c0] sm:$0xff]
    %v1087 = vld [vmem:[#allocation6 + $0x2c8] sm:$0xff]
    %v1088 = vld [vmem:[#allocation6 + $0x2d0] sm:$0xff]
    %v1089 = vld [vmem:[#allocation6 + $0x2d8] sm:$0xff]
    %v1090 = vld [vmem:[#allocation6 + $0x2e0] sm:$0xff]
    %v1091 = vld [vmem:[#allocation6 + $0x2e8] sm:$0xff]
    %v1092 = vld [vmem:[#allocation6 + $0x2f0] sm:$0xff]
    %v1093 = vld [vmem:[#allocation6 + $0x2f8] sm:$0xff]
    %v1094 = vld [vmem:[#allocation6 + $0x300] sm:$0xff]
    %v1095 = vld [vmem:[#allocation6 + $0x308] sm:$0xff]
    %v1096 = vld [vmem:[#allocation6 + $0x310] sm:$0xff]
    %v1097 = vld [vmem:[#allocation6 + $0x318] sm:$0xff]
    %v1098 = vld [vmem:[#allocation6 + $0x320] sm:$0xff]
    %v1099 = vld [vmem:[#allocation6 + $0x328] sm:$0xff]
    %v1100 = vld [vmem:[#allocation6 + $0x330] sm:$0xff]
    %v1101 = vld [vmem:[#allocation6 + $0x338] sm:$0xff]
    %v1102 = vld [vmem:[#allocation6 + $0x340] sm:$0xff]
    %v1103 = vld [vmem:[#allocation6 + $0x348] sm:$0xff]
    %v1104 = vld [vmem:[#allocation6 + $0x350] sm:$0xff]
    %v1105 = vld [vmem:[#allocation6 + $0x358] sm:$0xff]
    %v1106 = vld [vmem:[#allocation6 + $0x360] sm:$0xff]
    %v1107 = vld [vmem:[#allocation6 + $0x368] sm:$0xff]
    %v1108 = vld [vmem:[#allocation6 + $0x370] sm:$0xff]
    %v1109 = vld [vmem:[#allocation6 + $0x378] sm:$0xff]
    %v1110 = vld [vmem:[#allocation6 + $0x380] sm:$0xff]
    %v1111 = vld [vmem:[#allocation6 + $0x388] sm:$0xff]
    %v1112 = vld [vmem:[#allocation6 + $0x390] sm:$0xff]
    %v1113 = vld [vmem:[#allocation6 + $0x398] sm:$0xff]
    %v1114 = vld [vmem:[#allocation6 + $0x3a0] sm:$0xff]
    %v1115 = vld [vmem:[#allocation6 + $0x3a8] sm:$0xff]
    %v1116 = vld [vmem:[#allocation6 + $0x3b0] sm:$0xff]
    %v1117 = vld [vmem:[#allocation6 + $0x3b8] sm:$0xff]
    %v1118 = vld [vmem:[#allocation6 + $0x3c0] sm:$0xff]
    %v1119 = vld [vmem:[#allocation6 + $0x3c8] sm:$0xff]
    %v1120 = vld [vmem:[#allocation6 + $0x3d0] sm:$0xff]
    %v1121 = vld [vmem:[#allocation6 + $0x3d8] sm:$0xff]
    %v1122 = vld [vmem:[#allocation6 + $0x3e0] sm:$0xff]
    %v1123 = vld [vmem:[#allocation6 + $0x3e8] sm:$0xff]
    %v1124 = vld [vmem:[#allocation6 + $0x3f0] sm:$0xff]
    %v1125 = vld [vmem:[#allocation6 + $0x3f8] sm:$0xff]
    %v1126 = vld [vmem:[#allocation6 + $0x400] sm:$0xff]
    %v1127 = vld [vmem:[#allocation6 + $0x408] sm:$0xff]
    %v1128 = vld [vmem:[#allocation6 + $0x410] sm:$0xff]
    %v1129 = vld [vmem:[#allocation6 + $0x418] sm:$0xff]
    %v1130 = vld [vmem:[#allocation6 + $0x420] sm:$0xff]
    %v1131 = vld [vmem:[#allocation6 + $0x428] sm:$0xff]
    %v1132 = vld [vmem:[#allocation6 + $0x430] sm:$0xff]
    %v1133 = vld [vmem:[#allocation6 + $0x438] sm:$0xff]
    %v1134 = vld [vmem:[#allocation6 + $0x440] sm:$0xff]
    %v1135 = vld [vmem:[#allocation6 + $0x448] sm:$0xff]
    %v1136 = vld [vmem:[#allocation6 + $0x450] sm:$0xff]
    %v1137 = vld [vmem:[#allocation6 + $0x458] sm:$0xff]
    %v1138 = vld [vmem:[#allocation6 + $0x460] sm:$0xff]
    %v1139 = vld [vmem:[#allocation6 + $0x468] sm:$0xff]
    %v1140 = vld [vmem:[#allocation6 + $0x470] sm:$0xff]
    %v1141 = vld [vmem:[#allocation6 + $0x478] sm:$0xff]
    %v1142 = vld [vmem:[#allocation6 + $0x480] sm:$0xff]
    %v1143 = vld [vmem:[#allocation6 + $0x488] sm:$0xff]
    %v1144 = vld [vmem:[#allocation6 + $0x490] sm:$0xff]
    %v1145 = vld [vmem:[#allocation6 + $0x498] sm:$0xff]
    %v1146 = vld [vmem:[#allocation6 + $0x4a0] sm:$0xff]
    %v1147 = vld [vmem:[#allocation6 + $0x4a8] sm:$0xff]
    %v1148 = vld [vmem:[#allocation6 + $0x4b0] sm:$0xff]
    %v1149 = vld [vmem:[#allocation6 + $0x4b8] sm:$0xff]
    %v1150 = vld [vmem:[#allocation6 + $0x4c0] sm:$0xff]
    %v1151 = vld [vmem:[#allocation6 + $0x4c8] sm:$0xff]
    %v1152 = vld [vmem:[#allocation6 + $0x4d0] sm:$0xff]
    %v1153 = vld [vmem:[#allocation6 + $0x4d8] sm:$0xff]
    %v1154 = vld [vmem:[#allocation6 + $0x4e0] sm:$0xff]
    %v1155 = vld [vmem:[#allocation6 + $0x4e8] sm:$0xff]
    %v1156 = vld [vmem:[#allocation6 + $0x4f0] sm:$0xff]
    %v1157 = vld [vmem:[#allocation6 + $0x4f8] sm:$0xff]
    %v1158 = vld [vmem:[#allocation6 + $0x500] sm:$0xff]
    %v1159 = vld [vmem:[#allocation6 + $0x508] sm:$0xff]
    %v1160 = vld [vmem:[#allocation6 + $0x510] sm:$0xff]
    %v1161 = vld [vmem:[#allocation6 + $0x518] sm:$0xff]
    %v1162 = vld [vmem:[#allocation6 + $0x520] sm:$0xff]
    %v1163 = vld [vmem:[#allocation6 + $0x528] sm:$0xff]
    %v1164 = vld [vmem:[#allocation6 + $0x530] sm:$0xff]
    %v1165 = vld [vmem:[#allocation6 + $0x538] sm:$0xff]
    %v1166 = vld [vmem:[#allocation6 + $0x540] sm:$0xff]
    %v1167 = vld [vmem:[#allocation6 + $0x548] sm:$0xff]
    %v1168 = vld [vmem:[#allocation6 + $0x550] sm:$0xff]
    %v1169 = vld [vmem:[#allocation6 + $0x558] sm:$0xff]
    %v1170 = vld [vmem:[#allocation6 + $0x560] sm:$0xff]
    %v1171 = vld [vmem:[#allocation6 + $0x568] sm:$0xff]
    %v1172 = vld [vmem:[#allocation6 + $0x570] sm:$0xff]
    %v1173 = vld [vmem:[#allocation6 + $0x578] sm:$0xff]
    %v1174 = vld [vmem:[#allocation6 + $0x580] sm:$0xff]
    %v1175 = vld [vmem:[#allocation6 + $0x588] sm:$0xff]
    %v1176 = vld [vmem:[#allocation6 + $0x590] sm:$0xff]
    %v1177 = vld [vmem:[#allocation6 + $0x598] sm:$0xff]
    %v1178 = vld [vmem:[#allocation6 + $0x5a0] sm:$0xff]
    %v1179 = vld [vmem:[#allocation6 + $0x5a8] sm:$0xff]
    %v1180 = vld [vmem:[#allocation6 + $0x5b0] sm:$0xff]
    %v1181 = vld [vmem:[#allocation6 + $0x5b8] sm:$0xff]
    %v1182 = vld [vmem:[#allocation6 + $0x5c0] sm:$0xff]
    %v1183 = vld [vmem:[#allocation6 + $0x5c8] sm:$0xff]
    %v1184 = vld [vmem:[#allocation6 + $0x5d0] sm:$0xff]
    %v1185 = vld [vmem:[#allocation6 + $0x5d8] sm:$0xff]
    %v1186 = vld [vmem:[#allocation6 + $0x5e0] sm:$0xff]
    %v1187 = vld [vmem:[#allocation6 + $0x5e8] sm:$0xff]
    %v1188 = vld [vmem:[#allocation6 + $0x5f0] sm:$0xff]
    %v1189 = vld [vmem:[#allocation6 + $0x5f8] sm:$0xff]
    %v1190 = vld [vmem:[#allocation6 + $0x600] sm:$0xff]
    %v1191 = vld [vmem:[#allocation6 + $0x608] sm:$0xff]
    %v1192 = vld [vmem:[#allocation6 + $0x610] sm:$0xff]
    %v1193 = vld [vmem:[#allocation6 + $0x618] sm:$0xff]
    %v1194 = vld [vmem:[#allocation6 + $0x620] sm:$0xff]
    %v1195 = vld [vmem:[#allocation6 + $0x628] sm:$0xff]
    %v1196 = vld [vmem:[#allocation6 + $0x630] sm:$0xff]
    %v1197 = vld [vmem:[#allocation6 + $0x638] sm:$0xff]
    %v1198 = vld [vmem:[#allocation6 + $0x640] sm:$0xff]
    %v1199 = vld [vmem:[#allocation6 + $0x648] sm:$0xff]
    %v1200 = vld [vmem:[#allocation6 + $0x650] sm:$0xff]
    %v1201 = vld [vmem:[#allocation6 + $0x658] sm:$0xff]
    %v1202 = vld [vmem:[#allocation6 + $0x660] sm:$0xff]
    %v1203 = vld [vmem:[#allocation6 + $0x668] sm:$0xff]
    %v1204 = vld [vmem:[#allocation6 + $0x670] sm:$0xff]
    %v1205 = vld [vmem:[#allocation6 + $0x678] sm:$0xff]
    %v1206 = vld [vmem:[#allocation6 + $0x680] sm:$0xff]
    %v1207 = vld [vmem:[#allocation6 + $0x688] sm:$0xff]
    %v1208 = vld [vmem:[#allocation6 + $0x690] sm:$0xff]
    %v1209 = vld [vmem:[#allocation6 + $0x698] sm:$0xff]
    %v1210 = vld [vmem:[#allocation6 + $0x6a0] sm:$0xff]
    %v1211 = vld [vmem:[#allocation6 + $0x6a8] sm:$0xff]
    %v1212 = vld [vmem:[#allocation6 + $0x6b0] sm:$0xff]
    %v1213 = vld [vmem:[#allocation6 + $0x6b8] sm:$0xff]
    %v1214 = vld [vmem:[#allocation6 + $0x6c0] sm:$0xff]
    %v1215 = vld [vmem:[#allocation6 + $0x6c8] sm:$0xff]
    %v1216 = vld [vmem:[#allocation6 + $0x6d0] sm:$0xff]
    %v1217 = vld [vmem:[#allocation6 + $0x6d8] sm:$0xff]
    %v1218 = vld [vmem:[#allocation6 + $0x6e0] sm:$0xff]
    %v1219 = vld [vmem:[#allocation6 + $0x6e8] sm:$0xff]
    %v1220 = vld [vmem:[#allocation6 + $0x6f0] sm:$0xff]
    %v1221 = vld [vmem:[#allocation6 + $0x6f8] sm:$0xff]
    %v1222 = vld [vmem:[#allocation6 + $0x700] sm:$0xff]
    %v1223 = vld [vmem:[#allocation6 + $0x708] sm:$0xff]
    %v1224 = vld [vmem:[#allocation6 + $0x710] sm:$0xff]
    %v1225 = vld [vmem:[#allocation6 + $0x718] sm:$0xff]
    %v1226 = vld [vmem:[#allocation6 + $0x720] sm:$0xff]
    %v1227 = vld [vmem:[#allocation6 + $0x728] sm:$0xff]
    %v1228 = vld [vmem:[#allocation6 + $0x730] sm:$0xff]
    %v1229 = vld [vmem:[#allocation6 + $0x738] sm:$0xff]
    %v1230 = vld [vmem:[#allocation6 + $0x740] sm:$0xff]
    %v1231 = vld [vmem:[#allocation6 + $0x748] sm:$0xff]
    %v1232 = vld [vmem:[#allocation6 + $0x750] sm:$0xff]
    %v1233 = vld [vmem:[#allocation6 + $0x758] sm:$0xff]
    %v1234 = vld [vmem:[#allocation6 + $0x760] sm:$0xff]
    %v1235 = vld [vmem:[#allocation6 + $0x768] sm:$0xff]
    %v1236 = vld [vmem:[#allocation6 + $0x770] sm:$0xff]
    %v1237 = vld [vmem:[#allocation6 + $0x778] sm:$0xff]
    %v1238 = vld [vmem:[#allocation6 + $0x780] sm:$0xff]
    %v1239 = vld [vmem:[#allocation6 + $0x788] sm:$0xff]
    %v1240 = vld [vmem:[#allocation6 + $0x790] sm:$0xff]
    %v1241 = vld [vmem:[#allocation6 + $0x798] sm:$0xff]
    %v1242 = vld [vmem:[#allocation6 + $0x7a0] sm:$0xff]
    %v1243 = vld [vmem:[#allocation6 + $0x7a8] sm:$0xff]
    %v1244 = vld [vmem:[#allocation6 + $0x7b0] sm:$0xff]
    %v1245 = vld [vmem:[#allocation6 + $0x7b8] sm:$0xff]
    %v1246 = vld [vmem:[#allocation6 + $0x7c0] sm:$0xff]
    %v1247 = vld [vmem:[#allocation6 + $0x7c8] sm:$0xff]
    %v1248 = vld [vmem:[#allocation6 + $0x7d0] sm:$0xff]
    %v1249 = vld [vmem:[#allocation6 + $0x7d8] sm:$0xff]
    %v1250 = vld [vmem:[#allocation6 + $0x7e0] sm:$0xff]
    %v1251 = vld [vmem:[#allocation6 + $0x7e8] sm:$0xff]
    %v1252 = vld [vmem:[#allocation6 + $0x7f0] sm:$0xff]
    %v1253 = vld [vmem:[#allocation6 + $0x7f8] sm:$0xff]
    %v1254 = vld [vmem:[#allocation6 + $0x800] sm:$0xff]
    %v1255 = vld [vmem:[#allocation6 + $0x808] sm:$0xff]
    %v1256 = vld [vmem:[#allocation6 + $0x810] sm:$0xff]
    %v1257 = vld [vmem:[#allocation6 + $0x818] sm:$0xff]
    %v1258 = vld [vmem:[#allocation6 + $0x820] sm:$0xff]
    %v1259 = vld [vmem:[#allocation6 + $0x828] sm:$0xff]
    %v1260 = vld [vmem:[#allocation6 + $0x830] sm:$0xff]
    %v1261 = vld [vmem:[#allocation6 + $0x838] sm:$0xff]
    %v1262 = vld [vmem:[#allocation6 + $0x840] sm:$0xff]
    %v1263 = vld [vmem:[#allocation6 + $0x848] sm:$0xff]
    %v1264 = vld [vmem:[#allocation6 + $0x850] sm:$0xff]
    %v1265 = vld [vmem:[#allocation6 + $0x858] sm:$0xff]
    %v1266 = vld [vmem:[#allocation6 + $0x860] sm:$0xff]
    %v1267 = vld [vmem:[#allocation6 + $0x868] sm:$0xff]
    %v1268 = vld [vmem:[#allocation6 + $0x870] sm:$0xff]
    %v1269 = vld [vmem:[#allocation6 + $0x878] sm:$0xff]
    %v1270 = vld [vmem:[#allocation6 + $0x880] sm:$0xff]
    %v1271 = vld [vmem:[#allocation6 + $0x888] sm:$0xff]
    %v1272 = vld [vmem:[#allocation6 + $0x890] sm:$0xff]
    %v1273 = vld [vmem:[#allocation6 + $0x898] sm:$0xff]
    %v1274 = vld [vmem:[#allocation6 + $0x8a0] sm:$0xff]
    %v1275 = vld [vmem:[#allocation6 + $0x8a8] sm:$0xff]
    %v1276 = vld [vmem:[#allocation6 + $0x8b0] sm:$0xff]
    %v1277 = vld [vmem:[#allocation6 + $0x8b8] sm:$0xff]
    %v1278 = vld [vmem:[#allocation6 + $0x8c0] sm:$0xff]
    %v1279 = vld [vmem:[#allocation6 + $0x8c8] sm:$0xff]
    %v1280 = vld [vmem:[#allocation6 + $0x8d0] sm:$0xff]
    %v1281 = vld [vmem:[#allocation6 + $0x8d8] sm:$0xff]
    %v1282 = vld [vmem:[#allocation6 + $0x8e0] sm:$0xff]
    %v1283 = vld [vmem:[#allocation6 + $0x8e8] sm:$0xff]
    %v1284 = vld [vmem:[#allocation6 + $0x8f0] sm:$0xff]
    %v1285 = vld [vmem:[#allocation6 + $0x8f8] sm:$0xff]
    %v1286 = vld [vmem:[#allocation6 + $0x900] sm:$0xff]
    %v1287 = vld [vmem:[#allocation6 + $0x908] sm:$0xff]
    %v1288 = vld [vmem:[#allocation6 + $0x910] sm:$0xff]
    %v1289 = vld [vmem:[#allocation6 + $0x918] sm:$0xff]
    %v1290 = vld [vmem:[#allocation6 + $0x920] sm:$0xff]
    %v1291 = vld [vmem:[#allocation6 + $0x928] sm:$0xff]
    %v1292 = vld [vmem:[#allocation6 + $0x930] sm:$0xff]
    %v1293 = vld [vmem:[#allocation6 + $0x938] sm:$0xff]
    %v1294 = vld [vmem:[#allocation6 + $0x940] sm:$0xff]
    %v1295 = vld [vmem:[#allocation6 + $0x948] sm:$0xff]
    %v1296 = vld [vmem:[#allocation6 + $0x950] sm:$0xff]
    %v1297 = vld [vmem:[#allocation6 + $0x958] sm:$0xff]
    %v1298 = vld [vmem:[#allocation6 + $0x960] sm:$0xff]
    %v1299 = vld [vmem:[#allocation6 + $0x968] sm:$0xff]
    %v1300 = vld [vmem:[#allocation6 + $0x970] sm:$0xff]
    %v1301 = vld [vmem:[#allocation6 + $0x978] sm:$0xff]
    %v1302 = vld [vmem:[#allocation6 + $0x980] sm:$0xff]
    %v1303 = vld [vmem:[#allocation6 + $0x988] sm:$0xff]
    %v1304 = vld [vmem:[#allocation6 + $0x990] sm:$0xff]
    %v1305 = vld [vmem:[#allocation6 + $0x998] sm:$0xff]
    %v1306 = vld [vmem:[#allocation6 + $0x9a0] sm:$0xff]
    %v1307 = vld [vmem:[#allocation6 + $0x9a8] sm:$0xff]
    %v1308 = vld [vmem:[#allocation6 + $0x9b0] sm:$0xff]
    %v1309 = vld [vmem:[#allocation6 + $0x9b8] sm:$0xff]
    %v1310 = vld [vmem:[#allocation6 + $0x9c0] sm:$0xff]
    %v1311 = vld [vmem:[#allocation6 + $0x9c8] sm:$0xff]
    %v1312 = vld [vmem:[#allocation6 + $0x9d0] sm:$0xff]
    %v1313 = vld [vmem:[#allocation6 + $0x9d8] sm:$0xff]
    %v1314 = vld [vmem:[#allocation6 + $0x9e0] sm:$0xff]
    %v1315 = vld [vmem:[#allocation6 + $0x9e8] sm:$0xff]
    %v1316 = vld [vmem:[#allocation6 + $0x9f0] sm:$0xff]
    %v1317 = vld [vmem:[#allocation6 + $0x9f8] sm:$0xff]
    %v1318 = vld [vmem:[#allocation6 + $0xa00] sm:$0xff]
    %v1319 = vld [vmem:[#allocation6 + $0xa08] sm:$0xff]
    %v1320 = vld [vmem:[#allocation6 + $0xa10] sm:$0xff]
    %v1321 = vld [vmem:[#allocation6 + $0xa18] sm:$0xff]
    %v1322 = vld [vmem:[#allocation6 + $0xa20] sm:$0xff]
    %v1323 = vld [vmem:[#allocation6 + $0xa28] sm:$0xff]
    %v1324 = vld [vmem:[#allocation6 + $0xa30] sm:$0xff]
    %v1325 = vld [vmem:[#allocation6 + $0xa38] sm:$0xff]
    %v1326 = vld [vmem:[#allocation6 + $0xa40] sm:$0xff]
    %v1327 = vld [vmem:[#allocation6 + $0xa48] sm:$0xff]
    %v1328 = vld [vmem:[#allocation6 + $0xa50] sm:$0xff]
    %v1329 = vld [vmem:[#allocation6 + $0xa58] sm:$0xff]
    %v1330 = vld [vmem:[#allocation6 + $0xa60] sm:$0xff]
    %v1331 = vld [vmem:[#allocation6 + $0xa68] sm:$0xff]
    %v1332 = vld [vmem:[#allocation6 + $0xa70] sm:$0xff]
    %v1333 = vld [vmem:[#allocation6 + $0xa78] sm:$0xff]
    %v1334 = vld [vmem:[#allocation6 + $0xa80] sm:$0xff]
    %v1335 = vld [vmem:[#allocation6 + $0xa88] sm:$0xff]
    %v1336 = vld [vmem:[#allocation6 + $0xa90] sm:$0xff]
    %v1337 = vld [vmem:[#allocation6 + $0xa98] sm:$0xff]
    %v1338 = vld [vmem:[#allocation6 + $0xaa0] sm:$0xff]
    %v1339 = vld [vmem:[#allocation6 + $0xaa8] sm:$0xff]
    %v1340 = vld [vmem:[#allocation6 + $0xab0] sm:$0xff]
    %v1341 = vld [vmem:[#allocation6 + $0xab8] sm:$0xff]
    %v1342 = vld [vmem:[#allocation6 + $0xac0] sm:$0xff]
    %v1343 = vld [vmem:[#allocation6 + $0xac8] sm:$0xff]
    %v1344 = vld [vmem:[#allocation6 + $0xad0] sm:$0xff]
    %v1345 = vld [vmem:[#allocation6 + $0xad8] sm:$0xff]
    %v1346 = vld [vmem:[#allocation6 + $0xae0] sm:$0xff]
    %v1347 = vld [vmem:[#allocation6 + $0xae8] sm:$0xff]
    %v1348 = vld [vmem:[#allocation6 + $0xaf0] sm:$0xff]
    %v1349 = vld [vmem:[#allocation6 + $0xaf8] sm:$0xff]
    %v1350 = vld [vmem:[#allocation6 + $0xb00] sm:$0xff]
    %v1351 = vld [vmem:[#allocation6 + $0xb08] sm:$0xff]
    %v1352 = vld [vmem:[#allocation6 + $0xb10] sm:$0xff]
    %v1353 = vld [vmem:[#allocation6 + $0xb18] sm:$0xff]
    %v1354 = vld [vmem:[#allocation6 + $0xb20] sm:$0xff]
    %v1355 = vld [vmem:[#allocation6 + $0xb28] sm:$0xff]
    %v1356 = vld [vmem:[#allocation6 + $0xb30] sm:$0xff]
    %v1357 = vld [vmem:[#allocation6 + $0xb38] sm:$0xff]
    %v1358 = vld [vmem:[#allocation6 + $0xb40] sm:$0xff]
    %v1359 = vld [vmem:[#allocation6 + $0xb48] sm:$0xff]
    %v1360 = vld [vmem:[#allocation6 + $0xb50] sm:$0xff]
    %v1361 = vld [vmem:[#allocation6 + $0xb58] sm:$0xff]
    %v1362 = vld [vmem:[#allocation6 + $0xb60] sm:$0xff]
    %v1363 = vld [vmem:[#allocation6 + $0xb68] sm:$0xff]
    %v1364 = vld [vmem:[#allocation6 + $0xb70] sm:$0xff]
    %v1365 = vld [vmem:[#allocation6 + $0xb78] sm:$0xff]
    %v1366 = vld [vmem:[#allocation6 + $0xb80] sm:$0xff]
    %v1367 = vld [vmem:[#allocation6 + $0xb88] sm:$0xff]
    %v1368 = vld [vmem:[#allocation6 + $0xb90] sm:$0xff]
    %v1369 = vld [vmem:[#allocation6 + $0xb98] sm:$0xff]
    %v1370 = vld [vmem:[#allocation6 + $0xba0] sm:$0xff]
    %v1371 = vld [vmem:[#allocation6 + $0xba8] sm:$0xff]
    %v1372 = vld [vmem:[#allocation6 + $0xbb0] sm:$0xff]
    %v1373 = vld [vmem:[#allocation6 + $0xbb8] sm:$0xff]
    %v1374 = vld [vmem:[#allocation6 + $0xbc0] sm:$0xff]
    %v1375 = vld [vmem:[#allocation6 + $0xbc8] sm:$0xff]
    %v1376 = vld [vmem:[#allocation6 + $0xbd0] sm:$0xff]
    %v1377 = vld [vmem:[#allocation6 + $0xbd8] sm:$0xff]
    %v1378 = vld [vmem:[#allocation6 + $0xbe0] sm:$0xff]
    %v1379 = vld [vmem:[#allocation6 + $0xbe8] sm:$0xff]
    %v1380 = vld [vmem:[#allocation6 + $0xbf0] sm:$0xff]
    %v1381 = vld [vmem:[#allocation6 + $0xbf8] sm:$0xff]
    %v1382 = vld [vmem:[#allocation6 + $0xc00] sm:$0xff]
    %v1383 = vld [vmem:[#allocation6 + $0xc08] sm:$0xff]
    %v1384 = vld [vmem:[#allocation6 + $0xc10] sm:$0xff]
    %v1385 = vld [vmem:[#allocation6 + $0xc18] sm:$0xff]
    %v1386 = vld [vmem:[#allocation6 + $0xc20] sm:$0xff]
    %v1387 = vld [vmem:[#allocation6 + $0xc28] sm:$0xff]
    %v1388 = vld [vmem:[#allocation6 + $0xc30] sm:$0xff]
    %v1389 = vld [vmem:[#allocation6 + $0xc38] sm:$0xff]
    %v1390 = vld [vmem:[#allocation6 + $0xc40] sm:$0xff]
    %v1391 = vld [vmem:[#allocation6 + $0xc48] sm:$0xff]
    %v1392 = vld [vmem:[#allocation6 + $0xc50] sm:$0xff]
    %v1393 = vld [vmem:[#allocation6 + $0xc58] sm:$0xff]
    %v1394 = vld [vmem:[#allocation6 + $0xc60] sm:$0xff]
    %v1395 = vld [vmem:[#allocation6 + $0xc68] sm:$0xff]
    %v1396 = vld [vmem:[#allocation6 + $0xc70] sm:$0xff]
    %v1397 = vld [vmem:[#allocation6 + $0xc78] sm:$0xff]
    %v1398 = vld [vmem:[#allocation6 + $0xc80] sm:$0xff]
    %v1399 = vld [vmem:[#allocation6 + $0xc88] sm:$0xff]
    %v1400 = vld [vmem:[#allocation6 + $0xc90] sm:$0xff]
    %v1401 = vld [vmem:[#allocation6 + $0xc98] sm:$0xff]
    %v1402 = vld [vmem:[#allocation6 + $0xca0] sm:$0xff]
    %v1403 = vld [vmem:[#allocation6 + $0xca8] sm:$0xff]
    %v1404 = vld [vmem:[#allocation6 + $0xcb0] sm:$0xff]
    %v1405 = vld [vmem:[#allocation6 + $0xcb8] sm:$0xff]
    %v1406 = vld [vmem:[#allocation6 + $0xcc0] sm:$0xff]
    %v1407 = vld [vmem:[#allocation6 + $0xcc8] sm:$0xff]
    %v1408 = vld [vmem:[#allocation6 + $0xcd0] sm:$0xff]
    %v1409 = vld [vmem:[#allocation6 + $0xcd8] sm:$0xff]
    %v1410 = vld [vmem:[#allocation6 + $0xce0] sm:$0xff]
    %v1411 = vld [vmem:[#allocation6 + $0xce8] sm:$0xff]
    %v1412 = vld [vmem:[#allocation6 + $0xcf0] sm:$0xff]
    %v1413 = vld [vmem:[#allocation6 + $0xcf8] sm:$0xff]
    %v1414 = vld [vmem:[#allocation6 + $0xd00] sm:$0xff]
    %v1415 = vld [vmem:[#allocation6 + $0xd08] sm:$0xff]
    %v1416 = vld [vmem:[#allocation6 + $0xd10] sm:$0xff]
    %v1417 = vld [vmem:[#allocation6 + $0xd18] sm:$0xff]
    %v1418 = vld [vmem:[#allocation6 + $0xd20] sm:$0xff]
    %v1419 = vld [vmem:[#allocation6 + $0xd28] sm:$0xff]
    %v1420 = vld [vmem:[#allocation6 + $0xd30] sm:$0xff]
    %v1421 = vld [vmem:[#allocation6 + $0xd38] sm:$0xff]
    %v1422 = vld [vmem:[#allocation6 + $0xd40] sm:$0xff]
    %v1423 = vld [vmem:[#allocation6 + $0xd48] sm:$0xff]
    %v1424 = vld [vmem:[#allocation6 + $0xd50] sm:$0xff]
    %v1425 = vld [vmem:[#allocation6 + $0xd58] sm:$0xff]
    %v1426 = vld [vmem:[#allocation6 + $0xd60] sm:$0xff]
    %v1427 = vld [vmem:[#allocation6 + $0xd68] sm:$0xff]
    %v1428 = vld [vmem:[#allocation6 + $0xd70] sm:$0xff]
    %v1429 = vld [vmem:[#allocation6 + $0xd78] sm:$0xff]
    %v1430 = vld [vmem:[#allocation6 + $0xd80] sm:$0xff]
    %v1431 = vld [vmem:[#allocation6 + $0xd88] sm:$0xff]
    %v1432 = vld [vmem:[#allocation6 + $0xd90] sm:$0xff]
    %v1433 = vld [vmem:[#allocation6 + $0xd98] sm:$0xff]
    %v1434 = vld [vmem:[#allocation6 + $0xda0] sm:$0xff]
    %v1435 = vld [vmem:[#allocation6 + $0xda8] sm:$0xff]
    %v1436 = vld [vmem:[#allocation6 + $0xdb0] sm:$0xff]
    %v1437 = vld [vmem:[#allocation6 + $0xdb8] sm:$0xff]
    %v1438 = vld [vmem:[#allocation6 + $0xdc0] sm:$0xff]
    %v1439 = vld [vmem:[#allocation6 + $0xdc8] sm:$0xff]
    %v1440 = vld [vmem:[#allocation6 + $0xdd0] sm:$0xff]
    %v1441 = vld [vmem:[#allocation6 + $0xdd8] sm:$0xff]
    %v1442 = vld [vmem:[#allocation6 + $0xde0] sm:$0xff]
    %v1443 = vld [vmem:[#allocation6 + $0xde8] sm:$0xff]
    %v1444 = vld [vmem:[#allocation6 + $0xdf0] sm:$0xff]
    %v1445 = vld [vmem:[#allocation6 + $0xdf8] sm:$0xff]
    %v1446 = vld [vmem:[#allocation6 + $0xe00] sm:$0xff]
    %v1447 = vld [vmem:[#allocation6 + $0xe08] sm:$0xff]
    %v1448 = vld [vmem:[#allocation6 + $0xe10] sm:$0xff]
    %v1449 = vld [vmem:[#allocation6 + $0xe18] sm:$0xff]
    %v1450 = vld [vmem:[#allocation6 + $0xe20] sm:$0xff]
    %v1451 = vld [vmem:[#allocation6 + $0xe28] sm:$0xff]
    %v1452 = vld [vmem:[#allocation6 + $0xe30] sm:$0xff]
    %v1453 = vld [vmem:[#allocation6 + $0xe38] sm:$0xff]
    %v1454 = vld [vmem:[#allocation6 + $0xe40] sm:$0xff]
    %v1455 = vld [vmem:[#allocation6 + $0xe48] sm:$0xff]
    %v1456 = vld [vmem:[#allocation6 + $0xe50] sm:$0xff]
    %v1457 = vld [vmem:[#allocation6 + $0xe58] sm:$0xff]
    %v1458 = vld [vmem:[#allocation6 + $0xe60] sm:$0xff]
    %v1459 = vld [vmem:[#allocation6 + $0xe68] sm:$0xff]
    %v1460 = vld [vmem:[#allocation6 + $0xe70] sm:$0xff]
    %v1461 = vld [vmem:[#allocation6 + $0xe78] sm:$0xff]
    %v1462 = vld [vmem:[#allocation6 + $0xe80] sm:$0xff]
    %v1463 = vld [vmem:[#allocation6 + $0xe88] sm:$0xff]
    %v1464 = vld [vmem:[#allocation6 + $0xe90] sm:$0xff]
    %v1465 = vld [vmem:[#allocation6 + $0xe98] sm:$0xff]
    %v1466 = vld [vmem:[#allocation6 + $0xea0] sm:$0xff]
    %v1467 = vld [vmem:[#allocation6 + $0xea8] sm:$0xff]
    %v1468 = vld [vmem:[#allocation6 + $0xeb0] sm:$0xff]
    %v1469 = vld [vmem:[#allocation6 + $0xeb8] sm:$0xff]
    %v1470 = vld [vmem:[#allocation6 + $0xec0] sm:$0xff]
    %v1471 = vld [vmem:[#allocation6 + $0xec8] sm:$0xff]
    %v1472 = vld [vmem:[#allocation6 + $0xed0] sm:$0xff]
    %v1473 = vld [vmem:[#allocation6 + $0xed8] sm:$0xff]
    %v1474 = vld [vmem:[#allocation6 + $0xee0] sm:$0xff]
    %v1475 = vld [vmem:[#allocation6 + $0xee8] sm:$0xff]
    %v1476 = vld [vmem:[#allocation6 + $0xef0] sm:$0xff]
    %v1477 = vld [vmem:[#allocation6 + $0xef8] sm:$0xff]
    %v1478 = vld [vmem:[#allocation6 + $0xf00] sm:$0xff]
    %v1479 = vld [vmem:[#allocation6 + $0xf08] sm:$0xff]
    %v1480 = vld [vmem:[#allocation6 + $0xf10] sm:$0xff]
    %v1481 = vld [vmem:[#allocation6 + $0xf18] sm:$0xff]
    %v1482 = vld [vmem:[#allocation6 + $0xf20] sm:$0xff]
    %v1483 = vld [vmem:[#allocation6 + $0xf28] sm:$0xff]
    %v1484 = vld [vmem:[#allocation6 + $0xf30] sm:$0xff]
    %v1485 = vld [vmem:[#allocation6 + $0xf38] sm:$0xff]
    %v1486 = vld [vmem:[#allocation6 + $0xf40] sm:$0xff]
    %v1487 = vld [vmem:[#allocation6 + $0xf48] sm:$0xff]
    %v1488 = vld [vmem:[#allocation6 + $0xf50] sm:$0xff]
    %v1489 = vld [vmem:[#allocation6 + $0xf58] sm:$0xff]
    %v1490 = vld [vmem:[#allocation6 + $0xf60] sm:$0xff]
    %v1491 = vld [vmem:[#allocation6 + $0xf68] sm:$0xff]
    %v1492 = vld [vmem:[#allocation6 + $0xf70] sm:$0xff]
    %v1493 = vld [vmem:[#allocation6 + $0xf78] sm:$0xff]
    %v1494 = vld [vmem:[#allocation6 + $0xf80] sm:$0xff]
    %v1495 = vld [vmem:[#allocation6 + $0xf88] sm:$0xff]
    %v1496 = vld [vmem:[#allocation6 + $0xf90] sm:$0xff]
    %v1497 = vld [vmem:[#allocation6 + $0xf98] sm:$0xff]
    %v1498 = vld [vmem:[#allocation6 + $0xfa0] sm:$0xff]
    %v1499 = vld [vmem:[#allocation6 + $0xfa8] sm:$0xff]
    %v1500 = vld [vmem:[#allocation6 + $0xfb0] sm:$0xff]
    %v1501 = vld [vmem:[#allocation6 + $0xfb8] sm:$0xff]
    %v1502 = vld [vmem:[#allocation6 + $0xfc0] sm:$0xff]
    %v1503 = vld [vmem:[#allocation6 + $0xfc8] sm:$0xff]
    %v1504 = vld [vmem:[#allocation6 + $0xfd0] sm:$0xff]
    %v1505 = vld [vmem:[#allocation6 + $0xfd8] sm:$0xff]
    %v1506 = vld [vmem:[#allocation6 + $0xfe0] sm:$0xff]
    %v1507 = vld [vmem:[#allocation6 + $0xfe8] sm:$0xff]
    %v1508 = vld [vmem:[#allocation6 + $0xff0] sm:$0xff]
    %v1509 = vld [vmem:[#allocation6 + $0xff8] sm:$0xff]
    %v1510 = vld [vmem:[#allocation6 + $0x1000] sm:$0xff]
    %v1511 = vld [vmem:[#allocation6 + $0x1008] sm:$0xff]
    %v1512 = vld [vmem:[#allocation6 + $0x1010] sm:$0xff]
    %v1513 = vld [vmem:[#allocation6 + $0x1018] sm:$0xff]
    %v1514 = vld [vmem:[#allocation6 + $0x1020] sm:$0xff]
    %v1515 = vld [vmem:[#allocation6 + $0x1028] sm:$0xff]
    %v1516 = vld [vmem:[#allocation6 + $0x1030] sm:$0xff]
    %v1517 = vld [vmem:[#allocation6 + $0x1038] sm:$0xff]
    %v1518 = vld [vmem:[#allocation6 + $0x1040] sm:$0xff]
    %v1519 = vld [vmem:[#allocation6 + $0x1048] sm:$0xff]
    %v1520 = vld [vmem:[#allocation6 + $0x1050] sm:$0xff]
    %v1521 = vld [vmem:[#allocation6 + $0x1058] sm:$0xff]
    %v1522 = vld [vmem:[#allocation6 + $0x1060] sm:$0xff]
    %v1523 = vld [vmem:[#allocation6 + $0x1068] sm:$0xff]
    %v1524 = vld [vmem:[#allocation6 + $0x1070] sm:$0xff]
    %v1525 = vld [vmem:[#allocation6 + $0x1078] sm:$0xff]
    %v1526 = vld [vmem:[#allocation6 + $0x1080] sm:$0xff]
    %v1527 = vld [vmem:[#allocation6 + $0x1088] sm:$0xff]
    %v1528 = vld [vmem:[#allocation6 + $0x1090] sm:$0xff]
    %v1529 = vld [vmem:[#allocation6 + $0x1098] sm:$0xff]
    %v1530 = vld [vmem:[#allocation6 + $0x10a0] sm:$0xff]
    %v1531 = vld [vmem:[#allocation6 + $0x10a8] sm:$0xff]
    %v1532 = vld [vmem:[#allocation6 + $0x10b0] sm:$0xff]
    %v1533 = vld [vmem:[#allocation6 + $0x10b8] sm:$0xff]
    %v1534 = vld [vmem:[#allocation6 + $0x10c0] sm:$0xff]
    %v1535 = vld [vmem:[#allocation6 + $0x10c8] sm:$0xff]
    %v1536 = vld [vmem:[#allocation6 + $0x10d0] sm:$0xff]
    %v1537 = vld [vmem:[#allocation6 + $0x10d8] sm:$0xff]
    %v1538 = vld [vmem:[#allocation6 + $0x10e0] sm:$0xff]
    %v1539 = vld [vmem:[#allocation6 + $0x10e8] sm:$0xff]
    %v1540 = vld [vmem:[#allocation6 + $0x10f0] sm:$0xff]
    %v1541 = vld [vmem:[#allocation6 + $0x10f8] sm:$0xff]
    %v1542 = vld [vmem:[#allocation6 + $0x1100] sm:$0xff]
    %v1543 = vld [vmem:[#allocation6 + $0x1108] sm:$0xff]
    %v1544 = vld [vmem:[#allocation6 + $0x1110] sm:$0xff]
    %v1545 = vld [vmem:[#allocation6 + $0x1118] sm:$0xff]
    %v1546 = vld [vmem:[#allocation6 + $0x1120] sm:$0xff]
    %v1547 = vld [vmem:[#allocation6 + $0x1128] sm:$0xff]
    %v1548 = vld [vmem:[#allocation6 + $0x1130] sm:$0xff]
    %v1549 = vld [vmem:[#allocation6 + $0x1138] sm:$0xff]
    %v1550 = vld [vmem:[#allocation6 + $0x1140] sm:$0xff]
    %v1551 = vld [vmem:[#allocation6 + $0x1148] sm:$0xff]
    %v1552 = vld [vmem:[#allocation6 + $0x1150] sm:$0xff]
    %v1553 = vld [vmem:[#allocation6 + $0x1158] sm:$0xff]
    %v1554 = vld [vmem:[#allocation6 + $0x1160] sm:$0xff]
    %v1555 = vld [vmem:[#allocation6 + $0x1168] sm:$0xff]
    %v1556 = vld [vmem:[#allocation6 + $0x1170] sm:$0xff]
    %v1557 = vld [vmem:[#allocation6 + $0x1178] sm:$0xff]
    %v1558 = vld [vmem:[#allocation6 + $0x1180] sm:$0xff]
    %v1559 = vld [vmem:[#allocation6 + $0x1188] sm:$0xff]
    %v1560 = vld [vmem:[#allocation6 + $0x1190] sm:$0xff]
    %v1561 = vld [vmem:[#allocation6 + $0x1198] sm:$0xff]
    %v1562 = vld [vmem:[#allocation6 + $0x11a0] sm:$0xff]
    %v1563 = vld [vmem:[#allocation6 + $0x11a8] sm:$0xff]
    %v1564 = vld [vmem:[#allocation6 + $0x11b0] sm:$0xff]
    %v1565 = vld [vmem:[#allocation6 + $0x11b8] sm:$0xff]
    %v1566 = vld [vmem:[#allocation6 + $0x11c0] sm:$0xff]
    %v1567 = vld [vmem:[#allocation6 + $0x11c8] sm:$0xff]
    %v1568 = vld [vmem:[#allocation6 + $0x11d0] sm:$0xff]
    %v1569 = vld [vmem:[#allocation6 + $0x11d8] sm:$0xff]
    %v1570 = vld [vmem:[#allocation6 + $0x11e0] sm:$0xff]
    %v1571 = vld [vmem:[#allocation6 + $0x11e8] sm:$0xff]
    %v1572 = vld [vmem:[#allocation6 + $0x11f0] sm:$0xff]
    %v1573 = vld [vmem:[#allocation6 + $0x11f8] sm:$0xff]
    %v1574 = vld [vmem:[#allocation6 + $0x1200] sm:$0xff]
    %v1575 = vld [vmem:[#allocation6 + $0x1208] sm:$0xff]
    %v1576 = vld [vmem:[#allocation6 + $0x1210] sm:$0xff]
    %v1577 = vld [vmem:[#allocation6 + $0x1218] sm:$0xff]
    %v1578 = vld [vmem:[#allocation6 + $0x1220] sm:$0xff]
    %v1579 = vld [vmem:[#allocation6 + $0x1228] sm:$0xff]
    %v1580 = vld [vmem:[#allocation6 + $0x1230] sm:$0xff]
    %v1581 = vld [vmem:[#allocation6 + $0x1238] sm:$0xff]
    %v1582 = vld [vmem:[#allocation6 + $0x1240] sm:$0xff]
    %v1583 = vld [vmem:[#allocation6 + $0x1248] sm:$0xff]
    %v1584 = vld [vmem:[#allocation6 + $0x1250] sm:$0xff]
    %v1585 = vld [vmem:[#allocation6 + $0x1258] sm:$0xff]
    %v1586 = vld [vmem:[#allocation6 + $0x1260] sm:$0xff]
    %v1587 = vld [vmem:[#allocation6 + $0x1268] sm:$0xff]
    %v1588 = vld [vmem:[#allocation6 + $0x1270] sm:$0xff]
    %v1589 = vld [vmem:[#allocation6 + $0x1278] sm:$0xff]
    %v1590 = vld [vmem:[#allocation6 + $0x1280] sm:$0xff]
    %v1591 = vld [vmem:[#allocation6 + $0x1288] sm:$0xff]
    %v1592 = vld [vmem:[#allocation6 + $0x1290] sm:$0xff]
    %v1593 = vld [vmem:[#allocation6 + $0x1298] sm:$0xff]
    %v1594 = vld [vmem:[#allocation6 + $0x12a0] sm:$0xff]
    %v1595 = vld [vmem:[#allocation6 + $0x12a8] sm:$0xff]
    %v1596 = vld [vmem:[#allocation6 + $0x12b0] sm:$0xff]
    %v1597 = vld [vmem:[#allocation6 + $0x12b8] sm:$0xff]
    %v1598 = vld [vmem:[#allocation6 + $0x12c0] sm:$0xff]
    %v1599 = vld [vmem:[#allocation6 + $0x12c8] sm:$0xff]
    %v1600 = vld [vmem:[#allocation6 + $0x12d0] sm:$0xff]
    %v1601 = vld [vmem:[#allocation6 + $0x12d8] sm:$0xff]
    %v1602 = vld [vmem:[#allocation6 + $0x12e0] sm:$0xff]
    %v1603 = vld [vmem:[#allocation6 + $0x12e8] sm:$0xff]
    %v1604 = vld [vmem:[#allocation6 + $0x12f0] sm:$0xff]
    %v1605 = vld [vmem:[#allocation6 + $0x12f8] sm:$0xff]
    %v1606 = vld [vmem:[#allocation6 + $0x1300] sm:$0xff]
    %v1607 = vld [vmem:[#allocation6 + $0x1308] sm:$0xff]
    %v1608 = vld [vmem:[#allocation6 + $0x1310] sm:$0xff]
    %v1609 = vld [vmem:[#allocation6 + $0x1318] sm:$0xff]
    %v1610 = vld [vmem:[#allocation6 + $0x1320] sm:$0xff]
    %v1611 = vld [vmem:[#allocation6 + $0x1328] sm:$0xff]
    %v1612 = vld [vmem:[#allocation6 + $0x1330] sm:$0xff]
    %v1613 = vld [vmem:[#allocation6 + $0x1338] sm:$0xff]
    %v1614 = vld [vmem:[#allocation6 + $0x1340] sm:$0xff]
    %v1615 = vld [vmem:[#allocation6 + $0x1348] sm:$0xff]
    %v1616 = vld [vmem:[#allocation6 + $0x1350] sm:$0xff]
    %v1617 = vld [vmem:[#allocation6 + $0x1358] sm:$0xff]
    %v1618 = vld [vmem:[#allocation6 + $0x1360] sm:$0xff]
    %v1619 = vld [vmem:[#allocation6 + $0x1368] sm:$0xff]
    %v1620 = vld [vmem:[#allocation6 + $0x1370] sm:$0xff]
    %v1621 = vld [vmem:[#allocation6 + $0x1378] sm:$0xff]
    %v1622 = vld [vmem:[#allocation6 + $0x1380] sm:$0xff]
    %v1623 = vld [vmem:[#allocation6 + $0x1388] sm:$0xff]
    %v1624 = vld [vmem:[#allocation6 + $0x1390] sm:$0xff]
    %v1625 = vld [vmem:[#allocation6 + $0x1398] sm:$0xff]
    %v1626 = vld [vmem:[#allocation6 + $0x13a0] sm:$0xff]
    %v1627 = vld [vmem:[#allocation6 + $0x13a8] sm:$0xff]
    %v1628 = vld [vmem:[#allocation6 + $0x13b0] sm:$0xff]
    %v1629 = vld [vmem:[#allocation6 + $0x13b8] sm:$0xff]
    %v1630 = vld [vmem:[#allocation6 + $0x13c0] sm:$0xff]
    %v1631 = vld [vmem:[#allocation6 + $0x13c8] sm:$0xff]
    %v1632 = vld [vmem:[#allocation6 + $0x13d0] sm:$0xff]
    %v1633 = vld [vmem:[#allocation6 + $0x13d8] sm:$0xff]
    %v1634 = vld [vmem:[#allocation6 + $0x13e0] sm:$0xff]
    %v1635 = vld [vmem:[#allocation6 + $0x13e8] sm:$0xff]
    %v1636 = vld [vmem:[#allocation6 + $0x13f0] sm:$0xff]
    %v1637 = vld [vmem:[#allocation6 + $0x13f8] sm:$0xff]
    %v1638 = vld [vmem:[#allocation6 + $0x1400] sm:$0xff]
    %v1639 = vld [vmem:[#allocation6 + $0x1408] sm:$0xff]
    %v1640 = vld [vmem:[#allocation6 + $0x1410] sm:$0xff]
    %v1641 = vld [vmem:[#allocation6 + $0x1418] sm:$0xff]
    %v1642 = vld [vmem:[#allocation6 + $0x1420] sm:$0xff]
    %v1643 = vld [vmem:[#allocation6 + $0x1428] sm:$0xff]
    %v1644 = vld [vmem:[#allocation6 + $0x1430] sm:$0xff]
    %v1645 = vld [vmem:[#allocation6 + $0x1438] sm:$0xff]
    %v1646 = vld [vmem:[#allocation6 + $0x1440] sm:$0xff]
    %v1647 = vld [vmem:[#allocation6 + $0x1448] sm:$0xff]
    %v1648 = vld [vmem:[#allocation6 + $0x1450] sm:$0xff]
    %v1649 = vld [vmem:[#allocation6 + $0x1458] sm:$0xff]
    %v1650 = vld [vmem:[#allocation6 + $0x1460] sm:$0xff]
    %v1651 = vld [vmem:[#allocation6 + $0x1468] sm:$0xff]
    %v1652 = vld [vmem:[#allocation6 + $0x1470] sm:$0xff]
    %v1653 = vld [vmem:[#allocation6 + $0x1478] sm:$0xff]
    %v1654 = vld [vmem:[#allocation6 + $0x1480] sm:$0xff]
    %v1655 = vld [vmem:[#allocation6 + $0x1488] sm:$0xff]
    %v1656 = vld [vmem:[#allocation6 + $0x1490] sm:$0xff]
    %v1657 = vld [vmem:[#allocation6 + $0x1498] sm:$0xff]
    %v1658 = vld [vmem:[#allocation6 + $0x14a0] sm:$0xff]
    %v1659 = vld [vmem:[#allocation6 + $0x14a8] sm:$0xff]
    %v1660 = vld [vmem:[#allocation6 + $0x14b0] sm:$0xff]
    %v1661 = vld [vmem:[#allocation6 + $0x14b8] sm:$0xff]
    %v1662 = vld [vmem:[#allocation6 + $0x14c0] sm:$0xff]
    %v1663 = vld [vmem:[#allocation6 + $0x14c8] sm:$0xff]
    %v1664 = vld [vmem:[#allocation6 + $0x14d0] sm:$0xff]
    %v1665 = vld [vmem:[#allocation6 + $0x14d8] sm:$0xff]
    %v1666 = vld [vmem:[#allocation6 + $0x14e0] sm:$0xff]
    %v1667 = vld [vmem:[#allocation6 + $0x14e8] sm:$0xff]
    %v1668 = vld [vmem:[#allocation6 + $0x14f0] sm:$0xff]
    %v1669 = vld [vmem:[#allocation6 + $0x14f8] sm:$0xff]
    %v1670 = vld [vmem:[#allocation6 + $0x1500] sm:$0xff]
    %v1671 = vld [vmem:[#allocation6 + $0x1508] sm:$0xff]
    %v1672 = vld [vmem:[#allocation6 + $0x1510] sm:$0xff]
    %v1673 = vld [vmem:[#allocation6 + $0x1518] sm:$0xff]
    %v1674 = vld [vmem:[#allocation6 + $0x1520] sm:$0xff]
    %v1675 = vld [vmem:[#allocation6 + $0x1528] sm:$0xff]
    %v1676 = vld [vmem:[#allocation6 + $0x1530] sm:$0xff]
    %v1677 = vld [vmem:[#allocation6 + $0x1538] sm:$0xff]
    %v1678 = vld [vmem:[#allocation6 + $0x1540] sm:$0xff]
    %v1679 = vld [vmem:[#allocation6 + $0x1548] sm:$0xff]
    %v1680 = vld [vmem:[#allocation6 + $0x1550] sm:$0xff]
    %v1681 = vld [vmem:[#allocation6 + $0x1558] sm:$0xff]
    %v1682 = vld [vmem:[#allocation6 + $0x1560] sm:$0xff]
    %v1683 = vld [vmem:[#allocation6 + $0x1568] sm:$0xff]
    %v1684 = vld [vmem:[#allocation6 + $0x1570] sm:$0xff]
    %v1685 = vld [vmem:[#allocation6 + $0x1578] sm:$0xff]
    %v1686 = vld [vmem:[#allocation6 + $0x1580] sm:$0xff]
    %v1687 = vld [vmem:[#allocation6 + $0x1588] sm:$0xff]
    %v1688 = vld [vmem:[#allocation6 + $0x1590] sm:$0xff]
    %v1689 = vld [vmem:[#allocation6 + $0x1598] sm:$0xff]
    %v1690 = vld [vmem:[#allocation6 + $0x15a0] sm:$0xff]
    %v1691 = vld [vmem:[#allocation6 + $0x15a8] sm:$0xff]
    %v1692 = vld [vmem:[#allocation6 + $0x15b0] sm:$0xff]
    %v1693 = vld [vmem:[#allocation6 + $0x15b8] sm:$0xff]
    %v1694 = vld [vmem:[#allocation6 + $0x15c0] sm:$0xff]
    %v1695 = vld [vmem:[#allocation6 + $0x15c8] sm:$0xff]
    %v1696 = vld [vmem:[#allocation6 + $0x15d0] sm:$0xff]
    %v1697 = vld [vmem:[#allocation6 + $0x15d8] sm:$0xff]
    %v1698 = vld [vmem:[#allocation6 + $0x15e0] sm:$0xff]
    %v1699 = vld [vmem:[#allocation6 + $0x15e8] sm:$0xff]
    %v1700 = vld [vmem:[#allocation6 + $0x15f0] sm:$0xff]
    %v1701 = vld [vmem:[#allocation6 + $0x15f8] sm:$0xff]
    %v1702 = vld [vmem:[#allocation6 + $0x1600] sm:$0xff]
    %v1703 = vld [vmem:[#allocation6 + $0x1608] sm:$0xff]
    %v1704 = vld [vmem:[#allocation6 + $0x1610] sm:$0xff]
    %v1705 = vld [vmem:[#allocation6 + $0x1618] sm:$0xff]
    %v1706 = vld [vmem:[#allocation6 + $0x1620] sm:$0xff]
    %v1707 = vld [vmem:[#allocation6 + $0x1628] sm:$0xff]
    %v1708 = vld [vmem:[#allocation6 + $0x1630] sm:$0xff]
    %v1709 = vld [vmem:[#allocation6 + $0x1638] sm:$0xff]
    %v1710 = vld [vmem:[#allocation6 + $0x1640] sm:$0xff]
    %v1711 = vld [vmem:[#allocation6 + $0x1648] sm:$0xff]
    %v1712 = vld [vmem:[#allocation6 + $0x1650] sm:$0xff]
    %v1713 = vld [vmem:[#allocation6 + $0x1658] sm:$0xff]
    %v1714 = vld [vmem:[#allocation6 + $0x1660] sm:$0xff]
    %v1715 = vld [vmem:[#allocation6 + $0x1668] sm:$0xff]
    %v1716 = vld [vmem:[#allocation6 + $0x1670] sm:$0xff]
    %v1717 = vld [vmem:[#allocation6 + $0x1678] sm:$0xff]
    %v1718 = vld [vmem:[#allocation6 + $0x1680] sm:$0xff]
    %v1719 = vld [vmem:[#allocation6 + $0x1688] sm:$0xff]
    %v1720 = vld [vmem:[#allocation6 + $0x1690] sm:$0xff]
    %v1721 = vld [vmem:[#allocation6 + $0x1698] sm:$0xff]
    %v1722 = vld [vmem:[#allocation6 + $0x16a0] sm:$0xff]
    %v1723 = vld [vmem:[#allocation6 + $0x16a8] sm:$0xff]
    %v1724 = vld [vmem:[#allocation6 + $0x16b0] sm:$0xff]
    %v1725 = vld [vmem:[#allocation6 + $0x16b8] sm:$0xff]
    %v1726 = vld [vmem:[#allocation6 + $0x16c0] sm:$0xff]
    %v1727 = vld [vmem:[#allocation6 + $0x16c8] sm:$0xff]
    %v1728 = vld [vmem:[#allocation6 + $0x16d0] sm:$0xff]
    %v1729 = vld [vmem:[#allocation6 + $0x16d8] sm:$0xff]
    %v1730 = vld [vmem:[#allocation6 + $0x16e0] sm:$0xff]
    %v1731 = vld [vmem:[#allocation6 + $0x16e8] sm:$0xff]
    %v1732 = vld [vmem:[#allocation6 + $0x16f0] sm:$0xff]
    %v1733 = vld [vmem:[#allocation6 + $0x16f8] sm:$0xff]
    %v1734 = vld [vmem:[#allocation6 + $0x1700] sm:$0xff]
    %v1735 = vld [vmem:[#allocation6 + $0x1708] sm:$0xff]
    %v1736 = vld [vmem:[#allocation6 + $0x1710] sm:$0xff]
    %v1737 = vld [vmem:[#allocation6 + $0x1718] sm:$0xff]
    %v1738 = vld [vmem:[#allocation6 + $0x1720] sm:$0xff]
    %v1739 = vld [vmem:[#allocation6 + $0x1728] sm:$0xff]
    %v1740 = vld [vmem:[#allocation6 + $0x1730] sm:$0xff]
    %v1741 = vld [vmem:[#allocation6 + $0x1738] sm:$0xff]
    %v1742 = vld [vmem:[#allocation6 + $0x1740] sm:$0xff]
    %v1743 = vld [vmem:[#allocation6 + $0x1748] sm:$0xff]
    %v1744 = vld [vmem:[#allocation6 + $0x1750] sm:$0xff]
    %v1745 = vld [vmem:[#allocation6 + $0x1758] sm:$0xff]
    %v1746 = vld [vmem:[#allocation6 + $0x1760] sm:$0xff]
    %v1747 = vld [vmem:[#allocation6 + $0x1768] sm:$0xff]
    %v1748 = vld [vmem:[#allocation6 + $0x1770] sm:$0xff]
    %v1749 = vld [vmem:[#allocation6 + $0x1778] sm:$0xff]
    %v1750 = vld [vmem:[#allocation6 + $0x1780] sm:$0xff]
    %v1751 = vld [vmem:[#allocation6 + $0x1788] sm:$0xff]
    %v1752 = vld [vmem:[#allocation6 + $0x1790] sm:$0xff]
    %v1753 = vld [vmem:[#allocation6 + $0x1798] sm:$0xff]
    %v1754 = vld [vmem:[#allocation6 + $0x17a0] sm:$0xff]
    %v1755 = vld [vmem:[#allocation6 + $0x17a8] sm:$0xff]
    %v1756 = vld [vmem:[#allocation6 + $0x17b0] sm:$0xff]
    %v1757 = vld [vmem:[#allocation6 + $0x17b8] sm:$0xff]
    %v1758 = vld [vmem:[#allocation6 + $0x17c0] sm:$0xff]
    %v1759 = vld [vmem:[#allocation6 + $0x17c8] sm:$0xff]
    %v1760 = vld [vmem:[#allocation6 + $0x17d0] sm:$0xff]
    %v1761 = vld [vmem:[#allocation6 + $0x17d8] sm:$0xff]
    %v1762 = vld [vmem:[#allocation6 + $0x17e0] sm:$0xff]
    %v1763 = vld [vmem:[#allocation6 + $0x17e8] sm:$0xff]
    %v1764 = vld [vmem:[#allocation6 + $0x17f0] sm:$0xff]
    %v1765 = vld [vmem:[#allocation6 + $0x17f8] sm:$0xff]
    %v1766 = vld [vmem:[#allocation6 + $0x1800] sm:$0xff]
    %v1767 = vld [vmem:[#allocation6 + $0x1808] sm:$0xff]
    %v1768 = vld [vmem:[#allocation6 + $0x1810] sm:$0xff]
    %v1769 = vld [vmem:[#allocation6 + $0x1818] sm:$0xff]
    %v1770 = vld [vmem:[#allocation6 + $0x1820] sm:$0xff]
    %v1771 = vld [vmem:[#allocation6 + $0x1828] sm:$0xff]
    %v1772 = vld [vmem:[#allocation6 + $0x1830] sm:$0xff]
    %v1773 = vld [vmem:[#allocation6 + $0x1838] sm:$0xff]
    %v1774 = vld [vmem:[#allocation6 + $0x1840] sm:$0xff]
    %v1775 = vld [vmem:[#allocation6 + $0x1848] sm:$0xff]
    %v1776 = vld [vmem:[#allocation6 + $0x1850] sm:$0xff]
    %v1777 = vld [vmem:[#allocation6 + $0x1858] sm:$0xff]
    %v1778 = vld [vmem:[#allocation6 + $0x1860] sm:$0xff]
    %v1779 = vld [vmem:[#allocation6 + $0x1868] sm:$0xff]
    %v1780 = vld [vmem:[#allocation6 + $0x1870] sm:$0xff]
    %v1781 = vld [vmem:[#allocation6 + $0x1878] sm:$0xff]
    %v1782 = vld [vmem:[#allocation6 + $0x1880] sm:$0xff]
    %v1783 = vld [vmem:[#allocation6 + $0x1888] sm:$0xff]
    %v1784 = vld [vmem:[#allocation6 + $0x1890] sm:$0xff]
    %v1785 = vld [vmem:[#allocation6 + $0x1898] sm:$0xff]
    %v1786 = vld [vmem:[#allocation6 + $0x18a0] sm:$0xff]
    %v1787 = vld [vmem:[#allocation6 + $0x18a8] sm:$0xff]
    %v1788 = vld [vmem:[#allocation6 + $0x18b0] sm:$0xff]
    %v1789 = vld [vmem:[#allocation6 + $0x18b8] sm:$0xff]
    %v1790 = vld [vmem:[#allocation6 + $0x18c0] sm:$0xff]
    %v1791 = vld [vmem:[#allocation6 + $0x18c8] sm:$0xff]
    %v1792 = vld [vmem:[#allocation6 + $0x18d0] sm:$0xff]
    %v1793 = vld [vmem:[#allocation6 + $0x18d8] sm:$0xff]
    %v1794 = vld [vmem:[#allocation6 + $0x18e0] sm:$0xff]
    %v1795 = vld [vmem:[#allocation6 + $0x18e8] sm:$0xff]
    %v1796 = vld [vmem:[#allocation6 + $0x18f0] sm:$0xff]
    %v1797 = vld [vmem:[#allocation6 + $0x18f8] sm:$0xff]
    %v1798 = vld [vmem:[#allocation6 + $0x1900] sm:$0xff]
    %v1799 = vld [vmem:[#allocation6 + $0x1908] sm:$0xff]
    %v1800 = vld [vmem:[#allocation6 + $0x1910] sm:$0xff]
    %v1801 = vld [vmem:[#allocation6 + $0x1918] sm:$0xff]
    %v1802 = vld [vmem:[#allocation6 + $0x1920] sm:$0xff]
    %v1803 = vld [vmem:[#allocation6 + $0x1928] sm:$0xff]
    %v1804 = vld [vmem:[#allocation6 + $0x1930] sm:$0xff]
    %v1805 = vld [vmem:[#allocation6 + $0x1938] sm:$0xff]
    %v1806 = vld [vmem:[#allocation6 + $0x1940] sm:$0xff]
    %v1807 = vld [vmem:[#allocation6 + $0x1948] sm:$0xff]
    %v1808 = vld [vmem:[#allocation6 + $0x1950] sm:$0xff]
    %v1809 = vld [vmem:[#allocation6 + $0x1958] sm:$0xff]
    %v1810 = vld [vmem:[#allocation6 + $0x1960] sm:$0xff]
    %v1811 = vld [vmem:[#allocation6 + $0x1968] sm:$0xff]
    %v1812 = vld [vmem:[#allocation6 + $0x1970] sm:$0xff]
    %v1813 = vld [vmem:[#allocation6 + $0x1978] sm:$0xff]
    %v1814 = vld [vmem:[#allocation6 + $0x1980] sm:$0xff]
    %v1815 = vld [vmem:[#allocation6 + $0x1988] sm:$0xff]
    %v1816 = vld [vmem:[#allocation6 + $0x1990] sm:$0xff]
    %v1817 = vld [vmem:[#allocation6 + $0x1998] sm:$0xff]
    %v1818 = vld [vmem:[#allocation6 + $0x19a0] sm:$0xff]
    %v1819 = vld [vmem:[#allocation6 + $0x19a8] sm:$0xff]
    %v1820 = vld [vmem:[#allocation6 + $0x19b0] sm:$0xff]
    %v1821 = vld [vmem:[#allocation6 + $0x19b8] sm:$0xff]
    %v1822 = vld [vmem:[#allocation6 + $0x19c0] sm:$0xff]
    %v1823 = vld [vmem:[#allocation6 + $0x19c8] sm:$0xff]
    %v1824 = vld [vmem:[#allocation6 + $0x19d0] sm:$0xff]
    %v1825 = vld [vmem:[#allocation6 + $0x19d8] sm:$0xff]
    %v1826 = vld [vmem:[#allocation6 + $0x19e0] sm:$0xff]
    %v1827 = vld [vmem:[#allocation6 + $0x19e8] sm:$0xff]
    %v1828 = vld [vmem:[#allocation6 + $0x19f0] sm:$0xff]
    %v1829 = vld [vmem:[#allocation6 + $0x19f8] sm:$0xff]
    %v1830 = vld [vmem:[#allocation6 + $0x1a00] sm:$0xff]
    %v1831 = vld [vmem:[#allocation6 + $0x1a08] sm:$0xff]
    %v1832 = vld [vmem:[#allocation6 + $0x1a10] sm:$0xff]
    %v1833 = vld [vmem:[#allocation6 + $0x1a18] sm:$0xff]
    %v1834 = vld [vmem:[#allocation6 + $0x1a20] sm:$0xff]
    %v1835 = vld [vmem:[#allocation6 + $0x1a28] sm:$0xff]
    %v1836 = vld [vmem:[#allocation6 + $0x1a30] sm:$0xff]
    %v1837 = vld [vmem:[#allocation6 + $0x1a38] sm:$0xff]
    %v1838 = vld [vmem:[#allocation6 + $0x1a40] sm:$0xff]
    %v1839 = vld [vmem:[#allocation6 + $0x1a48] sm:$0xff]
    %v1840 = vld [vmem:[#allocation6 + $0x1a50] sm:$0xff]
    %v1841 = vld [vmem:[#allocation6 + $0x1a58] sm:$0xff]
    %v1842 = vld [vmem:[#allocation6 + $0x1a60] sm:$0xff]
    %v1843 = vld [vmem:[#allocation6 + $0x1a68] sm:$0xff]
    %v1844 = vld [vmem:[#allocation6 + $0x1a70] sm:$0xff]
    %v1845 = vld [vmem:[#allocation6 + $0x1a78] sm:$0xff]
    %v1846 = vld [vmem:[#allocation6 + $0x1a80] sm:$0xff]
    %v1847 = vld [vmem:[#allocation6 + $0x1a88] sm:$0xff]
    %v1848 = vld [vmem:[#allocation6 + $0x1a90] sm:$0xff]
    %v1849 = vld [vmem:[#allocation6 + $0x1a98] sm:$0xff]
    %v1850 = vld [vmem:[#allocation6 + $0x1aa0] sm:$0xff]
    %v1851 = vld [vmem:[#allocation6 + $0x1aa8] sm:$0xff]
    %v1852 = vld [vmem:[#allocation6 + $0x1ab0] sm:$0xff]
    %v1853 = vld [vmem:[#allocation6 + $0x1ab8] sm:$0xff]
    %v1854 = vld [vmem:[#allocation6 + $0x1ac0] sm:$0xff]
    %v1855 = vld [vmem:[#allocation6 + $0x1ac8] sm:$0xff]
    %v1856 = vld [vmem:[#allocation6 + $0x1ad0] sm:$0xff]
    %v1857 = vld [vmem:[#allocation6 + $0x1ad8] sm:$0xff]
    %v1858 = vld [vmem:[#allocation6 + $0x1ae0] sm:$0xff]
    %v1859 = vld [vmem:[#allocation6 + $0x1ae8] sm:$0xff]
    %v1860 = vld [vmem:[#allocation6 + $0x1af0] sm:$0xff]
    %v1861 = vld [vmem:[#allocation6 + $0x1af8] sm:$0xff]
    %v1862 = vld [vmem:[#allocation6 + $0x1b00] sm:$0xff]
    %v1863 = vld [vmem:[#allocation6 + $0x1b08] sm:$0xff]
    %v1864 = vld [vmem:[#allocation6 + $0x1b10] sm:$0xff]
    %v1865 = vld [vmem:[#allocation6 + $0x1b18] sm:$0xff]
    %v1866 = vld [vmem:[#allocation6 + $0x1b20] sm:$0xff]
    %v1867 = vld [vmem:[#allocation6 + $0x1b28] sm:$0xff]
    %v1868 = vld [vmem:[#allocation6 + $0x1b30] sm:$0xff]
    %v1869 = vld [vmem:[#allocation6 + $0x1b38] sm:$0xff]
    %v1870 = vld [vmem:[#allocation6 + $0x1b40] sm:$0xff]
    %v1871 = vld [vmem:[#allocation6 + $0x1b48] sm:$0xff]
    %v1872 = vld [vmem:[#allocation6 + $0x1b50] sm:$0xff]
    %v1873 = vld [vmem:[#allocation6 + $0x1b58] sm:$0xff]
    %v1874 = vld [vmem:[#allocation6 + $0x1b60] sm:$0xff]
    %v1875 = vld [vmem:[#allocation6 + $0x1b68] sm:$0xff]
    %v1876 = vld [vmem:[#allocation6 + $0x1b70] sm:$0xff]
    %v1877 = vld [vmem:[#allocation6 + $0x1b78] sm:$0xff]
    %v1878 = vld [vmem:[#allocation6 + $0x1b80] sm:$0xff]
    %v1879 = vld [vmem:[#allocation6 + $0x1b88] sm:$0xff]
    %v1880 = vld [vmem:[#allocation6 + $0x1b90] sm:$0xff]
    %v1881 = vld [vmem:[#allocation6 + $0x1b98] sm:$0xff]
    %v1882 = vld [vmem:[#allocation6 + $0x1ba0] sm:$0xff]
    %v1883 = vld [vmem:[#allocation6 + $0x1ba8] sm:$0xff]
    %v1884 = vld [vmem:[#allocation6 + $0x1bb0] sm:$0xff]
    %v1885 = vld [vmem:[#allocation6 + $0x1bb8] sm:$0xff]
    %v1886 = vld [vmem:[#allocation6 + $0x1bc0] sm:$0xff]
    %v1887 = vld [vmem:[#allocation6 + $0x1bc8] sm:$0xff]
    %v1888 = vld [vmem:[#allocation6 + $0x1bd0] sm:$0xff]
    %v1889 = vld [vmem:[#allocation6 + $0x1bd8] sm:$0xff]
    %v1890 = vld [vmem:[#allocation6 + $0x1be0] sm:$0xff]
    %v1891 = vld [vmem:[#allocation6 + $0x1be8] sm:$0xff]
    %v1892 = vld [vmem:[#allocation6 + $0x1bf0] sm:$0xff]
    %v1893 = vld [vmem:[#allocation6 + $0x1bf8] sm:$0xff]
    %v1894 = vld [vmem:[#allocation6 + $0x1c00] sm:$0xff]
    %v1895 = vld [vmem:[#allocation6 + $0x1c08] sm:$0xff]
    %v1896 = vld [vmem:[#allocation6 + $0x1c10] sm:$0xff]
    %v1897 = vld [vmem:[#allocation6 + $0x1c18] sm:$0xff]
    %v1898 = vld [vmem:[#allocation6 + $0x1c20] sm:$0xff]
    %v1899 = vld [vmem:[#allocation6 + $0x1c28] sm:$0xff]
    %v1900 = vld [vmem:[#allocation6 + $0x1c30] sm:$0xff]
    %v1901 = vld [vmem:[#allocation6 + $0x1c38] sm:$0xff]
    %v1902 = vld [vmem:[#allocation6 + $0x1c40] sm:$0xff]
    %v1903 = vld [vmem:[#allocation6 + $0x1c48] sm:$0xff]
    %v1904 = vld [vmem:[#allocation6 + $0x1c50] sm:$0xff]
    %v1905 = vld [vmem:[#allocation6 + $0x1c58] sm:$0xff]
    %v1906 = vld [vmem:[#allocation6 + $0x1c60] sm:$0xff]
    %v1907 = vld [vmem:[#allocation6 + $0x1c68] sm:$0xff]
    %v1908 = vld [vmem:[#allocation6 + $0x1c70] sm:$0xff]
    %v1909 = vld [vmem:[#allocation6 + $0x1c78] sm:$0xff]
    %v1910 = vld [vmem:[#allocation6 + $0x1c80] sm:$0xff]
    %v1911 = vld [vmem:[#allocation6 + $0x1c88] sm:$0xff]
    %v1912 = vld [vmem:[#allocation6 + $0x1c90] sm:$0xff]
    %v1913 = vld [vmem:[#allocation6 + $0x1c98] sm:$0xff]
    %v1914 = vld [vmem:[#allocation6 + $0x1ca0] sm:$0xff]
    %v1915 = vld [vmem:[#allocation6 + $0x1ca8] sm:$0xff]
    %v1916 = vld [vmem:[#allocation6 + $0x1cb0] sm:$0xff]
    %v1917 = vld [vmem:[#allocation6 + $0x1cb8] sm:$0xff]
    %v1918 = vld [vmem:[#allocation6 + $0x1cc0] sm:$0xff]
    %v1919 = vld [vmem:[#allocation6 + $0x1cc8] sm:$0xff]
    %v1920 = vld [vmem:[#allocation6 + $0x1cd0] sm:$0xff]
    %v1921 = vld [vmem:[#allocation6 + $0x1cd8] sm:$0xff]
    %v1922 = vld [vmem:[#allocation6 + $0x1ce0] sm:$0xff]
    %v1923 = vld [vmem:[#allocation6 + $0x1ce8] sm:$0xff]
    %v1924 = vld [vmem:[#allocation6 + $0x1cf0] sm:$0xff]
    %v1925 = vld [vmem:[#allocation6 + $0x1cf8] sm:$0xff]
    %v1926 = vld [vmem:[#allocation6 + $0x1d00] sm:$0xff]
    %v1927 = vld [vmem:[#allocation6 + $0x1d08] sm:$0xff]
    %v1928 = vld [vmem:[#allocation6 + $0x1d10] sm:$0xff]
    %v1929 = vld [vmem:[#allocation6 + $0x1d18] sm:$0xff]
    %v1930 = vld [vmem:[#allocation6 + $0x1d20] sm:$0xff]
    %v1931 = vld [vmem:[#allocation6 + $0x1d28] sm:$0xff]
    %v1932 = vld [vmem:[#allocation6 + $0x1d30] sm:$0xff]
    %v1933 = vld [vmem:[#allocation6 + $0x1d38] sm:$0xff]
    %v1934 = vld [vmem:[#allocation6 + $0x1d40] sm:$0xff]
    %v1935 = vld [vmem:[#allocation6 + $0x1d48] sm:$0xff]
    %v1936 = vld [vmem:[#allocation6 + $0x1d50] sm:$0xff]
    %v1937 = vld [vmem:[#allocation6 + $0x1d58] sm:$0xff]
    %v1938 = vld [vmem:[#allocation6 + $0x1d60] sm:$0xff]
    %v1939 = vld [vmem:[#allocation6 + $0x1d68] sm:$0xff]
    %v1940 = vld [vmem:[#allocation6 + $0x1d70] sm:$0xff]
    %v1941 = vld [vmem:[#allocation6 + $0x1d78] sm:$0xff]
    %v1942 = vld [vmem:[#allocation6 + $0x1d80] sm:$0xff]
    %v1943 = vld [vmem:[#allocation6 + $0x1d88] sm:$0xff]
    %v1944 = vld [vmem:[#allocation6 + $0x1d90] sm:$0xff]
    %v1945 = vld [vmem:[#allocation6 + $0x1d98] sm:$0xff]
    %v1946 = vld [vmem:[#allocation6 + $0x1da0] sm:$0xff]
    %v1947 = vld [vmem:[#allocation6 + $0x1da8] sm:$0xff]
    %v1948 = vld [vmem:[#allocation6 + $0x1db0] sm:$0xff]
    %v1949 = vld [vmem:[#allocation6 + $0x1db8] sm:$0xff]
    %v1950 = vld [vmem:[#allocation6 + $0x1dc0] sm:$0xff]
    %v1951 = vld [vmem:[#allocation6 + $0x1dc8] sm:$0xff]
    %v1952 = vld [vmem:[#allocation6 + $0x1dd0] sm:$0xff]
    %v1953 = vld [vmem:[#allocation6 + $0x1dd8] sm:$0xff]
    %v1954 = vld [vmem:[#allocation6 + $0x1de0] sm:$0xff]
    %v1955 = vld [vmem:[#allocation6 + $0x1de8] sm:$0xff]
    %v1956 = vld [vmem:[#allocation6 + $0x1df0] sm:$0xff]
    %v1957 = vld [vmem:[#allocation6 + $0x1df8] sm:$0xff]
    %v1958 = vld [vmem:[#allocation6 + $0x1e00] sm:$0xff]
    %v1959 = vld [vmem:[#allocation6 + $0x1e08] sm:$0xff]
    %v1960 = vld [vmem:[#allocation6 + $0x1e10] sm:$0xff]
    %v1961 = vld [vmem:[#allocation6 + $0x1e18] sm:$0xff]
    %v1962 = vld [vmem:[#allocation6 + $0x1e20] sm:$0xff]
    %v1963 = vld [vmem:[#allocation6 + $0x1e28] sm:$0xff]
    %v1964 = vld [vmem:[#allocation6 + $0x1e30] sm:$0xff]
    %v1965 = vld [vmem:[#allocation6 + $0x1e38] sm:$0xff]
    %v1966 = vld [vmem:[#allocation6 + $0x1e40] sm:$0xff]
    %v1967 = vld [vmem:[#allocation6 + $0x1e48] sm:$0xff]
    %v1968 = vld [vmem:[#allocation6 + $0x1e50] sm:$0xff]
    %v1969 = vld [vmem:[#allocation6 + $0x1e58] sm:$0xff]
    %v1970 = vld [vmem:[#allocation6 + $0x1e60] sm:$0xff]
    %v1971 = vld [vmem:[#allocation6 + $0x1e68] sm:$0xff]
    %v1972 = vld [vmem:[#allocation6 + $0x1e70] sm:$0xff]
    %v1973 = vld [vmem:[#allocation6 + $0x1e78] sm:$0xff]
    %v1974 = vld [vmem:[#allocation6 + $0x1e80] sm:$0xff]
    %v1975 = vld [vmem:[#allocation6 + $0x1e88] sm:$0xff]
    %v1976 = vld [vmem:[#allocation6 + $0x1e90] sm:$0xff]
    %v1977 = vld [vmem:[#allocation6 + $0x1e98] sm:$0xff]
    %v1978 = vld [vmem:[#allocation6 + $0x1ea0] sm:$0xff]
    %v1979 = vld [vmem:[#allocation6 + $0x1ea8] sm:$0xff]
    %v1980 = vld [vmem:[#allocation6 + $0x1eb0] sm:$0xff]
    %v1981 = vld [vmem:[#allocation6 + $0x1eb8] sm:$0xff]
    %v1982 = vld [vmem:[#allocation6 + $0x1ec0] sm:$0xff]
    %v1983 = vld [vmem:[#allocation6 + $0x1ec8] sm:$0xff]
    %v1984 = vld [vmem:[#allocation6 + $0x1ed0] sm:$0xff]
    %v1985 = vld [vmem:[#allocation6 + $0x1ed8] sm:$0xff]
    %v1986 = vld [vmem:[#allocation6 + $0x1ee0] sm:$0xff]
    %v1987 = vld [vmem:[#allocation6 + $0x1ee8] sm:$0xff]
    %v1988 = vld [vmem:[#allocation6 + $0x1ef0] sm:$0xff]
    %v1989 = vld [vmem:[#allocation6 + $0x1ef8] sm:$0xff]
    %v1990 = vld [vmem:[#allocation6 + $0x1f00] sm:$0xff]
    %v1991 = vld [vmem:[#allocation6 + $0x1f08] sm:$0xff]
    %v1992 = vld [vmem:[#allocation6 + $0x1f10] sm:$0xff]
    %v1993 = vld [vmem:[#allocation6 + $0x1f18] sm:$0xff]
    %v1994 = vld [vmem:[#allocation6 + $0x1f20] sm:$0xff]
    %v1995 = vld [vmem:[#allocation6 + $0x1f28] sm:$0xff]
    %v1996 = vld [vmem:[#allocation6 + $0x1f30] sm:$0xff]
    %v1997 = vld [vmem:[#allocation6 + $0x1f38] sm:$0xff]
    %v1998 = vld [vmem:[#allocation6 + $0x1f40] sm:$0xff]
    %v1999 = vld [vmem:[#allocation6 + $0x1f48] sm:$0xff]
    %v2000 = vld [vmem:[#allocation6 + $0x1f50] sm:$0xff]
    %v2001 = vld [vmem:[#allocation6 + $0x1f58] sm:$0xff]
    %v2002 = vld [vmem:[#allocation6 + $0x1f60] sm:$0xff]
    %v2003 = vld [vmem:[#allocation6 + $0x1f68] sm:$0xff]
    %v2004 = vld [vmem:[#allocation6 + $0x1f70] sm:$0xff]
    %v2005 = vld [vmem:[#allocation6 + $0x1f78] sm:$0xff]
    %v2006 = vld [vmem:[#allocation6 + $0x1f80] sm:$0xff]
    %v2007 = vld [vmem:[#allocation6 + $0x1f88] sm:$0xff]
    %v2008 = vld [vmem:[#allocation6 + $0x1f90] sm:$0xff]
    %v2009 = vld [vmem:[#allocation6 + $0x1f98] sm:$0xff]
    %v2010 = vld [vmem:[#allocation6 + $0x1fa0] sm:$0xff]
    %v2011 = vld [vmem:[#allocation6 + $0x1fa8] sm:$0xff]
    %v2012 = vld [vmem:[#allocation6 + $0x1fb0] sm:$0xff]
    %v2013 = vld [vmem:[#allocation6 + $0x1fb8] sm:$0xff]
    %v2014 = vld [vmem:[#allocation6 + $0x1fc0] sm:$0xff]
    %v2015 = vld [vmem:[#allocation6 + $0x1fc8] sm:$0xff]
    %v2016 = vld [vmem:[#allocation6 + $0x1fd0] sm:$0xff]
    %v2017 = vld [vmem:[#allocation6 + $0x1fd8] sm:$0xff]
    %v2018 = vld [vmem:[#allocation6 + $0x1fe0] sm:$0xff]
    %v2019 = vld [vmem:[#allocation6 + $0x1fe8] sm:$0xff]
    %v2020 = vld [vmem:[#allocation6 + $0x1ff0] sm:$0xff]
    %v2021 = vld [vmem:[#allocation6 + $0x1ff8] sm:$0xff]
    %v2022 = vld [vmem:[#allocation6 + $0x2000] sm:$0xff]
    %v2023 = vld [vmem:[#allocation6 + $0x2008] sm:$0xff]
    %v2024 = vld [vmem:[#allocation6 + $0x2010] sm:$0xff]
    %v2025 = vld [vmem:[#allocation6 + $0x2018] sm:$0xff]
    %v2026 = vld [vmem:[#allocation6 + $0x2020] sm:$0xff]
    %v2027 = vld [vmem:[#allocation6 + $0x2028] sm:$0xff]
    %v2028 = vld [vmem:[#allocation6 + $0x2030] sm:$0xff]
    %v2029 = vld [vmem:[#allocation6 + $0x2038] sm:$0xff]
    %v2030 = vld [vmem:[#allocation6 + $0x2040] sm:$0xff]
    %v2031 = vld [vmem:[#allocation6 + $0x2048] sm:$0xff]
    %v2032 = vld [vmem:[#allocation6 + $0x2050] sm:$0xff]
    %v2033 = vld [vmem:[#allocation6 + $0x2058] sm:$0xff]
    %v2034 = vld [vmem:[#allocation6 + $0x2060] sm:$0xff]
    %v2035 = vld [vmem:[#allocation6 + $0x2068] sm:$0xff]
    %v2036 = vld [vmem:[#allocation6 + $0x2070] sm:$0xff]
    %v2037 = vld [vmem:[#allocation6 + $0x2078] sm:$0xff]
    %v2038 = vld [vmem:[#allocation6 + $0x2080] sm:$0xff]
    %v2039 = vld [vmem:[#allocation6 + $0x2088] sm:$0xff]
    %v2040 = vld [vmem:[#allocation6 + $0x2090] sm:$0xff]
    %v2041 = vld [vmem:[#allocation6 + $0x2098] sm:$0xff]
    %v2042 = vld [vmem:[#allocation6 + $0x20a0] sm:$0xff]
    %v2043 = vld [vmem:[#allocation6 + $0x20a8] sm:$0xff]
    %v2044 = vld [vmem:[#allocation6 + $0x20b0] sm:$0xff]
    %v2045 = vld [vmem:[#allocation6 + $0x20b8] sm:$0xff]
    %v2046 = vld [vmem:[#allocation6 + $0x20c0] sm:$0xff]
    %v2047 = vld [vmem:[#allocation6 + $0x20c8] sm:$0xff]
    %v2048 = vld [vmem:[#allocation6 + $0x20d0] sm:$0xff]
    %v2049 = vld [vmem:[#allocation6 + $0x20d8] sm:$0xff]
    %v2050 = vld [vmem:[#allocation6 + $0x20e0] sm:$0xff]
    %v2051 = vld [vmem:[#allocation6 + $0x20e8] sm:$0xff]
    %v2052 = vld [vmem:[#allocation6 + $0x20f0] sm:$0xff]
    %v2053 = vld [vmem:[#allocation6 + $0x20f8] sm:$0xff]
    %v2054 = vld [vmem:[#allocation6 + $0x2100] sm:$0xff]
    %v2055 = vld [vmem:[#allocation6 + $0x2108] sm:$0xff]
    %v2056 = vld [vmem:[#allocation6 + $0x2110] sm:$0xff]
    %v2057 = vld [vmem:[#allocation6 + $0x2118] sm:$0xff]
    %v2058 = vld [vmem:[#allocation6 + $0x2120] sm:$0xff]
    %v2059 = vld [vmem:[#allocation6 + $0x2128] sm:$0xff]
    %v2060 = vld [vmem:[#allocation6 + $0x2130] sm:$0xff]
    %v2061 = vld [vmem:[#allocation6 + $0x2138] sm:$0xff]
    %v2062 = vld [vmem:[#allocation6 + $0x2140] sm:$0xff]
    %v2063 = vld [vmem:[#allocation6 + $0x2148] sm:$0xff]
    %v2064 = vld [vmem:[#allocation6 + $0x2150] sm:$0xff]
    %v2065 = vld [vmem:[#allocation6 + $0x2158] sm:$0xff]
    %v2066 = vld [vmem:[#allocation6 + $0x2160] sm:$0xff]
    %v2067 = vld [vmem:[#allocation6 + $0x2168] sm:$0xff]
    %v2068 = vld [vmem:[#allocation6 + $0x2170] sm:$0xff]
    %v2069 = vld [vmem:[#allocation6 + $0x2178] sm:$0xff]
    %v2070 = vld [vmem:[#allocation6 + $0x2180] sm:$0xff]
    %v2071 = vld [vmem:[#allocation6 + $0x2188] sm:$0xff]
    %v2072 = vld [vmem:[#allocation6 + $0x2190] sm:$0xff]
    %v2073 = vld [vmem:[#allocation6 + $0x2198] sm:$0xff]
    %v2074 = vld [vmem:[#allocation6 + $0x21a0] sm:$0xff]
    %v2075 = vld [vmem:[#allocation6 + $0x21a8] sm:$0xff]
    %v2076 = vld [vmem:[#allocation6 + $0x21b0] sm:$0xff]
    %v2077 = vld [vmem:[#allocation6 + $0x21b8] sm:$0xff]
    %v2078 = vld [vmem:[#allocation6 + $0x21c0] sm:$0xff]
    %v2079 = vld [vmem:[#allocation6 + $0x21c8] sm:$0xff]
    %v2080 = vld [vmem:[#allocation6 + $0x21d0] sm:$0xff]
    %v2081 = vld [vmem:[#allocation6 + $0x21d8] sm:$0xff]
    %v2082 = vld [vmem:[#allocation6 + $0x21e0] sm:$0xff]
    %v2083 = vld [vmem:[#allocation6 + $0x21e8] sm:$0xff]
    %v2084 = vld [vmem:[#allocation6 + $0x21f0] sm:$0xff]
    %v2085 = vld [vmem:[#allocation6 + $0x21f8] sm:$0xff]
    %v2086 = vld [vmem:[#allocation6 + $0x2200] sm:$0xff]
    %v2087 = vld [vmem:[#allocation6 + $0x2208] sm:$0xff]
    %v2088 = vld [vmem:[#allocation6 + $0x2210] sm:$0xff]
    %v2089 = vld [vmem:[#allocation6 + $0x2218] sm:$0xff]
    %v2090 = vld [vmem:[#allocation6 + $0x2220] sm:$0xff]
    %v2091 = vld [vmem:[#allocation6 + $0x2228] sm:$0xff]
    %v2092 = vld [vmem:[#allocation6 + $0x2230] sm:$0xff]
    %v2093 = vld [vmem:[#allocation6 + $0x2238] sm:$0xff]
    %v2094 = vld [vmem:[#allocation6 + $0x2240] sm:$0xff]
    %v2095 = vld [vmem:[#allocation6 + $0x2248] sm:$0xff]
    %v2096 = vld [vmem:[#allocation6 + $0x2250] sm:$0xff]
    %v2097 = vld [vmem:[#allocation6 + $0x2258] sm:$0xff]
    %v2098 = vld [vmem:[#allocation6 + $0x2260] sm:$0xff]
    %v2099 = vld [vmem:[#allocation6 + $0x2268] sm:$0xff]
    %v2100 = vld [vmem:[#allocation6 + $0x2270] sm:$0xff]
    %v2101 = vld [vmem:[#allocation6 + $0x2278] sm:$0xff]
    %v2102 = vld [vmem:[#allocation6 + $0x2280] sm:$0xff]
    %v2103 = vld [vmem:[#allocation6 + $0x2288] sm:$0xff]
    %v2104 = vld [vmem:[#allocation6 + $0x2290] sm:$0xff]
    %v2105 = vld [vmem:[#allocation6 + $0x2298] sm:$0xff]
    %v2106 = vld [vmem:[#allocation6 + $0x22a0] sm:$0xff]
    %v2107 = vld [vmem:[#allocation6 + $0x22a8] sm:$0xff]
    %v2108 = vld [vmem:[#allocation6 + $0x22b0] sm:$0xff]
    %v2109 = vld [vmem:[#allocation6 + $0x22b8] sm:$0xff]
    %v2110 = vld [vmem:[#allocation6 + $0x22c0] sm:$0xff]
    %v2111 = vld [vmem:[#allocation6 + $0x22c8] sm:$0xff]
    %v2112 = vld [vmem:[#allocation6 + $0x22d0] sm:$0xff]
    %v2113 = vld [vmem:[#allocation6 + $0x22d8] sm:$0xff]
    %v2114 = vld [vmem:[#allocation6 + $0x22e0] sm:$0xff]
    %v2115 = vld [vmem:[#allocation6 + $0x22e8] sm:$0xff]
    %v2116 = vld [vmem:[#allocation6 + $0x22f0] sm:$0xff]
    %v2117 = vld [vmem:[#allocation6 + $0x22f8] sm:$0xff]
    %v2118 = vld [vmem:[#allocation6 + $0x2300] sm:$0xff]
    %v2119 = vld [vmem:[#allocation6 + $0x2308] sm:$0xff]
    %v2120 = vld [vmem:[#allocation6 + $0x2310] sm:$0xff]
    %v2121 = vld [vmem:[#allocation6 + $0x2318] sm:$0xff]
    %v2122 = vld [vmem:[#allocation6 + $0x2320] sm:$0xff]
    %v2123 = vld [vmem:[#allocation6 + $0x2328] sm:$0xff]
    %v2124 = vld [vmem:[#allocation6 + $0x2330] sm:$0xff]
    %v2125 = vld [vmem:[#allocation6 + $0x2338] sm:$0xff]
    %v2126 = vld [vmem:[#allocation6 + $0x2340] sm:$0xff]
    %v2127 = vld [vmem:[#allocation6 + $0x2348] sm:$0xff]
    %v2128 = vld [vmem:[#allocation6 + $0x2350] sm:$0xff]
    %v2129 = vld [vmem:[#allocation6 + $0x2358] sm:$0xff]
    %v2130 = vld [vmem:[#allocation6 + $0x2360] sm:$0xff]
    %v2131 = vld [vmem:[#allocation6 + $0x2368] sm:$0xff]
    %v2132 = vld [vmem:[#allocation6 + $0x2370] sm:$0xff]
    %v2133 = vld [vmem:[#allocation6 + $0x2378] sm:$0xff]
    %v2134 = vld [vmem:[#allocation6 + $0x2380] sm:$0xff]
    %v2135 = vld [vmem:[#allocation6 + $0x2388] sm:$0xff]
    %v2136 = vld [vmem:[#allocation6 + $0x2390] sm:$0xff]
    %v2137 = vld [vmem:[#allocation6 + $0x2398] sm:$0xff]
    %v2138 = vld [vmem:[#allocation6 + $0x23a0] sm:$0xff]
    %v2139 = vld [vmem:[#allocation6 + $0x23a8] sm:$0xff]
    %v2140 = vld [vmem:[#allocation6 + $0x23b0] sm:$0xff]
    %v2141 = vld [vmem:[#allocation6 + $0x23b8] sm:$0xff]
    %v2142 = vld [vmem:[#allocation6 + $0x23c0] sm:$0xff]
    %v2143 = vld [vmem:[#allocation6 + $0x23c8] sm:$0xff]
    %v2144 = vld [vmem:[#allocation6 + $0x23d0] sm:$0xff]
    %v2145 = vld [vmem:[#allocation6 + $0x23d8] sm:$0xff]
    %v2146 = vld [vmem:[#allocation6 + $0x23e0] sm:$0xff]
    %v2147 = vld [vmem:[#allocation6 + $0x23e8] sm:$0xff]
    %v2148 = vld [vmem:[#allocation6 + $0x23f0] sm:$0xff]
    %v2149 = vld [vmem:[#allocation6 + $0x23f8] sm:$0xff]
    %v2150 = vld [vmem:[#allocation6 + $0x2400] sm:$0xff]
    %v2151 = vld [vmem:[#allocation6 + $0x2408] sm:$0xff]
    %v2152 = vld [vmem:[#allocation6 + $0x2410] sm:$0xff]
    %v2153 = vld [vmem:[#allocation6 + $0x2418] sm:$0xff]
    %v2154 = vld [vmem:[#allocation6 + $0x2420] sm:$0xff]
    %v2155 = vld [vmem:[#allocation6 + $0x2428] sm:$0xff]
    %v2156 = vld [vmem:[#allocation6 + $0x2430] sm:$0xff]
    %v2157 = vld [vmem:[#allocation6 + $0x2438] sm:$0xff]
    %v2158 = vld [vmem:[#allocation6 + $0x2440] sm:$0xff]
    %v2159 = vld [vmem:[#allocation6 + $0x2448] sm:$0xff]
    %v2160 = vld [vmem:[#allocation6 + $0x2450] sm:$0xff]
    %v2161 = vld [vmem:[#allocation6 + $0x2458] sm:$0xff]
    %v2162 = vld [vmem:[#allocation6 + $0x2460] sm:$0xff]
    %v2163 = vld [vmem:[#allocation6 + $0x2468] sm:$0xff]
    %v2164 = vld [vmem:[#allocation6 + $0x2470] sm:$0xff]
    %v2165 = vld [vmem:[#allocation6 + $0x2478] sm:$0xff]
    %v2166 = vld [vmem:[#allocation6 + $0x2480] sm:$0xff]
    %v2167 = vld [vmem:[#allocation6 + $0x2488] sm:$0xff]
    %v2168 = vld [vmem:[#allocation6 + $0x2490] sm:$0xff]
    %v2169 = vld [vmem:[#allocation6 + $0x2498] sm:$0xff]
    %v2170 = vld [vmem:[#allocation6 + $0x24a0] sm:$0xff]
    %v2171 = vld [vmem:[#allocation6 + $0x24a8] sm:$0xff]
    %v2172 = vld [vmem:[#allocation6 + $0x24b0] sm:$0xff]
    %v2173 = vld [vmem:[#allocation6 + $0x24b8] sm:$0xff]
    %v2174 = vld [vmem:[#allocation6 + $0x24c0] sm:$0xff]
    %v2175 = vld [vmem:[#allocation6 + $0x24c8] sm:$0xff]
    %v2176 = vld [vmem:[#allocation6 + $0x24d0] sm:$0xff]
    %v2177 = vld [vmem:[#allocation6 + $0x24d8] sm:$0xff]
    %v2178 = vld [vmem:[#allocation6 + $0x24e0] sm:$0xff]
    %v2179 = vld [vmem:[#allocation6 + $0x24e8] sm:$0xff]
    %v2180 = vld [vmem:[#allocation6 + $0x24f0] sm:$0xff]
    %v2181 = vld [vmem:[#allocation6 + $0x24f8] sm:$0xff]
    %v2182 = vld [vmem:[#allocation6 + $0x2500] sm:$0xff]
    %v2183 = vld [vmem:[#allocation6 + $0x2508] sm:$0xff]
    %v2184 = vld [vmem:[#allocation6 + $0x2510] sm:$0xff]
    %v2185 = vld [vmem:[#allocation6 + $0x2518] sm:$0xff]
    %v2186 = vld [vmem:[#allocation6 + $0x2520] sm:$0xff]
    %v2187 = vld [vmem:[#allocation6 + $0x2528] sm:$0xff]
    %v2188 = vld [vmem:[#allocation6 + $0x2530] sm:$0xff]
    %v2189 = vld [vmem:[#allocation6 + $0x2538] sm:$0xff]
    %v2190 = vld [vmem:[#allocation6 + $0x2540] sm:$0xff]
    %v2191 = vld [vmem:[#allocation6 + $0x2548] sm:$0xff]
    %v2192 = vld [vmem:[#allocation6 + $0x2550] sm:$0xff]
    %v2193 = vld [vmem:[#allocation6 + $0x2558] sm:$0xff]
    %v2194 = vld [vmem:[#allocation6 + $0x2560] sm:$0xff]
    %v2195 = vld [vmem:[#allocation6 + $0x2568] sm:$0xff]
    %v2196 = vld [vmem:[#allocation6 + $0x2570] sm:$0xff]
    %v2197 = vld [vmem:[#allocation6 + $0x2578] sm:$0xff]
    %v2198 = vld [vmem:[#allocation6 + $0x2580] sm:$0xff]
    %v2199 = vld [vmem:[#allocation6 + $0x2588] sm:$0xff]
    %v2200 = vld [vmem:[#allocation6 + $0x2590] sm:$0xff]
    %v2201 = vld [vmem:[#allocation6 + $0x2598] sm:$0xff]
    %v2202 = vld [vmem:[#allocation6 + $0x25a0] sm:$0xff]
    %v2203 = vld [vmem:[#allocation6 + $0x25a8] sm:$0xff]
    %v2204 = vld [vmem:[#allocation6 + $0x25b0] sm:$0xff]
    %v2205 = vld [vmem:[#allocation6 + $0x25b8] sm:$0xff]
    %v2206 = vld [vmem:[#allocation6 + $0x25c0] sm:$0xff]
    %v2207 = vld [vmem:[#allocation6 + $0x25c8] sm:$0xff]
    %v2208 = vld [vmem:[#allocation6 + $0x25d0] sm:$0xff]
    %v2209 = vld [vmem:[#allocation6 + $0x25d8] sm:$0xff]
    %v2210 = vld [vmem:[#allocation6 + $0x25e0] sm:$0xff]
    %v2211 = vld [vmem:[#allocation6 + $0x25e8] sm:$0xff]
    %v2212 = vld [vmem:[#allocation6 + $0x25f0] sm:$0xff]
    %v2213 = vld [vmem:[#allocation6 + $0x25f8] sm:$0xff]
    %v2214 = vld [vmem:[#allocation6 + $0x2600] sm:$0xff]
    %v2215 = vld [vmem:[#allocation6 + $0x2608] sm:$0xff]
    %v2216 = vld [vmem:[#allocation6 + $0x2610] sm:$0xff]
    %v2217 = vld [vmem:[#allocation6 + $0x2618] sm:$0xff]
    %v2218 = vld [vmem:[#allocation6 + $0x2620] sm:$0xff]
    %v2219 = vld [vmem:[#allocation6 + $0x2628] sm:$0xff]
    %v2220 = vld [vmem:[#allocation6 + $0x2630] sm:$0xff]
    %v2221 = vld [vmem:[#allocation6 + $0x2638] sm:$0xff]
    %v2222 = vld [vmem:[#allocation6 + $0x2640] sm:$0xff]
    %v2223 = vld [vmem:[#allocation6 + $0x2648] sm:$0xff]
    %v2224 = vld [vmem:[#allocation6 + $0x2650] sm:$0xff]
    %v2225 = vld [vmem:[#allocation6 + $0x2658] sm:$0xff]
    %v2226 = vld [vmem:[#allocation6 + $0x2660] sm:$0xff]
    %v2227 = vld [vmem:[#allocation6 + $0x2668] sm:$0xff]
    %v2228 = vld [vmem:[#allocation6 + $0x2670] sm:$0xff]
    %v2229 = vld [vmem:[#allocation6 + $0x2678] sm:$0xff]
    %v2230 = vld [vmem:[#allocation6 + $0x2680] sm:$0xff]
    %v2231 = vld [vmem:[#allocation6 + $0x2688] sm:$0xff]
    %v2232 = vld [vmem:[#allocation6 + $0x2690] sm:$0xff]
    %v2233 = vld [vmem:[#allocation6 + $0x2698] sm:$0xff]
    %v2234 = vld [vmem:[#allocation6 + $0x26a0] sm:$0xff]
    %v2235 = vld [vmem:[#allocation6 + $0x26a8] sm:$0xff]
    %v2236 = vld [vmem:[#allocation6 + $0x26b0] sm:$0xff]
    %v2237 = vld [vmem:[#allocation6 + $0x26b8] sm:$0xff]
    %v2238 = vld [vmem:[#allocation6 + $0x26c0] sm:$0xff]
    %v2239 = vld [vmem:[#allocation6 + $0x26c8] sm:$0xff]
    %v2240 = vld [vmem:[#allocation6 + $0x26d0] sm:$0xff]
    %v2241 = vld [vmem:[#allocation6 + $0x26d8] sm:$0xff]
    %v2242 = vld [vmem:[#allocation6 + $0x26e0] sm:$0xff]
    %v2243 = vld [vmem:[#allocation6 + $0x26e8] sm:$0xff]
    %v2244 = vld [vmem:[#allocation6 + $0x26f0] sm:$0xff]
    %v2245 = vld [vmem:[#allocation6 + $0x26f8] sm:$0xff]
    %v2246 = vld [vmem:[#allocation6 + $0x2700] sm:$0xff]
    %v2247 = vld [vmem:[#allocation6 + $0x2708] sm:$0xff]
    %v2248 = vld [vmem:[#allocation6 + $0x2710] sm:$0xff]
    %v2249 = vld [vmem:[#allocation6 + $0x2718] sm:$0xff]
    %v2250 = vld [vmem:[#allocation6 + $0x2720] sm:$0xff]
    %v2251 = vld [vmem:[#allocation6 + $0x2728] sm:$0xff]
    %v2252 = vld [vmem:[#allocation6 + $0x2730] sm:$0xff]
    %v2253 = vld [vmem:[#allocation6 + $0x2738] sm:$0xff]
    %v2254 = vld [vmem:[#allocation6 + $0x2740] sm:$0xff]
    %v2255 = vld [vmem:[#allocation6 + $0x2748] sm:$0xff]
    %v2256 = vld [vmem:[#allocation6 + $0x2750] sm:$0xff]
    %v2257 = vld [vmem:[#allocation6 + $0x2758] sm:$0xff]
    %v2258 = vld [vmem:[#allocation6 + $0x2760] sm:$0xff]
    %v2259 = vld [vmem:[#allocation6 + $0x2768] sm:$0xff]
    %v2260 = vld [vmem:[#allocation6 + $0x2770] sm:$0xff]
    %v2261 = vld [vmem:[#allocation6 + $0x2778] sm:$0xff]
    %v2262 = vld [vmem:[#allocation6 + $0x2780] sm:$0xff]
    %v2263 = vld [vmem:[#allocation6 + $0x2788] sm:$0xff]
    %v2264 = vld [vmem:[#allocation6 + $0x2790] sm:$0xff]
    %v2265 = vld [vmem:[#allocation6 + $0x2798] sm:$0xff]
    %v2266 = vld [vmem:[#allocation6 + $0x27a0] sm:$0xff]
    %v2267 = vld [vmem:[#allocation6 + $0x27a8] sm:$0xff]
    %v2268 = vld [vmem:[#allocation6 + $0x27b0] sm:$0xff]
    %v2269 = vld [vmem:[#allocation6 + $0x27b8] sm:$0xff]
    %v2270 = vld [vmem:[#allocation6 + $0x27c0] sm:$0xff]
    %v2271 = vld [vmem:[#allocation6 + $0x27c8] sm:$0xff]
    %v2272 = vld [vmem:[#allocation6 + $0x27d0] sm:$0xff]
    %v2273 = vld [vmem:[#allocation6 + $0x27d8] sm:$0xff]
    %v2274 = vld [vmem:[#allocation6 + $0x27e0] sm:$0xff]
    %v2275 = vld [vmem:[#allocation6 + $0x27e8] sm:$0xff]
    %v2276 = vld [vmem:[#allocation6 + $0x27f0] sm:$0xff]
    %v2277 = vld [vmem:[#allocation6 + $0x27f8] sm:$0xff]
    %v2278 = vld [vmem:[#allocation6 + $0x2800] sm:$0xff]
    %v2279 = vld [vmem:[#allocation6 + $0x2808] sm:$0xff]
    %v2280 = vld [vmem:[#allocation6 + $0x2810] sm:$0xff]
    %v2281 = vld [vmem:[#allocation6 + $0x2818] sm:$0xff]
    %v2282 = vld [vmem:[#allocation6 + $0x2820] sm:$0xff]
    %v2283 = vld [vmem:[#allocation6 + $0x2828] sm:$0xff]
    %v2284 = vld [vmem:[#allocation6 + $0x2830] sm:$0xff]
    %v2285 = vld [vmem:[#allocation6 + $0x2838] sm:$0xff]
    %v2286 = vld [vmem:[#allocation6 + $0x2840] sm:$0xff]
    %v2287 = vld [vmem:[#allocation6 + $0x2848] sm:$0xff]
    %v2288 = vld [vmem:[#allocation6 + $0x2850] sm:$0xff]
    %v2289 = vld [vmem:[#allocation6 + $0x2858] sm:$0xff]
    %v2290 = vld [vmem:[#allocation6 + $0x2860] sm:$0xff]
    %v2291 = vld [vmem:[#allocation6 + $0x2868] sm:$0xff]
    %v2292 = vld [vmem:[#allocation6 + $0x2870] sm:$0xff]
    %v2293 = vld [vmem:[#allocation6 + $0x2878] sm:$0xff]
    %v2294 = vld [vmem:[#allocation6 + $0x2880] sm:$0xff]
    %v2295 = vld [vmem:[#allocation6 + $0x2888] sm:$0xff]
    %v2296 = vld [vmem:[#allocation6 + $0x2890] sm:$0xff]
    %v2297 = vld [vmem:[#allocation6 + $0x2898] sm:$0xff]
    %v2298 = vld [vmem:[#allocation6 + $0x28a0] sm:$0xff]
    %v2299 = vld [vmem:[#allocation6 + $0x28a8] sm:$0xff]
    %v2300 = vld [vmem:[#allocation6 + $0x28b0] sm:$0xff]
    %v2301 = vld [vmem:[#allocation6 + $0x28b8] sm:$0xff]
    %v2302 = vld [vmem:[#allocation6 + $0x28c0] sm:$0xff]
    %v2303 = vld [vmem:[#allocation6 + $0x28c8] sm:$0xff]
    %v2304 = vld [vmem:[#allocation6 + $0x28d0] sm:$0xff]
    %v2305 = vld [vmem:[#allocation6 + $0x28d8] sm:$0xff]
    %v2306 = vld [vmem:[#allocation6 + $0x28e0] sm:$0xff]
    %v2307 = vld [vmem:[#allocation6 + $0x28e8] sm:$0xff]
    %v2308 = vld [vmem:[#allocation6 + $0x28f0] sm:$0xff]
    %v2309 = vld [vmem:[#allocation6 + $0x28f8] sm:$0xff]
    %v2310 = vld [vmem:[#allocation6 + $0x2900] sm:$0xff]
    %v2311 = vld [vmem:[#allocation6 + $0x2908] sm:$0xff]
    %v2312 = vld [vmem:[#allocation6 + $0x2910] sm:$0xff]
    %v2313 = vld [vmem:[#allocation6 + $0x2918] sm:$0xff]
    %v2314 = vld [vmem:[#allocation6 + $0x2920] sm:$0xff]
    %v2315 = vld [vmem:[#allocation6 + $0x2928] sm:$0xff]
    %v2316 = vld [vmem:[#allocation6 + $0x2930] sm:$0xff]
    %v2317 = vld [vmem:[#allocation6 + $0x2938] sm:$0xff]
    %v2318 = vld [vmem:[#allocation6 + $0x2940] sm:$0xff]
    %v2319 = vld [vmem:[#allocation6 + $0x2948] sm:$0xff]
    %v2320 = vld [vmem:[#allocation6 + $0x2950] sm:$0xff]
    %v2321 = vld [vmem:[#allocation6 + $0x2958] sm:$0xff]
    %v2322 = vld [vmem:[#allocation6 + $0x2960] sm:$0xff]
    %v2323 = vld [vmem:[#allocation6 + $0x2968] sm:$0xff]
    %v2324 = vld [vmem:[#allocation6 + $0x2970] sm:$0xff]
    %v2325 = vld [vmem:[#allocation6 + $0x2978] sm:$0xff]
    %v2326 = vld [vmem:[#allocation6 + $0x2980] sm:$0xff]
    %v2327 = vld [vmem:[#allocation6 + $0x2988] sm:$0xff]
    %v2328 = vld [vmem:[#allocation6 + $0x2990] sm:$0xff]
    %v2329 = vld [vmem:[#allocation6 + $0x2998] sm:$0xff]
    %v2330 = vld [vmem:[#allocation6 + $0x29a0] sm:$0xff]
    %v2331 = vld [vmem:[#allocation6 + $0x29a8] sm:$0xff]
    %v2332 = vld [vmem:[#allocation6 + $0x29b0] sm:$0xff]
    %v2333 = vld [vmem:[#allocation6 + $0x29b8] sm:$0xff]
    %v2334 = vld [vmem:[#allocation6 + $0x29c0] sm:$0xff]
    %v2335 = vld [vmem:[#allocation6 + $0x29c8] sm:$0xff]
    %v2336 = vld [vmem:[#allocation6 + $0x29d0] sm:$0xff]
    %v2337 = vld [vmem:[#allocation6 + $0x29d8] sm:$0xff]
    %v2338 = vld [vmem:[#allocation6 + $0x29e0] sm:$0xff]
    %v2339 = vld [vmem:[#allocation6 + $0x29e8] sm:$0xff]
    %v2340 = vld [vmem:[#allocation6 + $0x29f0] sm:$0xff]
    %v2341 = vld [vmem:[#allocation6 + $0x29f8] sm:$0xff]
    %v2342 = vld [vmem:[#allocation6 + $0x2a00] sm:$0xff]
    %v2343 = vld [vmem:[#allocation6 + $0x2a08] sm:$0xff]
    %v2344 = vld [vmem:[#allocation6 + $0x2a10] sm:$0xff]
    %v2345 = vld [vmem:[#allocation6 + $0x2a18] sm:$0xff]
    %v2346 = vld [vmem:[#allocation6 + $0x2a20] sm:$0xff]
    %v2347 = vld [vmem:[#allocation6 + $0x2a28] sm:$0xff]
    %v2348 = vld [vmem:[#allocation6 + $0x2a30] sm:$0xff]
    %v2349 = vld [vmem:[#allocation6 + $0x2a38] sm:$0xff]
    %v2350 = vld [vmem:[#allocation6 + $0x2a40] sm:$0xff]
    %v2351 = vld [vmem:[#allocation6 + $0x2a48] sm:$0xff]
    %v2352 = vld [vmem:[#allocation6 + $0x2a50] sm:$0xff]
    %v2353 = vld [vmem:[#allocation6 + $0x2a58] sm:$0xff]
    %v2354 = vld [vmem:[#allocation6 + $0x2a60] sm:$0xff]
    %v2355 = vld [vmem:[#allocation6 + $0x2a68] sm:$0xff]
    %v2356 = vld [vmem:[#allocation6 + $0x2a70] sm:$0xff]
    %v2357 = vld [vmem:[#allocation6 + $0x2a78] sm:$0xff]
    %v2358 = vld [vmem:[#allocation6 + $0x2a80] sm:$0xff]
    %v2359 = vld [vmem:[#allocation6 + $0x2a88] sm:$0xff]
    %v2360 = vld [vmem:[#allocation6 + $0x2a90] sm:$0xff]
    %v2361 = vld [vmem:[#allocation6 + $0x2a98] sm:$0xff]
    %v2362 = vld [vmem:[#allocation6 + $0x2aa0] sm:$0xff]
    %v2363 = vld [vmem:[#allocation6 + $0x2aa8] sm:$0xff]
    %v2364 = vld [vmem:[#allocation6 + $0x2ab0] sm:$0xff]
    %v2365 = vld [vmem:[#allocation6 + $0x2ab8] sm:$0xff]
    %v2366 = vld [vmem:[#allocation6 + $0x2ac0] sm:$0xff]
    %v2367 = vld [vmem:[#allocation6 + $0x2ac8] sm:$0xff]
    %v2368 = vld [vmem:[#allocation6 + $0x2ad0] sm:$0xff]
    %v2369 = vld [vmem:[#allocation6 + $0x2ad8] sm:$0xff]
    %v2370 = vld [vmem:[#allocation6 + $0x2ae0] sm:$0xff]
    %v2371 = vld [vmem:[#allocation6 + $0x2ae8] sm:$0xff]
    %v2372 = vld [vmem:[#allocation6 + $0x2af0] sm:$0xff]
    %v2373 = vld [vmem:[#allocation6 + $0x2af8] sm:$0xff]
    %v2374 = vld [vmem:[#allocation6 + $0x2b00] sm:$0xff]
    %v2375 = vld [vmem:[#allocation6 + $0x2b08] sm:$0xff]
    %v2376 = vld [vmem:[#allocation6 + $0x2b10] sm:$0xff]
    %v2377 = vld [vmem:[#allocation6 + $0x2b18] sm:$0xff]
    %v2378 = vld [vmem:[#allocation6 + $0x2b20] sm:$0xff]
    %v2379 = vld [vmem:[#allocation6 + $0x2b28] sm:$0xff]
    %v2380 = vld [vmem:[#allocation6 + $0x2b30] sm:$0xff]
    %v2381 = vld [vmem:[#allocation6 + $0x2b38] sm:$0xff]
    %v2382 = vld [vmem:[#allocation6 + $0x2b40] sm:$0xff]
    %v2383 = vld [vmem:[#allocation6 + $0x2b48] sm:$0xff]
    %v2384 = vld [vmem:[#allocation6 + $0x2b50] sm:$0xff]
    %v2385 = vld [vmem:[#allocation6 + $0x2b58] sm:$0xff]
    %v2386 = vld [vmem:[#allocation6 + $0x2b60] sm:$0xff]
    %v2387 = vld [vmem:[#allocation6 + $0x2b68] sm:$0xff]
    %v2388 = vld [vmem:[#allocation6 + $0x2b70] sm:$0xff]
    %v2389 = vld [vmem:[#allocation6 + $0x2b78] sm:$0xff]
    %v2390 = vld [vmem:[#allocation6 + $0x2b80] sm:$0xff]
    %v2391 = vld [vmem:[#allocation6 + $0x2b88] sm:$0xff]
    %v2392 = vld [vmem:[#allocation6 + $0x2b90] sm:$0xff]
    %v2393 = vld [vmem:[#allocation6 + $0x2b98] sm:$0xff]
    %v2394 = vld [vmem:[#allocation6 + $0x2ba0] sm:$0xff]
    %v2395 = vld [vmem:[#allocation6 + $0x2ba8] sm:$0xff]
    %v2396 = vld [vmem:[#allocation6 + $0x2bb0] sm:$0xff]
    %v2397 = vld [vmem:[#allocation6 + $0x2bb8] sm:$0xff]
    %v2398 = vld [vmem:[#allocation6 + $0x2bc0] sm:$0xff]
    %v2399 = vld [vmem:[#allocation6 + $0x2bc8] sm:$0xff]
    %v2400 = vld [vmem:[#allocation6 + $0x2bd0] sm:$0xff]
    %v2401 = vld [vmem:[#allocation6 + $0x2bd8] sm:$0xff]
    %v2402 = vld [vmem:[#allocation6 + $0x2be0] sm:$0xff]
    %v2403 = vld [vmem:[#allocation6 + $0x2be8] sm:$0xff]
    %v2404 = vld [vmem:[#allocation6 + $0x2bf0] sm:$0xff]
    %v2405 = vld [vmem:[#allocation6 + $0x2bf8] sm:$0xff]
    %v2406 = vld [vmem:[#allocation6 + $0x2c00] sm:$0xff]
    %v2407 = vld [vmem:[#allocation6 + $0x2c08] sm:$0xff]
    %v2408 = vld [vmem:[#allocation6 + $0x2c10] sm:$0xff]
    %v2409 = vld [vmem:[#allocation6 + $0x2c18] sm:$0xff]
    %v2410 = vld [vmem:[#allocation6 + $0x2c20] sm:$0xff]
    %v2411 = vld [vmem:[#allocation6 + $0x2c28] sm:$0xff]
    %v2412 = vld [vmem:[#allocation6 + $0x2c30] sm:$0xff]
    %v2413 = vld [vmem:[#allocation6 + $0x2c38] sm:$0xff]
    %v2414 = vld [vmem:[#allocation6 + $0x2c40] sm:$0xff]
    %v2415 = vld [vmem:[#allocation6 + $0x2c48] sm:$0xff]
    %v2416 = vld [vmem:[#allocation6 + $0x2c50] sm:$0xff]
    %v2417 = vld [vmem:[#allocation6 + $0x2c58] sm:$0xff]
    %v2418 = vld [vmem:[#allocation6 + $0x2c60] sm:$0xff]
    %v2419 = vld [vmem:[#allocation6 + $0x2c68] sm:$0xff]
    %v2420 = vld [vmem:[#allocation6 + $0x2c70] sm:$0xff]
    %v2421 = vld [vmem:[#allocation6 + $0x2c78] sm:$0xff]
    %v2422 = vld [vmem:[#allocation6 + $0x2c80] sm:$0xff]
    %v2423 = vld [vmem:[#allocation6 + $0x2c88] sm:$0xff]
    %v2424 = vld [vmem:[#allocation6 + $0x2c90] sm:$0xff]
    %v2425 = vld [vmem:[#allocation6 + $0x2c98] sm:$0xff]
    %v2426 = vld [vmem:[#allocation6 + $0x2ca0] sm:$0xff]
    %v2427 = vld [vmem:[#allocation6 + $0x2ca8] sm:$0xff]
    %v2428 = vld [vmem:[#allocation6 + $0x2cb0] sm:$0xff]
    %v2429 = vld [vmem:[#allocation6 + $0x2cb8] sm:$0xff]
    %v2430 = vld [vmem:[#allocation6 + $0x2cc0] sm:$0xff]
    %v2431 = vld [vmem:[#allocation6 + $0x2cc8] sm:$0xff]
    %v2432 = vld [vmem:[#allocation6 + $0x2cd0] sm:$0xff]
    %v2433 = vld [vmem:[#allocation6 + $0x2cd8] sm:$0xff]
    %v2434 = vld [vmem:[#allocation6 + $0x2ce0] sm:$0xff]
    %v2435 = vld [vmem:[#allocation6 + $0x2ce8] sm:$0xff]
    %v2436 = vld [vmem:[#allocation6 + $0x2cf0] sm:$0xff]
    %v2437 = vld [vmem:[#allocation6 + $0x2cf8] sm:$0xff]
    %v2438 = vld [vmem:[#allocation6 + $0x2d00] sm:$0xff]
    %v2439 = vld [vmem:[#allocation6 + $0x2d08] sm:$0xff]
    %v2440 = vld [vmem:[#allocation6 + $0x2d10] sm:$0xff]
    %v2441 = vld [vmem:[#allocation6 + $0x2d18] sm:$0xff]
    %v2442 = vld [vmem:[#allocation6 + $0x2d20] sm:$0xff]
    %v2443 = vld [vmem:[#allocation6 + $0x2d28] sm:$0xff]
    %v2444 = vld [vmem:[#allocation6 + $0x2d30] sm:$0xff]
    %v2445 = vld [vmem:[#allocation6 + $0x2d38] sm:$0xff]
    %v2446 = vld [vmem:[#allocation6 + $0x2d40] sm:$0xff]
    %v2447 = vld [vmem:[#allocation6 + $0x2d48] sm:$0xff]
    %v2448 = vld [vmem:[#allocation6 + $0x2d50] sm:$0xff]
    %v2449 = vld [vmem:[#allocation6 + $0x2d58] sm:$0xff]
    %v2450 = vld [vmem:[#allocation6 + $0x2d60] sm:$0xff]
    %v2451 = vld [vmem:[#allocation6 + $0x2d68] sm:$0xff]
    %v2452 = vld [vmem:[#allocation6 + $0x2d70] sm:$0xff]
    %v2453 = vld [vmem:[#allocation6 + $0x2d78] sm:$0xff]
    %v2454 = vld [vmem:[#allocation6 + $0x2d80] sm:$0xff]
    %v2455 = vld [vmem:[#allocation6 + $0x2d88] sm:$0xff]
    %v2456 = vld [vmem:[#allocation6 + $0x2d90] sm:$0xff]
    %v2457 = vld [vmem:[#allocation6 + $0x2d98] sm:$0xff]
    %v2458 = vld [vmem:[#allocation6 + $0x2da0] sm:$0xff]
    %v2459 = vld [vmem:[#allocation6 + $0x2da8] sm:$0xff]
    %v2460 = vld [vmem:[#allocation6 + $0x2db0] sm:$0xff]
    %v2461 = vld [vmem:[#allocation6 + $0x2db8] sm:$0xff]
    %v2462 = vld [vmem:[#allocation6 + $0x2dc0] sm:$0xff]
    %v2463 = vld [vmem:[#allocation6 + $0x2dc8] sm:$0xff]
    %v2464 = vld [vmem:[#allocation6 + $0x2dd0] sm:$0xff]
    %v2465 = vld [vmem:[#allocation6 + $0x2dd8] sm:$0xff]
    %v2466 = vld [vmem:[#allocation6 + $0x2de0] sm:$0xff]
    %v2467 = vld [vmem:[#allocation6 + $0x2de8] sm:$0xff]
    %v2468 = vld [vmem:[#allocation6 + $0x2df0] sm:$0xff]
    %v2469 = vld [vmem:[#allocation6 + $0x2df8] sm:$0xff]
    %v2470 = vld [vmem:[#allocation6 + $0x2e00] sm:$0xff]
    %v2471 = vld [vmem:[#allocation6 + $0x2e08] sm:$0xff]
    %v2472 = vld [vmem:[#allocation6 + $0x2e10] sm:$0xff]
    %v2473 = vld [vmem:[#allocation6 + $0x2e18] sm:$0xff]
    %v2474 = vld [vmem:[#allocation6 + $0x2e20] sm:$0xff]
    %v2475 = vld [vmem:[#allocation6 + $0x2e28] sm:$0xff]
    %v2476 = vld [vmem:[#allocation6 + $0x2e30] sm:$0xff]
    %v2477 = vld [vmem:[#allocation6 + $0x2e38] sm:$0xff]
    %v2478 = vld [vmem:[#allocation6 + $0x2e40] sm:$0xff]
    %v2479 = vld [vmem:[#allocation6 + $0x2e48] sm:$0xff]
    %v2480 = vld [vmem:[#allocation6 + $0x2e50] sm:$0xff]
    %v2481 = vld [vmem:[#allocation6 + $0x2e58] sm:$0xff]
    %v2482 = vld [vmem:[#allocation6 + $0x2e60] sm:$0xff]
    %v2483 = vld [vmem:[#allocation6 + $0x2e68] sm:$0xff]
    %v2484 = vld [vmem:[#allocation6 + $0x2e70] sm:$0xff]
    %v2485 = vld [vmem:[#allocation6 + $0x2e78] sm:$0xff]
    %v2486 = vld [vmem:[#allocation6 + $0x2e80] sm:$0xff]
    %v2487 = vld [vmem:[#allocation6 + $0x2e88] sm:$0xff]
    %v2488 = vld [vmem:[#allocation6 + $0x2e90] sm:$0xff]
    %v2489 = vld [vmem:[#allocation6 + $0x2e98] sm:$0xff]
    %v2490 = vld [vmem:[#allocation6 + $0x2ea0] sm:$0xff]
    %v2491 = vld [vmem:[#allocation6 + $0x2ea8] sm:$0xff]
    %v2492 = vld [vmem:[#allocation6 + $0x2eb0] sm:$0xff]
    %v2493 = vld [vmem:[#allocation6 + $0x2eb8] sm:$0xff]
    %v2494 = vld [vmem:[#allocation6 + $0x2ec0] sm:$0xff]
    %v2495 = vld [vmem:[#allocation6 + $0x2ec8] sm:$0xff]
    %v2496 = vld [vmem:[#allocation6 + $0x2ed0] sm:$0xff]
    %v2497 = vld [vmem:[#allocation6 + $0x2ed8] sm:$0xff]
    %v2498 = vld [vmem:[#allocation6 + $0x2ee0] sm:$0xff]
    %v2499 = vld [vmem:[#allocation6 + $0x2ee8] sm:$0xff]
    %v2500 = vld [vmem:[#allocation6 + $0x2ef0] sm:$0xff]
    %v2501 = vld [vmem:[#allocation6 + $0x2ef8] sm:$0xff]
    %v2502 = vld [vmem:[#allocation6 + $0x2f00] sm:$0xff]
    %v2503 = vld [vmem:[#allocation6 + $0x2f08] sm:$0xff]
    %v2504 = vld [vmem:[#allocation6 + $0x2f10] sm:$0xff]
    %v2505 = vld [vmem:[#allocation6 + $0x2f18] sm:$0xff]
    %v2506 = vld [vmem:[#allocation6 + $0x2f20] sm:$0xff]
    %v2507 = vld [vmem:[#allocation6 + $0x2f28] sm:$0xff]
    %v2508 = vld [vmem:[#allocation6 + $0x2f30] sm:$0xff]
    %v2509 = vld [vmem:[#allocation6 + $0x2f38] sm:$0xff]
    %v2510 = vld [vmem:[#allocation6 + $0x2f40] sm:$0xff]
    %v2511 = vld [vmem:[#allocation6 + $0x2f48] sm:$0xff]
    %v2512 = vld [vmem:[#allocation6 + $0x2f50] sm:$0xff]
    %v2513 = vld [vmem:[#allocation6 + $0x2f58] sm:$0xff]
    %v2514 = vld [vmem:[#allocation6 + $0x2f60] sm:$0xff]
    %v2515 = vld [vmem:[#allocation6 + $0x2f68] sm:$0xff]
    %v2516 = vld [vmem:[#allocation6 + $0x2f70] sm:$0xff]
    %v2517 = vld [vmem:[#allocation6 + $0x2f78] sm:$0xff]
    %v2518 = vld [vmem:[#allocation6 + $0x2f80] sm:$0xff]
    %v2519 = vld [vmem:[#allocation6 + $0x2f88] sm:$0xff]
    %v2520 = vld [vmem:[#allocation6 + $0x2f90] sm:$0xff]
    %v2521 = vld [vmem:[#allocation6 + $0x2f98] sm:$0xff]
    %v2522 = vld [vmem:[#allocation6 + $0x2fa0] sm:$0xff]
    %v2523 = vld [vmem:[#allocation6 + $0x2fa8] sm:$0xff]
    %v2524 = vld [vmem:[#allocation6 + $0x2fb0] sm:$0xff]
    %v2525 = vld [vmem:[#allocation6 + $0x2fb8] sm:$0xff]
    %v2526 = vld [vmem:[#allocation6 + $0x2fc0] sm:$0xff]
    %v2527 = vld [vmem:[#allocation6 + $0x2fc8] sm:$0xff]
    %v2528 = vld [vmem:[#allocation6 + $0x2fd0] sm:$0xff]
    %v2529 = vld [vmem:[#allocation6 + $0x2fd8] sm:$0xff]
    %v2530 = vld [vmem:[#allocation6 + $0x2fe0] sm:$0xff]
    %v2531 = vld [vmem:[#allocation6 + $0x2fe8] sm:$0xff]
    %v2532 = vld [vmem:[#allocation6 + $0x2ff0] sm:$0xff]
    %v2533 = vld [vmem:[#allocation6 + $0x2ff8] sm:$0xff]
    %v2534 = vld [vmem:[#allocation6 + $0x3000] sm:$0xff]
    %v2535 = vld [vmem:[#allocation6 + $0x3008] sm:$0xff]
    %v2536 = vld [vmem:[#allocation6 + $0x3010] sm:$0xff]
    %v2537 = vld [vmem:[#allocation6 + $0x3018] sm:$0xff]
    %v2538 = vld [vmem:[#allocation6 + $0x3020] sm:$0xff]
    %v2539 = vld [vmem:[#allocation6 + $0x3028] sm:$0xff]
    %v2540 = vld [vmem:[#allocation6 + $0x3030] sm:$0xff]
    %v2541 = vld [vmem:[#allocation6 + $0x3038] sm:$0xff]
    %v2542 = vld [vmem:[#allocation6 + $0x3040] sm:$0xff]
    %v2543 = vld [vmem:[#allocation6 + $0x3048] sm:$0xff]
    %v2544 = vld [vmem:[#allocation6 + $0x3050] sm:$0xff]
    %v2545 = vld [vmem:[#allocation6 + $0x3058] sm:$0xff]
    %v2546 = vld [vmem:[#allocation6 + $0x3060] sm:$0xff]
    %v2547 = vld [vmem:[#allocation6 + $0x3068] sm:$0xff]
    %v2548 = vld [vmem:[#allocation6 + $0x3070] sm:$0xff]
    %v2549 = vld [vmem:[#allocation6 + $0x3078] sm:$0xff]
    %v2550 = vld [vmem:[#allocation6 + $0x3080] sm:$0xff]
    %v2551 = vld [vmem:[#allocation6 + $0x3088] sm:$0xff]
    %v2552 = vld [vmem:[#allocation6 + $0x3090] sm:$0xff]
    %v2553 = vld [vmem:[#allocation6 + $0x3098] sm:$0xff]
    %v2554 = vld [vmem:[#allocation6 + $0x30a0] sm:$0xff]
    %v2555 = vld [vmem:[#allocation6 + $0x30a8] sm:$0xff]
    %v2556 = vld [vmem:[#allocation6 + $0x30b0] sm:$0xff]
    %v2557 = vld [vmem:[#allocation6 + $0x30b8] sm:$0xff]
    %v2558 = vld [vmem:[#allocation6 + $0x30c0] sm:$0xff]
    %v2559 = vld [vmem:[#allocation6 + $0x30c8] sm:$0xff]
    %v2560 = vld [vmem:[#allocation6 + $0x30d0] sm:$0xff]
    %v2561 = vld [vmem:[#allocation6 + $0x30d8] sm:$0xff]
    %v2562 = vld [vmem:[#allocation6 + $0x30e0] sm:$0xff]
    %v2563 = vld [vmem:[#allocation6 + $0x30e8] sm:$0xff]
    %v2564 = vld [vmem:[#allocation6 + $0x30f0] sm:$0xff]
    %v2565 = vld [vmem:[#allocation6 + $0x30f8] sm:$0xff]
    %v2566 = vld [vmem:[#allocation6 + $0x3100] sm:$0xff]
    %v2567 = vld [vmem:[#allocation6 + $0x3108] sm:$0xff]
    %v2568 = vld [vmem:[#allocation6 + $0x3110] sm:$0xff]
    %v2569 = vld [vmem:[#allocation6 + $0x3118] sm:$0xff]
    %v2570 = vld [vmem:[#allocation6 + $0x3120] sm:$0xff]
    %v2571 = vld [vmem:[#allocation6 + $0x3128] sm:$0xff]
    %v2572 = vld [vmem:[#allocation6 + $0x3130] sm:$0xff]
    %v2573 = vld [vmem:[#allocation6 + $0x3138] sm:$0xff]
    %v2574 = vld [vmem:[#allocation6 + $0x3140] sm:$0xff]
    %v2575 = vld [vmem:[#allocation6 + $0x3148] sm:$0xff]
    %v2576 = vld [vmem:[#allocation6 + $0x3150] sm:$0xff]
    %v2577 = vld [vmem:[#allocation6 + $0x3158] sm:$0xff]
    %v2578 = vld [vmem:[#allocation6 + $0x3160] sm:$0xff]
    %v2579 = vld [vmem:[#allocation6 + $0x3168] sm:$0xff]
    %v2580 = vld [vmem:[#allocation6 + $0x3170] sm:$0xff]
    %v2581 = vld [vmem:[#allocation6 + $0x3178] sm:$0xff]
    %v2582 = vld [vmem:[#allocation6 + $0x3180] sm:$0xff]
    %v2583 = vld [vmem:[#allocation6 + $0x3188] sm:$0xff]
    %v2584 = vld [vmem:[#allocation6 + $0x3190] sm:$0xff]
    %v2585 = vld [vmem:[#allocation6 + $0x3198] sm:$0xff]
    %v2586 = vld [vmem:[#allocation6 + $0x31a0] sm:$0xff]
    %v2587 = vld [vmem:[#allocation6 + $0x31a8] sm:$0xff]
    %v2588 = vld [vmem:[#allocation6 + $0x31b0] sm:$0xff]
    %v2589 = vld [vmem:[#allocation6 + $0x31b8] sm:$0xff]
    %v2590 = vld [vmem:[#allocation6 + $0x31c0] sm:$0xff]
    %v2591 = vld [vmem:[#allocation6 + $0x31c8] sm:$0xff]
    %v2592 = vld [vmem:[#allocation6 + $0x31d0] sm:$0xff]
    %v2593 = vld [vmem:[#allocation6 + $0x31d8] sm:$0xff]
    %v2594 = vld [vmem:[#allocation6 + $0x31e0] sm:$0xff]
    %v2595 = vld [vmem:[#allocation6 + $0x31e8] sm:$0xff]
    %v2596 = vld [vmem:[#allocation6 + $0x31f0] sm:$0xff]
    %v2597 = vld [vmem:[#allocation6 + $0x31f8] sm:$0xff]
    %v2598 = vld [vmem:[#allocation6 + $0x3200] sm:$0xff]
    %v2599 = vld [vmem:[#allocation6 + $0x3208] sm:$0xff]
    %v2600 = vld [vmem:[#allocation6 + $0x3210] sm:$0xff]
    %v2601 = vld [vmem:[#allocation6 + $0x3218] sm:$0xff]
    %v2602 = vld [vmem:[#allocation6 + $0x3220] sm:$0xff]
    %v2603 = vld [vmem:[#allocation6 + $0x3228] sm:$0xff]
    %v2604 = vld [vmem:[#allocation6 + $0x3230] sm:$0xff]
    %v2605 = vld [vmem:[#allocation6 + $0x3238] sm:$0xff]
    %v2606 = vld [vmem:[#allocation6 + $0x3240] sm:$0xff]
    %v2607 = vld [vmem:[#allocation6 + $0x3248] sm:$0xff]
    %v2608 = vld [vmem:[#allocation6 + $0x3250] sm:$0xff]
    %v2609 = vld [vmem:[#allocation6 + $0x3258] sm:$0xff]
    %v2610 = vld [vmem:[#allocation6 + $0x3260] sm:$0xff]
    %v2611 = vld [vmem:[#allocation6 + $0x3268] sm:$0xff]
    %v2612 = vld [vmem:[#allocation6 + $0x3270] sm:$0xff]
    %v2613 = vld [vmem:[#allocation6 + $0x3278] sm:$0xff]
    %v2614 = vld [vmem:[#allocation6 + $0x3280] sm:$0xff]
    %v2615 = vld [vmem:[#allocation6 + $0x3288] sm:$0xff]
    %v2616 = vld [vmem:[#allocation6 + $0x3290] sm:$0xff]
    %v2617 = vld [vmem:[#allocation6 + $0x3298] sm:$0xff]
    %v2618 = vld [vmem:[#allocation6 + $0x32a0] sm:$0xff]
    %v2619 = vld [vmem:[#allocation6 + $0x32a8] sm:$0xff]
    %v2620 = vld [vmem:[#allocation6 + $0x32b0] sm:$0xff]
    %v2621 = vld [vmem:[#allocation6 + $0x32b8] sm:$0xff]
    %v2622 = vld [vmem:[#allocation6 + $0x32c0] sm:$0xff]
    %v2623 = vld [vmem:[#allocation6 + $0x32c8] sm:$0xff]
    %v2624 = vld [vmem:[#allocation6 + $0x32d0] sm:$0xff]
    %v2625 = vld [vmem:[#allocation6 + $0x32d8] sm:$0xff]
    %v2626 = vld [vmem:[#allocation6 + $0x32e0] sm:$0xff]
    %v2627 = vld [vmem:[#allocation6 + $0x32e8] sm:$0xff]
    %v2628 = vld [vmem:[#allocation6 + $0x32f0] sm:$0xff]
    %v2629 = vld [vmem:[#allocation6 + $0x32f8] sm:$0xff]
    %v2630 = vld [vmem:[#allocation6 + $0x3300] sm:$0xff]
    %v2631 = vld [vmem:[#allocation6 + $0x3308] sm:$0xff]
    %v2632 = vld [vmem:[#allocation6 + $0x3310] sm:$0xff]
    %v2633 = vld [vmem:[#allocation6 + $0x3318] sm:$0xff]
    %v2634 = vld [vmem:[#allocation6 + $0x3320] sm:$0xff]
    %v2635 = vld [vmem:[#allocation6 + $0x3328] sm:$0xff]
    %v2636 = vld [vmem:[#allocation6 + $0x3330] sm:$0xff]
    %v2637 = vld [vmem:[#allocation6 + $0x3338] sm:$0xff]
    %v2638 = vld [vmem:[#allocation6 + $0x3340] sm:$0xff]
    %v2639 = vld [vmem:[#allocation6 + $0x3348] sm:$0xff]
    %v2640 = vld [vmem:[#allocation6 + $0x3350] sm:$0xff]
    %v2641 = vld [vmem:[#allocation6 + $0x3358] sm:$0xff]
    %v2642 = vld [vmem:[#allocation6 + $0x3360] sm:$0xff]
    %v2643 = vld [vmem:[#allocation6 + $0x3368] sm:$0xff]
    %v2644 = vld [vmem:[#allocation6 + $0x3370] sm:$0xff]
    %v2645 = vld [vmem:[#allocation6 + $0x3378] sm:$0xff]
    %v2646 = vld [vmem:[#allocation6 + $0x3380] sm:$0xff]
    %v2647 = vld [vmem:[#allocation6 + $0x3388] sm:$0xff]
    %v2648 = vld [vmem:[#allocation6 + $0x3390] sm:$0xff]
    %v2649 = vld [vmem:[#allocation6 + $0x3398] sm:$0xff]
    %v2650 = vld [vmem:[#allocation6 + $0x33a0] sm:$0xff]
    %v2651 = vld [vmem:[#allocation6 + $0x33a8] sm:$0xff]
    %v2652 = vld [vmem:[#allocation6 + $0x33b0] sm:$0xff]
    %v2653 = vld [vmem:[#allocation6 + $0x33b8] sm:$0xff]
    %v2654 = vld [vmem:[#allocation6 + $0x33c0] sm:$0xff]
    %v2655 = vld [vmem:[#allocation6 + $0x33c8] sm:$0xff]
    %v2656 = vld [vmem:[#allocation6 + $0x33d0] sm:$0xff]
    %v2657 = vld [vmem:[#allocation6 + $0x33d8] sm:$0xff]
    %v2658 = vld [vmem:[#allocation6 + $0x33e0] sm:$0xff]
    %v2659 = vld [vmem:[#allocation6 + $0x33e8] sm:$0xff]
    %v2660 = vld [vmem:[#allocation6 + $0x33f0] sm:$0xff]
    %v2661 = vld [vmem:[#allocation6 + $0x33f8] sm:$0xff]
    %v2662 = vld [vmem:[#allocation6 + $0x3400] sm:$0xff]
    %v2663 = vld [vmem:[#allocation6 + $0x3408] sm:$0xff]
    %v2664 = vld [vmem:[#allocation6 + $0x3410] sm:$0xff]
    %v2665 = vld [vmem:[#allocation6 + $0x3418] sm:$0xff]
    %v2666 = vld [vmem:[#allocation6 + $0x3420] sm:$0xff]
    %v2667 = vld [vmem:[#allocation6 + $0x3428] sm:$0xff]
    %v2668 = vld [vmem:[#allocation6 + $0x3430] sm:$0xff]
    %v2669 = vld [vmem:[#allocation6 + $0x3438] sm:$0xff]
    %v2670 = vld [vmem:[#allocation6 + $0x3440] sm:$0xff]
    %v2671 = vld [vmem:[#allocation6 + $0x3448] sm:$0xff]
    %v2672 = vld [vmem:[#allocation6 + $0x3450] sm:$0xff]
    %v2673 = vld [vmem:[#allocation6 + $0x3458] sm:$0xff]
    %v2674 = vld [vmem:[#allocation6 + $0x3460] sm:$0xff]
    %v2675 = vld [vmem:[#allocation6 + $0x3468] sm:$0xff]
    %v2676 = vld [vmem:[#allocation6 + $0x3470] sm:$0xff]
    %v2677 = vld [vmem:[#allocation6 + $0x3478] sm:$0xff]
    %v2678 = vld [vmem:[#allocation6 + $0x3480] sm:$0xff]
    %v2679 = vld [vmem:[#allocation6 + $0x3488] sm:$0xff]
    %v2680 = vld [vmem:[#allocation6 + $0x3490] sm:$0xff]
    %v2681 = vld [vmem:[#allocation6 + $0x3498] sm:$0xff]
    %v2682 = vld [vmem:[#allocation6 + $0x34a0] sm:$0xff]
    %v2683 = vld [vmem:[#allocation6 + $0x34a8] sm:$0xff]
    %v2684 = vld [vmem:[#allocation6 + $0x34b0] sm:$0xff]
    %v2685 = vld [vmem:[#allocation6 + $0x34b8] sm:$0xff]
    %v2686 = vld [vmem:[#allocation6 + $0x34c0] sm:$0xff]
    %v2687 = vld [vmem:[#allocation6 + $0x34c8] sm:$0xff]
    %v2688 = vld [vmem:[#allocation6 + $0x34d0] sm:$0xff]
    %v2689 = vld [vmem:[#allocation6 + $0x34d8] sm:$0xff]
    %v2690 = vld [vmem:[#allocation6 + $0x34e0] sm:$0xff]
    %v2691 = vld [vmem:[#allocation6 + $0x34e8] sm:$0xff]
    %v2692 = vld [vmem:[#allocation6 + $0x34f0] sm:$0xff]
    %v2693 = vld [vmem:[#allocation6 + $0x34f8] sm:$0xff]
    %v2694 = vld [vmem:[#allocation6 + $0x3500] sm:$0xff]
    %v2695 = vld [vmem:[#allocation6 + $0x3508] sm:$0xff]
    %v2696 = vld [vmem:[#allocation6 + $0x3510] sm:$0xff]
    %v2697 = vld [vmem:[#allocation6 + $0x3518] sm:$0xff]
    %v2698 = vld [vmem:[#allocation6 + $0x3520] sm:$0xff]
    %v2699 = vld [vmem:[#allocation6 + $0x3528] sm:$0xff]
    %v2700 = vld [vmem:[#allocation6 + $0x3530] sm:$0xff]
    %v2701 = vld [vmem:[#allocation6 + $0x3538] sm:$0xff]
    %v2702 = vld [vmem:[#allocation6 + $0x3540] sm:$0xff]
    %v2703 = vld [vmem:[#allocation6 + $0x3548] sm:$0xff]
    %v2704 = vld [vmem:[#allocation6 + $0x3550] sm:$0xff]
    %v2705 = vld [vmem:[#allocation6 + $0x3558] sm:$0xff]
    %v2706 = vld [vmem:[#allocation6 + $0x3560] sm:$0xff]
    %v2707 = vld [vmem:[#allocation6 + $0x3568] sm:$0xff]
    %v2708 = vld [vmem:[#allocation6 + $0x3570] sm:$0xff]
    %v2709 = vld [vmem:[#allocation6 + $0x3578] sm:$0xff]
    %v2710 = vld [vmem:[#allocation6 + $0x3580] sm:$0xff]
    %v2711 = vld [vmem:[#allocation6 + $0x3588] sm:$0xff]
    %v2712 = vld [vmem:[#allocation6 + $0x3590] sm:$0xff]
    %v2713 = vld [vmem:[#allocation6 + $0x3598] sm:$0xff]
    %v2714 = vld [vmem:[#allocation6 + $0x35a0] sm:$0xff]
    %v2715 = vld [vmem:[#allocation6 + $0x35a8] sm:$0xff]
    %v2716 = vld [vmem:[#allocation6 + $0x35b0] sm:$0xff]
    %v2717 = vld [vmem:[#allocation6 + $0x35b8] sm:$0xff]
    %v2718 = vld [vmem:[#allocation6 + $0x35c0] sm:$0xff]
    %v2719 = vld [vmem:[#allocation6 + $0x35c8] sm:$0xff]
    %v2720 = vld [vmem:[#allocation6 + $0x35d0] sm:$0xff]
    %v2721 = vld [vmem:[#allocation6 + $0x35d8] sm:$0xff]
    %v2722 = vld [vmem:[#allocation6 + $0x35e0] sm:$0xff]
    %v2723 = vld [vmem:[#allocation6 + $0x35e8] sm:$0xff]
    %v2724 = vld [vmem:[#allocation6 + $0x35f0] sm:$0xff]
    %v2725 = vld [vmem:[#allocation6 + $0x35f8] sm:$0xff]
    %v2726 = vld [vmem:[#allocation6 + $0x3600] sm:$0xff]
    %v2727 = vld [vmem:[#allocation6 + $0x3608] sm:$0xff]
    %v2728 = vld [vmem:[#allocation6 + $0x3610] sm:$0xff]
    %v2729 = vld [vmem:[#allocation6 + $0x3618] sm:$0xff]
    %v2730 = vld [vmem:[#allocation6 + $0x3620] sm:$0xff]
    %v2731 = vld [vmem:[#allocation6 + $0x3628] sm:$0xff]
    %v2732 = vld [vmem:[#allocation6 + $0x3630] sm:$0xff]
    %v2733 = vld [vmem:[#allocation6 + $0x3638] sm:$0xff]
    %v2734 = vld [vmem:[#allocation6 + $0x3640] sm:$0xff]
    %v2735 = vld [vmem:[#allocation6 + $0x3648] sm:$0xff]
    %v2736 = vld [vmem:[#allocation6 + $0x3650] sm:$0xff]
    %v2737 = vld [vmem:[#allocation6 + $0x3658] sm:$0xff]
    %v2738 = vld [vmem:[#allocation6 + $0x3660] sm:$0xff]
    %v2739 = vld [vmem:[#allocation6 + $0x3668] sm:$0xff]
    %v2740 = vld [vmem:[#allocation6 + $0x3670] sm:$0xff]
    %v2741 = vld [vmem:[#allocation6 + $0x3678] sm:$0xff]
    %v2742 = vld [vmem:[#allocation6 + $0x3680] sm:$0xff]
    %v2743 = vld [vmem:[#allocation6 + $0x3688] sm:$0xff]
    %v2744 = vld [vmem:[#allocation6 + $0x3690] sm:$0xff]
    %v2745 = vld [vmem:[#allocation6 + $0x3698] sm:$0xff]
    %v2746 = vld [vmem:[#allocation6 + $0x36a0] sm:$0xff]
    %v2747 = vld [vmem:[#allocation6 + $0x36a8] sm:$0xff]
    %v2748 = vld [vmem:[#allocation6 + $0x36b0] sm:$0xff]
    %v2749 = vld [vmem:[#allocation6 + $0x36b8] sm:$0xff]
    %v2750 = vld [vmem:[#allocation6 + $0x36c0] sm:$0xff]
    %v2751 = vld [vmem:[#allocation6 + $0x36c8] sm:$0xff]
    %v2752 = vld [vmem:[#allocation6 + $0x36d0] sm:$0xff]
    %v2753 = vld [vmem:[#allocation6 + $0x36d8] sm:$0xff]
    %v2754 = vld [vmem:[#allocation6 + $0x36e0] sm:$0xff]
    %v2755 = vld [vmem:[#allocation6 + $0x36e8] sm:$0xff]
    %v2756 = vld [vmem:[#allocation6 + $0x36f0] sm:$0xff]
    %v2757 = vld [vmem:[#allocation6 + $0x36f8] sm:$0xff]
    %v2758 = vld [vmem:[#allocation6 + $0x3700] sm:$0xff]
    %v2759 = vld [vmem:[#allocation6 + $0x3708] sm:$0xff]
    %v2760 = vld [vmem:[#allocation6 + $0x3710] sm:$0xff]
    %v2761 = vld [vmem:[#allocation6 + $0x3718] sm:$0xff]
    %v2762 = vld [vmem:[#allocation6 + $0x3720] sm:$0xff]
    %v2763 = vld [vmem:[#allocation6 + $0x3728] sm:$0xff]
    %v2764 = vld [vmem:[#allocation6 + $0x3730] sm:$0xff]
    %v2765 = vld [vmem:[#allocation6 + $0x3738] sm:$0xff]
    %v2766 = vld [vmem:[#allocation6 + $0x3740] sm:$0xff]
    %v2767 = vld [vmem:[#allocation6 + $0x3748] sm:$0xff]
    %v2768 = vld [vmem:[#allocation6 + $0x3750] sm:$0xff]
    %v2769 = vld [vmem:[#allocation6 + $0x3758] sm:$0xff]
    %v2770 = vld [vmem:[#allocation6 + $0x3760] sm:$0xff]
    %v2771 = vld [vmem:[#allocation6 + $0x3768] sm:$0xff]
    %v2772 = vld [vmem:[#allocation6 + $0x3770] sm:$0xff]
    %v2773 = vld [vmem:[#allocation6 + $0x3778] sm:$0xff]
    %v2774 = vld [vmem:[#allocation6 + $0x3780] sm:$0xff]
    %v2775 = vld [vmem:[#allocation6 + $0x3788] sm:$0xff]
    %v2776 = vld [vmem:[#allocation6 + $0x3790] sm:$0xff]
    %v2777 = vld [vmem:[#allocation6 + $0x3798] sm:$0xff]
    %v2778 = vld [vmem:[#allocation6 + $0x37a0] sm:$0xff]
    %v2779 = vld [vmem:[#allocation6 + $0x37a8] sm:$0xff]
    %v2780 = vld [vmem:[#allocation6 + $0x37b0] sm:$0xff]
    %v2781 = vld [vmem:[#allocation6 + $0x37b8] sm:$0xff]
    %v2782 = vld [vmem:[#allocation6 + $0x37c0] sm:$0xff]
    %v2783 = vld [vmem:[#allocation6 + $0x37c8] sm:$0xff]
    %v2784 = vld [vmem:[#allocation6 + $0x37d0] sm:$0xff]
    %v2785 = vld [vmem:[#allocation6 + $0x37d8] sm:$0xff]
    %v2786 = vld [vmem:[#allocation6 + $0x37e0] sm:$0xff]
    %v2787 = vld [vmem:[#allocation6 + $0x37e8] sm:$0xff]
    %v2788 = vld [vmem:[#allocation6 + $0x37f0] sm:$0xff]
    %v2789 = vld [vmem:[#allocation6 + $0x37f8] sm:$0xff]
    %v2790 = vld [vmem:[#allocation6 + $0x3800] sm:$0xff]
    %v2791 = vld [vmem:[#allocation6 + $0x3808] sm:$0xff]
    %v2792 = vld [vmem:[#allocation6 + $0x3810] sm:$0xff]
    %v2793 = vld [vmem:[#allocation6 + $0x3818] sm:$0xff]
    %v2794 = vld [vmem:[#allocation6 + $0x3820] sm:$0xff]
    %v2795 = vld [vmem:[#allocation6 + $0x3828] sm:$0xff]
    %v2796 = vld [vmem:[#allocation6 + $0x3830] sm:$0xff]
    %v2797 = vld [vmem:[#allocation6 + $0x3838] sm:$0xff]
    %v2798 = vld [vmem:[#allocation6 + $0x3840] sm:$0xff]
    %v2799 = vld [vmem:[#allocation6 + $0x3848] sm:$0xff]
    %v2800 = vld [vmem:[#allocation6 + $0x3850] sm:$0xff]
    %v2801 = vld [vmem:[#allocation6 + $0x3858] sm:$0xff]
    %v2802 = vld [vmem:[#allocation6 + $0x3860] sm:$0xff]
    %v2803 = vld [vmem:[#allocation6 + $0x3868] sm:$0xff]
    %v2804 = vld [vmem:[#allocation6 + $0x3870] sm:$0xff]
    %v2805 = vld [vmem:[#allocation6 + $0x3878] sm:$0xff]
    %v2806 = vld [vmem:[#allocation6 + $0x3880] sm:$0xff]
    %v2807 = vld [vmem:[#allocation6 + $0x3888] sm:$0xff]
    %v2808 = vld [vmem:[#allocation6 + $0x3890] sm:$0xff]
    %v2809 = vld [vmem:[#allocation6 + $0x3898] sm:$0xff]
    %v2810 = vld [vmem:[#allocation6 + $0x38a0] sm:$0xff]
    %v2811 = vld [vmem:[#allocation6 + $0x38a8] sm:$0xff]
    %v2812 = vld [vmem:[#allocation6 + $0x38b0] sm:$0xff]
    %v2813 = vld [vmem:[#allocation6 + $0x38b8] sm:$0xff]
    %v2814 = vld [vmem:[#allocation6 + $0x38c0] sm:$0xff]
    %v2815 = vld [vmem:[#allocation6 + $0x38c8] sm:$0xff]
    %v2816 = vld [vmem:[#allocation6 + $0x38d0] sm:$0xff]
    %v2817 = vld [vmem:[#allocation6 + $0x38d8] sm:$0xff]
    %v2818 = vld [vmem:[#allocation6 + $0x38e0] sm:$0xff]
    %v2819 = vld [vmem:[#allocation6 + $0x38e8] sm:$0xff]
    %v2820 = vld [vmem:[#allocation6 + $0x38f0] sm:$0xff]
    %v2821 = vld [vmem:[#allocation6 + $0x38f8] sm:$0xff]
    %v2822 = vld [vmem:[#allocation6 + $0x3900] sm:$0xff]
    %v2823 = vld [vmem:[#allocation6 + $0x3908] sm:$0xff]
    %v2824 = vld [vmem:[#allocation6 + $0x3910] sm:$0xff]
    %v2825 = vld [vmem:[#allocation6 + $0x3918] sm:$0xff]
    %v2826 = vld [vmem:[#allocation6 + $0x3920] sm:$0xff]
    %v2827 = vld [vmem:[#allocation6 + $0x3928] sm:$0xff]
    %v2828 = vld [vmem:[#allocation6 + $0x3930] sm:$0xff]
    %v2829 = vld [vmem:[#allocation6 + $0x3938] sm:$0xff]
    %v2830 = vld [vmem:[#allocation6 + $0x3940] sm:$0xff]
    %v2831 = vld [vmem:[#allocation6 + $0x3948] sm:$0xff]
    %v2832 = vld [vmem:[#allocation6 + $0x3950] sm:$0xff]
    %v2833 = vld [vmem:[#allocation6 + $0x3958] sm:$0xff]
    %v2834 = vld [vmem:[#allocation6 + $0x3960] sm:$0xff]
    %v2835 = vld [vmem:[#allocation6 + $0x3968] sm:$0xff]
    %v2836 = vld [vmem:[#allocation6 + $0x3970] sm:$0xff]
    %v2837 = vld [vmem:[#allocation6 + $0x3978] sm:$0xff]
    %v2838 = vld [vmem:[#allocation6 + $0x3980] sm:$0xff]
    %v2839 = vld [vmem:[#allocation6 + $0x3988] sm:$0xff]
    %v2840 = vld [vmem:[#allocation6 + $0x3990] sm:$0xff]
    %v2841 = vld [vmem:[#allocation6 + $0x3998] sm:$0xff]
    %v2842 = vld [vmem:[#allocation6 + $0x39a0] sm:$0xff]
    %v2843 = vld [vmem:[#allocation6 + $0x39a8] sm:$0xff]
    %v2844 = vld [vmem:[#allocation6 + $0x39b0] sm:$0xff]
    %v2845 = vld [vmem:[#allocation6 + $0x39b8] sm:$0xff]
    %v2846 = vld [vmem:[#allocation6 + $0x39c0] sm:$0xff]
    %v2847 = vld [vmem:[#allocation6 + $0x39c8] sm:$0xff]
    %v2848 = vld [vmem:[#allocation6 + $0x39d0] sm:$0xff]
    %v2849 = vld [vmem:[#allocation6 + $0x39d8] sm:$0xff]
    %v2850 = vld [vmem:[#allocation6 + $0x39e0] sm:$0xff]
    %v2851 = vld [vmem:[#allocation6 + $0x39e8] sm:$0xff]
    %v2852 = vld [vmem:[#allocation6 + $0x39f0] sm:$0xff]
    %v2853 = vld [vmem:[#allocation6 + $0x39f8] sm:$0xff]
    %v2854 = vld [vmem:[#allocation6 + $0x3a00] sm:$0xff]
    %v2855 = vld [vmem:[#allocation6 + $0x3a08] sm:$0xff]
    %v2856 = vld [vmem:[#allocation6 + $0x3a10] sm:$0xff]
    %v2857 = vld [vmem:[#allocation6 + $0x3a18] sm:$0xff]
    %v2858 = vld [vmem:[#allocation6 + $0x3a20] sm:$0xff]
    %v2859 = vld [vmem:[#allocation6 + $0x3a28] sm:$0xff]
    %v2860 = vld [vmem:[#allocation6 + $0x3a30] sm:$0xff]
    %v2861 = vld [vmem:[#allocation6 + $0x3a38] sm:$0xff]
    %v2862 = vld [vmem:[#allocation6 + $0x3a40] sm:$0xff]
    %v2863 = vld [vmem:[#allocation6 + $0x3a48] sm:$0xff]
    %v2864 = vld [vmem:[#allocation6 + $0x3a50] sm:$0xff]
    %v2865 = vld [vmem:[#allocation6 + $0x3a58] sm:$0xff]
    %v2866 = vld [vmem:[#allocation6 + $0x3a60] sm:$0xff]
    %v2867 = vld [vmem:[#allocation6 + $0x3a68] sm:$0xff]
    %v2868 = vld [vmem:[#allocation6 + $0x3a70] sm:$0xff]
    %v2869 = vld [vmem:[#allocation6 + $0x3a78] sm:$0xff]
    %v2870 = vld [vmem:[#allocation6 + $0x3a80] sm:$0xff]
    %v2871 = vld [vmem:[#allocation6 + $0x3a88] sm:$0xff]
    %v2872 = vld [vmem:[#allocation6 + $0x3a90] sm:$0xff]
    %v2873 = vld [vmem:[#allocation6 + $0x3a98] sm:$0xff]
    %v2874 = vld [vmem:[#allocation6 + $0x3aa0] sm:$0xff]
    %v2875 = vld [vmem:[#allocation6 + $0x3aa8] sm:$0xff]
    %v2876 = vld [vmem:[#allocation6 + $0x3ab0] sm:$0xff]
    %v2877 = vld [vmem:[#allocation6 + $0x3ab8] sm:$0xff]
    %v2878 = vld [vmem:[#allocation6 + $0x3ac0] sm:$0xff]
    %v2879 = vld [vmem:[#allocation6 + $0x3ac8] sm:$0xff]
    %v2880 = vld [vmem:[#allocation6 + $0x3ad0] sm:$0xff]
    %v2881 = vld [vmem:[#allocation6 + $0x3ad8] sm:$0xff]
    %v2882 = vld [vmem:[#allocation6 + $0x3ae0] sm:$0xff]
    %v2883 = vld [vmem:[#allocation6 + $0x3ae8] sm:$0xff]
    %v2884 = vld [vmem:[#allocation6 + $0x3af0] sm:$0xff]
    %v2885 = vld [vmem:[#allocation6 + $0x3af8] sm:$0xff]
    %v2886 = vld [vmem:[#allocation6 + $0x3b00] sm:$0xff]
    %v2887 = vld [vmem:[#allocation6 + $0x3b08] sm:$0xff]
    %v2888 = vld [vmem:[#allocation6 + $0x3b10] sm:$0xff]
    %v2889 = vld [vmem:[#allocation6 + $0x3b18] sm:$0xff]
    %v2890 = vld [vmem:[#allocation6 + $0x3b20] sm:$0xff]
    %v2891 = vld [vmem:[#allocation6 + $0x3b28] sm:$0xff]
    %v2892 = vld [vmem:[#allocation6 + $0x3b30] sm:$0xff]
    %v2893 = vld [vmem:[#allocation6 + $0x3b38] sm:$0xff]
    %v2894 = vld [vmem:[#allocation6 + $0x3b40] sm:$0xff]
    %v2895 = vld [vmem:[#allocation6 + $0x3b48] sm:$0xff]
    %v2896 = vld [vmem:[#allocation6 + $0x3b50] sm:$0xff]
    %v2897 = vld [vmem:[#allocation6 + $0x3b58] sm:$0xff]
    %v2898 = vld [vmem:[#allocation6 + $0x3b60] sm:$0xff]
    %v2899 = vld [vmem:[#allocation6 + $0x3b68] sm:$0xff]
    %v2900 = vld [vmem:[#allocation6 + $0x3b70] sm:$0xff]
    %v2901 = vld [vmem:[#allocation6 + $0x3b78] sm:$0xff]
    %v2902 = vld [vmem:[#allocation6 + $0x3b80] sm:$0xff]
    %v2903 = vld [vmem:[#allocation6 + $0x3b88] sm:$0xff]
    %v2904 = vld [vmem:[#allocation6 + $0x3b90] sm:$0xff]
    %v2905 = vld [vmem:[#allocation6 + $0x3b98] sm:$0xff]
    %v2906 = vld [vmem:[#allocation6 + $0x3ba0] sm:$0xff]
    %v2907 = vld [vmem:[#allocation6 + $0x3ba8] sm:$0xff]
    %v2908 = vld [vmem:[#allocation6 + $0x3bb0] sm:$0xff]
    %v2909 = vld [vmem:[#allocation6 + $0x3bb8] sm:$0xff]
    %v2910 = vld [vmem:[#allocation6 + $0x3bc0] sm:$0xff]
    %v2911 = vld [vmem:[#allocation6 + $0x3bc8] sm:$0xff]
    %v2912 = vld [vmem:[#allocation6 + $0x3bd0] sm:$0xff]
    %v2913 = vld [vmem:[#allocation6 + $0x3bd8] sm:$0xff]
    %v2914 = vld [vmem:[#allocation6 + $0x3be0] sm:$0xff]
    %v2915 = vld [vmem:[#allocation6 + $0x3be8] sm:$0xff]
    %v2916 = vld [vmem:[#allocation6 + $0x3bf0] sm:$0xff]
    %v2917 = vld [vmem:[#allocation6 + $0x3bf8] sm:$0xff]
    %v2918 = vld [vmem:[#allocation6 + $0x3c00] sm:$0xff]
    %v2919 = vld [vmem:[#allocation6 + $0x3c08] sm:$0xff]
    %v2920 = vld [vmem:[#allocation6 + $0x3c10] sm:$0xff]
    %v2921 = vld [vmem:[#allocation6 + $0x3c18] sm:$0xff]
    %v2922 = vld [vmem:[#allocation6 + $0x3c20] sm:$0xff]
    %v2923 = vld [vmem:[#allocation6 + $0x3c28] sm:$0xff]
    %v2924 = vld [vmem:[#allocation6 + $0x3c30] sm:$0xff]
    %v2925 = vld [vmem:[#allocation6 + $0x3c38] sm:$0xff]
    %v2926 = vld [vmem:[#allocation6 + $0x3c40] sm:$0xff]
    %v2927 = vld [vmem:[#allocation6 + $0x3c48] sm:$0xff]
    %v2928 = vld [vmem:[#allocation6 + $0x3c50] sm:$0xff]
    %v2929 = vld [vmem:[#allocation6 + $0x3c58] sm:$0xff]
    %v2930 = vld [vmem:[#allocation6 + $0x3c60] sm:$0xff]
    %v2931 = vld [vmem:[#allocation6 + $0x3c68] sm:$0xff]
    %v2932 = vld [vmem:[#allocation6 + $0x3c70] sm:$0xff]
    %v2933 = vld [vmem:[#allocation6 + $0x3c78] sm:$0xff]
    %v2934 = vld [vmem:[#allocation6 + $0x3c80] sm:$0xff]
    %v2935 = vld [vmem:[#allocation6 + $0x3c88] sm:$0xff]
    %v2936 = vld [vmem:[#allocation6 + $0x3c90] sm:$0xff]
    %v2937 = vld [vmem:[#allocation6 + $0x3c98] sm:$0xff]
    %v2938 = vld [vmem:[#allocation6 + $0x3ca0] sm:$0xff]
    %v2939 = vld [vmem:[#allocation6 + $0x3ca8] sm:$0xff]
    %v2940 = vld [vmem:[#allocation6 + $0x3cb0] sm:$0xff]
    %v2941 = vld [vmem:[#allocation6 + $0x3cb8] sm:$0xff]
    %v2942 = vld [vmem:[#allocation6 + $0x3cc0] sm:$0xff]
    %v2943 = vld [vmem:[#allocation6 + $0x3cc8] sm:$0xff]
    %v2944 = vld [vmem:[#allocation6 + $0x3cd0] sm:$0xff]
    %v2945 = vld [vmem:[#allocation6 + $0x3cd8] sm:$0xff]
    %v2946 = vld [vmem:[#allocation6 + $0x3ce0] sm:$0xff]
    %v2947 = vld [vmem:[#allocation6 + $0x3ce8] sm:$0xff]
    %v2948 = vld [vmem:[#allocation6 + $0x3cf0] sm:$0xff]
    %v2949 = vld [vmem:[#allocation6 + $0x3cf8] sm:$0xff]
    %v2950 = vld [vmem:[#allocation6 + $0x3d00] sm:$0xff]
    %v2951 = vld [vmem:[#allocation6 + $0x3d08] sm:$0xff]
    %v2952 = vld [vmem:[#allocation6 + $0x3d10] sm:$0xff]
    %v2953 = vld [vmem:[#allocation6 + $0x3d18] sm:$0xff]
    %v2954 = vld [vmem:[#allocation6 + $0x3d20] sm:$0xff]
    %v2955 = vld [vmem:[#allocation6 + $0x3d28] sm:$0xff]
    %v2956 = vld [vmem:[#allocation6 + $0x3d30] sm:$0xff]
    %v2957 = vld [vmem:[#allocation6 + $0x3d38] sm:$0xff]
    %v2958 = vld [vmem:[#allocation6 + $0x3d40] sm:$0xff]
    %v2959 = vld [vmem:[#allocation6 + $0x3d48] sm:$0xff]
    %v2960 = vld [vmem:[#allocation6 + $0x3d50] sm:$0xff]
    %v2961 = vld [vmem:[#allocation6 + $0x3d58] sm:$0xff]
    %v2962 = vld [vmem:[#allocation6 + $0x3d60] sm:$0xff]
    %v2963 = vld [vmem:[#allocation6 + $0x3d68] sm:$0xff]
    %v2964 = vld [vmem:[#allocation6 + $0x3d70] sm:$0xff]
    %v2965 = vld [vmem:[#allocation6 + $0x3d78] sm:$0xff]
    %v2966 = vld [vmem:[#allocation6 + $0x3d80] sm:$0xff]
    %v2967 = vld [vmem:[#allocation6 + $0x3d88] sm:$0xff]
    %v2968 = vld [vmem:[#allocation6 + $0x3d90] sm:$0xff]
    %v2969 = vld [vmem:[#allocation6 + $0x3d98] sm:$0xff]
    %v2970 = vld [vmem:[#allocation6 + $0x3da0] sm:$0xff]
    %v2971 = vld [vmem:[#allocation6 + $0x3da8] sm:$0xff]
    %v2972 = vld [vmem:[#allocation6 + $0x3db0] sm:$0xff]
    %v2973 = vld [vmem:[#allocation6 + $0x3db8] sm:$0xff]
    %v2974 = vld [vmem:[#allocation6 + $0x3dc0] sm:$0xff]
    %v2975 = vld [vmem:[#allocation6 + $0x3dc8] sm:$0xff]
    %v2976 = vld [vmem:[#allocation6 + $0x3dd0] sm:$0xff]
    %v2977 = vld [vmem:[#allocation6 + $0x3dd8] sm:$0xff]
    %v2978 = vld [vmem:[#allocation6 + $0x3de0] sm:$0xff]
    %v2979 = vld [vmem:[#allocation6 + $0x3de8] sm:$0xff]
    %v2980 = vld [vmem:[#allocation6 + $0x3df0] sm:$0xff]
    %v2981 = vld [vmem:[#allocation6 + $0x3df8] sm:$0xff]
    %v2982 = vld [vmem:[#allocation6 + $0x3e00] sm:$0xff]
    %v2983 = vld [vmem:[#allocation6 + $0x3e08] sm:$0xff]
    %v2984 = vld [vmem:[#allocation6 + $0x3e10] sm:$0xff]
    %v2985 = vld [vmem:[#allocation6 + $0x3e18] sm:$0xff]
    %v2986 = vld [vmem:[#allocation6 + $0x3e20] sm:$0xff]
    %v2987 = vld [vmem:[#allocation6 + $0x3e28] sm:$0xff]
    %v2988 = vld [vmem:[#allocation6 + $0x3e30] sm:$0xff]
    %v2989 = vld [vmem:[#allocation6 + $0x3e38] sm:$0xff]
    %v2990 = vld [vmem:[#allocation6 + $0x3e40] sm:$0xff]
    %v2991 = vld [vmem:[#allocation6 + $0x3e48] sm:$0xff]
    %v2992 = vld [vmem:[#allocation6 + $0x3e50] sm:$0xff]
    %v2993 = vld [vmem:[#allocation6 + $0x3e58] sm:$0xff]
    %v2994 = vld [vmem:[#allocation6 + $0x3e60] sm:$0xff]
    %v2995 = vld [vmem:[#allocation6 + $0x3e68] sm:$0xff]
    %v2996 = vld [vmem:[#allocation6 + $0x3e70] sm:$0xff]
    %v2997 = vld [vmem:[#allocation6 + $0x3e78] sm:$0xff]
    %v2998 = vld [vmem:[#allocation6 + $0x3e80] sm:$0xff]
    %v2999 = vld [vmem:[#allocation6 + $0x3e88] sm:$0xff]
    %v3000 = vld [vmem:[#allocation6 + $0x3e90] sm:$0xff]
    %v3001 = vld [vmem:[#allocation6 + $0x3e98] sm:$0xff]
    %v3002 = vld [vmem:[#allocation6 + $0x3ea0] sm:$0xff]
    %v3003 = vld [vmem:[#allocation6 + $0x3ea8] sm:$0xff]
    %v3004 = vld [vmem:[#allocation6 + $0x3eb0] sm:$0xff]
    %v3005 = vld [vmem:[#allocation6 + $0x3eb8] sm:$0xff]
    %v3006 = vld [vmem:[#allocation6 + $0x3ec0] sm:$0xff]
    %v3007 = vld [vmem:[#allocation6 + $0x3ec8] sm:$0xff]
    %v3008 = vld [vmem:[#allocation6 + $0x3ed0] sm:$0xff]
    %v3009 = vld [vmem:[#allocation6 + $0x3ed8] sm:$0xff]
    %v3010 = vld [vmem:[#allocation6 + $0x3ee0] sm:$0xff]
    %v3011 = vld [vmem:[#allocation6 + $0x3ee8] sm:$0xff]
    %v3012 = vld [vmem:[#allocation6 + $0x3ef0] sm:$0xff]
    %v3013 = vld [vmem:[#allocation6 + $0x3ef8] sm:$0xff]
    %v3014 = vld [vmem:[#allocation6 + $0x3f00] sm:$0xff]
    %v3015 = vld [vmem:[#allocation6 + $0x3f08] sm:$0xff]
    %v3016 = vld [vmem:[#allocation6 + $0x3f10] sm:$0xff]
    %v3017 = vld [vmem:[#allocation6 + $0x3f18] sm:$0xff]
    %v3018 = vld [vmem:[#allocation6 + $0x3f20] sm:$0xff]
    %v3019 = vld [vmem:[#allocation6 + $0x3f28] sm:$0xff]
    %v3020 = vld [vmem:[#allocation6 + $0x3f30] sm:$0xff]
    %v3021 = vld [vmem:[#allocation6 + $0x3f38] sm:$0xff]
    %v3022 = vld [vmem:[#allocation6 + $0x3f40] sm:$0xff]
    %v3023 = vld [vmem:[#allocation6 + $0x3f48] sm:$0xff]
    %v3024 = vld [vmem:[#allocation6 + $0x3f50] sm:$0xff]
    %v3025 = vld [vmem:[#allocation6 + $0x3f58] sm:$0xff]
    %v3026 = vld [vmem:[#allocation6 + $0x3f60] sm:$0xff]
    %v3027 = vld [vmem:[#allocation6 + $0x3f68] sm:$0xff]
    %v3028 = vld [vmem:[#allocation6 + $0x3f70] sm:$0xff]
    %v3029 = vld [vmem:[#allocation6 + $0x3f78] sm:$0xff]
    %v3030 = vld [vmem:[#allocation6 + $0x3f80] sm:$0xff]
    %v3031 = vld [vmem:[#allocation6 + $0x3f88] sm:$0xff]
    %v3032 = vld [vmem:[#allocation6 + $0x3f90] sm:$0xff]
    %v3033 = vld [vmem:[#allocation6 + $0x3f98] sm:$0xff]
    %v3034 = vld [vmem:[#allocation6 + $0x3fa0] sm:$0xff]
    %v3035 = vld [vmem:[#allocation6 + $0x3fa8] sm:$0xff]
    %v3036 = vld [vmem:[#allocation6 + $0x3fb0] sm:$0xff]
    %v3037 = vld [vmem:[#allocation6 + $0x3fb8] sm:$0xff]
    %v3038 = vld [vmem:[#allocation6 + $0x3fc0] sm:$0xff]
    %v3039 = vld [vmem:[#allocation6 + $0x3fc8] sm:$0xff]
    %v3040 = vld [vmem:[#allocation6 + $0x3fd0] sm:$0xff]
    %v3041 = vld [vmem:[#allocation6 + $0x3fd8] sm:$0xff]
    %v3042 = vld [vmem:[#allocation6 + $0x3fe0] sm:$0xff]
    %v3043 = vld [vmem:[#allocation6 + $0x3fe8] sm:$0xff]
    %v3044 = vld [vmem:[#allocation6 + $0x3ff0] sm:$0xff]
    %v3045 = vld [vmem:[#allocation6 + $0x3ff8] sm:$0xff]
    %3046 = vmatprep.subr.mxu0 %v1119
    %3047 = vmatpush1.xpose.msra.mxu0 %v1118
    %3048 = vmatprep.subr.mxu0 %v1111
    %3049 = vmatpush1.xpose.msra.mxu0 %v1110
    %3050 = vmatprep.subr.mxu0 %v1103
    %3051 = vmatpush1.xpose.msra.mxu0 %v1102
    %3052 = vmatprep.subr.mxu0 %v1095
    %3053 = vmatpush1.xpose.msra.mxu0 %v1094
    %3054 = vmatprep.subr.mxu0 %v1087
    %3055 = vmatpush1.xpose.msra.mxu0 %v1086
    %3056 = vmatprep.subr.mxu0 %v1079
    %3057 = vmatpush1.xpose.msra.mxu0 %v1078
    %3058 = vmatprep.subr.mxu0 %v1071
    %3059 = vmatpush1.xpose.msra.mxu0 %v1070
    %3060 = vmatprep.subr.mxu0 %v1063
    %3061 = vmatpush1.xpose.msra.mxu0 %v1062
    %3062 = vmatprep.subr.mxu0 %v1055
    %3063 = vmatpush1.xpose.msra.mxu0 %v1054
    %3064 = vmatprep.subr.mxu0 %v1047
    %3065 = vmatpush1.xpose.msra.mxu0 %v1046
    %3066 = vmatprep.subr.mxu0 %v1039
    %3067 = vmatpush1.xpose.msra.mxu0 %v1038
    %3068 = vmatprep.subr.mxu0 %v1031
    %3069 = vmatpush1.xpose.msra.mxu0 %v1030
    %3070 = vmatprep.subr.mxu0 %v1023
    %3071 = vmatpush1.xpose.msra.mxu0 %v1022
    %3072 = vmatprep.subr.mxu0 %v1015
    %3073 = vmatpush1.xpose.msra.mxu0 %v1014
    %3074 = vmatprep.subr.mxu0 %v1007
    %3075 = vmatpush1.xpose.msra.mxu0 %v1006
    %3076 = vmatprep.subr.mxu0 %v999
    %3077 = vmatpush1.xpose.msra.mxu0 %v998
    %3078 = vmatprep.subr.mxu0 %v1247
    %3079 = vmatpush2.xpose.msra.mxu0 %v1246
    %3080 = vmatprep.subr.mxu0 %v1239
    %3081 = vmatpush2.xpose.msra.mxu0 %v1238
    %3082 = vmatprep.subr.mxu0 %v1231
    %3083 = vmatpush2.xpose.msra.mxu0 %v1230
    %3084 = vmatprep.subr.mxu0 %v1223
    %3085 = vmatpush2.xpose.msra.mxu0 %v1222
    %3086 = vmatprep.subr.mxu0 %v1215
    %3087 = vmatpush2.xpose.msra.mxu0 %v1214
    %3088 = vmatprep.subr.mxu0 %v1207
    %3089 = vmatpush2.xpose.msra.mxu0 %v1206
    %3090 = vmatprep.subr.mxu0 %v1199
    %3091 = vmatpush2.xpose.msra.mxu0 %v1198
    %3092 = vmatprep.subr.mxu0 %v1191
    %3093 = vmatpush2.xpose.msra.mxu0 %v1190
    %3094 = vmatprep.subr.mxu0 %v1183
    %3095 = vmatpush2.xpose.msra.mxu0 %v1182
    %3096 = vmatprep.subr.mxu0 %v1175
    %3097 = vmatpush2.xpose.msra.mxu0 %v1174
    %3098 = vmatprep.subr.mxu0 %v1167
    %3099 = vmatpush2.xpose.msra.mxu0 %v1166
    %3100 = vmatprep.subr.mxu0 %v1159
    %3101 = vmatpush2.xpose.msra.mxu0 %v1158
    %3102 = vmatprep.subr.mxu0 %v1151
    %3103 = vmatpush2.xpose.msra.mxu0 %v1150
    %3104 = vmatprep.subr.mxu0 %v1143
    %3105 = vmatpush2.xpose.msra.mxu0 %v1142
    %3106 = vmatprep.subr.mxu0 %v1135
    %3107 = vmatpush2.xpose.msra.mxu0 %v1134
    %3108 = vmatprep.subr.mxu0 %v1127
    %3109 = vmatpush2.xpose.msra.mxu0 %v1126
    %3110 = vmatprep.mubr.f32.mxu0 %v991
    %3111 = vmatmul.mubr.f32.gmra.mxu0 %v990
    %v3112 = vpop.f32.mrf.mxu0
    %v3113 = vadd.f32 0.0, %v3112
    %v3114 = vpop.f32.mrf.mxu0
    %v3115 = vadd.f32 0.0, %v3114
    %3116 = vdwg.mxu0
    %3117 = vmatprep.subr.mxu0 %v1121
    %3118 = vmatpush1.xpose.msra.mxu0 %v1120
    %3119 = vmatprep.subr.mxu0 %v1113
    %3120 = vmatpush1.xpose.msra.mxu0 %v1112
    %3121 = vmatprep.subr.mxu0 %v1105
    %3122 = vmatpush1.xpose.msra.mxu0 %v1104
    %3123 = vmatprep.subr.mxu0 %v1097
    %3124 = vmatpush1.xpose.msra.mxu0 %v1096
    %3125 = vmatprep.subr.mxu0 %v1089
    %3126 = vmatpush1.xpose.msra.mxu0 %v1088
    %3127 = vmatprep.subr.mxu0 %v1081
    %3128 = vmatpush1.xpose.msra.mxu0 %v1080
    %3129 = vmatprep.subr.mxu0 %v1073
    %3130 = vmatpush1.xpose.msra.mxu0 %v1072
    %3131 = vmatprep.subr.mxu0 %v1065
    %3132 = vmatpush1.xpose.msra.mxu0 %v1064
    %3133 = vmatprep.subr.mxu0 %v1057
    %3134 = vmatpush1.xpose.msra.mxu0 %v1056
    %3135 = vmatprep.subr.mxu0 %v1049
    %3136 = vmatpush1.xpose.msra.mxu0 %v1048
    %3137 = vmatprep.subr.mxu0 %v1041
    %3138 = vmatpush1.xpose.msra.mxu0 %v1040
    %3139 = vmatprep.subr.mxu0 %v1033
    %3140 = vmatpush1.xpose.msra.mxu0 %v1032
    %3141 = vmatprep.subr.mxu0 %v1025
    %3142 = vmatpush1.xpose.msra.mxu0 %v1024
    %3143 = vmatprep.subr.mxu0 %v1017
    %3144 = vmatpush1.xpose.msra.mxu0 %v1016
    %3145 = vmatprep.subr.mxu0 %v1009
    %3146 = vmatpush1.xpose.msra.mxu0 %v1008
    %3147 = vmatprep.subr.mxu0 %v1001
    %3148 = vmatpush1.xpose.msra.mxu0 %v1000
    %3149 = vmatprep.subr.mxu0 %v1249
    %3150 = vmatpush2.xpose.msra.mxu0 %v1248
    %3151 = vmatprep.subr.mxu0 %v1241
    %3152 = vmatpush2.xpose.msra.mxu0 %v1240
    %3153 = vmatprep.subr.mxu0 %v1233
    %3154 = vmatpush2.xpose.msra.mxu0 %v1232
    %3155 = vmatprep.subr.mxu0 %v1225
    %3156 = vmatpush2.xpose.msra.mxu0 %v1224
    %3157 = vmatprep.subr.mxu0 %v1217
    %3158 = vmatpush2.xpose.msra.mxu0 %v1216
    %3159 = vmatprep.subr.mxu0 %v1209
    %3160 = vmatpush2.xpose.msra.mxu0 %v1208
    %3161 = vmatprep.subr.mxu0 %v1201
    %3162 = vmatpush2.xpose.msra.mxu0 %v1200
    %3163 = vmatprep.subr.mxu0 %v1193
    %3164 = vmatpush2.xpose.msra.mxu0 %v1192
    %3165 = vmatprep.subr.mxu0 %v1185
    %3166 = vmatpush2.xpose.msra.mxu0 %v1184
    %3167 = vmatprep.subr.mxu0 %v1177
    %3168 = vmatpush2.xpose.msra.mxu0 %v1176
    %3169 = vmatprep.subr.mxu0 %v1169
    %3170 = vmatpush2.xpose.msra.mxu0 %v1168
    %3171 = vmatprep.subr.mxu0 %v1161
    %3172 = vmatpush2.xpose.msra.mxu0 %v1160
    %3173 = vmatprep.subr.mxu0 %v1153
    %3174 = vmatpush2.xpose.msra.mxu0 %v1152
    %3175 = vmatprep.subr.mxu0 %v1145
    %3176 = vmatpush2.xpose.msra.mxu0 %v1144
    %3177 = vmatprep.subr.mxu0 %v1137
    %3178 = vmatpush2.xpose.msra.mxu0 %v1136
    %3179 = vmatprep.subr.mxu0 %v1129
    %3180 = vmatpush2.xpose.msra.mxu0 %v1128
    %3181 = vmatprep.mubr.f32.mxu0 %v993
    %3182 = vmatmul.mubr.f32.gmra.mxu0 %v992
    %v3183 = vpop.f32.mrf.mxu0
    %v3184 = vadd.f32 %v3113, %v3183
    %v3185 = vpop.f32.mrf.mxu0
    %v3186 = vadd.f32 %v3115, %v3185
    %3187 = vdwg.mxu0
    %3188 = vmatprep.subr.mxu0 %v1123
    %3189 = vmatpush1.xpose.msra.mxu0 %v1122
    %3190 = vmatprep.subr.mxu0 %v1115
    %3191 = vmatpush1.xpose.msra.mxu0 %v1114
    %3192 = vmatprep.subr.mxu0 %v1107
    %3193 = vmatpush1.xpose.msra.mxu0 %v1106
    %3194 = vmatprep.subr.mxu0 %v1099
    %3195 = vmatpush1.xpose.msra.mxu0 %v1098
    %3196 = vmatprep.subr.mxu0 %v1091
    %3197 = vmatpush1.xpose.msra.mxu0 %v1090
    %3198 = vmatprep.subr.mxu0 %v1083
    %3199 = vmatpush1.xpose.msra.mxu0 %v1082
    %3200 = vmatprep.subr.mxu0 %v1075
    %3201 = vmatpush1.xpose.msra.mxu0 %v1074
    %3202 = vmatprep.subr.mxu0 %v1067
    %3203 = vmatpush1.xpose.msra.mxu0 %v1066
    %3204 = vmatprep.subr.mxu0 %v1059
    %3205 = vmatpush1.xpose.msra.mxu0 %v1058
    %3206 = vmatprep.subr.mxu0 %v1051
    %3207 = vmatpush1.xpose.msra.mxu0 %v1050
    %3208 = vmatprep.subr.mxu0 %v1043
    %3209 = vmatpush1.xpose.msra.mxu0 %v1042
    %3210 = vmatprep.subr.mxu0 %v1035
    %3211 = vmatpush1.xpose.msra.mxu0 %v1034
    %3212 = vmatprep.subr.mxu0 %v1027
    %3213 = vmatpush1.xpose.msra.mxu0 %v1026
    %3214 = vmatprep.subr.mxu0 %v1019
    %3215 = vmatpush1.xpose.msra.mxu0 %v1018
    %3216 = vmatprep.subr.mxu0 %v1011
    %3217 = vmatpush1.xpose.msra.mxu0 %v1010
    %3218 = vmatprep.subr.mxu0 %v1003
    %3219 = vmatpush1.xpose.msra.mxu0 %v1002
    %3220 = vmatprep.subr.mxu0 %v1251
    %3221 = vmatpush2.xpose.msra.mxu0 %v1250
    %3222 = vmatprep.subr.mxu0 %v1243
    %3223 = vmatpush2.xpose.msra.mxu0 %v1242
    %3224 = vmatprep.subr.mxu0 %v1235
    %3225 = vmatpush2.xpose.msra.mxu0 %v1234
    %3226 = vmatprep.subr.mxu0 %v1227
    %3227 = vmatpush2.xpose.msra.mxu0 %v1226
    %3228 = vmatprep.subr.mxu0 %v1219
    %3229 = vmatpush2.xpose.msra.mxu0 %v1218
    %3230 = vmatprep.subr.mxu0 %v1211
    %3231 = vmatpush2.xpose.msra.mxu0 %v1210
    %3232 = vmatprep.subr.mxu0 %v1203
    %3233 = vmatpush2.xpose.msra.mxu0 %v1202
    %3234 = vmatprep.subr.mxu0 %v1195
    %3235 = vmatpush2.xpose.msra.mxu0 %v1194
    %3236 = vmatprep.subr.mxu0 %v1187
    %3237 = vmatpush2.xpose.msra.mxu0 %v1186
    %3238 = vmatprep.subr.mxu0 %v1179
    %3239 = vmatpush2.xpose.msra.mxu0 %v1178
    %3240 = vmatprep.subr.mxu0 %v1171
    %3241 = vmatpush2.xpose.msra.mxu0 %v1170
    %3242 = vmatprep.subr.mxu0 %v1163
    %3243 = vmatpush2.xpose.msra.mxu0 %v1162
    %3244 = vmatprep.subr.mxu0 %v1155
    %3245 = vmatpush2.xpose.msra.mxu0 %v1154
    %3246 = vmatprep.subr.mxu0 %v1147
    %3247 = vmatpush2.xpose.msra.mxu0 %v1146
    %3248 = vmatprep.subr.mxu0 %v1139
    %3249 = vmatpush2.xpose.msra.mxu0 %v1138
    %3250 = vmatprep.subr.mxu0 %v1131
    %3251 = vmatpush2.xpose.msra.mxu0 %v1130
    %3252 = vmatprep.mubr.f32.mxu0 %v995
    %3253 = vmatmul.mubr.f32.gmra.mxu0 %v994
    %v3254 = vpop.f32.mrf.mxu0
    %v3255 = vadd.f32 %v3184, %v3254
    %v3256 = vpop.f32.mrf.mxu0
    %v3257 = vadd.f32 %v3186, %v3256
    %3258 = vdwg.mxu0
    %3259 = vmatprep.subr.mxu0 %v1125
    %3260 = vmatpush1.xpose.msra.mxu0 %v1124
    %3261 = vmatprep.subr.mxu0 %v1117
    %3262 = vmatpush1.xpose.msra.mxu0 %v1116
    %3263 = vmatprep.subr.mxu0 %v1109
    %3264 = vmatpush1.xpose.msra.mxu0 %v1108
    %3265 = vmatprep.subr.mxu0 %v1101
    %3266 = vmatpush1.xpose.msra.mxu0 %v1100
    %3267 = vmatprep.subr.mxu0 %v1093
    %3268 = vmatpush1.xpose.msra.mxu0 %v1092
    %3269 = vmatprep.subr.mxu0 %v1085
    %3270 = vmatpush1.xpose.msra.mxu0 %v1084
    %3271 = vmatprep.subr.mxu0 %v1077
    %3272 = vmatpush1.xpose.msra.mxu0 %v1076
    %3273 = vmatprep.subr.mxu0 %v1069
    %3274 = vmatpush1.xpose.msra.mxu0 %v1068
    %3275 = vmatprep.subr.mxu0 %v1061
    %3276 = vmatpush1.xpose.msra.mxu0 %v1060
    %3277 = vmatprep.subr.mxu0 %v1053
    %3278 = vmatpush1.xpose.msra.mxu0 %v1052
    %3279 = vmatprep.subr.mxu0 %v1045
    %3280 = vmatpush1.xpose.msra.mxu0 %v1044
    %3281 = vmatprep.subr.mxu0 %v1037
    %3282 = vmatpush1.xpose.msra.mxu0 %v1036
    %3283 = vmatprep.subr.mxu0 %v1029
    %3284 = vmatpush1.xpose.msra.mxu0 %v1028
    %3285 = vmatprep.subr.mxu0 %v1021
    %3286 = vmatpush1.xpose.msra.mxu0 %v1020
    %3287 = vmatprep.subr.mxu0 %v1013
    %3288 = vmatpush1.xpose.msra.mxu0 %v1012
    %3289 = vmatprep.subr.mxu0 %v1005
    %3290 = vmatpush1.xpose.msra.mxu0 %v1004
    %3291 = vmatprep.subr.mxu0 %v1253
    %3292 = vmatpush2.xpose.msra.mxu0 %v1252
    %3293 = vmatprep.subr.mxu0 %v1245
    %3294 = vmatpush2.xpose.msra.mxu0 %v1244
    %3295 = vmatprep.subr.mxu0 %v1237
    %3296 = vmatpush2.xpose.msra.mxu0 %v1236
    %3297 = vmatprep.subr.mxu0 %v1229
    %3298 = vmatpush2.xpose.msra.mxu0 %v1228
    %3299 = vmatprep.subr.mxu0 %v1221
    %3300 = vmatpush2.xpose.msra.mxu0 %v1220
    %3301 = vmatprep.subr.mxu0 %v1213
    %3302 = vmatpush2.xpose.msra.mxu0 %v1212
    %3303 = vmatprep.subr.mxu0 %v1205
    %3304 = vmatpush2.xpose.msra.mxu0 %v1204
    %3305 = vmatprep.subr.mxu0 %v1197
    %3306 = vmatpush2.xpose.msra.mxu0 %v1196
    %3307 = vmatprep.subr.mxu0 %v1189
    %3308 = vmatpush2.xpose.msra.mxu0 %v1188
    %3309 = vmatprep.subr.mxu0 %v1181
    %3310 = vmatpush2.xpose.msra.mxu0 %v1180
    %3311 = vmatprep.subr.mxu0 %v1173
    %3312 = vmatpush2.xpose.msra.mxu0 %v1172
    %3313 = vmatprep.subr.mxu0 %v1165
    %3314 = vmatpush2.xpose.msra.mxu0 %v1164
    %3315 = vmatprep.subr.mxu0 %v1157
    %3316 = vmatpush2.xpose.msra.mxu0 %v1156
    %3317 = vmatprep.subr.mxu0 %v1149
    %3318 = vmatpush2.xpose.msra.mxu0 %v1148
    %3319 = vmatprep.subr.mxu0 %v1141
    %3320 = vmatpush2.xpose.msra.mxu0 %v1140
    %3321 = vmatprep.subr.mxu0 %v1133
    %3322 = vmatpush2.xpose.msra.mxu0 %v1132
    %3323 = vmatprep.mubr.f32.mxu0 %v997
    %3324 = vmatmul.mubr.f32.gmra.mxu0 %v996
    %v3325 = vpop.f32.mrf.mxu0
    %v3326 = vadd.f32 %v3255, %v3325
    %v3327 = vpop.f32.mrf.mxu0
    %v3328 = vadd.f32 %v3257, %v3327
    %3329 = vdwg.mxu0
    %3330 = vmatprep.subr.mxu0 %v1375
    %3331 = vmatpush1.xpose.msra.mxu0 %v1374
    %3332 = vmatprep.subr.mxu0 %v1367
    %3333 = vmatpush1.xpose.msra.mxu0 %v1366
    %3334 = vmatprep.subr.mxu0 %v1359
    %3335 = vmatpush1.xpose.msra.mxu0 %v1358
    %3336 = vmatprep.subr.mxu0 %v1351
    %3337 = vmatpush1.xpose.msra.mxu0 %v1350
    %3338 = vmatprep.subr.mxu0 %v1343
    %3339 = vmatpush1.xpose.msra.mxu0 %v1342
    %3340 = vmatprep.subr.mxu0 %v1335
    %3341 = vmatpush1.xpose.msra.mxu0 %v1334
    %3342 = vmatprep.subr.mxu0 %v1327
    %3343 = vmatpush1.xpose.msra.mxu0 %v1326
    %3344 = vmatprep.subr.mxu0 %v1319
    %3345 = vmatpush1.xpose.msra.mxu0 %v1318
    %3346 = vmatprep.subr.mxu0 %v1311
    %3347 = vmatpush1.xpose.msra.mxu0 %v1310
    %3348 = vmatprep.subr.mxu0 %v1303
    %3349 = vmatpush1.xpose.msra.mxu0 %v1302
    %3350 = vmatprep.subr.mxu0 %v1295
    %3351 = vmatpush1.xpose.msra.mxu0 %v1294
    %3352 = vmatprep.subr.mxu0 %v1287
    %3353 = vmatpush1.xpose.msra.mxu0 %v1286
    %3354 = vmatprep.subr.mxu0 %v1279
    %3355 = vmatpush1.xpose.msra.mxu0 %v1278
    %3356 = vmatprep.subr.mxu0 %v1271
    %3357 = vmatpush1.xpose.msra.mxu0 %v1270
    %3358 = vmatprep.subr.mxu0 %v1263
    %3359 = vmatpush1.xpose.msra.mxu0 %v1262
    %3360 = vmatprep.subr.mxu0 %v1255
    %3361 = vmatpush1.xpose.msra.mxu0 %v1254
    %3362 = vmatprep.subr.mxu0 %v1503
    %3363 = vmatpush2.xpose.msra.mxu0 %v1502
    %3364 = vmatprep.subr.mxu0 %v1495
    %3365 = vmatpush2.xpose.msra.mxu0 %v1494
    %3366 = vmatprep.subr.mxu0 %v1487
    %3367 = vmatpush2.xpose.msra.mxu0 %v1486
    %3368 = vmatprep.subr.mxu0 %v1479
    %3369 = vmatpush2.xpose.msra.mxu0 %v1478
    %3370 = vmatprep.subr.mxu0 %v1471
    %3371 = vmatpush2.xpose.msra.mxu0 %v1470
    %3372 = vmatprep.subr.mxu0 %v1463
    %3373 = vmatpush2.xpose.msra.mxu0 %v1462
    %3374 = vmatprep.subr.mxu0 %v1455
    %3375 = vmatpush2.xpose.msra.mxu0 %v1454
    %3376 = vmatprep.subr.mxu0 %v1447
    %3377 = vmatpush2.xpose.msra.mxu0 %v1446
    %3378 = vmatprep.subr.mxu0 %v1439
    %3379 = vmatpush2.xpose.msra.mxu0 %v1438
    %3380 = vmatprep.subr.mxu0 %v1431
    %3381 = vmatpush2.xpose.msra.mxu0 %v1430
    %3382 = vmatprep.subr.mxu0 %v1423
    %3383 = vmatpush2.xpose.msra.mxu0 %v1422
    %3384 = vmatprep.subr.mxu0 %v1415
    %3385 = vmatpush2.xpose.msra.mxu0 %v1414
    %3386 = vmatprep.subr.mxu0 %v1407
    %3387 = vmatpush2.xpose.msra.mxu0 %v1406
    %3388 = vmatprep.subr.mxu0 %v1399
    %3389 = vmatpush2.xpose.msra.mxu0 %v1398
    %3390 = vmatprep.subr.mxu0 %v1391
    %3391 = vmatpush2.xpose.msra.mxu0 %v1390
    %3392 = vmatprep.subr.mxu0 %v1383
    %3393 = vmatpush2.xpose.msra.mxu0 %v1382
    %3394 = vmatprep.mubr.f32.mxu0 %v991
    %3395 = vmatmul.mubr.f32.gmra.mxu0 %v990
    %v3396 = vpop.f32.mrf.mxu0
    %v3397 = vadd.f32 0.0, %v3396
    %v3398 = vpop.f32.mrf.mxu0
    %v3399 = vadd.f32 0.0, %v3398
    %3400 = vdwg.mxu0
    %3401 = vmatprep.subr.mxu0 %v1377
    %3402 = vmatpush1.xpose.msra.mxu0 %v1376
    %3403 = vmatprep.subr.mxu0 %v1369
    %3404 = vmatpush1.xpose.msra.mxu0 %v1368
    %3405 = vmatprep.subr.mxu0 %v1361
    %3406 = vmatpush1.xpose.msra.mxu0 %v1360
    %3407 = vmatprep.subr.mxu0 %v1353
    %3408 = vmatpush1.xpose.msra.mxu0 %v1352
    %3409 = vmatprep.subr.mxu0 %v1345
    %3410 = vmatpush1.xpose.msra.mxu0 %v1344
    %3411 = vmatprep.subr.mxu0 %v1337
    %3412 = vmatpush1.xpose.msra.mxu0 %v1336
    %3413 = vmatprep.subr.mxu0 %v1329
    %3414 = vmatpush1.xpose.msra.mxu0 %v1328
    %3415 = vmatprep.subr.mxu0 %v1321
    %3416 = vmatpush1.xpose.msra.mxu0 %v1320
    %3417 = vmatprep.subr.mxu0 %v1313
    %3418 = vmatpush1.xpose.msra.mxu0 %v1312
    %3419 = vmatprep.subr.mxu0 %v1305
    %3420 = vmatpush1.xpose.msra.mxu0 %v1304
    %3421 = vmatprep.subr.mxu0 %v1297
    %3422 = vmatpush1.xpose.msra.mxu0 %v1296
    %3423 = vmatprep.subr.mxu0 %v1289
    %3424 = vmatpush1.xpose.msra.mxu0 %v1288
    %3425 = vmatprep.subr.mxu0 %v1281
    %3426 = vmatpush1.xpose.msra.mxu0 %v1280
    %3427 = vmatprep.subr.mxu0 %v1273
    %3428 = vmatpush1.xpose.msra.mxu0 %v1272
    %3429 = vmatprep.subr.mxu0 %v1265
    %3430 = vmatpush1.xpose.msra.mxu0 %v1264
    %3431 = vmatprep.subr.mxu0 %v1257
    %3432 = vmatpush1.xpose.msra.mxu0 %v1256
    %3433 = vmatprep.subr.mxu0 %v1505
    %3434 = vmatpush2.xpose.msra.mxu0 %v1504
    %3435 = vmatprep.subr.mxu0 %v1497
    %3436 = vmatpush2.xpose.msra.mxu0 %v1496
    %3437 = vmatprep.subr.mxu0 %v1489
    %3438 = vmatpush2.xpose.msra.mxu0 %v1488
    %3439 = vmatprep.subr.mxu0 %v1481
    %3440 = vmatpush2.xpose.msra.mxu0 %v1480
    %3441 = vmatprep.subr.mxu0 %v1473
    %3442 = vmatpush2.xpose.msra.mxu0 %v1472
    %3443 = vmatprep.subr.mxu0 %v1465
    %3444 = vmatpush2.xpose.msra.mxu0 %v1464
    %3445 = vmatprep.subr.mxu0 %v1457
    %3446 = vmatpush2.xpose.msra.mxu0 %v1456
    %3447 = vmatprep.subr.mxu0 %v1449
    %3448 = vmatpush2.xpose.msra.mxu0 %v1448
    %3449 = vmatprep.subr.mxu0 %v1441
    %3450 = vmatpush2.xpose.msra.mxu0 %v1440
    %3451 = vmatprep.subr.mxu0 %v1433
    %3452 = vmatpush2.xpose.msra.mxu0 %v1432
    %3453 = vmatprep.subr.mxu0 %v1425
    %3454 = vmatpush2.xpose.msra.mxu0 %v1424
    %3455 = vmatprep.subr.mxu0 %v1417
    %3456 = vmatpush2.xpose.msra.mxu0 %v1416
    %3457 = vmatprep.subr.mxu0 %v1409
    %3458 = vmatpush2.xpose.msra.mxu0 %v1408
    %3459 = vmatprep.subr.mxu0 %v1401
    %3460 = vmatpush2.xpose.msra.mxu0 %v1400
    %3461 = vmatprep.subr.mxu0 %v1393
    %3462 = vmatpush2.xpose.msra.mxu0 %v1392
    %3463 = vmatprep.subr.mxu0 %v1385
    %3464 = vmatpush2.xpose.msra.mxu0 %v1384
    %3465 = vmatprep.mubr.f32.mxu0 %v993
    %3466 = vmatmul.mubr.f32.gmra.mxu0 %v992
    %v3467 = vpop.f32.mrf.mxu0
    %v3468 = vadd.f32 %v3397, %v3467
    %v3469 = vpop.f32.mrf.mxu0
    %v3470 = vadd.f32 %v3399, %v3469
    %3471 = vdwg.mxu0
    %3472 = vmatprep.subr.mxu0 %v1379
    %3473 = vmatpush1.xpose.msra.mxu0 %v1378
    %3474 = vmatprep.subr.mxu0 %v1371
    %3475 = vmatpush1.xpose.msra.mxu0 %v1370
    %3476 = vmatprep.subr.mxu0 %v1363
    %3477 = vmatpush1.xpose.msra.mxu0 %v1362
    %3478 = vmatprep.subr.mxu0 %v1355
    %3479 = vmatpush1.xpose.msra.mxu0 %v1354
    %3480 = vmatprep.subr.mxu0 %v1347
    %3481 = vmatpush1.xpose.msra.mxu0 %v1346
    %3482 = vmatprep.subr.mxu0 %v1339
    %3483 = vmatpush1.xpose.msra.mxu0 %v1338
    %3484 = vmatprep.subr.mxu0 %v1331
    %3485 = vmatpush1.xpose.msra.mxu0 %v1330
    %3486 = vmatprep.subr.mxu0 %v1323
    %3487 = vmatpush1.xpose.msra.mxu0 %v1322
    %3488 = vmatprep.subr.mxu0 %v1315
    %3489 = vmatpush1.xpose.msra.mxu0 %v1314
    %3490 = vmatprep.subr.mxu0 %v1307
    %3491 = vmatpush1.xpose.msra.mxu0 %v1306
    %3492 = vmatprep.subr.mxu0 %v1299
    %3493 = vmatpush1.xpose.msra.mxu0 %v1298
    %3494 = vmatprep.subr.mxu0 %v1291
    %3495 = vmatpush1.xpose.msra.mxu0 %v1290
    %3496 = vmatprep.subr.mxu0 %v1283
    %3497 = vmatpush1.xpose.msra.mxu0 %v1282
    %3498 = vmatprep.subr.mxu0 %v1275
    %3499 = vmatpush1.xpose.msra.mxu0 %v1274
    %3500 = vmatprep.subr.mxu0 %v1267
    %3501 = vmatpush1.xpose.msra.mxu0 %v1266
    %3502 = vmatprep.subr.mxu0 %v1259
    %3503 = vmatpush1.xpose.msra.mxu0 %v1258
    %3504 = vmatprep.subr.mxu0 %v1507
    %3505 = vmatpush2.xpose.msra.mxu0 %v1506
    %3506 = vmatprep.subr.mxu0 %v1499
    %3507 = vmatpush2.xpose.msra.mxu0 %v1498
    %3508 = vmatprep.subr.mxu0 %v1491
    %3509 = vmatpush2.xpose.msra.mxu0 %v1490
    %3510 = vmatprep.subr.mxu0 %v1483
    %3511 = vmatpush2.xpose.msra.mxu0 %v1482
    %3512 = vmatprep.subr.mxu0 %v1475
    %3513 = vmatpush2.xpose.msra.mxu0 %v1474
    %3514 = vmatprep.subr.mxu0 %v1467
    %3515 = vmatpush2.xpose.msra.mxu0 %v1466
    %3516 = vmatprep.subr.mxu0 %v1459
    %3517 = vmatpush2.xpose.msra.mxu0 %v1458
    %3518 = vmatprep.subr.mxu0 %v1451
    %3519 = vmatpush2.xpose.msra.mxu0 %v1450
    %3520 = vmatprep.subr.mxu0 %v1443
    %3521 = vmatpush2.xpose.msra.mxu0 %v1442
    %3522 = vmatprep.subr.mxu0 %v1435
    %3523 = vmatpush2.xpose.msra.mxu0 %v1434
    %3524 = vmatprep.subr.mxu0 %v1427
    %3525 = vmatpush2.xpose.msra.mxu0 %v1426
    %3526 = vmatprep.subr.mxu0 %v1419
    %3527 = vmatpush2.xpose.msra.mxu0 %v1418
    %3528 = vmatprep.subr.mxu0 %v1411
    %3529 = vmatpush2.xpose.msra.mxu0 %v1410
    %3530 = vmatprep.subr.mxu0 %v1403
    %3531 = vmatpush2.xpose.msra.mxu0 %v1402
    %3532 = vmatprep.subr.mxu0 %v1395
    %3533 = vmatpush2.xpose.msra.mxu0 %v1394
    %3534 = vmatprep.subr.mxu0 %v1387
    %3535 = vmatpush2.xpose.msra.mxu0 %v1386
    %3536 = vmatprep.mubr.f32.mxu0 %v995
    %3537 = vmatmul.mubr.f32.gmra.mxu0 %v994
    %v3538 = vpop.f32.mrf.mxu0
    %v3539 = vadd.f32 %v3468, %v3538
    %v3540 = vpop.f32.mrf.mxu0
    %v3541 = vadd.f32 %v3470, %v3540
    %3542 = vdwg.mxu0
    %3543 = vmatprep.subr.mxu0 %v1381
    %3544 = vmatpush1.xpose.msra.mxu0 %v1380
    %3545 = vmatprep.subr.mxu0 %v1373
    %3546 = vmatpush1.xpose.msra.mxu0 %v1372
    %3547 = vmatprep.subr.mxu0 %v1365
    %3548 = vmatpush1.xpose.msra.mxu0 %v1364
    %3549 = vmatprep.subr.mxu0 %v1357
    %3550 = vmatpush1.xpose.msra.mxu0 %v1356
    %3551 = vmatprep.subr.mxu0 %v1349
    %3552 = vmatpush1.xpose.msra.mxu0 %v1348
    %3553 = vmatprep.subr.mxu0 %v1341
    %3554 = vmatpush1.xpose.msra.mxu0 %v1340
    %3555 = vmatprep.subr.mxu0 %v1333
    %3556 = vmatpush1.xpose.msra.mxu0 %v1332
    %3557 = vmatprep.subr.mxu0 %v1325
    %3558 = vmatpush1.xpose.msra.mxu0 %v1324
    %3559 = vmatprep.subr.mxu0 %v1317
    %3560 = vmatpush1.xpose.msra.mxu0 %v1316
    %3561 = vmatprep.subr.mxu0 %v1309
    %3562 = vmatpush1.xpose.msra.mxu0 %v1308
    %3563 = vmatprep.subr.mxu0 %v1301
    %3564 = vmatpush1.xpose.msra.mxu0 %v1300
    %3565 = vmatprep.subr.mxu0 %v1293
    %3566 = vmatpush1.xpose.msra.mxu0 %v1292
    %3567 = vmatprep.subr.mxu0 %v1285
    %3568 = vmatpush1.xpose.msra.mxu0 %v1284
    %3569 = vmatprep.subr.mxu0 %v1277
    %3570 = vmatpush1.xpose.msra.mxu0 %v1276
    %3571 = vmatprep.subr.mxu0 %v1269
    %3572 = vmatpush1.xpose.msra.mxu0 %v1268
    %3573 = vmatprep.subr.mxu0 %v1261
    %3574 = vmatpush1.xpose.msra.mxu0 %v1260
    %3575 = vmatprep.subr.mxu0 %v1509
    %3576 = vmatpush2.xpose.msra.mxu0 %v1508
    %3577 = vmatprep.subr.mxu0 %v1501
    %3578 = vmatpush2.xpose.msra.mxu0 %v1500
    %3579 = vmatprep.subr.mxu0 %v1493
    %3580 = vmatpush2.xpose.msra.mxu0 %v1492
    %3581 = vmatprep.subr.mxu0 %v1485
    %3582 = vmatpush2.xpose.msra.mxu0 %v1484
    %3583 = vmatprep.subr.mxu0 %v1477
    %3584 = vmatpush2.xpose.msra.mxu0 %v1476
    %3585 = vmatprep.subr.mxu0 %v1469
    %3586 = vmatpush2.xpose.msra.mxu0 %v1468
    %3587 = vmatprep.subr.mxu0 %v1461
    %3588 = vmatpush2.xpose.msra.mxu0 %v1460
    %3589 = vmatprep.subr.mxu0 %v1453
    %3590 = vmatpush2.xpose.msra.mxu0 %v1452
    %3591 = vmatprep.subr.mxu0 %v1445
    %3592 = vmatpush2.xpose.msra.mxu0 %v1444
    %3593 = vmatprep.subr.mxu0 %v1437
    %3594 = vmatpush2.xpose.msra.mxu0 %v1436
    %3595 = vmatprep.subr.mxu0 %v1429
    %3596 = vmatpush2.xpose.msra.mxu0 %v1428
    %3597 = vmatprep.subr.mxu0 %v1421
    %3598 = vmatpush2.xpose.msra.mxu0 %v1420
    %3599 = vmatprep.subr.mxu0 %v1413
    %3600 = vmatpush2.xpose.msra.mxu0 %v1412
    %3601 = vmatprep.subr.mxu0 %v1405
    %3602 = vmatpush2.xpose.msra.mxu0 %v1404
    %3603 = vmatprep.subr.mxu0 %v1397
    %3604 = vmatpush2.xpose.msra.mxu0 %v1396
    %3605 = vmatprep.subr.mxu0 %v1389
    %3606 = vmatpush2.xpose.msra.mxu0 %v1388
    %3607 = vmatprep.mubr.f32.mxu0 %v997
    %3608 = vmatmul.mubr.f32.gmra.mxu0 %v996
    %v3609 = vpop.f32.mrf.mxu0
    %v3610 = vadd.f32 %v3539, %v3609
    %v3611 = vpop.f32.mrf.mxu0
    %v3612 = vadd.f32 %v3541, %v3611
    %3613 = vdwg.mxu0
    %3614 = vmatprep.subr.mxu0 %v1631
    %3615 = vmatpush1.xpose.msra.mxu0 %v1630
    %3616 = vmatprep.subr.mxu0 %v1623
    %3617 = vmatpush1.xpose.msra.mxu0 %v1622
    %3618 = vmatprep.subr.mxu0 %v1615
    %3619 = vmatpush1.xpose.msra.mxu0 %v1614
    %3620 = vmatprep.subr.mxu0 %v1607
    %3621 = vmatpush1.xpose.msra.mxu0 %v1606
    %3622 = vmatprep.subr.mxu0 %v1599
    %3623 = vmatpush1.xpose.msra.mxu0 %v1598
    %3624 = vmatprep.subr.mxu0 %v1591
    %3625 = vmatpush1.xpose.msra.mxu0 %v1590
    %3626 = vmatprep.subr.mxu0 %v1583
    %3627 = vmatpush1.xpose.msra.mxu0 %v1582
    %3628 = vmatprep.subr.mxu0 %v1575
    %3629 = vmatpush1.xpose.msra.mxu0 %v1574
    %3630 = vmatprep.subr.mxu0 %v1567
    %3631 = vmatpush1.xpose.msra.mxu0 %v1566
    %3632 = vmatprep.subr.mxu0 %v1559
    %3633 = vmatpush1.xpose.msra.mxu0 %v1558
    %3634 = vmatprep.subr.mxu0 %v1551
    %3635 = vmatpush1.xpose.msra.mxu0 %v1550
    %3636 = vmatprep.subr.mxu0 %v1543
    %3637 = vmatpush1.xpose.msra.mxu0 %v1542
    %3638 = vmatprep.subr.mxu0 %v1535
    %3639 = vmatpush1.xpose.msra.mxu0 %v1534
    %3640 = vmatprep.subr.mxu0 %v1527
    %3641 = vmatpush1.xpose.msra.mxu0 %v1526
    %3642 = vmatprep.subr.mxu0 %v1519
    %3643 = vmatpush1.xpose.msra.mxu0 %v1518
    %3644 = vmatprep.subr.mxu0 %v1511
    %3645 = vmatpush1.xpose.msra.mxu0 %v1510
    %3646 = vmatprep.subr.mxu0 %v1759
    %3647 = vmatpush2.xpose.msra.mxu0 %v1758
    %3648 = vmatprep.subr.mxu0 %v1751
    %3649 = vmatpush2.xpose.msra.mxu0 %v1750
    %3650 = vmatprep.subr.mxu0 %v1743
    %3651 = vmatpush2.xpose.msra.mxu0 %v1742
    %3652 = vmatprep.subr.mxu0 %v1735
    %3653 = vmatpush2.xpose.msra.mxu0 %v1734
    %3654 = vmatprep.subr.mxu0 %v1727
    %3655 = vmatpush2.xpose.msra.mxu0 %v1726
    %3656 = vmatprep.subr.mxu0 %v1719
    %3657 = vmatpush2.xpose.msra.mxu0 %v1718
    %3658 = vmatprep.subr.mxu0 %v1711
    %3659 = vmatpush2.xpose.msra.mxu0 %v1710
    %3660 = vmatprep.subr.mxu0 %v1703
    %3661 = vmatpush2.xpose.msra.mxu0 %v1702
    %3662 = vmatprep.subr.mxu0 %v1695
    %3663 = vmatpush2.xpose.msra.mxu0 %v1694
    %3664 = vmatprep.subr.mxu0 %v1687
    %3665 = vmatpush2.xpose.msra.mxu0 %v1686
    %3666 = vmatprep.subr.mxu0 %v1679
    %3667 = vmatpush2.xpose.msra.mxu0 %v1678
    %3668 = vmatprep.subr.mxu0 %v1671
    %3669 = vmatpush2.xpose.msra.mxu0 %v1670
    %3670 = vmatprep.subr.mxu0 %v1663
    %3671 = vmatpush2.xpose.msra.mxu0 %v1662
    %3672 = vmatprep.subr.mxu0 %v1655
    %3673 = vmatpush2.xpose.msra.mxu0 %v1654
    %3674 = vmatprep.subr.mxu0 %v1647
    %3675 = vmatpush2.xpose.msra.mxu0 %v1646
    %3676 = vmatprep.subr.mxu0 %v1639
    %3677 = vmatpush2.xpose.msra.mxu0 %v1638
    %3678 = vmatprep.mubr.f32.mxu0 %v991
    %3679 = vmatmul.mubr.f32.gmra.mxu0 %v990
    %v3680 = vpop.f32.mrf.mxu0
    %v3681 = vadd.f32 0.0, %v3680
    %v3682 = vpop.f32.mrf.mxu0
    %v3683 = vadd.f32 0.0, %v3682
    %3684 = vdwg.mxu0
    %3685 = vmatprep.subr.mxu0 %v1633
    %3686 = vmatpush1.xpose.msra.mxu0 %v1632
    %3687 = vmatprep.subr.mxu0 %v1625
    %3688 = vmatpush1.xpose.msra.mxu0 %v1624
    %3689 = vmatprep.subr.mxu0 %v1617
    %3690 = vmatpush1.xpose.msra.mxu0 %v1616
    %3691 = vmatprep.subr.mxu0 %v1609
    %3692 = vmatpush1.xpose.msra.mxu0 %v1608
    %3693 = vmatprep.subr.mxu0 %v1601
    %3694 = vmatpush1.xpose.msra.mxu0 %v1600
    %3695 = vmatprep.subr.mxu0 %v1593
    %3696 = vmatpush1.xpose.msra.mxu0 %v1592
    %3697 = vmatprep.subr.mxu0 %v1585
    %3698 = vmatpush1.xpose.msra.mxu0 %v1584
    %3699 = vmatprep.subr.mxu0 %v1577
    %3700 = vmatpush1.xpose.msra.mxu0 %v1576
    %3701 = vmatprep.subr.mxu0 %v1569
    %3702 = vmatpush1.xpose.msra.mxu0 %v1568
    %3703 = vmatprep.subr.mxu0 %v1561
    %3704 = vmatpush1.xpose.msra.mxu0 %v1560
    %3705 = vmatprep.subr.mxu0 %v1553
    %3706 = vmatpush1.xpose.msra.mxu0 %v1552
    %3707 = vmatprep.subr.mxu0 %v1545
    %3708 = vmatpush1.xpose.msra.mxu0 %v1544
    %3709 = vmatprep.subr.mxu0 %v1537
    %3710 = vmatpush1.xpose.msra.mxu0 %v1536
    %3711 = vmatprep.subr.mxu0 %v1529
    %3712 = vmatpush1.xpose.msra.mxu0 %v1528
    %3713 = vmatprep.subr.mxu0 %v1521
    %3714 = vmatpush1.xpose.msra.mxu0 %v1520
    %3715 = vmatprep.subr.mxu0 %v1513
    %3716 = vmatpush1.xpose.msra.mxu0 %v1512
    %3717 = vmatprep.subr.mxu0 %v1761
    %3718 = vmatpush2.xpose.msra.mxu0 %v1760
    %3719 = vmatprep.subr.mxu0 %v1753
    %3720 = vmatpush2.xpose.msra.mxu0 %v1752
    %3721 = vmatprep.subr.mxu0 %v1745
    %3722 = vmatpush2.xpose.msra.mxu0 %v1744
    %3723 = vmatprep.subr.mxu0 %v1737
    %3724 = vmatpush2.xpose.msra.mxu0 %v1736
    %3725 = vmatprep.subr.mxu0 %v1729
    %3726 = vmatpush2.xpose.msra.mxu0 %v1728
    %3727 = vmatprep.subr.mxu0 %v1721
    %3728 = vmatpush2.xpose.msra.mxu0 %v1720
    %3729 = vmatprep.subr.mxu0 %v1713
    %3730 = vmatpush2.xpose.msra.mxu0 %v1712
    %3731 = vmatprep.subr.mxu0 %v1705
    %3732 = vmatpush2.xpose.msra.mxu0 %v1704
    %3733 = vmatprep.subr.mxu0 %v1697
    %3734 = vmatpush2.xpose.msra.mxu0 %v1696
    %3735 = vmatprep.subr.mxu0 %v1689
    %3736 = vmatpush2.xpose.msra.mxu0 %v1688
    %3737 = vmatprep.subr.mxu0 %v1681
    %3738 = vmatpush2.xpose.msra.mxu0 %v1680
    %3739 = vmatprep.subr.mxu0 %v1673
    %3740 = vmatpush2.xpose.msra.mxu0 %v1672
    %3741 = vmatprep.subr.mxu0 %v1665
    %3742 = vmatpush2.xpose.msra.mxu0 %v1664
    %3743 = vmatprep.subr.mxu0 %v1657
    %3744 = vmatpush2.xpose.msra.mxu0 %v1656
    %3745 = vmatprep.subr.mxu0 %v1649
    %3746 = vmatpush2.xpose.msra.mxu0 %v1648
    %3747 = vmatprep.subr.mxu0 %v1641
    %3748 = vmatpush2.xpose.msra.mxu0 %v1640
    %3749 = vmatprep.mubr.f32.mxu0 %v993
    %3750 = vmatmul.mubr.f32.gmra.mxu0 %v992
    %v3751 = vpop.f32.mrf.mxu0
    %v3752 = vadd.f32 %v3681, %v3751
    %v3753 = vpop.f32.mrf.mxu0
    %v3754 = vadd.f32 %v3683, %v3753
    %3755 = vdwg.mxu0
    %3756 = vmatprep.subr.mxu0 %v1635
    %3757 = vmatpush1.xpose.msra.mxu0 %v1634
    %3758 = vmatprep.subr.mxu0 %v1627
    %3759 = vmatpush1.xpose.msra.mxu0 %v1626
    %3760 = vmatprep.subr.mxu0 %v1619
    %3761 = vmatpush1.xpose.msra.mxu0 %v1618
    %3762 = vmatprep.subr.mxu0 %v1611
    %3763 = vmatpush1.xpose.msra.mxu0 %v1610
    %3764 = vmatprep.subr.mxu0 %v1603
    %3765 = vmatpush1.xpose.msra.mxu0 %v1602
    %3766 = vmatprep.subr.mxu0 %v1595
    %3767 = vmatpush1.xpose.msra.mxu0 %v1594
    %3768 = vmatprep.subr.mxu0 %v1587
    %3769 = vmatpush1.xpose.msra.mxu0 %v1586
    %3770 = vmatprep.subr.mxu0 %v1579
    %3771 = vmatpush1.xpose.msra.mxu0 %v1578
    %3772 = vmatprep.subr.mxu0 %v1571
    %3773 = vmatpush1.xpose.msra.mxu0 %v1570
    %3774 = vmatprep.subr.mxu0 %v1563
    %3775 = vmatpush1.xpose.msra.mxu0 %v1562
    %3776 = vmatprep.subr.mxu0 %v1555
    %3777 = vmatpush1.xpose.msra.mxu0 %v1554
    %3778 = vmatprep.subr.mxu0 %v1547
    %3779 = vmatpush1.xpose.msra.mxu0 %v1546
    %3780 = vmatprep.subr.mxu0 %v1539
    %3781 = vmatpush1.xpose.msra.mxu0 %v1538
    %3782 = vmatprep.subr.mxu0 %v1531
    %3783 = vmatpush1.xpose.msra.mxu0 %v1530
    %3784 = vmatprep.subr.mxu0 %v1523
    %3785 = vmatpush1.xpose.msra.mxu0 %v1522
    %3786 = vmatprep.subr.mxu0 %v1515
    %3787 = vmatpush1.xpose.msra.mxu0 %v1514
    %3788 = vmatprep.subr.mxu0 %v1763
    %3789 = vmatpush2.xpose.msra.mxu0 %v1762
    %3790 = vmatprep.subr.mxu0 %v1755
    %3791 = vmatpush2.xpose.msra.mxu0 %v1754
    %3792 = vmatprep.subr.mxu0 %v1747
    %3793 = vmatpush2.xpose.msra.mxu0 %v1746
    %3794 = vmatprep.subr.mxu0 %v1739
    %3795 = vmatpush2.xpose.msra.mxu0 %v1738
    %3796 = vmatprep.subr.mxu0 %v1731
    %3797 = vmatpush2.xpose.msra.mxu0 %v1730
    %3798 = vmatprep.subr.mxu0 %v1723
    %3799 = vmatpush2.xpose.msra.mxu0 %v1722
    %3800 = vmatprep.subr.mxu0 %v1715
    %3801 = vmatpush2.xpose.msra.mxu0 %v1714
    %3802 = vmatprep.subr.mxu0 %v1707
    %3803 = vmatpush2.xpose.msra.mxu0 %v1706
    %3804 = vmatprep.subr.mxu0 %v1699
    %3805 = vmatpush2.xpose.msra.mxu0 %v1698
    %3806 = vmatprep.subr.mxu0 %v1691
    %3807 = vmatpush2.xpose.msra.mxu0 %v1690
    %3808 = vmatprep.subr.mxu0 %v1683
    %3809 = vmatpush2.xpose.msra.mxu0 %v1682
    %3810 = vmatprep.subr.mxu0 %v1675
    %3811 = vmatpush2.xpose.msra.mxu0 %v1674
    %3812 = vmatprep.subr.mxu0 %v1667
    %3813 = vmatpush2.xpose.msra.mxu0 %v1666
    %3814 = vmatprep.subr.mxu0 %v1659
    %3815 = vmatpush2.xpose.msra.mxu0 %v1658
    %3816 = vmatprep.subr.mxu0 %v1651
    %3817 = vmatpush2.xpose.msra.mxu0 %v1650
    %3818 = vmatprep.subr.mxu0 %v1643
    %3819 = vmatpush2.xpose.msra.mxu0 %v1642
    %3820 = vmatprep.mubr.f32.mxu0 %v995
    %3821 = vmatmul.mubr.f32.gmra.mxu0 %v994
    %v3822 = vpop.f32.mrf.mxu0
    %v3823 = vadd.f32 %v3752, %v3822
    %v3824 = vpop.f32.mrf.mxu0
    %v3825 = vadd.f32 %v3754, %v3824
    %3826 = vdwg.mxu0
    %3827 = vmatprep.subr.mxu0 %v1637
    %3828 = vmatpush1.xpose.msra.mxu0 %v1636
    %3829 = vmatprep.subr.mxu0 %v1629
    %3830 = vmatpush1.xpose.msra.mxu0 %v1628
    %3831 = vmatprep.subr.mxu0 %v1621
    %3832 = vmatpush1.xpose.msra.mxu0 %v1620
    %3833 = vmatprep.subr.mxu0 %v1613
    %3834 = vmatpush1.xpose.msra.mxu0 %v1612
    %3835 = vmatprep.subr.mxu0 %v1605
    %3836 = vmatpush1.xpose.msra.mxu0 %v1604
    %3837 = vmatprep.subr.mxu0 %v1597
    %3838 = vmatpush1.xpose.msra.mxu0 %v1596
    %3839 = vmatprep.subr.mxu0 %v1589
    %3840 = vmatpush1.xpose.msra.mxu0 %v1588
    %3841 = vmatprep.subr.mxu0 %v1581
    %3842 = vmatpush1.xpose.msra.mxu0 %v1580
    %3843 = vmatprep.subr.mxu0 %v1573
    %3844 = vmatpush1.xpose.msra.mxu0 %v1572
    %3845 = vmatprep.subr.mxu0 %v1565
    %3846 = vmatpush1.xpose.msra.mxu0 %v1564
    %3847 = vmatprep.subr.mxu0 %v1557
    %3848 = vmatpush1.xpose.msra.mxu0 %v1556
    %3849 = vmatprep.subr.mxu0 %v1549
    %3850 = vmatpush1.xpose.msra.mxu0 %v1548
    %3851 = vmatprep.subr.mxu0 %v1541
    %3852 = vmatpush1.xpose.msra.mxu0 %v1540
    %3853 = vmatprep.subr.mxu0 %v1533
    %3854 = vmatpush1.xpose.msra.mxu0 %v1532
    %3855 = vmatprep.subr.mxu0 %v1525
    %3856 = vmatpush1.xpose.msra.mxu0 %v1524
    %3857 = vmatprep.subr.mxu0 %v1517
    %3858 = vmatpush1.xpose.msra.mxu0 %v1516
    %3859 = vmatprep.subr.mxu0 %v1765
    %3860 = vmatpush2.xpose.msra.mxu0 %v1764
    %3861 = vmatprep.subr.mxu0 %v1757
    %3862 = vmatpush2.xpose.msra.mxu0 %v1756
    %3863 = vmatprep.subr.mxu0 %v1749
    %3864 = vmatpush2.xpose.msra.mxu0 %v1748
    %3865 = vmatprep.subr.mxu0 %v1741
    %3866 = vmatpush2.xpose.msra.mxu0 %v1740
    %3867 = vmatprep.subr.mxu0 %v1733
    %3868 = vmatpush2.xpose.msra.mxu0 %v1732
    %3869 = vmatprep.subr.mxu0 %v1725
    %3870 = vmatpush2.xpose.msra.mxu0 %v1724
    %3871 = vmatprep.subr.mxu0 %v1717
    %3872 = vmatpush2.xpose.msra.mxu0 %v1716
    %3873 = vmatprep.subr.mxu0 %v1709
    %3874 = vmatpush2.xpose.msra.mxu0 %v1708
    %3875 = vmatprep.subr.mxu0 %v1701
    %3876 = vmatpush2.xpose.msra.mxu0 %v1700
    %3877 = vmatprep.subr.mxu0 %v1693
    %3878 = vmatpush2.xpose.msra.mxu0 %v1692
    %3879 = vmatprep.subr.mxu0 %v1685
    %3880 = vmatpush2.xpose.msra.mxu0 %v1684
    %3881 = vmatprep.subr.mxu0 %v1677
    %3882 = vmatpush2.xpose.msra.mxu0 %v1676
    %3883 = vmatprep.subr.mxu0 %v1669
    %3884 = vmatpush2.xpose.msra.mxu0 %v1668
    %3885 = vmatprep.subr.mxu0 %v1661
    %3886 = vmatpush2.xpose.msra.mxu0 %v1660
    %3887 = vmatprep.subr.mxu0 %v1653
    %3888 = vmatpush2.xpose.msra.mxu0 %v1652
    %3889 = vmatprep.subr.mxu0 %v1645
    %3890 = vmatpush2.xpose.msra.mxu0 %v1644
    %3891 = vmatprep.mubr.f32.mxu0 %v997
    %3892 = vmatmul.mubr.f32.gmra.mxu0 %v996
    %v3893 = vpop.f32.mrf.mxu0
    %v3894 = vadd.f32 %v3823, %v3893
    %v3895 = vpop.f32.mrf.mxu0
    %v3896 = vadd.f32 %v3825, %v3895
    %3897 = vdwg.mxu0
    %3898 = vmatprep.subr.mxu0 %v1887
    %3899 = vmatpush1.xpose.msra.mxu0 %v1886
    %3900 = vmatprep.subr.mxu0 %v1879
    %3901 = vmatpush1.xpose.msra.mxu0 %v1878
    %3902 = vmatprep.subr.mxu0 %v1871
    %3903 = vmatpush1.xpose.msra.mxu0 %v1870
    %3904 = vmatprep.subr.mxu0 %v1863
    %3905 = vmatpush1.xpose.msra.mxu0 %v1862
    %3906 = vmatprep.subr.mxu0 %v1855
    %3907 = vmatpush1.xpose.msra.mxu0 %v1854
    %3908 = vmatprep.subr.mxu0 %v1847
    %3909 = vmatpush1.xpose.msra.mxu0 %v1846
    %3910 = vmatprep.subr.mxu0 %v1839
    %3911 = vmatpush1.xpose.msra.mxu0 %v1838
    %3912 = vmatprep.subr.mxu0 %v1831
    %3913 = vmatpush1.xpose.msra.mxu0 %v1830
    %3914 = vmatprep.subr.mxu0 %v1823
    %3915 = vmatpush1.xpose.msra.mxu0 %v1822
    %3916 = vmatprep.subr.mxu0 %v1815
    %3917 = vmatpush1.xpose.msra.mxu0 %v1814
    %3918 = vmatprep.subr.mxu0 %v1807
    %3919 = vmatpush1.xpose.msra.mxu0 %v1806
    %3920 = vmatprep.subr.mxu0 %v1799
    %3921 = vmatpush1.xpose.msra.mxu0 %v1798
    %3922 = vmatprep.subr.mxu0 %v1791
    %3923 = vmatpush1.xpose.msra.mxu0 %v1790
    %3924 = vmatprep.subr.mxu0 %v1783
    %3925 = vmatpush1.xpose.msra.mxu0 %v1782
    %3926 = vmatprep.subr.mxu0 %v1775
    %3927 = vmatpush1.xpose.msra.mxu0 %v1774
    %3928 = vmatprep.subr.mxu0 %v1767
    %3929 = vmatpush1.xpose.msra.mxu0 %v1766
    %3930 = vmatprep.subr.mxu0 %v2015
    %3931 = vmatpush2.xpose.msra.mxu0 %v2014
    %3932 = vmatprep.subr.mxu0 %v2007
    %3933 = vmatpush2.xpose.msra.mxu0 %v2006
    %3934 = vmatprep.subr.mxu0 %v1999
    %3935 = vmatpush2.xpose.msra.mxu0 %v1998
    %3936 = vmatprep.subr.mxu0 %v1991
    %3937 = vmatpush2.xpose.msra.mxu0 %v1990
    %3938 = vmatprep.subr.mxu0 %v1983
    %3939 = vmatpush2.xpose.msra.mxu0 %v1982
    %3940 = vmatprep.subr.mxu0 %v1975
    %3941 = vmatpush2.xpose.msra.mxu0 %v1974
    %3942 = vmatprep.subr.mxu0 %v1967
    %3943 = vmatpush2.xpose.msra.mxu0 %v1966
    %3944 = vmatprep.subr.mxu0 %v1959
    %3945 = vmatpush2.xpose.msra.mxu0 %v1958
    %3946 = vmatprep.subr.mxu0 %v1951
    %3947 = vmatpush2.xpose.msra.mxu0 %v1950
    %3948 = vmatprep.subr.mxu0 %v1943
    %3949 = vmatpush2.xpose.msra.mxu0 %v1942
    %3950 = vmatprep.subr.mxu0 %v1935
    %3951 = vmatpush2.xpose.msra.mxu0 %v1934
    %3952 = vmatprep.subr.mxu0 %v1927
    %3953 = vmatpush2.xpose.msra.mxu0 %v1926
    %3954 = vmatprep.subr.mxu0 %v1919
    %3955 = vmatpush2.xpose.msra.mxu0 %v1918
    %3956 = vmatprep.subr.mxu0 %v1911
    %3957 = vmatpush2.xpose.msra.mxu0 %v1910
    %3958 = vmatprep.subr.mxu0 %v1903
    %3959 = vmatpush2.xpose.msra.mxu0 %v1902
    %3960 = vmatprep.subr.mxu0 %v1895
    %3961 = vmatpush2.xpose.msra.mxu0 %v1894
    %3962 = vmatprep.mubr.f32.mxu0 %v991
    %3963 = vmatmul.mubr.f32.gmra.mxu0 %v990
    %v3964 = vpop.f32.mrf.mxu0
    %v3965 = vadd.f32 0.0, %v3964
    %v3966 = vpop.f32.mrf.mxu0
    %v3967 = vadd.f32 0.0, %v3966
    %3968 = vdwg.mxu0
    %3969 = vmatprep.subr.mxu0 %v1889
    %3970 = vmatpush1.xpose.msra.mxu0 %v1888
    %3971 = vmatprep.subr.mxu0 %v1881
    %3972 = vmatpush1.xpose.msra.mxu0 %v1880
    %3973 = vmatprep.subr.mxu0 %v1873
    %3974 = vmatpush1.xpose.msra.mxu0 %v1872
    %3975 = vmatprep.subr.mxu0 %v1865
    %3976 = vmatpush1.xpose.msra.mxu0 %v1864
    %3977 = vmatprep.subr.mxu0 %v1857
    %3978 = vmatpush1.xpose.msra.mxu0 %v1856
    %3979 = vmatprep.subr.mxu0 %v1849
    %3980 = vmatpush1.xpose.msra.mxu0 %v1848
    %3981 = vmatprep.subr.mxu0 %v1841
    %3982 = vmatpush1.xpose.msra.mxu0 %v1840
    %3983 = vmatprep.subr.mxu0 %v1833
    %3984 = vmatpush1.xpose.msra.mxu0 %v1832
    %3985 = vmatprep.subr.mxu0 %v1825
    %3986 = vmatpush1.xpose.msra.mxu0 %v1824
    %3987 = vmatprep.subr.mxu0 %v1817
    %3988 = vmatpush1.xpose.msra.mxu0 %v1816
    %3989 = vmatprep.subr.mxu0 %v1809
    %3990 = vmatpush1.xpose.msra.mxu0 %v1808
    %3991 = vmatprep.subr.mxu0 %v1801
    %3992 = vmatpush1.xpose.msra.mxu0 %v1800
    %3993 = vmatprep.subr.mxu0 %v1793
    %3994 = vmatpush1.xpose.msra.mxu0 %v1792
    %3995 = vmatprep.subr.mxu0 %v1785
    %3996 = vmatpush1.xpose.msra.mxu0 %v1784
    %3997 = vmatprep.subr.mxu0 %v1777
    %3998 = vmatpush1.xpose.msra.mxu0 %v1776
    %3999 = vmatprep.subr.mxu0 %v1769
    %4000 = vmatpush1.xpose.msra.mxu0 %v1768
    %4001 = vmatprep.subr.mxu0 %v2017
    %4002 = vmatpush2.xpose.msra.mxu0 %v2016
    %4003 = vmatprep.subr.mxu0 %v2009
    %4004 = vmatpush2.xpose.msra.mxu0 %v2008
    %4005 = vmatprep.subr.mxu0 %v2001
    %4006 = vmatpush2.xpose.msra.mxu0 %v2000
    %4007 = vmatprep.subr.mxu0 %v1993
    %4008 = vmatpush2.xpose.msra.mxu0 %v1992
    %4009 = vmatprep.subr.mxu0 %v1985
    %4010 = vmatpush2.xpose.msra.mxu0 %v1984
    %4011 = vmatprep.subr.mxu0 %v1977
    %4012 = vmatpush2.xpose.msra.mxu0 %v1976
    %4013 = vmatprep.subr.mxu0 %v1969
    %4014 = vmatpush2.xpose.msra.mxu0 %v1968
    %4015 = vmatprep.subr.mxu0 %v1961
    %4016 = vmatpush2.xpose.msra.mxu0 %v1960
    %4017 = vmatprep.subr.mxu0 %v1953
    %4018 = vmatpush2.xpose.msra.mxu0 %v1952
    %4019 = vmatprep.subr.mxu0 %v1945
    %4020 = vmatpush2.xpose.msra.mxu0 %v1944
    %4021 = vmatprep.subr.mxu0 %v1937
    %4022 = vmatpush2.xpose.msra.mxu0 %v1936
    %4023 = vmatprep.subr.mxu0 %v1929
    %4024 = vmatpush2.xpose.msra.mxu0 %v1928
    %4025 = vmatprep.subr.mxu0 %v1921
    %4026 = vmatpush2.xpose.msra.mxu0 %v1920
    %4027 = vmatprep.subr.mxu0 %v1913
    %4028 = vmatpush2.xpose.msra.mxu0 %v1912
    %4029 = vmatprep.subr.mxu0 %v1905
    %4030 = vmatpush2.xpose.msra.mxu0 %v1904
    %4031 = vmatprep.subr.mxu0 %v1897
    %4032 = vmatpush2.xpose.msra.mxu0 %v1896
    %4033 = vmatprep.mubr.f32.mxu0 %v993
    %4034 = vmatmul.mubr.f32.gmra.mxu0 %v992
    %v4035 = vpop.f32.mrf.mxu0
    %v4036 = vadd.f32 %v3965, %v4035
    %v4037 = vpop.f32.mrf.mxu0
    %v4038 = vadd.f32 %v3967, %v4037
    %4039 = vdwg.mxu0
    %4040 = vmatprep.subr.mxu0 %v1891
    %4041 = vmatpush1.xpose.msra.mxu0 %v1890
    %4042 = vmatprep.subr.mxu0 %v1883
    %4043 = vmatpush1.xpose.msra.mxu0 %v1882
    %4044 = vmatprep.subr.mxu0 %v1875
    %4045 = vmatpush1.xpose.msra.mxu0 %v1874
    %4046 = vmatprep.subr.mxu0 %v1867
    %4047 = vmatpush1.xpose.msra.mxu0 %v1866
    %4048 = vmatprep.subr.mxu0 %v1859
    %4049 = vmatpush1.xpose.msra.mxu0 %v1858
    %4050 = vmatprep.subr.mxu0 %v1851
    %4051 = vmatpush1.xpose.msra.mxu0 %v1850
    %4052 = vmatprep.subr.mxu0 %v1843
    %4053 = vmatpush1.xpose.msra.mxu0 %v1842
    %4054 = vmatprep.subr.mxu0 %v1835
    %4055 = vmatpush1.xpose.msra.mxu0 %v1834
    %4056 = vmatprep.subr.mxu0 %v1827
    %4057 = vmatpush1.xpose.msra.mxu0 %v1826
    %4058 = vmatprep.subr.mxu0 %v1819
    %4059 = vmatpush1.xpose.msra.mxu0 %v1818
    %4060 = vmatprep.subr.mxu0 %v1811
    %4061 = vmatpush1.xpose.msra.mxu0 %v1810
    %4062 = vmatprep.subr.mxu0 %v1803
    %4063 = vmatpush1.xpose.msra.mxu0 %v1802
    %4064 = vmatprep.subr.mxu0 %v1795
    %4065 = vmatpush1.xpose.msra.mxu0 %v1794
    %4066 = vmatprep.subr.mxu0 %v1787
    %4067 = vmatpush1.xpose.msra.mxu0 %v1786
    %4068 = vmatprep.subr.mxu0 %v1779
    %4069 = vmatpush1.xpose.msra.mxu0 %v1778
    %4070 = vmatprep.subr.mxu0 %v1771
    %4071 = vmatpush1.xpose.msra.mxu0 %v1770
    %4072 = vmatprep.subr.mxu0 %v2019
    %4073 = vmatpush2.xpose.msra.mxu0 %v2018
    %4074 = vmatprep.subr.mxu0 %v2011
    %4075 = vmatpush2.xpose.msra.mxu0 %v2010
    %4076 = vmatprep.subr.mxu0 %v2003
    %4077 = vmatpush2.xpose.msra.mxu0 %v2002
    %4078 = vmatprep.subr.mxu0 %v1995
    %4079 = vmatpush2.xpose.msra.mxu0 %v1994
    %4080 = vmatprep.subr.mxu0 %v1987
    %4081 = vmatpush2.xpose.msra.mxu0 %v1986
    %4082 = vmatprep.subr.mxu0 %v1979
    %4083 = vmatpush2.xpose.msra.mxu0 %v1978
    %4084 = vmatprep.subr.mxu0 %v1971
    %4085 = vmatpush2.xpose.msra.mxu0 %v1970
    %4086 = vmatprep.subr.mxu0 %v1963
    %4087 = vmatpush2.xpose.msra.mxu0 %v1962
    %4088 = vmatprep.subr.mxu0 %v1955
    %4089 = vmatpush2.xpose.msra.mxu0 %v1954
    %4090 = vmatprep.subr.mxu0 %v1947
    %4091 = vmatpush2.xpose.msra.mxu0 %v1946
    %4092 = vmatprep.subr.mxu0 %v1939
    %4093 = vmatpush2.xpose.msra.mxu0 %v1938
    %4094 = vmatprep.subr.mxu0 %v1931
    %4095 = vmatpush2.xpose.msra.mxu0 %v1930
    %4096 = vmatprep.subr.mxu0 %v1923
    %4097 = vmatpush2.xpose.msra.mxu0 %v1922
    %4098 = vmatprep.subr.mxu0 %v1915
    %4099 = vmatpush2.xpose.msra.mxu0 %v1914
    %4100 = vmatprep.subr.mxu0 %v1907
    %4101 = vmatpush2.xpose.msra.mxu0 %v1906
    %4102 = vmatprep.subr.mxu0 %v1899
    %4103 = vmatpush2.xpose.msra.mxu0 %v1898
    %4104 = vmatprep.mubr.f32.mxu0 %v995
    %4105 = vmatmul.mubr.f32.gmra.mxu0 %v994
    %v4106 = vpop.f32.mrf.mxu0
    %v4107 = vadd.f32 %v4036, %v4106
    %v4108 = vpop.f32.mrf.mxu0
    %v4109 = vadd.f32 %v4038, %v4108
    %4110 = vdwg.mxu0
    %4111 = vmatprep.subr.mxu0 %v1893
    %4112 = vmatpush1.xpose.msra.mxu0 %v1892
    %4113 = vmatprep.subr.mxu0 %v1885
    %4114 = vmatpush1.xpose.msra.mxu0 %v1884
    %4115 = vmatprep.subr.mxu0 %v1877
    %4116 = vmatpush1.xpose.msra.mxu0 %v1876
    %4117 = vmatprep.subr.mxu0 %v1869
    %4118 = vmatpush1.xpose.msra.mxu0 %v1868
    %4119 = vmatprep.subr.mxu0 %v1861
    %4120 = vmatpush1.xpose.msra.mxu0 %v1860
    %4121 = vmatprep.subr.mxu0 %v1853
    %4122 = vmatpush1.xpose.msra.mxu0 %v1852
    %4123 = vmatprep.subr.mxu0 %v1845
    %4124 = vmatpush1.xpose.msra.mxu0 %v1844
    %4125 = vmatprep.subr.mxu0 %v1837
    %4126 = vmatpush1.xpose.msra.mxu0 %v1836
    %4127 = vmatprep.subr.mxu0 %v1829
    %4128 = vmatpush1.xpose.msra.mxu0 %v1828
    %4129 = vmatprep.subr.mxu0 %v1821
    %4130 = vmatpush1.xpose.msra.mxu0 %v1820
    %4131 = vmatprep.subr.mxu0 %v1813
    %4132 = vmatpush1.xpose.msra.mxu0 %v1812
    %4133 = vmatprep.subr.mxu0 %v1805
    %4134 = vmatpush1.xpose.msra.mxu0 %v1804
    %4135 = vmatprep.subr.mxu0 %v1797
    %4136 = vmatpush1.xpose.msra.mxu0 %v1796
    %4137 = vmatprep.subr.mxu0 %v1789
    %4138 = vmatpush1.xpose.msra.mxu0 %v1788
    %4139 = vmatprep.subr.mxu0 %v1781
    %4140 = vmatpush1.xpose.msra.mxu0 %v1780
    %4141 = vmatprep.subr.mxu0 %v1773
    %4142 = vmatpush1.xpose.msra.mxu0 %v1772
    %4143 = vmatprep.subr.mxu0 %v2021
    %4144 = vmatpush2.xpose.msra.mxu0 %v2020
    %4145 = vmatprep.subr.mxu0 %v2013
    %4146 = vmatpush2.xpose.msra.mxu0 %v2012
    %4147 = vmatprep.subr.mxu0 %v2005
    %4148 = vmatpush2.xpose.msra.mxu0 %v2004
    %4149 = vmatprep.subr.mxu0 %v1997
    %4150 = vmatpush2.xpose.msra.mxu0 %v1996
    %4151 = vmatprep.subr.mxu0 %v1989
    %4152 = vmatpush2.xpose.msra.mxu0 %v1988
    %4153 = vmatprep.subr.mxu0 %v1981
    %4154 = vmatpush2.xpose.msra.mxu0 %v1980
    %4155 = vmatprep.subr.mxu0 %v1973
    %4156 = vmatpush2.xpose.msra.mxu0 %v1972
    %4157 = vmatprep.subr.mxu0 %v1965
    %4158 = vmatpush2.xpose.msra.mxu0 %v1964
    %4159 = vmatprep.subr.mxu0 %v1957
    %4160 = vmatpush2.xpose.msra.mxu0 %v1956
    %4161 = vmatprep.subr.mxu0 %v1949
    %4162 = vmatpush2.xpose.msra.mxu0 %v1948
    %4163 = vmatprep.subr.mxu0 %v1941
    %4164 = vmatpush2.xpose.msra.mxu0 %v1940
    %4165 = vmatprep.subr.mxu0 %v1933
    %4166 = vmatpush2.xpose.msra.mxu0 %v1932
    %4167 = vmatprep.subr.mxu0 %v1925
    %4168 = vmatpush2.xpose.msra.mxu0 %v1924
    %4169 = vmatprep.subr.mxu0 %v1917
    %4170 = vmatpush2.xpose.msra.mxu0 %v1916
    %4171 = vmatprep.subr.mxu0 %v1909
    %4172 = vmatpush2.xpose.msra.mxu0 %v1908
    %4173 = vmatprep.subr.mxu0 %v1901
    %4174 = vmatpush2.xpose.msra.mxu0 %v1900
    %4175 = vmatprep.mubr.f32.mxu0 %v997
    %4176 = vmatmul.mubr.f32.gmra.mxu0 %v996
    %v4177 = vpop.f32.mrf.mxu0
    %v4178 = vadd.f32 %v4107, %v4177
    %v4179 = vpop.f32.mrf.mxu0
    %v4180 = vadd.f32 %v4109, %v4179
    %4181 = vdwg.mxu0
    %4182 = vmatprep.subr.mxu0 %v2143
    %4183 = vmatpush1.xpose.msra.mxu0 %v2142
    %4184 = vmatprep.subr.mxu0 %v2135
    %4185 = vmatpush1.xpose.msra.mxu0 %v2134
    %4186 = vmatprep.subr.mxu0 %v2127
    %4187 = vmatpush1.xpose.msra.mxu0 %v2126
    %4188 = vmatprep.subr.mxu0 %v2119
    %4189 = vmatpush1.xpose.msra.mxu0 %v2118
    %4190 = vmatprep.subr.mxu0 %v2111
    %4191 = vmatpush1.xpose.msra.mxu0 %v2110
    %4192 = vmatprep.subr.mxu0 %v2103
    %4193 = vmatpush1.xpose.msra.mxu0 %v2102
    %4194 = vmatprep.subr.mxu0 %v2095
    %4195 = vmatpush1.xpose.msra.mxu0 %v2094
    %4196 = vmatprep.subr.mxu0 %v2087
    %4197 = vmatpush1.xpose.msra.mxu0 %v2086
    %4198 = vmatprep.subr.mxu0 %v2079
    %4199 = vmatpush1.xpose.msra.mxu0 %v2078
    %4200 = vmatprep.subr.mxu0 %v2071
    %4201 = vmatpush1.xpose.msra.mxu0 %v2070
    %4202 = vmatprep.subr.mxu0 %v2063
    %4203 = vmatpush1.xpose.msra.mxu0 %v2062
    %4204 = vmatprep.subr.mxu0 %v2055
    %4205 = vmatpush1.xpose.msra.mxu0 %v2054
    %4206 = vmatprep.subr.mxu0 %v2047
    %4207 = vmatpush1.xpose.msra.mxu0 %v2046
    %4208 = vmatprep.subr.mxu0 %v2039
    %4209 = vmatpush1.xpose.msra.mxu0 %v2038
    %4210 = vmatprep.subr.mxu0 %v2031
    %4211 = vmatpush1.xpose.msra.mxu0 %v2030
    %4212 = vmatprep.subr.mxu0 %v2023
    %4213 = vmatpush1.xpose.msra.mxu0 %v2022
    %4214 = vmatprep.subr.mxu0 %v2271
    %4215 = vmatpush2.xpose.msra.mxu0 %v2270
    %4216 = vmatprep.subr.mxu0 %v2263
    %4217 = vmatpush2.xpose.msra.mxu0 %v2262
    %4218 = vmatprep.subr.mxu0 %v2255
    %4219 = vmatpush2.xpose.msra.mxu0 %v2254
    %4220 = vmatprep.subr.mxu0 %v2247
    %4221 = vmatpush2.xpose.msra.mxu0 %v2246
    %4222 = vmatprep.subr.mxu0 %v2239
    %4223 = vmatpush2.xpose.msra.mxu0 %v2238
    %4224 = vmatprep.subr.mxu0 %v2231
    %4225 = vmatpush2.xpose.msra.mxu0 %v2230
    %4226 = vmatprep.subr.mxu0 %v2223
    %4227 = vmatpush2.xpose.msra.mxu0 %v2222
    %4228 = vmatprep.subr.mxu0 %v2215
    %4229 = vmatpush2.xpose.msra.mxu0 %v2214
    %4230 = vmatprep.subr.mxu0 %v2207
    %4231 = vmatpush2.xpose.msra.mxu0 %v2206
    %4232 = vmatprep.subr.mxu0 %v2199
    %4233 = vmatpush2.xpose.msra.mxu0 %v2198
    %4234 = vmatprep.subr.mxu0 %v2191
    %4235 = vmatpush2.xpose.msra.mxu0 %v2190
    %4236 = vmatprep.subr.mxu0 %v2183
    %4237 = vmatpush2.xpose.msra.mxu0 %v2182
    %4238 = vmatprep.subr.mxu0 %v2175
    %4239 = vmatpush2.xpose.msra.mxu0 %v2174
    %4240 = vmatprep.subr.mxu0 %v2167
    %4241 = vmatpush2.xpose.msra.mxu0 %v2166
    %4242 = vmatprep.subr.mxu0 %v2159
    %4243 = vmatpush2.xpose.msra.mxu0 %v2158
    %4244 = vmatprep.subr.mxu0 %v2151
    %4245 = vmatpush2.xpose.msra.mxu0 %v2150
    %4246 = vmatprep.mubr.f32.mxu0 %v991
    %4247 = vmatmul.mubr.f32.gmra.mxu0 %v990
    %v4248 = vpop.f32.mrf.mxu0
    %v4249 = vadd.f32 0.0, %v4248
    %v4250 = vpop.f32.mrf.mxu0
    %v4251 = vadd.f32 0.0, %v4250
    %4252 = vdwg.mxu0
    %4253 = vmatprep.subr.mxu0 %v2145
    %4254 = vmatpush1.xpose.msra.mxu0 %v2144
    %4255 = vmatprep.subr.mxu0 %v2137
    %4256 = vmatpush1.xpose.msra.mxu0 %v2136
    %4257 = vmatprep.subr.mxu0 %v2129
    %4258 = vmatpush1.xpose.msra.mxu0 %v2128
    %4259 = vmatprep.subr.mxu0 %v2121
    %4260 = vmatpush1.xpose.msra.mxu0 %v2120
    %4261 = vmatprep.subr.mxu0 %v2113
    %4262 = vmatpush1.xpose.msra.mxu0 %v2112
    %4263 = vmatprep.subr.mxu0 %v2105
    %4264 = vmatpush1.xpose.msra.mxu0 %v2104
    %4265 = vmatprep.subr.mxu0 %v2097
    %4266 = vmatpush1.xpose.msra.mxu0 %v2096
    %4267 = vmatprep.subr.mxu0 %v2089
    %4268 = vmatpush1.xpose.msra.mxu0 %v2088
    %4269 = vmatprep.subr.mxu0 %v2081
    %4270 = vmatpush1.xpose.msra.mxu0 %v2080
    %4271 = vmatprep.subr.mxu0 %v2073
    %4272 = vmatpush1.xpose.msra.mxu0 %v2072
    %4273 = vmatprep.subr.mxu0 %v2065
    %4274 = vmatpush1.xpose.msra.mxu0 %v2064
    %4275 = vmatprep.subr.mxu0 %v2057
    %4276 = vmatpush1.xpose.msra.mxu0 %v2056
    %4277 = vmatprep.subr.mxu0 %v2049
    %4278 = vmatpush1.xpose.msra.mxu0 %v2048
    %4279 = vmatprep.subr.mxu0 %v2041
    %4280 = vmatpush1.xpose.msra.mxu0 %v2040
    %4281 = vmatprep.subr.mxu0 %v2033
    %4282 = vmatpush1.xpose.msra.mxu0 %v2032
    %4283 = vmatprep.subr.mxu0 %v2025
    %4284 = vmatpush1.xpose.msra.mxu0 %v2024
    %4285 = vmatprep.subr.mxu0 %v2273
    %4286 = vmatpush2.xpose.msra.mxu0 %v2272
    %4287 = vmatprep.subr.mxu0 %v2265
    %4288 = vmatpush2.xpose.msra.mxu0 %v2264
    %4289 = vmatprep.subr.mxu0 %v2257
    %4290 = vmatpush2.xpose.msra.mxu0 %v2256
    %4291 = vmatprep.subr.mxu0 %v2249
    %4292 = vmatpush2.xpose.msra.mxu0 %v2248
    %4293 = vmatprep.subr.mxu0 %v2241
    %4294 = vmatpush2.xpose.msra.mxu0 %v2240
    %4295 = vmatprep.subr.mxu0 %v2233
    %4296 = vmatpush2.xpose.msra.mxu0 %v2232
    %4297 = vmatprep.subr.mxu0 %v2225
    %4298 = vmatpush2.xpose.msra.mxu0 %v2224
    %4299 = vmatprep.subr.mxu0 %v2217
    %4300 = vmatpush2.xpose.msra.mxu0 %v2216
    %4301 = vmatprep.subr.mxu0 %v2209
    %4302 = vmatpush2.xpose.msra.mxu0 %v2208
    %4303 = vmatprep.subr.mxu0 %v2201
    %4304 = vmatpush2.xpose.msra.mxu0 %v2200
    %4305 = vmatprep.subr.mxu0 %v2193
    %4306 = vmatpush2.xpose.msra.mxu0 %v2192
    %4307 = vmatprep.subr.mxu0 %v2185
    %4308 = vmatpush2.xpose.msra.mxu0 %v2184
    %4309 = vmatprep.subr.mxu0 %v2177
    %4310 = vmatpush2.xpose.msra.mxu0 %v2176
    %4311 = vmatprep.subr.mxu0 %v2169
    %4312 = vmatpush2.xpose.msra.mxu0 %v2168
    %4313 = vmatprep.subr.mxu0 %v2161
    %4314 = vmatpush2.xpose.msra.mxu0 %v2160
    %4315 = vmatprep.subr.mxu0 %v2153
    %4316 = vmatpush2.xpose.msra.mxu0 %v2152
    %4317 = vmatprep.mubr.f32.mxu0 %v993
    %4318 = vmatmul.mubr.f32.gmra.mxu0 %v992
    %v4319 = vpop.f32.mrf.mxu0
    %v4320 = vadd.f32 %v4249, %v4319
    %v4321 = vpop.f32.mrf.mxu0
    %v4322 = vadd.f32 %v4251, %v4321
    %4323 = vdwg.mxu0
    %4324 = vmatprep.subr.mxu0 %v2147
    %4325 = vmatpush1.xpose.msra.mxu0 %v2146
    %4326 = vmatprep.subr.mxu0 %v2139
    %4327 = vmatpush1.xpose.msra.mxu0 %v2138
    %4328 = vmatprep.subr.mxu0 %v2131
    %4329 = vmatpush1.xpose.msra.mxu0 %v2130
    %4330 = vmatprep.subr.mxu0 %v2123
    %4331 = vmatpush1.xpose.msra.mxu0 %v2122
    %4332 = vmatprep.subr.mxu0 %v2115
    %4333 = vmatpush1.xpose.msra.mxu0 %v2114
    %4334 = vmatprep.subr.mxu0 %v2107
    %4335 = vmatpush1.xpose.msra.mxu0 %v2106
    %4336 = vmatprep.subr.mxu0 %v2099
    %4337 = vmatpush1.xpose.msra.mxu0 %v2098
    %4338 = vmatprep.subr.mxu0 %v2091
    %4339 = vmatpush1.xpose.msra.mxu0 %v2090
    %4340 = vmatprep.subr.mxu0 %v2083
    %4341 = vmatpush1.xpose.msra.mxu0 %v2082
    %4342 = vmatprep.subr.mxu0 %v2075
    %4343 = vmatpush1.xpose.msra.mxu0 %v2074
    %4344 = vmatprep.subr.mxu0 %v2067
    %4345 = vmatpush1.xpose.msra.mxu0 %v2066
    %4346 = vmatprep.subr.mxu0 %v2059
    %4347 = vmatpush1.xpose.msra.mxu0 %v2058
    %4348 = vmatprep.subr.mxu0 %v2051
    %4349 = vmatpush1.xpose.msra.mxu0 %v2050
    %4350 = vmatprep.subr.mxu0 %v2043
    %4351 = vmatpush1.xpose.msra.mxu0 %v2042
    %4352 = vmatprep.subr.mxu0 %v2035
    %4353 = vmatpush1.xpose.msra.mxu0 %v2034
    %4354 = vmatprep.subr.mxu0 %v2027
    %4355 = vmatpush1.xpose.msra.mxu0 %v2026
    %4356 = vmatprep.subr.mxu0 %v2275
    %4357 = vmatpush2.xpose.msra.mxu0 %v2274
    %4358 = vmatprep.subr.mxu0 %v2267
    %4359 = vmatpush2.xpose.msra.mxu0 %v2266
    %4360 = vmatprep.subr.mxu0 %v2259
    %4361 = vmatpush2.xpose.msra.mxu0 %v2258
    %4362 = vmatprep.subr.mxu0 %v2251
    %4363 = vmatpush2.xpose.msra.mxu0 %v2250
    %4364 = vmatprep.subr.mxu0 %v2243
    %4365 = vmatpush2.xpose.msra.mxu0 %v2242
    %4366 = vmatprep.subr.mxu0 %v2235
    %4367 = vmatpush2.xpose.msra.mxu0 %v2234
    %4368 = vmatprep.subr.mxu0 %v2227
    %4369 = vmatpush2.xpose.msra.mxu0 %v2226
    %4370 = vmatprep.subr.mxu0 %v2219
    %4371 = vmatpush2.xpose.msra.mxu0 %v2218
    %4372 = vmatprep.subr.mxu0 %v2211
    %4373 = vmatpush2.xpose.msra.mxu0 %v2210
    %4374 = vmatprep.subr.mxu0 %v2203
    %4375 = vmatpush2.xpose.msra.mxu0 %v2202
    %4376 = vmatprep.subr.mxu0 %v2195
    %4377 = vmatpush2.xpose.msra.mxu0 %v2194
    %4378 = vmatprep.subr.mxu0 %v2187
    %4379 = vmatpush2.xpose.msra.mxu0 %v2186
    %4380 = vmatprep.subr.mxu0 %v2179
    %4381 = vmatpush2.xpose.msra.mxu0 %v2178
    %4382 = vmatprep.subr.mxu0 %v2171
    %4383 = vmatpush2.xpose.msra.mxu0 %v2170
    %4384 = vmatprep.subr.mxu0 %v2163
    %4385 = vmatpush2.xpose.msra.mxu0 %v2162
    %4386 = vmatprep.subr.mxu0 %v2155
    %4387 = vmatpush2.xpose.msra.mxu0 %v2154
    %4388 = vmatprep.mubr.f32.mxu0 %v995
    %4389 = vmatmul.mubr.f32.gmra.mxu0 %v994
    %v4390 = vpop.f32.mrf.mxu0
    %v4391 = vadd.f32 %v4320, %v4390
    %v4392 = vpop.f32.mrf.mxu0
    %v4393 = vadd.f32 %v4322, %v4392
    %4394 = vdwg.mxu0
    %4395 = vmatprep.subr.mxu0 %v2149
    %4396 = vmatpush1.xpose.msra.mxu0 %v2148
    %4397 = vmatprep.subr.mxu0 %v2141
    %4398 = vmatpush1.xpose.msra.mxu0 %v2140
    %4399 = vmatprep.subr.mxu0 %v2133
    %4400 = vmatpush1.xpose.msra.mxu0 %v2132
    %4401 = vmatprep.subr.mxu0 %v2125
    %4402 = vmatpush1.xpose.msra.mxu0 %v2124
    %4403 = vmatprep.subr.mxu0 %v2117
    %4404 = vmatpush1.xpose.msra.mxu0 %v2116
    %4405 = vmatprep.subr.mxu0 %v2109
    %4406 = vmatpush1.xpose.msra.mxu0 %v2108
    %4407 = vmatprep.subr.mxu0 %v2101
    %4408 = vmatpush1.xpose.msra.mxu0 %v2100
    %4409 = vmatprep.subr.mxu0 %v2093
    %4410 = vmatpush1.xpose.msra.mxu0 %v2092
    %4411 = vmatprep.subr.mxu0 %v2085
    %4412 = vmatpush1.xpose.msra.mxu0 %v2084
    %4413 = vmatprep.subr.mxu0 %v2077
    %4414 = vmatpush1.xpose.msra.mxu0 %v2076
    %4415 = vmatprep.subr.mxu0 %v2069
    %4416 = vmatpush1.xpose.msra.mxu0 %v2068
    %4417 = vmatprep.subr.mxu0 %v2061
    %4418 = vmatpush1.xpose.msra.mxu0 %v2060
    %4419 = vmatprep.subr.mxu0 %v2053
    %4420 = vmatpush1.xpose.msra.mxu0 %v2052
    %4421 = vmatprep.subr.mxu0 %v2045
    %4422 = vmatpush1.xpose.msra.mxu0 %v2044
    %4423 = vmatprep.subr.mxu0 %v2037
    %4424 = vmatpush1.xpose.msra.mxu0 %v2036
    %4425 = vmatprep.subr.mxu0 %v2029
    %4426 = vmatpush1.xpose.msra.mxu0 %v2028
    %4427 = vmatprep.subr.mxu0 %v2277
    %4428 = vmatpush2.xpose.msra.mxu0 %v2276
    %4429 = vmatprep.subr.mxu0 %v2269
    %4430 = vmatpush2.xpose.msra.mxu0 %v2268
    %4431 = vmatprep.subr.mxu0 %v2261
    %4432 = vmatpush2.xpose.msra.mxu0 %v2260
    %4433 = vmatprep.subr.mxu0 %v2253
    %4434 = vmatpush2.xpose.msra.mxu0 %v2252
    %4435 = vmatprep.subr.mxu0 %v2245
    %4436 = vmatpush2.xpose.msra.mxu0 %v2244
    %4437 = vmatprep.subr.mxu0 %v2237
    %4438 = vmatpush2.xpose.msra.mxu0 %v2236
    %4439 = vmatprep.subr.mxu0 %v2229
    %4440 = vmatpush2.xpose.msra.mxu0 %v2228
    %4441 = vmatprep.subr.mxu0 %v2221
    %4442 = vmatpush2.xpose.msra.mxu0 %v2220
    %4443 = vmatprep.subr.mxu0 %v2213
    %4444 = vmatpush2.xpose.msra.mxu0 %v2212
    %4445 = vmatprep.subr.mxu0 %v2205
    %4446 = vmatpush2.xpose.msra.mxu0 %v2204
    %4447 = vmatprep.subr.mxu0 %v2197
    %4448 = vmatpush2.xpose.msra.mxu0 %v2196
    %4449 = vmatprep.subr.mxu0 %v2189
    %4450 = vmatpush2.xpose.msra.mxu0 %v2188
    %4451 = vmatprep.subr.mxu0 %v2181
    %4452 = vmatpush2.xpose.msra.mxu0 %v2180
    %4453 = vmatprep.subr.mxu0 %v2173
    %4454 = vmatpush2.xpose.msra.mxu0 %v2172
    %4455 = vmatprep.subr.mxu0 %v2165
    %4456 = vmatpush2.xpose.msra.mxu0 %v2164
    %4457 = vmatprep.subr.mxu0 %v2157
    %4458 = vmatpush2.xpose.msra.mxu0 %v2156
    %4459 = vmatprep.mubr.f32.mxu0 %v997
    %4460 = vmatmul.mubr.f32.gmra.mxu0 %v996
    %v4461 = vpop.f32.mrf.mxu0
    %v4462 = vadd.f32 %v4391, %v4461
    %v4463 = vpop.f32.mrf.mxu0
    %v4464 = vadd.f32 %v4393, %v4463
    %4465 = vdwg.mxu0
    %4466 = vmatprep.subr.mxu0 %v2399
    %4467 = vmatpush1.xpose.msra.mxu0 %v2398
    %4468 = vmatprep.subr.mxu0 %v2391
    %4469 = vmatpush1.xpose.msra.mxu0 %v2390
    %4470 = vmatprep.subr.mxu0 %v2383
    %4471 = vmatpush1.xpose.msra.mxu0 %v2382
    %4472 = vmatprep.subr.mxu0 %v2375
    %4473 = vmatpush1.xpose.msra.mxu0 %v2374
    %4474 = vmatprep.subr.mxu0 %v2367
    %4475 = vmatpush1.xpose.msra.mxu0 %v2366
    %4476 = vmatprep.subr.mxu0 %v2359
    %4477 = vmatpush1.xpose.msra.mxu0 %v2358
    %4478 = vmatprep.subr.mxu0 %v2351
    %4479 = vmatpush1.xpose.msra.mxu0 %v2350
    %4480 = vmatprep.subr.mxu0 %v2343
    %4481 = vmatpush1.xpose.msra.mxu0 %v2342
    %4482 = vmatprep.subr.mxu0 %v2335
    %4483 = vmatpush1.xpose.msra.mxu0 %v2334
    %4484 = vmatprep.subr.mxu0 %v2327
    %4485 = vmatpush1.xpose.msra.mxu0 %v2326
    %4486 = vmatprep.subr.mxu0 %v2319
    %4487 = vmatpush1.xpose.msra.mxu0 %v2318
    %4488 = vmatprep.subr.mxu0 %v2311
    %4489 = vmatpush1.xpose.msra.mxu0 %v2310
    %4490 = vmatprep.subr.mxu0 %v2303
    %4491 = vmatpush1.xpose.msra.mxu0 %v2302
    %4492 = vmatprep.subr.mxu0 %v2295
    %4493 = vmatpush1.xpose.msra.mxu0 %v2294
    %4494 = vmatprep.subr.mxu0 %v2287
    %4495 = vmatpush1.xpose.msra.mxu0 %v2286
    %4496 = vmatprep.subr.mxu0 %v2279
    %4497 = vmatpush1.xpose.msra.mxu0 %v2278
    %4498 = vmatprep.subr.mxu0 %v2527
    %4499 = vmatpush2.xpose.msra.mxu0 %v2526
    %4500 = vmatprep.subr.mxu0 %v2519
    %4501 = vmatpush2.xpose.msra.mxu0 %v2518
    %4502 = vmatprep.subr.mxu0 %v2511
    %4503 = vmatpush2.xpose.msra.mxu0 %v2510
    %4504 = vmatprep.subr.mxu0 %v2503
    %4505 = vmatpush2.xpose.msra.mxu0 %v2502
    %4506 = vmatprep.subr.mxu0 %v2495
    %4507 = vmatpush2.xpose.msra.mxu0 %v2494
    %4508 = vmatprep.subr.mxu0 %v2487
    %4509 = vmatpush2.xpose.msra.mxu0 %v2486
    %4510 = vmatprep.subr.mxu0 %v2479
    %4511 = vmatpush2.xpose.msra.mxu0 %v2478
    %4512 = vmatprep.subr.mxu0 %v2471
    %4513 = vmatpush2.xpose.msra.mxu0 %v2470
    %4514 = vmatprep.subr.mxu0 %v2463
    %4515 = vmatpush2.xpose.msra.mxu0 %v2462
    %4516 = vmatprep.subr.mxu0 %v2455
    %4517 = vmatpush2.xpose.msra.mxu0 %v2454
    %4518 = vmatprep.subr.mxu0 %v2447
    %4519 = vmatpush2.xpose.msra.mxu0 %v2446
    %4520 = vmatprep.subr.mxu0 %v2439
    %4521 = vmatpush2.xpose.msra.mxu0 %v2438
    %4522 = vmatprep.subr.mxu0 %v2431
    %4523 = vmatpush2.xpose.msra.mxu0 %v2430
    %4524 = vmatprep.subr.mxu0 %v2423
    %4525 = vmatpush2.xpose.msra.mxu0 %v2422
    %4526 = vmatprep.subr.mxu0 %v2415
    %4527 = vmatpush2.xpose.msra.mxu0 %v2414
    %4528 = vmatprep.subr.mxu0 %v2407
    %4529 = vmatpush2.xpose.msra.mxu0 %v2406
    %4530 = vmatprep.mubr.f32.mxu0 %v991
    %4531 = vmatmul.mubr.f32.gmra.mxu0 %v990
    %v4532 = vpop.f32.mrf.mxu0
    %v4533 = vadd.f32 0.0, %v4532
    %v4534 = vpop.f32.mrf.mxu0
    %v4535 = vadd.f32 0.0, %v4534
    %4536 = vdwg.mxu0
    %4537 = vmatprep.subr.mxu0 %v2401
    %4538 = vmatpush1.xpose.msra.mxu0 %v2400
    %4539 = vmatprep.subr.mxu0 %v2393
    %4540 = vmatpush1.xpose.msra.mxu0 %v2392
    %4541 = vmatprep.subr.mxu0 %v2385
    %4542 = vmatpush1.xpose.msra.mxu0 %v2384
    %4543 = vmatprep.subr.mxu0 %v2377
    %4544 = vmatpush1.xpose.msra.mxu0 %v2376
    %4545 = vmatprep.subr.mxu0 %v2369
    %4546 = vmatpush1.xpose.msra.mxu0 %v2368
    %4547 = vmatprep.subr.mxu0 %v2361
    %4548 = vmatpush1.xpose.msra.mxu0 %v2360
    %4549 = vmatprep.subr.mxu0 %v2353
    %4550 = vmatpush1.xpose.msra.mxu0 %v2352
    %4551 = vmatprep.subr.mxu0 %v2345
    %4552 = vmatpush1.xpose.msra.mxu0 %v2344
    %4553 = vmatprep.subr.mxu0 %v2337
    %4554 = vmatpush1.xpose.msra.mxu0 %v2336
    %4555 = vmatprep.subr.mxu0 %v2329
    %4556 = vmatpush1.xpose.msra.mxu0 %v2328
    %4557 = vmatprep.subr.mxu0 %v2321
    %4558 = vmatpush1.xpose.msra.mxu0 %v2320
    %4559 = vmatprep.subr.mxu0 %v2313
    %4560 = vmatpush1.xpose.msra.mxu0 %v2312
    %4561 = vmatprep.subr.mxu0 %v2305
    %4562 = vmatpush1.xpose.msra.mxu0 %v2304
    %4563 = vmatprep.subr.mxu0 %v2297
    %4564 = vmatpush1.xpose.msra.mxu0 %v2296
    %4565 = vmatprep.subr.mxu0 %v2289
    %4566 = vmatpush1.xpose.msra.mxu0 %v2288
    %4567 = vmatprep.subr.mxu0 %v2281
    %4568 = vmatpush1.xpose.msra.mxu0 %v2280
    %4569 = vmatprep.subr.mxu0 %v2529
    %4570 = vmatpush2.xpose.msra.mxu0 %v2528
    %4571 = vmatprep.subr.mxu0 %v2521
    %4572 = vmatpush2.xpose.msra.mxu0 %v2520
    %4573 = vmatprep.subr.mxu0 %v2513
    %4574 = vmatpush2.xpose.msra.mxu0 %v2512
    %4575 = vmatprep.subr.mxu0 %v2505
    %4576 = vmatpush2.xpose.msra.mxu0 %v2504
    %4577 = vmatprep.subr.mxu0 %v2497
    %4578 = vmatpush2.xpose.msra.mxu0 %v2496
    %4579 = vmatprep.subr.mxu0 %v2489
    %4580 = vmatpush2.xpose.msra.mxu0 %v2488
    %4581 = vmatprep.subr.mxu0 %v2481
    %4582 = vmatpush2.xpose.msra.mxu0 %v2480
    %4583 = vmatprep.subr.mxu0 %v2473
    %4584 = vmatpush2.xpose.msra.mxu0 %v2472
    %4585 = vmatprep.subr.mxu0 %v2465
    %4586 = vmatpush2.xpose.msra.mxu0 %v2464
    %4587 = vmatprep.subr.mxu0 %v2457
    %4588 = vmatpush2.xpose.msra.mxu0 %v2456
    %4589 = vmatprep.subr.mxu0 %v2449
    %4590 = vmatpush2.xpose.msra.mxu0 %v2448
    %4591 = vmatprep.subr.mxu0 %v2441
    %4592 = vmatpush2.xpose.msra.mxu0 %v2440
    %4593 = vmatprep.subr.mxu0 %v2433
    %4594 = vmatpush2.xpose.msra.mxu0 %v2432
    %4595 = vmatprep.subr.mxu0 %v2425
    %4596 = vmatpush2.xpose.msra.mxu0 %v2424
    %4597 = vmatprep.subr.mxu0 %v2417
    %4598 = vmatpush2.xpose.msra.mxu0 %v2416
    %4599 = vmatprep.subr.mxu0 %v2409
    %4600 = vmatpush2.xpose.msra.mxu0 %v2408
    %4601 = vmatprep.mubr.f32.mxu0 %v993
    %4602 = vmatmul.mubr.f32.gmra.mxu0 %v992
    %v4603 = vpop.f32.mrf.mxu0
    %v4604 = vadd.f32 %v4533, %v4603
    %v4605 = vpop.f32.mrf.mxu0
    %v4606 = vadd.f32 %v4535, %v4605
    %4607 = vdwg.mxu0
    %4608 = vmatprep.subr.mxu0 %v2403
    %4609 = vmatpush1.xpose.msra.mxu0 %v2402
    %4610 = vmatprep.subr.mxu0 %v2395
    %4611 = vmatpush1.xpose.msra.mxu0 %v2394
    %4612 = vmatprep.subr.mxu0 %v2387
    %4613 = vmatpush1.xpose.msra.mxu0 %v2386
    %4614 = vmatprep.subr.mxu0 %v2379
    %4615 = vmatpush1.xpose.msra.mxu0 %v2378
    %4616 = vmatprep.subr.mxu0 %v2371
    %4617 = vmatpush1.xpose.msra.mxu0 %v2370
    %4618 = vmatprep.subr.mxu0 %v2363
    %4619 = vmatpush1.xpose.msra.mxu0 %v2362
    %4620 = vmatprep.subr.mxu0 %v2355
    %4621 = vmatpush1.xpose.msra.mxu0 %v2354
    %4622 = vmatprep.subr.mxu0 %v2347
    %4623 = vmatpush1.xpose.msra.mxu0 %v2346
    %4624 = vmatprep.subr.mxu0 %v2339
    %4625 = vmatpush1.xpose.msra.mxu0 %v2338
    %4626 = vmatprep.subr.mxu0 %v2331
    %4627 = vmatpush1.xpose.msra.mxu0 %v2330
    %4628 = vmatprep.subr.mxu0 %v2323
    %4629 = vmatpush1.xpose.msra.mxu0 %v2322
    %4630 = vmatprep.subr.mxu0 %v2315
    %4631 = vmatpush1.xpose.msra.mxu0 %v2314
    %4632 = vmatprep.subr.mxu0 %v2307
    %4633 = vmatpush1.xpose.msra.mxu0 %v2306
    %4634 = vmatprep.subr.mxu0 %v2299
    %4635 = vmatpush1.xpose.msra.mxu0 %v2298
    %4636 = vmatprep.subr.mxu0 %v2291
    %4637 = vmatpush1.xpose.msra.mxu0 %v2290
    %4638 = vmatprep.subr.mxu0 %v2283
    %4639 = vmatpush1.xpose.msra.mxu0 %v2282
    %4640 = vmatprep.subr.mxu0 %v2531
    %4641 = vmatpush2.xpose.msra.mxu0 %v2530
    %4642 = vmatprep.subr.mxu0 %v2523
    %4643 = vmatpush2.xpose.msra.mxu0 %v2522
    %4644 = vmatprep.subr.mxu0 %v2515
    %4645 = vmatpush2.xpose.msra.mxu0 %v2514
    %4646 = vmatprep.subr.mxu0 %v2507
    %4647 = vmatpush2.xpose.msra.mxu0 %v2506
    %4648 = vmatprep.subr.mxu0 %v2499
    %4649 = vmatpush2.xpose.msra.mxu0 %v2498
    %4650 = vmatprep.subr.mxu0 %v2491
    %4651 = vmatpush2.xpose.msra.mxu0 %v2490
    %4652 = vmatprep.subr.mxu0 %v2483
    %4653 = vmatpush2.xpose.msra.mxu0 %v2482
    %4654 = vmatprep.subr.mxu0 %v2475
    %4655 = vmatpush2.xpose.msra.mxu0 %v2474
    %4656 = vmatprep.subr.mxu0 %v2467
    %4657 = vmatpush2.xpose.msra.mxu0 %v2466
    %4658 = vmatprep.subr.mxu0 %v2459
    %4659 = vmatpush2.xpose.msra.mxu0 %v2458
    %4660 = vmatprep.subr.mxu0 %v2451
    %4661 = vmatpush2.xpose.msra.mxu0 %v2450
    %4662 = vmatprep.subr.mxu0 %v2443
    %4663 = vmatpush2.xpose.msra.mxu0 %v2442
    %4664 = vmatprep.subr.mxu0 %v2435
    %4665 = vmatpush2.xpose.msra.mxu0 %v2434
    %4666 = vmatprep.subr.mxu0 %v2427
    %4667 = vmatpush2.xpose.msra.mxu0 %v2426
    %4668 = vmatprep.subr.mxu0 %v2419
    %4669 = vmatpush2.xpose.msra.mxu0 %v2418
    %4670 = vmatprep.subr.mxu0 %v2411
    %4671 = vmatpush2.xpose.msra.mxu0 %v2410
    %4672 = vmatprep.mubr.f32.mxu0 %v995
    %4673 = vmatmul.mubr.f32.gmra.mxu0 %v994
    %v4674 = vpop.f32.mrf.mxu0
    %v4675 = vadd.f32 %v4604, %v4674
    %v4676 = vpop.f32.mrf.mxu0
    %v4677 = vadd.f32 %v4606, %v4676
    %4678 = vdwg.mxu0
    %4679 = vmatprep.subr.mxu0 %v2405
    %4680 = vmatpush1.xpose.msra.mxu0 %v2404
    %4681 = vmatprep.subr.mxu0 %v2397
    %4682 = vmatpush1.xpose.msra.mxu0 %v2396
    %4683 = vmatprep.subr.mxu0 %v2389
    %4684 = vmatpush1.xpose.msra.mxu0 %v2388
    %4685 = vmatprep.subr.mxu0 %v2381
    %4686 = vmatpush1.xpose.msra.mxu0 %v2380
    %4687 = vmatprep.subr.mxu0 %v2373
    %4688 = vmatpush1.xpose.msra.mxu0 %v2372
    %4689 = vmatprep.subr.mxu0 %v2365
    %4690 = vmatpush1.xpose.msra.mxu0 %v2364
    %4691 = vmatprep.subr.mxu0 %v2357
    %4692 = vmatpush1.xpose.msra.mxu0 %v2356
    %4693 = vmatprep.subr.mxu0 %v2349
    %4694 = vmatpush1.xpose.msra.mxu0 %v2348
    %4695 = vmatprep.subr.mxu0 %v2341
    %4696 = vmatpush1.xpose.msra.mxu0 %v2340
    %4697 = vmatprep.subr.mxu0 %v2333
    %4698 = vmatpush1.xpose.msra.mxu0 %v2332
    %4699 = vmatprep.subr.mxu0 %v2325
    %4700 = vmatpush1.xpose.msra.mxu0 %v2324
    %4701 = vmatprep.subr.mxu0 %v2317
    %4702 = vmatpush1.xpose.msra.mxu0 %v2316
    %4703 = vmatprep.subr.mxu0 %v2309
    %4704 = vmatpush1.xpose.msra.mxu0 %v2308
    %4705 = vmatprep.subr.mxu0 %v2301
    %4706 = vmatpush1.xpose.msra.mxu0 %v2300
    %4707 = vmatprep.subr.mxu0 %v2293
    %4708 = vmatpush1.xpose.msra.mxu0 %v2292
    %4709 = vmatprep.subr.mxu0 %v2285
    %4710 = vmatpush1.xpose.msra.mxu0 %v2284
    %4711 = vmatprep.subr.mxu0 %v2533
    %4712 = vmatpush2.xpose.msra.mxu0 %v2532
    %4713 = vmatprep.subr.mxu0 %v2525
    %4714 = vmatpush2.xpose.msra.mxu0 %v2524
    %4715 = vmatprep.subr.mxu0 %v2517
    %4716 = vmatpush2.xpose.msra.mxu0 %v2516
    %4717 = vmatprep.subr.mxu0 %v2509
    %4718 = vmatpush2.xpose.msra.mxu0 %v2508
    %4719 = vmatprep.subr.mxu0 %v2501
    %4720 = vmatpush2.xpose.msra.mxu0 %v2500
    %4721 = vmatprep.subr.mxu0 %v2493
    %4722 = vmatpush2.xpose.msra.mxu0 %v2492
    %4723 = vmatprep.subr.mxu0 %v2485
    %4724 = vmatpush2.xpose.msra.mxu0 %v2484
    %4725 = vmatprep.subr.mxu0 %v2477
    %4726 = vmatpush2.xpose.msra.mxu0 %v2476
    %4727 = vmatprep.subr.mxu0 %v2469
    %4728 = vmatpush2.xpose.msra.mxu0 %v2468
    %4729 = vmatprep.subr.mxu0 %v2461
    %4730 = vmatpush2.xpose.msra.mxu0 %v2460
    %4731 = vmatprep.subr.mxu0 %v2453
    %4732 = vmatpush2.xpose.msra.mxu0 %v2452
    %4733 = vmatprep.subr.mxu0 %v2445
    %4734 = vmatpush2.xpose.msra.mxu0 %v2444
    %4735 = vmatprep.subr.mxu0 %v2437
    %4736 = vmatpush2.xpose.msra.mxu0 %v2436
    %4737 = vmatprep.subr.mxu0 %v2429
    %4738 = vmatpush2.xpose.msra.mxu0 %v2428
    %4739 = vmatprep.subr.mxu0 %v2421
    %4740 = vmatpush2.xpose.msra.mxu0 %v2420
    %4741 = vmatprep.subr.mxu0 %v2413
    %4742 = vmatpush2.xpose.msra.mxu0 %v2412
    %4743 = vmatprep.mubr.f32.mxu0 %v997
    %4744 = vmatmul.mubr.f32.gmra.mxu0 %v996
    %v4745 = vpop.f32.mrf.mxu0
    %v4746 = vadd.f32 %v4675, %v4745
    %v4747 = vpop.f32.mrf.mxu0
    %v4748 = vadd.f32 %v4677, %v4747
    %4749 = vdwg.mxu0
    %4750 = vmatprep.subr.mxu0 %v2655
    %4751 = vmatpush1.xpose.msra.mxu0 %v2654
    %4752 = vmatprep.subr.mxu0 %v2647
    %4753 = vmatpush1.xpose.msra.mxu0 %v2646
    %4754 = vmatprep.subr.mxu0 %v2639
    %4755 = vmatpush1.xpose.msra.mxu0 %v2638
    %4756 = vmatprep.subr.mxu0 %v2631
    %4757 = vmatpush1.xpose.msra.mxu0 %v2630
    %4758 = vmatprep.subr.mxu0 %v2623
    %4759 = vmatpush1.xpose.msra.mxu0 %v2622
    %4760 = vmatprep.subr.mxu0 %v2615
    %4761 = vmatpush1.xpose.msra.mxu0 %v2614
    %4762 = vmatprep.subr.mxu0 %v2607
    %4763 = vmatpush1.xpose.msra.mxu0 %v2606
    %4764 = vmatprep.subr.mxu0 %v2599
    %4765 = vmatpush1.xpose.msra.mxu0 %v2598
    %4766 = vmatprep.subr.mxu0 %v2591
    %4767 = vmatpush1.xpose.msra.mxu0 %v2590
    %4768 = vmatprep.subr.mxu0 %v2583
    %4769 = vmatpush1.xpose.msra.mxu0 %v2582
    %4770 = vmatprep.subr.mxu0 %v2575
    %4771 = vmatpush1.xpose.msra.mxu0 %v2574
    %4772 = vmatprep.subr.mxu0 %v2567
    %4773 = vmatpush1.xpose.msra.mxu0 %v2566
    %4774 = vmatprep.subr.mxu0 %v2559
    %4775 = vmatpush1.xpose.msra.mxu0 %v2558
    %4776 = vmatprep.subr.mxu0 %v2551
    %4777 = vmatpush1.xpose.msra.mxu0 %v2550
    %4778 = vmatprep.subr.mxu0 %v2543
    %4779 = vmatpush1.xpose.msra.mxu0 %v2542
    %4780 = vmatprep.subr.mxu0 %v2535
    %4781 = vmatpush1.xpose.msra.mxu0 %v2534
    %4782 = vmatprep.subr.mxu0 %v2783
    %4783 = vmatpush2.xpose.msra.mxu0 %v2782
    %4784 = vmatprep.subr.mxu0 %v2775
    %4785 = vmatpush2.xpose.msra.mxu0 %v2774
    %4786 = vmatprep.subr.mxu0 %v2767
    %4787 = vmatpush2.xpose.msra.mxu0 %v2766
    %4788 = vmatprep.subr.mxu0 %v2759
    %4789 = vmatpush2.xpose.msra.mxu0 %v2758
    %4790 = vmatprep.subr.mxu0 %v2751
    %4791 = vmatpush2.xpose.msra.mxu0 %v2750
    %4792 = vmatprep.subr.mxu0 %v2743
    %4793 = vmatpush2.xpose.msra.mxu0 %v2742
    %4794 = vmatprep.subr.mxu0 %v2735
    %4795 = vmatpush2.xpose.msra.mxu0 %v2734
    %4796 = vmatprep.subr.mxu0 %v2727
    %4797 = vmatpush2.xpose.msra.mxu0 %v2726
    %4798 = vmatprep.subr.mxu0 %v2719
    %4799 = vmatpush2.xpose.msra.mxu0 %v2718
    %4800 = vmatprep.subr.mxu0 %v2711
    %4801 = vmatpush2.xpose.msra.mxu0 %v2710
    %4802 = vmatprep.subr.mxu0 %v2703
    %4803 = vmatpush2.xpose.msra.mxu0 %v2702
    %4804 = vmatprep.subr.mxu0 %v2695
    %4805 = vmatpush2.xpose.msra.mxu0 %v2694
    %4806 = vmatprep.subr.mxu0 %v2687
    %4807 = vmatpush2.xpose.msra.mxu0 %v2686
    %4808 = vmatprep.subr.mxu0 %v2679
    %4809 = vmatpush2.xpose.msra.mxu0 %v2678
    %4810 = vmatprep.subr.mxu0 %v2671
    %4811 = vmatpush2.xpose.msra.mxu0 %v2670
    %4812 = vmatprep.subr.mxu0 %v2663
    %4813 = vmatpush2.xpose.msra.mxu0 %v2662
    %4814 = vmatprep.mubr.f32.mxu0 %v991
    %4815 = vmatmul.mubr.f32.gmra.mxu0 %v990
    %v4816 = vpop.f32.mrf.mxu0
    %v4817 = vadd.f32 0.0, %v4816
    %v4818 = vpop.f32.mrf.mxu0
    %v4819 = vadd.f32 0.0, %v4818
    %4820 = vdwg.mxu0
    %4821 = vmatprep.subr.mxu0 %v2657
    %4822 = vmatpush1.xpose.msra.mxu0 %v2656
    %4823 = vmatprep.subr.mxu0 %v2649
    %4824 = vmatpush1.xpose.msra.mxu0 %v2648
    %4825 = vmatprep.subr.mxu0 %v2641
    %4826 = vmatpush1.xpose.msra.mxu0 %v2640
    %4827 = vmatprep.subr.mxu0 %v2633
    %4828 = vmatpush1.xpose.msra.mxu0 %v2632
    %4829 = vmatprep.subr.mxu0 %v2625
    %4830 = vmatpush1.xpose.msra.mxu0 %v2624
    %4831 = vmatprep.subr.mxu0 %v2617
    %4832 = vmatpush1.xpose.msra.mxu0 %v2616
    %4833 = vmatprep.subr.mxu0 %v2609
    %4834 = vmatpush1.xpose.msra.mxu0 %v2608
    %4835 = vmatprep.subr.mxu0 %v2601
    %4836 = vmatpush1.xpose.msra.mxu0 %v2600
    %4837 = vmatprep.subr.mxu0 %v2593
    %4838 = vmatpush1.xpose.msra.mxu0 %v2592
    %4839 = vmatprep.subr.mxu0 %v2585
    %4840 = vmatpush1.xpose.msra.mxu0 %v2584
    %4841 = vmatprep.subr.mxu0 %v2577
    %4842 = vmatpush1.xpose.msra.mxu0 %v2576
    %4843 = vmatprep.subr.mxu0 %v2569
    %4844 = vmatpush1.xpose.msra.mxu0 %v2568
    %4845 = vmatprep.subr.mxu0 %v2561
    %4846 = vmatpush1.xpose.msra.mxu0 %v2560
    %4847 = vmatprep.subr.mxu0 %v2553
    %4848 = vmatpush1.xpose.msra.mxu0 %v2552
    %4849 = vmatprep.subr.mxu0 %v2545
    %4850 = vmatpush1.xpose.msra.mxu0 %v2544
    %4851 = vmatprep.subr.mxu0 %v2537
    %4852 = vmatpush1.xpose.msra.mxu0 %v2536
    %4853 = vmatprep.subr.mxu0 %v2785
    %4854 = vmatpush2.xpose.msra.mxu0 %v2784
    %4855 = vmatprep.subr.mxu0 %v2777
    %4856 = vmatpush2.xpose.msra.mxu0 %v2776
    %4857 = vmatprep.subr.mxu0 %v2769
    %4858 = vmatpush2.xpose.msra.mxu0 %v2768
    %4859 = vmatprep.subr.mxu0 %v2761
    %4860 = vmatpush2.xpose.msra.mxu0 %v2760
    %4861 = vmatprep.subr.mxu0 %v2753
    %4862 = vmatpush2.xpose.msra.mxu0 %v2752
    %4863 = vmatprep.subr.mxu0 %v2745
    %4864 = vmatpush2.xpose.msra.mxu0 %v2744
    %4865 = vmatprep.subr.mxu0 %v2737
    %4866 = vmatpush2.xpose.msra.mxu0 %v2736
    %4867 = vmatprep.subr.mxu0 %v2729
    %4868 = vmatpush2.xpose.msra.mxu0 %v2728
    %4869 = vmatprep.subr.mxu0 %v2721
    %4870 = vmatpush2.xpose.msra.mxu0 %v2720
    %4871 = vmatprep.subr.mxu0 %v2713
    %4872 = vmatpush2.xpose.msra.mxu0 %v2712
    %4873 = vmatprep.subr.mxu0 %v2705
    %4874 = vmatpush2.xpose.msra.mxu0 %v2704
    %4875 = vmatprep.subr.mxu0 %v2697
    %4876 = vmatpush2.xpose.msra.mxu0 %v2696
    %4877 = vmatprep.subr.mxu0 %v2689
    %4878 = vmatpush2.xpose.msra.mxu0 %v2688
    %4879 = vmatprep.subr.mxu0 %v2681
    %4880 = vmatpush2.xpose.msra.mxu0 %v2680
    %4881 = vmatprep.subr.mxu0 %v2673
    %4882 = vmatpush2.xpose.msra.mxu0 %v2672
    %4883 = vmatprep.subr.mxu0 %v2665
    %4884 = vmatpush2.xpose.msra.mxu0 %v2664
    %4885 = vmatprep.mubr.f32.mxu0 %v993
    %4886 = vmatmul.mubr.f32.gmra.mxu0 %v992
    %v4887 = vpop.f32.mrf.mxu0
    %v4888 = vadd.f32 %v4817, %v4887
    %v4889 = vpop.f32.mrf.mxu0
    %v4890 = vadd.f32 %v4819, %v4889
    %4891 = vdwg.mxu0
    %4892 = vmatprep.subr.mxu0 %v2659
    %4893 = vmatpush1.xpose.msra.mxu0 %v2658
    %4894 = vmatprep.subr.mxu0 %v2651
    %4895 = vmatpush1.xpose.msra.mxu0 %v2650
    %4896 = vmatprep.subr.mxu0 %v2643
    %4897 = vmatpush1.xpose.msra.mxu0 %v2642
    %4898 = vmatprep.subr.mxu0 %v2635
    %4899 = vmatpush1.xpose.msra.mxu0 %v2634
    %4900 = vmatprep.subr.mxu0 %v2627
    %4901 = vmatpush1.xpose.msra.mxu0 %v2626
    %4902 = vmatprep.subr.mxu0 %v2619
    %4903 = vmatpush1.xpose.msra.mxu0 %v2618
    %4904 = vmatprep.subr.mxu0 %v2611
    %4905 = vmatpush1.xpose.msra.mxu0 %v2610
    %4906 = vmatprep.subr.mxu0 %v2603
    %4907 = vmatpush1.xpose.msra.mxu0 %v2602
    %4908 = vmatprep.subr.mxu0 %v2595
    %4909 = vmatpush1.xpose.msra.mxu0 %v2594
    %4910 = vmatprep.subr.mxu0 %v2587
    %4911 = vmatpush1.xpose.msra.mxu0 %v2586
    %4912 = vmatprep.subr.mxu0 %v2579
    %4913 = vmatpush1.xpose.msra.mxu0 %v2578
    %4914 = vmatprep.subr.mxu0 %v2571
    %4915 = vmatpush1.xpose.msra.mxu0 %v2570
    %4916 = vmatprep.subr.mxu0 %v2563
    %4917 = vmatpush1.xpose.msra.mxu0 %v2562
    %4918 = vmatprep.subr.mxu0 %v2555
    %4919 = vmatpush1.xpose.msra.mxu0 %v2554
    %4920 = vmatprep.subr.mxu0 %v2547
    %4921 = vmatpush1.xpose.msra.mxu0 %v2546
    %4922 = vmatprep.subr.mxu0 %v2539
    %4923 = vmatpush1.xpose.msra.mxu0 %v2538
    %4924 = vmatprep.subr.mxu0 %v2787
    %4925 = vmatpush2.xpose.msra.mxu0 %v2786
    %4926 = vmatprep.subr.mxu0 %v2779
    %4927 = vmatpush2.xpose.msra.mxu0 %v2778
    %4928 = vmatprep.subr.mxu0 %v2771
    %4929 = vmatpush2.xpose.msra.mxu0 %v2770
    %4930 = vmatprep.subr.mxu0 %v2763
    %4931 = vmatpush2.xpose.msra.mxu0 %v2762
    %4932 = vmatprep.subr.mxu0 %v2755
    %4933 = vmatpush2.xpose.msra.mxu0 %v2754
    %4934 = vmatprep.subr.mxu0 %v2747
    %4935 = vmatpush2.xpose.msra.mxu0 %v2746
    %4936 = vmatprep.subr.mxu0 %v2739
    %4937 = vmatpush2.xpose.msra.mxu0 %v2738
    %4938 = vmatprep.subr.mxu0 %v2731
    %4939 = vmatpush2.xpose.msra.mxu0 %v2730
    %4940 = vmatprep.subr.mxu0 %v2723
    %4941 = vmatpush2.xpose.msra.mxu0 %v2722
    %4942 = vmatprep.subr.mxu0 %v2715
    %4943 = vmatpush2.xpose.msra.mxu0 %v2714
    %4944 = vmatprep.subr.mxu0 %v2707
    %4945 = vmatpush2.xpose.msra.mxu0 %v2706
    %4946 = vmatprep.subr.mxu0 %v2699
    %4947 = vmatpush2.xpose.msra.mxu0 %v2698
    %4948 = vmatprep.subr.mxu0 %v2691
    %4949 = vmatpush2.xpose.msra.mxu0 %v2690
    %4950 = vmatprep.subr.mxu0 %v2683
    %4951 = vmatpush2.xpose.msra.mxu0 %v2682
    %4952 = vmatprep.subr.mxu0 %v2675
    %4953 = vmatpush2.xpose.msra.mxu0 %v2674
    %4954 = vmatprep.subr.mxu0 %v2667
    %4955 = vmatpush2.xpose.msra.mxu0 %v2666
    %4956 = vmatprep.mubr.f32.mxu0 %v995
    %4957 = vmatmul.mubr.f32.gmra.mxu0 %v994
    %v4958 = vpop.f32.mrf.mxu0
    %v4959 = vadd.f32 %v4888, %v4958
    %v4960 = vpop.f32.mrf.mxu0
    %v4961 = vadd.f32 %v4890, %v4960
    %4962 = vdwg.mxu0
    %4963 = vmatprep.subr.mxu0 %v2661
    %4964 = vmatpush1.xpose.msra.mxu0 %v2660
    %4965 = vmatprep.subr.mxu0 %v2653
    %4966 = vmatpush1.xpose.msra.mxu0 %v2652
    %4967 = vmatprep.subr.mxu0 %v2645
    %4968 = vmatpush1.xpose.msra.mxu0 %v2644
    %4969 = vmatprep.subr.mxu0 %v2637
    %4970 = vmatpush1.xpose.msra.mxu0 %v2636
    %4971 = vmatprep.subr.mxu0 %v2629
    %4972 = vmatpush1.xpose.msra.mxu0 %v2628
    %4973 = vmatprep.subr.mxu0 %v2621
    %4974 = vmatpush1.xpose.msra.mxu0 %v2620
    %4975 = vmatprep.subr.mxu0 %v2613
    %4976 = vmatpush1.xpose.msra.mxu0 %v2612
    %4977 = vmatprep.subr.mxu0 %v2605
    %4978 = vmatpush1.xpose.msra.mxu0 %v2604
    %4979 = vmatprep.subr.mxu0 %v2597
    %4980 = vmatpush1.xpose.msra.mxu0 %v2596
    %4981 = vmatprep.subr.mxu0 %v2589
    %4982 = vmatpush1.xpose.msra.mxu0 %v2588
    %4983 = vmatprep.subr.mxu0 %v2581
    %4984 = vmatpush1.xpose.msra.mxu0 %v2580
    %4985 = vmatprep.subr.mxu0 %v2573
    %4986 = vmatpush1.xpose.msra.mxu0 %v2572
    %4987 = vmatprep.subr.mxu0 %v2565
    %4988 = vmatpush1.xpose.msra.mxu0 %v2564
    %4989 = vmatprep.subr.mxu0 %v2557
    %4990 = vmatpush1.xpose.msra.mxu0 %v2556
    %4991 = vmatprep.subr.mxu0 %v2549
    %4992 = vmatpush1.xpose.msra.mxu0 %v2548
    %4993 = vmatprep.subr.mxu0 %v2541
    %4994 = vmatpush1.xpose.msra.mxu0 %v2540
    %4995 = vmatprep.subr.mxu0 %v2789
    %4996 = vmatpush2.xpose.msra.mxu0 %v2788
    %4997 = vmatprep.subr.mxu0 %v2781
    %4998 = vmatpush2.xpose.msra.mxu0 %v2780
    %4999 = vmatprep.subr.mxu0 %v2773
    %5000 = vmatpush2.xpose.msra.mxu0 %v2772
    %5001 = vmatprep.subr.mxu0 %v2765
    %5002 = vmatpush2.xpose.msra.mxu0 %v2764
    %5003 = vmatprep.subr.mxu0 %v2757
    %5004 = vmatpush2.xpose.msra.mxu0 %v2756
    %5005 = vmatprep.subr.mxu0 %v2749
    %5006 = vmatpush2.xpose.msra.mxu0 %v2748
    %5007 = vmatprep.subr.mxu0 %v2741
    %5008 = vmatpush2.xpose.msra.mxu0 %v2740
    %5009 = vmatprep.subr.mxu0 %v2733
    %5010 = vmatpush2.xpose.msra.mxu0 %v2732
    %5011 = vmatprep.subr.mxu0 %v2725
    %5012 = vmatpush2.xpose.msra.mxu0 %v2724
    %5013 = vmatprep.subr.mxu0 %v2717
    %5014 = vmatpush2.xpose.msra.mxu0 %v2716
    %5015 = vmatprep.subr.mxu0 %v2709
    %5016 = vmatpush2.xpose.msra.mxu0 %v2708
    %5017 = vmatprep.subr.mxu0 %v2701
    %5018 = vmatpush2.xpose.msra.mxu0 %v2700
    %5019 = vmatprep.subr.mxu0 %v2693
    %5020 = vmatpush2.xpose.msra.mxu0 %v2692
    %5021 = vmatprep.subr.mxu0 %v2685
    %5022 = vmatpush2.xpose.msra.mxu0 %v2684
    %5023 = vmatprep.subr.mxu0 %v2677
    %5024 = vmatpush2.xpose.msra.mxu0 %v2676
    %5025 = vmatprep.subr.mxu0 %v2669
    %5026 = vmatpush2.xpose.msra.mxu0 %v2668
    %5027 = vmatprep.mubr.f32.mxu0 %v997
    %5028 = vmatmul.mubr.f32.gmra.mxu0 %v996
    %v5029 = vpop.f32.mrf.mxu0
    %v5030 = vadd.f32 %v4959, %v5029
    %v5031 = vpop.f32.mrf.mxu0
    %v5032 = vadd.f32 %v4961, %v5031
    %5033 = vdwg.mxu0
    %5034 = vmatprep.subr.mxu0 %v2911
    %5035 = vmatpush1.xpose.msra.mxu0 %v2910
    %5036 = vmatprep.subr.mxu0 %v2903
    %5037 = vmatpush1.xpose.msra.mxu0 %v2902
    %5038 = vmatprep.subr.mxu0 %v2895
    %5039 = vmatpush1.xpose.msra.mxu0 %v2894
    %5040 = vmatprep.subr.mxu0 %v2887
    %5041 = vmatpush1.xpose.msra.mxu0 %v2886
    %5042 = vmatprep.subr.mxu0 %v2879
    %5043 = vmatpush1.xpose.msra.mxu0 %v2878
    %5044 = vmatprep.subr.mxu0 %v2871
    %5045 = vmatpush1.xpose.msra.mxu0 %v2870
    %5046 = vmatprep.subr.mxu0 %v2863
    %5047 = vmatpush1.xpose.msra.mxu0 %v2862
    %5048 = vmatprep.subr.mxu0 %v2855
    %5049 = vmatpush1.xpose.msra.mxu0 %v2854
    %5050 = vmatprep.subr.mxu0 %v2847
    %5051 = vmatpush1.xpose.msra.mxu0 %v2846
    %5052 = vmatprep.subr.mxu0 %v2839
    %5053 = vmatpush1.xpose.msra.mxu0 %v2838
    %5054 = vmatprep.subr.mxu0 %v2831
    %5055 = vmatpush1.xpose.msra.mxu0 %v2830
    %5056 = vmatprep.subr.mxu0 %v2823
    %5057 = vmatpush1.xpose.msra.mxu0 %v2822
    %5058 = vmatprep.subr.mxu0 %v2815
    %5059 = vmatpush1.xpose.msra.mxu0 %v2814
    %5060 = vmatprep.subr.mxu0 %v2807
    %5061 = vmatpush1.xpose.msra.mxu0 %v2806
    %5062 = vmatprep.subr.mxu0 %v2799
    %5063 = vmatpush1.xpose.msra.mxu0 %v2798
    %5064 = vmatprep.subr.mxu0 %v2791
    %5065 = vmatpush1.xpose.msra.mxu0 %v2790
    %5066 = vmatprep.subr.mxu0 %v3039
    %5067 = vmatpush2.xpose.msra.mxu0 %v3038
    %5068 = vmatprep.subr.mxu0 %v3031
    %5069 = vmatpush2.xpose.msra.mxu0 %v3030
    %5070 = vmatprep.subr.mxu0 %v3023
    %5071 = vmatpush2.xpose.msra.mxu0 %v3022
    %5072 = vmatprep.subr.mxu0 %v3015
    %5073 = vmatpush2.xpose.msra.mxu0 %v3014
    %5074 = vmatprep.subr.mxu0 %v3007
    %5075 = vmatpush2.xpose.msra.mxu0 %v3006
    %5076 = vmatprep.subr.mxu0 %v2999
    %5077 = vmatpush2.xpose.msra.mxu0 %v2998
    %5078 = vmatprep.subr.mxu0 %v2991
    %5079 = vmatpush2.xpose.msra.mxu0 %v2990
    %5080 = vmatprep.subr.mxu0 %v2983
    %5081 = vmatpush2.xpose.msra.mxu0 %v2982
    %5082 = vmatprep.subr.mxu0 %v2975
    %5083 = vmatpush2.xpose.msra.mxu0 %v2974
    %5084 = vmatprep.subr.mxu0 %v2967
    %5085 = vmatpush2.xpose.msra.mxu0 %v2966
    %5086 = vmatprep.subr.mxu0 %v2959
    %5087 = vmatpush2.xpose.msra.mxu0 %v2958
    %5088 = vmatprep.subr.mxu0 %v2951
    %5089 = vmatpush2.xpose.msra.mxu0 %v2950
    %5090 = vmatprep.subr.mxu0 %v2943
    %5091 = vmatpush2.xpose.msra.mxu0 %v2942
    %5092 = vmatprep.subr.mxu0 %v2935
    %5093 = vmatpush2.xpose.msra.mxu0 %v2934
    %5094 = vmatprep.subr.mxu0 %v2927
    %5095 = vmatpush2.xpose.msra.mxu0 %v2926
    %5096 = vmatprep.subr.mxu0 %v2919
    %5097 = vmatpush2.xpose.msra.mxu0 %v2918
    %5098 = vmatprep.mubr.f32.mxu0 %v991
    %5099 = vmatmul.mubr.f32.gmra.mxu0 %v990
    %v5100 = vpop.f32.mrf.mxu0
    %v5101 = vadd.f32 0.0, %v5100
    %v5102 = vpop.f32.mrf.mxu0
    %v5103 = vadd.f32 0.0, %v5102
    %5104 = vdwg.mxu0
    %5105 = vmatprep.subr.mxu0 %v2913
    %5106 = vmatpush1.xpose.msra.mxu0 %v2912
    %5107 = vmatprep.subr.mxu0 %v2905
    %5108 = vmatpush1.xpose.msra.mxu0 %v2904
    %5109 = vmatprep.subr.mxu0 %v2897
    %5110 = vmatpush1.xpose.msra.mxu0 %v2896
    %5111 = vmatprep.subr.mxu0 %v2889
    %5112 = vmatpush1.xpose.msra.mxu0 %v2888
    %5113 = vmatprep.subr.mxu0 %v2881
    %5114 = vmatpush1.xpose.msra.mxu0 %v2880
    %5115 = vmatprep.subr.mxu0 %v2873
    %5116 = vmatpush1.xpose.msra.mxu0 %v2872
    %5117 = vmatprep.subr.mxu0 %v2865
    %5118 = vmatpush1.xpose.msra.mxu0 %v2864
    %5119 = vmatprep.subr.mxu0 %v2857
    %5120 = vmatpush1.xpose.msra.mxu0 %v2856
    %5121 = vmatprep.subr.mxu0 %v2849
    %5122 = vmatpush1.xpose.msra.mxu0 %v2848
    %5123 = vmatprep.subr.mxu0 %v2841
    %5124 = vmatpush1.xpose.msra.mxu0 %v2840
    %5125 = vmatprep.subr.mxu0 %v2833
    %5126 = vmatpush1.xpose.msra.mxu0 %v2832
    %5127 = vmatprep.subr.mxu0 %v2825
    %5128 = vmatpush1.xpose.msra.mxu0 %v2824
    %5129 = vmatprep.subr.mxu0 %v2817
    %5130 = vmatpush1.xpose.msra.mxu0 %v2816
    %5131 = vmatprep.subr.mxu0 %v2809
    %5132 = vmatpush1.xpose.msra.mxu0 %v2808
    %5133 = vmatprep.subr.mxu0 %v2801
    %5134 = vmatpush1.xpose.msra.mxu0 %v2800
    %5135 = vmatprep.subr.mxu0 %v2793
    %5136 = vmatpush1.xpose.msra.mxu0 %v2792
    %5137 = vmatprep.subr.mxu0 %v3041
    %5138 = vmatpush2.xpose.msra.mxu0 %v3040
    %5139 = vmatprep.subr.mxu0 %v3033
    %5140 = vmatpush2.xpose.msra.mxu0 %v3032
    %5141 = vmatprep.subr.mxu0 %v3025
    %5142 = vmatpush2.xpose.msra.mxu0 %v3024
    %5143 = vmatprep.subr.mxu0 %v3017
    %5144 = vmatpush2.xpose.msra.mxu0 %v3016
    %5145 = vmatprep.subr.mxu0 %v3009
    %5146 = vmatpush2.xpose.msra.mxu0 %v3008
    %5147 = vmatprep.subr.mxu0 %v3001
    %5148 = vmatpush2.xpose.msra.mxu0 %v3000
    %5149 = vmatprep.subr.mxu0 %v2993
    %5150 = vmatpush2.xpose.msra.mxu0 %v2992
    %5151 = vmatprep.subr.mxu0 %v2985
    %5152 = vmatpush2.xpose.msra.mxu0 %v2984
    %5153 = vmatprep.subr.mxu0 %v2977
    %5154 = vmatpush2.xpose.msra.mxu0 %v2976
    %5155 = vmatprep.subr.mxu0 %v2969
    %5156 = vmatpush2.xpose.msra.mxu0 %v2968
    %5157 = vmatprep.subr.mxu0 %v2961
    %5158 = vmatpush2.xpose.msra.mxu0 %v2960
    %5159 = vmatprep.subr.mxu0 %v2953
    %5160 = vmatpush2.xpose.msra.mxu0 %v2952
    %5161 = vmatprep.subr.mxu0 %v2945
    %5162 = vmatpush2.xpose.msra.mxu0 %v2944
    %5163 = vmatprep.subr.mxu0 %v2937
    %5164 = vmatpush2.xpose.msra.mxu0 %v2936
    %5165 = vmatprep.subr.mxu0 %v2929
    %5166 = vmatpush2.xpose.msra.mxu0 %v2928
    %5167 = vmatprep.subr.mxu0 %v2921
    %5168 = vmatpush2.xpose.msra.mxu0 %v2920
    %5169 = vmatprep.mubr.f32.mxu0 %v993
    %5170 = vmatmul.mubr.f32.gmra.mxu0 %v992
    %v5171 = vpop.f32.mrf.mxu0
    %v5172 = vadd.f32 %v5101, %v5171
    %v5173 = vpop.f32.mrf.mxu0
    %v5174 = vadd.f32 %v5103, %v5173
    %5175 = vdwg.mxu0
    %5176 = vmatprep.subr.mxu0 %v2915
    %5177 = vmatpush1.xpose.msra.mxu0 %v2914
    %5178 = vmatprep.subr.mxu0 %v2907
    %5179 = vmatpush1.xpose.msra.mxu0 %v2906
    %5180 = vmatprep.subr.mxu0 %v2899
    %5181 = vmatpush1.xpose.msra.mxu0 %v2898
    %5182 = vmatprep.subr.mxu0 %v2891
    %5183 = vmatpush1.xpose.msra.mxu0 %v2890
    %5184 = vmatprep.subr.mxu0 %v2883
    %5185 = vmatpush1.xpose.msra.mxu0 %v2882
    %5186 = vmatprep.subr.mxu0 %v2875
    %5187 = vmatpush1.xpose.msra.mxu0 %v2874
    %5188 = vmatprep.subr.mxu0 %v2867
    %5189 = vmatpush1.xpose.msra.mxu0 %v2866
    %5190 = vmatprep.subr.mxu0 %v2859
    %5191 = vmatpush1.xpose.msra.mxu0 %v2858
    %5192 = vmatprep.subr.mxu0 %v2851
    %5193 = vmatpush1.xpose.msra.mxu0 %v2850
    %5194 = vmatprep.subr.mxu0 %v2843
    %5195 = vmatpush1.xpose.msra.mxu0 %v2842
    %5196 = vmatprep.subr.mxu0 %v2835
    %5197 = vmatpush1.xpose.msra.mxu0 %v2834
    %5198 = vmatprep.subr.mxu0 %v2827
    %5199 = vmatpush1.xpose.msra.mxu0 %v2826
    %5200 = vmatprep.subr.mxu0 %v2819
    %5201 = vmatpush1.xpose.msra.mxu0 %v2818
    %5202 = vmatprep.subr.mxu0 %v2811
    %5203 = vmatpush1.xpose.msra.mxu0 %v2810
    %5204 = vmatprep.subr.mxu0 %v2803
    %5205 = vmatpush1.xpose.msra.mxu0 %v2802
    %5206 = vmatprep.subr.mxu0 %v2795
    %5207 = vmatpush1.xpose.msra.mxu0 %v2794
    %5208 = vmatprep.subr.mxu0 %v3043
    %5209 = vmatpush2.xpose.msra.mxu0 %v3042
    %5210 = vmatprep.subr.mxu0 %v3035
    %5211 = vmatpush2.xpose.msra.mxu0 %v3034
    %5212 = vmatprep.subr.mxu0 %v3027
    %5213 = vmatpush2.xpose.msra.mxu0 %v3026
    %5214 = vmatprep.subr.mxu0 %v3019
    %5215 = vmatpush2.xpose.msra.mxu0 %v3018
    %5216 = vmatprep.subr.mxu0 %v3011
    %5217 = vmatpush2.xpose.msra.mxu0 %v3010
    %5218 = vmatprep.subr.mxu0 %v3003
    %5219 = vmatpush2.xpose.msra.mxu0 %v3002
    %5220 = vmatprep.subr.mxu0 %v2995
    %5221 = vmatpush2.xpose.msra.mxu0 %v2994
    %5222 = vmatprep.subr.mxu0 %v2987
    %5223 = vmatpush2.xpose.msra.mxu0 %v2986
    %5224 = vmatprep.subr.mxu0 %v2979
    %5225 = vmatpush2.xpose.msra.mxu0 %v2978
    %5226 = vmatprep.subr.mxu0 %v2971
    %5227 = vmatpush2.xpose.msra.mxu0 %v2970
    %5228 = vmatprep.subr.mxu0 %v2963
    %5229 = vmatpush2.xpose.msra.mxu0 %v2962
    %5230 = vmatprep.subr.mxu0 %v2955
    %5231 = vmatpush2.xpose.msra.mxu0 %v2954
    %5232 = vmatprep.subr.mxu0 %v2947
    %5233 = vmatpush2.xpose.msra.mxu0 %v2946
    %5234 = vmatprep.subr.mxu0 %v2939
    %5235 = vmatpush2.xpose.msra.mxu0 %v2938
    %5236 = vmatprep.subr.mxu0 %v2931
    %5237 = vmatpush2.xpose.msra.mxu0 %v2930
    %5238 = vmatprep.subr.mxu0 %v2923
    %5239 = vmatpush2.xpose.msra.mxu0 %v2922
    %5240 = vmatprep.mubr.f32.mxu0 %v995
    %5241 = vmatmul.mubr.f32.gmra.mxu0 %v994
    %v5242 = vpop.f32.mrf.mxu0
    %v5243 = vadd.f32 %v5172, %v5242
    %v5244 = vpop.f32.mrf.mxu0
    %v5245 = vadd.f32 %v5174, %v5244
    %5246 = vdwg.mxu0
    %5247 = vmatprep.subr.mxu0 %v2917
    %5248 = vmatpush1.xpose.msra.mxu0 %v2916
    %5249 = vmatprep.subr.mxu0 %v2909
    %5250 = vmatpush1.xpose.msra.mxu0 %v2908
    %5251 = vmatprep.subr.mxu0 %v2901
    %5252 = vmatpush1.xpose.msra.mxu0 %v2900
    %5253 = vmatprep.subr.mxu0 %v2893
    %5254 = vmatpush1.xpose.msra.mxu0 %v2892
    %5255 = vmatprep.subr.mxu0 %v2885
    %5256 = vmatpush1.xpose.msra.mxu0 %v2884
    %5257 = vmatprep.subr.mxu0 %v2877
    %5258 = vmatpush1.xpose.msra.mxu0 %v2876
    %5259 = vmatprep.subr.mxu0 %v2869
    %5260 = vmatpush1.xpose.msra.mxu0 %v2868
    %5261 = vmatprep.subr.mxu0 %v2861
    %5262 = vmatpush1.xpose.msra.mxu0 %v2860
    %5263 = vmatprep.subr.mxu0 %v2853
    %5264 = vmatpush1.xpose.msra.mxu0 %v2852
    %5265 = vmatprep.subr.mxu0 %v2845
    %5266 = vmatpush1.xpose.msra.mxu0 %v2844
    %5267 = vmatprep.subr.mxu0 %v2837
    %5268 = vmatpush1.xpose.msra.mxu0 %v2836
    %5269 = vmatprep.subr.mxu0 %v2829
    %5270 = vmatpush1.xpose.msra.mxu0 %v2828
    %5271 = vmatprep.subr.mxu0 %v2821
    %5272 = vmatpush1.xpose.msra.mxu0 %v2820
    %5273 = vmatprep.subr.mxu0 %v2813
    %5274 = vmatpush1.xpose.msra.mxu0 %v2812
    %5275 = vmatprep.subr.mxu0 %v2805
    %5276 = vmatpush1.xpose.msra.mxu0 %v2804
    %5277 = vmatprep.subr.mxu0 %v2797
    %5278 = vmatpush1.xpose.msra.mxu0 %v2796
    %5279 = vmatprep.subr.mxu0 %v3045
    %5280 = vmatpush2.xpose.msra.mxu0 %v3044
    %5281 = vmatprep.subr.mxu0 %v3037
    %5282 = vmatpush2.xpose.msra.mxu0 %v3036
    %5283 = vmatprep.subr.mxu0 %v3029
    %5284 = vmatpush2.xpose.msra.mxu0 %v3028
    %5285 = vmatprep.subr.mxu0 %v3021
    %5286 = vmatpush2.xpose.msra.mxu0 %v3020
    %5287 = vmatprep.subr.mxu0 %v3013
    %5288 = vmatpush2.xpose.msra.mxu0 %v3012
    %5289 = vmatprep.subr.mxu0 %v3005
    %5290 = vmatpush2.xpose.msra.mxu0 %v3004
    %5291 = vmatprep.subr.mxu0 %v2997
    %5292 = vmatpush2.xpose.msra.mxu0 %v2996
    %5293 = vmatprep.subr.mxu0 %v2989
    %5294 = vmatpush2.xpose.msra.mxu0 %v2988
    %5295 = vmatprep.subr.mxu0 %v2981
    %5296 = vmatpush2.xpose.msra.mxu0 %v2980
    %5297 = vmatprep.subr.mxu0 %v2973
    %5298 = vmatpush2.xpose.msra.mxu0 %v2972
    %5299 = vmatprep.subr.mxu0 %v2965
    %5300 = vmatpush2.xpose.msra.mxu0 %v2964
    %5301 = vmatprep.subr.mxu0 %v2957
    %5302 = vmatpush2.xpose.msra.mxu0 %v2956
    %5303 = vmatprep.subr.mxu0 %v2949
    %5304 = vmatpush2.xpose.msra.mxu0 %v2948
    %5305 = vmatprep.subr.mxu0 %v2941
    %5306 = vmatpush2.xpose.msra.mxu0 %v2940
    %5307 = vmatprep.subr.mxu0 %v2933
    %5308 = vmatpush2.xpose.msra.mxu0 %v2932
    %5309 = vmatprep.subr.mxu0 %v2925
    %5310 = vmatpush2.xpose.msra.mxu0 %v2924
    %5311 = vmatprep.mubr.f32.mxu0 %v997
    %5312 = vmatmul.mubr.f32.gmra.mxu0 %v996
    %v5313 = vpop.f32.mrf.mxu0
    %v5314 = vadd.f32 %v5243, %v5313
    %v5315 = vpop.f32.mrf.mxu0
    %v5316 = vadd.f32 %v5245, %v5315
    %5317 = vdwg.mxu0
    %v5318 = vld [vmem:[#allocation7] sm:$0xff]
    %v5319 = vld [vmem:[#allocation7 + $0x8] sm:$0xff]
    %v5320 = vld [vmem:[#allocation7 + $0x10] sm:$0xff]
    %v5321 = vld [vmem:[#allocation7 + $0x18] sm:$0xff]
    %v5322 = vsel %vm658, %v3326, 0.0
    %v5323 = vrot.slane %v5322, 4
    %v5324 = vadd.f32 %v5322, %v5323
    %v5325 = vrot.slane %v5324, 2
    %v5326 = vadd.f32 %v5324, %v5325
    %v5327 = vrot.slane %v5326, 1
    %v5328 = vadd.f32 %v5326, %v5327
    %v5329 = vsel %vm658, %v3328, 0.0
    %v5330 = vrot.slane %v5329, 4
    %v5331 = vadd.f32 %v5329, %v5330
    %v5332 = vrot.slane %v5331, 2
    %v5333 = vadd.f32 %v5331, %v5332
    %v5334 = vrot.slane %v5333, 1
    %v5335 = vadd.f32 %v5333, %v5334
    %v5336 = vsel %vm658, %v3610, 0.0
    %v5337 = vrot.slane %v5336, 4
    %v5338 = vadd.f32 %v5336, %v5337
    %v5339 = vrot.slane %v5338, 2
    %v5340 = vadd.f32 %v5338, %v5339
    %v5341 = vrot.slane %v5340, 1
    %v5342 = vadd.f32 %v5340, %v5341
    %v5343 = vsel %vm658, %v3612, 0.0
    %v5344 = vrot.slane %v5343, 4
    %v5345 = vadd.f32 %v5343, %v5344
    %v5346 = vrot.slane %v5345, 2
    %v5347 = vadd.f32 %v5345, %v5346
    %v5348 = vrot.slane %v5347, 1
    %v5349 = vadd.f32 %v5347, %v5348
    %v5350 = vsel %vm658, %v3894, 0.0
    %v5351 = vrot.slane %v5350, 4
    %v5352 = vadd.f32 %v5350, %v5351
    %v5353 = vrot.slane %v5352, 2
    %v5354 = vadd.f32 %v5352, %v5353
    %v5355 = vrot.slane %v5354, 1
    %v5356 = vadd.f32 %v5354, %v5355
    %v5357 = vsel %vm658, %v3896, 0.0
    %v5358 = vrot.slane %v5357, 4
    %v5359 = vadd.f32 %v5357, %v5358
    %v5360 = vrot.slane %v5359, 2
    %v5361 = vadd.f32 %v5359, %v5360
    %v5362 = vrot.slane %v5361, 1
    %v5363 = vadd.f32 %v5361, %v5362
    %v5364 = vsel %vm658, %v4178, 0.0
    %v5365 = vrot.slane %v5364, 4
    %v5366 = vadd.f32 %v5364, %v5365
    %v5367 = vrot.slane %v5366, 2
    %v5368 = vadd.f32 %v5366, %v5367
    %v5369 = vrot.slane %v5368, 1
    %v5370 = vadd.f32 %v5368, %v5369
    %v5371 = vsel %vm658, %v4180, 0.0
    %v5372 = vrot.slane %v5371, 4
    %v5373 = vadd.f32 %v5371, %v5372
    %v5374 = vrot.slane %v5373, 2
    %v5375 = vadd.f32 %v5373, %v5374
    %v5376 = vrot.slane %v5375, 1
    %v5377 = vadd.f32 %v5375, %v5376
    %v5378 = vsel %vm658, %v4462, 0.0
    %v5379 = vrot.slane %v5378, 4
    %v5380 = vadd.f32 %v5378, %v5379
    %v5381 = vrot.slane %v5380, 2
    %v5382 = vadd.f32 %v5380, %v5381
    %v5383 = vrot.slane %v5382, 1
    %v5384 = vadd.f32 %v5382, %v5383
    %v5385 = vsel %vm658, %v4464, 0.0
    %v5386 = vrot.slane %v5385, 4
    %v5387 = vadd.f32 %v5385, %v5386
    %v5388 = vrot.slane %v5387, 2
    %v5389 = vadd.f32 %v5387, %v5388
    %v5390 = vrot.slane %v5389, 1
    %v5391 = vadd.f32 %v5389, %v5390
    %v5392 = vsel %vm658, %v4746, 0.0
    %v5393 = vrot.slane %v5392, 4
    %v5394 = vadd.f32 %v5392, %v5393
    %v5395 = vrot.slane %v5394, 2
    %v5396 = vadd.f32 %v5394, %v5395
    %v5397 = vrot.slane %v5396, 1
    %v5398 = vadd.f32 %v5396, %v5397
    %v5399 = vsel %vm658, %v4748, 0.0
    %v5400 = vrot.slane %v5399, 4
    %v5401 = vadd.f32 %v5399, %v5400
    %v5402 = vrot.slane %v5401, 2
    %v5403 = vadd.f32 %v5401, %v5402
    %v5404 = vrot.slane %v5403, 1
    %v5405 = vadd.f32 %v5403, %v5404
    %v5406 = vsel %vm658, %v5030, 0.0
    %v5407 = vrot.slane %v5406, 4
    %v5408 = vadd.f32 %v5406, %v5407
    %v5409 = vrot.slane %v5408, 2
    %v5410 = vadd.f32 %v5408, %v5409
    %v5411 = vrot.slane %v5410, 1
    %v5412 = vadd.f32 %v5410, %v5411
    %v5413 = vsel %vm658, %v5032, 0.0
    %v5414 = vrot.slane %v5413, 4
    %v5415 = vadd.f32 %v5413, %v5414
    %v5416 = vrot.slane %v5415, 2
    %v5417 = vadd.f32 %v5415, %v5416
    %v5418 = vrot.slane %v5417, 1
    %v5419 = vadd.f32 %v5417, %v5418
    %v5420 = vsel %vm658, %v5314, 0.0
    %v5421 = vrot.slane %v5420, 4
    %v5422 = vadd.f32 %v5420, %v5421
    %v5423 = vrot.slane %v5422, 2
    %v5424 = vadd.f32 %v5422, %v5423
    %v5425 = vrot.slane %v5424, 1
    %v5426 = vadd.f32 %v5424, %v5425
    %v5427 = vsel %vm658, %v5316, 0.0
    %v5428 = vrot.slane %v5427, 4
    %v5429 = vadd.f32 %v5427, %v5428
    %v5430 = vrot.slane %v5429, 2
    %v5431 = vadd.f32 %v5429, %v5430
    %v5432 = vrot.slane %v5431, 1
    %v5433 = vadd.f32 %v5431, %v5432
    %v5434 = vmul.f32 %v5328, %v715
    %v5435 = vmul.f32 %v5335, %v715
    %v5436 = vmul.f32 %v5342, %v715
    %v5437 = vmul.f32 %v5349, %v715
    %v5438 = vmul.f32 %v5356, %v715
    %v5439 = vmul.f32 %v5363, %v715
    %v5440 = vmul.f32 %v5370, %v715
    %v5441 = vmul.f32 %v5377, %v715
    %v5442 = vmul.f32 %v5384, %v715
    %v5443 = vmul.f32 %v5391, %v715
    %v5444 = vmul.f32 %v5398, %v715
    %v5445 = vmul.f32 %v5405, %v715
    %v5446 = vmul.f32 %v5412, %v715
    %v5447 = vmul.f32 %v5419, %v715
    %v5448 = vmul.f32 %v5426, %v715
    %v5449 = vmul.f32 %v5433, %v715
    %v5450 = vsub.f32 %v3326, %v5434
    %v5451 = vsub.f32 %v3328, %v5435
    %v5452 = vsub.f32 %v3610, %v5436
    %v5453 = vsub.f32 %v3612, %v5437
    %v5454 = vsub.f32 %v3894, %v5438
    %v5455 = vsub.f32 %v3896, %v5439
    %v5456 = vsub.f32 %v4178, %v5440
    %v5457 = vsub.f32 %v4180, %v5441
    %v5458 = vsub.f32 %v4462, %v5442
    %v5459 = vsub.f32 %v4464, %v5443
    %v5460 = vsub.f32 %v4746, %v5444
    %v5461 = vsub.f32 %v4748, %v5445
    %v5462 = vsub.f32 %v5030, %v5446
    %v5463 = vsub.f32 %v5032, %v5447
    %v5464 = vsub.f32 %v5314, %v5448
    %v5465 = vsub.f32 %v5316, %v5449
    %v5466 = vmul.f32 %v5450, %v5450
    %v5467 = vmul.f32 %v5451, %v5451
    %v5468 = vmul.f32 %v5452, %v5452
    %v5469 = vmul.f32 %v5453, %v5453
    %v5470 = vmul.f32 %v5454, %v5454
    %v5471 = vmul.f32 %v5455, %v5455
    %v5472 = vmul.f32 %v5456, %v5456
    %v5473 = vmul.f32 %v5457, %v5457
    %v5474 = vmul.f32 %v5458, %v5458
    %v5475 = vmul.f32 %v5459, %v5459
    %v5476 = vmul.f32 %v5460, %v5460
    %v5477 = vmul.f32 %v5461, %v5461
    %v5478 = vmul.f32 %v5462, %v5462
    %v5479 = vmul.f32 %v5463, %v5463
    %v5480 = vmul.f32 %v5464, %v5464
    %v5481 = vmul.f32 %v5465, %v5465
    %v5482 = vsel %vm658, %v5466, 0.0
    %v5483 = vrot.slane %v5482, 4
    %v5484 = vadd.f32 %v5482, %v5483
    %v5485 = vrot.slane %v5484, 2
    %v5486 = vadd.f32 %v5484, %v5485
    %v5487 = vrot.slane %v5486, 1
    %v5488 = vadd.f32 %v5486, %v5487
    %v5489 = vsel %vm658, %v5467, 0.0
    %v5490 = vrot.slane %v5489, 4
    %v5491 = vadd.f32 %v5489, %v5490
    %v5492 = vrot.slane %v5491, 2
    %v5493 = vadd.f32 %v5491, %v5492
    %v5494 = vrot.slane %v5493, 1
    %v5495 = vadd.f32 %v5493, %v5494
    %v5496 = vsel %vm658, %v5468, 0.0
    %v5497 = vrot.slane %v5496, 4
    %v5498 = vadd.f32 %v5496, %v5497
    %v5499 = vrot.slane %v5498, 2
    %v5500 = vadd.f32 %v5498, %v5499
    %v5501 = vrot.slane %v5500, 1
    %v5502 = vadd.f32 %v5500, %v5501
    %v5503 = vsel %vm658, %v5469, 0.0
    %v5504 = vrot.slane %v5503, 4
    %v5505 = vadd.f32 %v5503, %v5504
    %v5506 = vrot.slane %v5505, 2
    %v5507 = vadd.f32 %v5505, %v5506
    %v5508 = vrot.slane %v5507, 1
    %v5509 = vadd.f32 %v5507, %v5508
    %v5510 = vsel %vm658, %v5470, 0.0
    %v5511 = vrot.slane %v5510, 4
    %v5512 = vadd.f32 %v5510, %v5511
    %v5513 = vrot.slane %v5512, 2
    %v5514 = vadd.f32 %v5512, %v5513
    %v5515 = vrot.slane %v5514, 1
    %v5516 = vadd.f32 %v5514, %v5515
    %v5517 = vsel %vm658, %v5471, 0.0
    %v5518 = vrot.slane %v5517, 4
    %v5519 = vadd.f32 %v5517, %v5518
    %v5520 = vrot.slane %v5519, 2
    %v5521 = vadd.f32 %v5519, %v5520
    %v5522 = vrot.slane %v5521, 1
    %v5523 = vadd.f32 %v5521, %v5522
    %v5524 = vsel %vm658, %v5472, 0.0
    %v5525 = vrot.slane %v5524, 4
    %v5526 = vadd.f32 %v5524, %v5525
    %v5527 = vrot.slane %v5526, 2
    %v5528 = vadd.f32 %v5526, %v5527
    %v5529 = vrot.slane %v5528, 1
    %v5530 = vadd.f32 %v5528, %v5529
    %v5531 = vsel %vm658, %v5473, 0.0
    %v5532 = vrot.slane %v5531, 4
    %v5533 = vadd.f32 %v5531, %v5532
    %v5534 = vrot.slane %v5533, 2
    %v5535 = vadd.f32 %v5533, %v5534
    %v5536 = vrot.slane %v5535, 1
    %v5537 = vadd.f32 %v5535, %v5536
    %v5538 = vsel %vm658, %v5474, 0.0
    %v5539 = vrot.slane %v5538, 4
    %v5540 = vadd.f32 %v5538, %v5539
    %v5541 = vrot.slane %v5540, 2
    %v5542 = vadd.f32 %v5540, %v5541
    %v5543 = vrot.slane %v5542, 1
    %v5544 = vadd.f32 %v5542, %v5543
    %v5545 = vsel %vm658, %v5475, 0.0
    %v5546 = vrot.slane %v5545, 4
    %v5547 = vadd.f32 %v5545, %v5546
    %v5548 = vrot.slane %v5547, 2
    %v5549 = vadd.f32 %v5547, %v5548
    %v5550 = vrot.slane %v5549, 1
    %v5551 = vadd.f32 %v5549, %v5550
    %v5552 = vsel %vm658, %v5476, 0.0
    %v5553 = vrot.slane %v5552, 4
    %v5554 = vadd.f32 %v5552, %v5553
    %v5555 = vrot.slane %v5554, 2
    %v5556 = vadd.f32 %v5554, %v5555
    %v5557 = vrot.slane %v5556, 1
    %v5558 = vadd.f32 %v5556, %v5557
    %v5559 = vsel %vm658, %v5477, 0.0
    %v5560 = vrot.slane %v5559, 4
    %v5561 = vadd.f32 %v5559, %v5560
    %v5562 = vrot.slane %v5561, 2
    %v5563 = vadd.f32 %v5561, %v5562
    %v5564 = vrot.slane %v5563, 1
    %v5565 = vadd.f32 %v5563, %v5564
    %v5566 = vsel %vm658, %v5478, 0.0
    %v5567 = vrot.slane %v5566, 4
    %v5568 = vadd.f32 %v5566, %v5567
    %v5569 = vrot.slane %v5568, 2
    %v5570 = vadd.f32 %v5568, %v5569
    %v5571 = vrot.slane %v5570, 1
    %v5572 = vadd.f32 %v5570, %v5571
    %v5573 = vsel %vm658, %v5479, 0.0
    %v5574 = vrot.slane %v5573, 4
    %v5575 = vadd.f32 %v5573, %v5574
    %v5576 = vrot.slane %v5575, 2
    %v5577 = vadd.f32 %v5575, %v5576
    %v5578 = vrot.slane %v5577, 1
    %v5579 = vadd.f32 %v5577, %v5578
    %v5580 = vsel %vm658, %v5480, 0.0
    %v5581 = vrot.slane %v5580, 4
    %v5582 = vadd.f32 %v5580, %v5581
    %v5583 = vrot.slane %v5582, 2
    %v5584 = vadd.f32 %v5582, %v5583
    %v5585 = vrot.slane %v5584, 1
    %v5586 = vadd.f32 %v5584, %v5585
    %v5587 = vsel %vm658, %v5481, 0.0
    %v5588 = vrot.slane %v5587, 4
    %v5589 = vadd.f32 %v5587, %v5588
    %v5590 = vrot.slane %v5589, 2
    %v5591 = vadd.f32 %v5589, %v5590
    %v5592 = vrot.slane %v5591, 1
    %v5593 = vadd.f32 %v5591, %v5592
    %v5594 = vmul.f32 %v5488, %v715
    %v5595 = vmul.f32 %v5495, %v715
    %v5596 = vmul.f32 %v5502, %v715
    %v5597 = vmul.f32 %v5509, %v715
    %v5598 = vmul.f32 %v5516, %v715
    %v5599 = vmul.f32 %v5523, %v715
    %v5600 = vmul.f32 %v5530, %v715
    %v5601 = vmul.f32 %v5537, %v715
    %v5602 = vmul.f32 %v5544, %v715
    %v5603 = vmul.f32 %v5551, %v715
    %v5604 = vmul.f32 %v5558, %v715
    %v5605 = vmul.f32 %v5565, %v715
    %v5606 = vmul.f32 %v5572, %v715
    %v5607 = vmul.f32 %v5579, %v715
    %v5608 = vmul.f32 %v5586, %v715
    %v5609 = vmul.f32 %v5593, %v715
    %v5610 = vadd.f32 %v5594, 1e-05
    %v5611 = vadd.f32 %v5595, 1e-05
    %v5612 = vadd.f32 %v5596, 1e-05
    %v5613 = vadd.f32 %v5597, 1e-05
    %v5614 = vadd.f32 %v5598, 1e-05
    %v5615 = vadd.f32 %v5599, 1e-05
    %v5616 = vadd.f32 %v5600, 1e-05
    %v5617 = vadd.f32 %v5601, 1e-05
    %v5618 = vadd.f32 %v5602, 1e-05
    %v5619 = vadd.f32 %v5603, 1e-05
    %v5620 = vadd.f32 %v5604, 1e-05
    %v5621 = vadd.f32 %v5605, 1e-05
    %v5622 = vadd.f32 %v5606, 1e-05
    %v5623 = vadd.f32 %v5607, 1e-05
    %v5624 = vadd.f32 %v5608, 1e-05
    %v5625 = vadd.f32 %v5609, 1e-05
    %v5626 = vrsqrt.pop %v5610
    %v5627 = vrsqrt.pop %v5611
    %v5628 = vrsqrt.pop %v5612
    %v5629 = vrsqrt.pop %v5613
    %v5630 = vrsqrt.pop %v5614
    %v5631 = vrsqrt.pop %v5615
    %v5632 = vrsqrt.pop %v5616
    %v5633 = vrsqrt.pop %v5617
    %v5634 = vrsqrt.pop %v5618
    %v5635 = vrsqrt.pop %v5619
    %v5636 = vrsqrt.pop %v5620
    %v5637 = vrsqrt.pop %v5621
    %v5638 = vrsqrt.pop %v5622
    %v5639 = vrsqrt.pop %v5623
    %v5640 = vrsqrt.pop %v5624
    %v5641 = vrsqrt.pop %v5625
    %v5642 = vmul.f32 %v5450, %v5626
    %v5643 = vmul.f32 %v5451, %v5627
    %v5644 = vmul.f32 %v5452, %v5628
    %v5645 = vmul.f32 %v5453, %v5629
    %v5646 = vmul.f32 %v5454, %v5630
    %v5647 = vmul.f32 %v5455, %v5631
    %v5648 = vmul.f32 %v5456, %v5632
    %v5649 = vmul.f32 %v5457, %v5633
    %v5650 = vmul.f32 %v5458, %v5634
    %v5651 = vmul.f32 %v5459, %v5635
    %v5652 = vmul.f32 %v5460, %v5636
    %v5653 = vmul.f32 %v5461, %v5637
    %v5654 = vmul.f32 %v5462, %v5638
    %v5655 = vmul.f32 %v5463, %v5639
    %v5656 = vmul.f32 %v5464, %v5640
    %v5657 = vmul.f32 %v5465, %v5641
    %v5662 = vlaneseq
    %v5663 = vshrl.u32 %v5662, 7
    %v5664 = vsub.s32 0, %v5663
    %v5665 = vrot.slane %v5318, %v5664
    %v5666 = vlaneseq
    %v5667 = vshrl.u32 %v5666, 7
    %v5668 = vsub.s32 2, %v5667
    %v5669 = vrot.slane %v5318, %v5668
    %v5670 = vlaneseq
    %v5671 = vshrl.u32 %v5670, 7
    %v5672 = vsub.s32 4, %v5671
    %v5673 = vrot.slane %v5318, %v5672
    %v5674 = vlaneseq
    %v5675 = vshrl.u32 %v5674, 7
    %v5676 = vsub.s32 6, %v5675
    %v5677 = vrot.slane %v5318, %v5676
    %v5678 = vlaneseq
    %v5679 = vshrl.u32 %v5678, 7
    %v5680 = vsub.s32 0, %v5679
    %v5681 = vrot.slane %v5319, %v5680
    %v5682 = vlaneseq
    %v5683 = vshrl.u32 %v5682, 7
    %v5684 = vsub.s32 2, %v5683
    %v5685 = vrot.slane %v5319, %v5684
    %v5686 = vlaneseq
    %v5687 = vshrl.u32 %v5686, 7
    %v5688 = vsub.s32 4, %v5687
    %v5689 = vrot.slane %v5319, %v5688
    %v5690 = vlaneseq
    %v5691 = vshrl.u32 %v5690, 7
    %v5692 = vsub.s32 6, %v5691
    %v5693 = vrot.slane %v5319, %v5692
    %v5694 = vlaneseq
    %v5695 = vshrl.u32 %v5694, 7
    %v5696 = vsub.s32 0, %v5695
    %v5697 = vrot.slane %v5320, %v5696
    %v5698 = vlaneseq
    %v5699 = vshrl.u32 %v5698, 7
    %v5700 = vsub.s32 2, %v5699
    %v5701 = vrot.slane %v5320, %v5700
    %v5702 = vlaneseq
    %v5703 = vshrl.u32 %v5702, 7
    %v5704 = vsub.s32 4, %v5703
    %v5705 = vrot.slane %v5320, %v5704
    %v5706 = vlaneseq
    %v5707 = vshrl.u32 %v5706, 7
    %v5708 = vsub.s32 6, %v5707
    %v5709 = vrot.slane %v5320, %v5708
    %v5710 = vlaneseq
    %v5711 = vshrl.u32 %v5710, 7
    %v5712 = vsub.s32 0, %v5711
    %v5713 = vrot.slane %v5321, %v5712
    %v5714 = vlaneseq
    %v5715 = vshrl.u32 %v5714, 7
    %v5716 = vsub.s32 2, %v5715
    %v5717 = vrot.slane %v5321, %v5716
    %v5718 = vlaneseq
    %v5719 = vshrl.u32 %v5718, 7
    %v5720 = vsub.s32 4, %v5719
    %v5721 = vrot.slane %v5321, %v5720
    %v5722 = vlaneseq
    %v5723 = vshrl.u32 %v5722, 7
    %v5724 = vsub.s32 6, %v5723
    %v5725 = vrot.slane %v5321, %v5724
    %v5742 = vlaneseq
    %v5743 = vshrl.u32 %v5742, 7
    %v5744 = vsub.s32 0, %v5743
    %v5745 = vrot.slane %v5665, %v5744
    %v5746 = vlaneseq
    %v5747 = vshrl.u32 %v5746, 7
    %v5748 = vsub.s32 0, %v5747
    %v5749 = vrot.slane %v5669, %v5748
    %v5750 = vlaneseq
    %v5751 = vshrl.u32 %v5750, 7
    %v5752 = vsub.s32 0, %v5751
    %v5753 = vrot.slane %v5673, %v5752
    %v5754 = vlaneseq
    %v5755 = vshrl.u32 %v5754, 7
    %v5756 = vsub.s32 0, %v5755
    %v5757 = vrot.slane %v5677, %v5756
    %v5758 = vlaneseq
    %v5759 = vshrl.u32 %v5758, 7
    %v5760 = vsub.s32 0, %v5759
    %v5761 = vrot.slane %v5681, %v5760
    %v5762 = vlaneseq
    %v5763 = vshrl.u32 %v5762, 7
    %v5764 = vsub.s32 0, %v5763
    %v5765 = vrot.slane %v5685, %v5764
    %v5766 = vlaneseq
    %v5767 = vshrl.u32 %v5766, 7
    %v5768 = vsub.s32 0, %v5767
    %v5769 = vrot.slane %v5689, %v5768
    %v5770 = vlaneseq
    %v5771 = vshrl.u32 %v5770, 7
    %v5772 = vsub.s32 0, %v5771
    %v5773 = vrot.slane %v5693, %v5772
    %v5774 = vlaneseq
    %v5775 = vshrl.u32 %v5774, 7
    %v5776 = vsub.s32 0, %v5775
    %v5777 = vrot.slane %v5697, %v5776
    %v5778 = vlaneseq
    %v5779 = vshrl.u32 %v5778, 7
    %v5780 = vsub.s32 0, %v5779
    %v5781 = vrot.slane %v5701, %v5780
    %v5782 = vlaneseq
    %v5783 = vshrl.u32 %v5782, 7
    %v5784 = vsub.s32 0, %v5783
    %v5785 = vrot.slane %v5705, %v5784
    %v5786 = vlaneseq
    %v5787 = vshrl.u32 %v5786, 7
    %v5788 = vsub.s32 0, %v5787
    %v5789 = vrot.slane %v5709, %v5788
    %v5790 = vlaneseq
    %v5791 = vshrl.u32 %v5790, 7
    %v5792 = vsub.s32 0, %v5791
    %v5793 = vrot.slane %v5713, %v5792
    %v5794 = vlaneseq
    %v5795 = vshrl.u32 %v5794, 7
    %v5796 = vsub.s32 0, %v5795
    %v5797 = vrot.slane %v5717, %v5796
    %v5798 = vlaneseq
    %v5799 = vshrl.u32 %v5798, 7
    %v5800 = vsub.s32 0, %v5799
    %v5801 = vrot.slane %v5721, %v5800
    %v5802 = vlaneseq
    %v5803 = vshrl.u32 %v5802, 7
    %v5804 = vsub.s32 0, %v5803
    %v5805 = vrot.slane %v5725, %v5804
    %v5806 = vmul.f32 %v5642, %v5745
    %v5807 = vmul.f32 %v5643, %v5749
    %v5808 = vmul.f32 %v5644, %v5753
    %v5809 = vmul.f32 %v5645, %v5757
    %v5810 = vmul.f32 %v5646, %v5761
    %v5811 = vmul.f32 %v5647, %v5765
    %v5812 = vmul.f32 %v5648, %v5769
    %v5813 = vmul.f32 %v5649, %v5773
    %v5814 = vmul.f32 %v5650, %v5777
    %v5815 = vmul.f32 %v5651, %v5781
    %v5816 = vmul.f32 %v5652, %v5785
    %v5817 = vmul.f32 %v5653, %v5789
    %v5818 = vmul.f32 %v5654, %v5793
    %v5819 = vmul.f32 %v5655, %v5797
    %v5820 = vmul.f32 %v5656, %v5801
    %v5821 = vmul.f32 %v5657, %v5805
    %v5822 = vlaneseq
    %v5823 = vshrl.u32 %v5822, 7
    %v5824 = vsub.s32 1, %v5823
    %v5825 = vrot.slane %v5318, %v5824
    %v5826 = vlaneseq
    %v5827 = vshrl.u32 %v5826, 7
    %v5828 = vsub.s32 3, %v5827
    %v5829 = vrot.slane %v5318, %v5828
    %v5830 = vlaneseq
    %v5831 = vshrl.u32 %v5830, 7
    %v5832 = vsub.s32 5, %v5831
    %v5833 = vrot.slane %v5318, %v5832
    %v5834 = vlaneseq
    %v5835 = vshrl.u32 %v5834, 7
    %v5836 = vsub.s32 7, %v5835
    %v5837 = vrot.slane %v5318, %v5836
    %v5838 = vlaneseq
    %v5839 = vshrl.u32 %v5838, 7
    %v5840 = vsub.s32 1, %v5839
    %v5841 = vrot.slane %v5319, %v5840
    %v5842 = vlaneseq
    %v5843 = vshrl.u32 %v5842, 7
    %v5844 = vsub.s32 3, %v5843
    %v5845 = vrot.slane %v5319, %v5844
    %v5846 = vlaneseq
    %v5847 = vshrl.u32 %v5846, 7
    %v5848 = vsub.s32 5, %v5847
    %v5849 = vrot.slane %v5319, %v5848
    %v5850 = vlaneseq
    %v5851 = vshrl.u32 %v5850, 7
    %v5852 = vsub.s32 7, %v5851
    %v5853 = vrot.slane %v5319, %v5852
    %v5854 = vlaneseq
    %v5855 = vshrl.u32 %v5854, 7
    %v5856 = vsub.s32 1, %v5855
    %v5857 = vrot.slane %v5320, %v5856
    %v5858 = vlaneseq
    %v5859 = vshrl.u32 %v5858, 7
    %v5860 = vsub.s32 3, %v5859
    %v5861 = vrot.slane %v5320, %v5860
    %v5862 = vlaneseq
    %v5863 = vshrl.u32 %v5862, 7
    %v5864 = vsub.s32 5, %v5863
    %v5865 = vrot.slane %v5320, %v5864
    %v5866 = vlaneseq
    %v5867 = vshrl.u32 %v5866, 7
    %v5868 = vsub.s32 7, %v5867
    %v5869 = vrot.slane %v5320, %v5868
    %v5870 = vlaneseq
    %v5871 = vshrl.u32 %v5870, 7
    %v5872 = vsub.s32 1, %v5871
    %v5873 = vrot.slane %v5321, %v5872
    %v5874 = vlaneseq
    %v5875 = vshrl.u32 %v5874, 7
    %v5876 = vsub.s32 3, %v5875
    %v5877 = vrot.slane %v5321, %v5876
    %v5878 = vlaneseq
    %v5879 = vshrl.u32 %v5878, 7
    %v5880 = vsub.s32 5, %v5879
    %v5881 = vrot.slane %v5321, %v5880
    %v5882 = vlaneseq
    %v5883 = vshrl.u32 %v5882, 7
    %v5884 = vsub.s32 7, %v5883
    %v5885 = vrot.slane %v5321, %v5884
    %v5902 = vlaneseq
    %v5903 = vshrl.u32 %v5902, 7
    %v5904 = vsub.s32 1, %v5903
    %v5905 = vrot.slane %v5825, %v5904
    %v5906 = vlaneseq
    %v5907 = vshrl.u32 %v5906, 7
    %v5908 = vsub.s32 1, %v5907
    %v5909 = vrot.slane %v5829, %v5908
    %v5910 = vlaneseq
    %v5911 = vshrl.u32 %v5910, 7
    %v5912 = vsub.s32 1, %v5911
    %v5913 = vrot.slane %v5833, %v5912
    %v5914 = vlaneseq
    %v5915 = vshrl.u32 %v5914, 7
    %v5916 = vsub.s32 1, %v5915
    %v5917 = vrot.slane %v5837, %v5916
    %v5918 = vlaneseq
    %v5919 = vshrl.u32 %v5918, 7
    %v5920 = vsub.s32 1, %v5919
    %v5921 = vrot.slane %v5841, %v5920
    %v5922 = vlaneseq
    %v5923 = vshrl.u32 %v5922, 7
    %v5924 = vsub.s32 1, %v5923
    %v5925 = vrot.slane %v5845, %v5924
    %v5926 = vlaneseq
    %v5927 = vshrl.u32 %v5926, 7
    %v5928 = vsub.s32 1, %v5927
    %v5929 = vrot.slane %v5849, %v5928
    %v5930 = vlaneseq
    %v5931 = vshrl.u32 %v5930, 7
    %v5932 = vsub.s32 1, %v5931
    %v5933 = vrot.slane %v5853, %v5932
    %v5934 = vlaneseq
    %v5935 = vshrl.u32 %v5934, 7
    %v5936 = vsub.s32 1, %v5935
    %v5937 = vrot.slane %v5857, %v5936
    %v5938 = vlaneseq
    %v5939 = vshrl.u32 %v5938, 7
    %v5940 = vsub.s32 1, %v5939
    %v5941 = vrot.slane %v5861, %v5940
    %v5942 = vlaneseq
    %v5943 = vshrl.u32 %v5942, 7
    %v5944 = vsub.s32 1, %v5943
    %v5945 = vrot.slane %v5865, %v5944
    %v5946 = vlaneseq
    %v5947 = vshrl.u32 %v5946, 7
    %v5948 = vsub.s32 1, %v5947
    %v5949 = vrot.slane %v5869, %v5948
    %v5950 = vlaneseq
    %v5951 = vshrl.u32 %v5950, 7
    %v5952 = vsub.s32 1, %v5951
    %v5953 = vrot.slane %v5873, %v5952
    %v5954 = vlaneseq
    %v5955 = vshrl.u32 %v5954, 7
    %v5956 = vsub.s32 1, %v5955
    %v5957 = vrot.slane %v5877, %v5956
    %v5958 = vlaneseq
    %v5959 = vshrl.u32 %v5958, 7
    %v5960 = vsub.s32 1, %v5959
    %v5961 = vrot.slane %v5881, %v5960
    %v5962 = vlaneseq
    %v5963 = vshrl.u32 %v5962, 7
    %v5964 = vsub.s32 1, %v5963
    %v5965 = vrot.slane %v5885, %v5964
    %v5966 = vadd.f32 %v5806, %v5905
    %v5967 = vadd.f32 %v5807, %v5909
    %v5968 = vadd.f32 %v5808, %v5913
    %v5969 = vadd.f32 %v5809, %v5917
    %v5970 = vadd.f32 %v5810, %v5921
    %v5971 = vadd.f32 %v5811, %v5925
    %v5972 = vadd.f32 %v5812, %v5929
    %v5973 = vadd.f32 %v5813, %v5933
    %v5974 = vadd.f32 %v5814, %v5937
    %v5975 = vadd.f32 %v5815, %v5941
    %v5976 = vadd.f32 %v5816, %v5945
    %v5977 = vadd.f32 %v5817, %v5949
    %v5978 = vadd.f32 %v5818, %v5953
    %v5979 = vadd.f32 %v5819, %v5957
    %v5980 = vadd.f32 %v5820, %v5961
    %v5981 = vadd.f32 %v5821, %v5965
    %v5982 = vmax.f32 %v5966, 0.0
    %v5983 = vmax.f32 %v5967, 0.0
    %v5984 = vmax.f32 %v5968, 0.0
    %v5985 = vmax.f32 %v5969, 0.0
    %v5986 = vmax.f32 %v5970, 0.0
    %v5987 = vmax.f32 %v5971, 0.0
    %v5988 = vmax.f32 %v5972, 0.0
    %v5989 = vmax.f32 %v5973, 0.0
    %v5990 = vmax.f32 %v5974, 0.0
    %v5991 = vmax.f32 %v5975, 0.0
    %v5992 = vmax.f32 %v5976, 0.0
    %v5993 = vmax.f32 %v5977, 0.0
    %v5994 = vmax.f32 %v5978, 0.0
    %v5995 = vmax.f32 %v5979, 0.0
    %v5996 = vmax.f32 %v5980, 0.0
    %v5997 = vmax.f32 %v5981, 0.0
    %v6014 = vcombine.low %v5982, %v5983
    %v6015 = vcombine.low %v5984, %v5985
    %v6017 = vunpack.c.l.s4 1983009808
    %v6018 = vunpack.c.0.s8 %v6017
    %v6019 = vlaneseq
    %v6020 = vshrl.u32 %v6019, 7
    %v6021 = vsub.s32 %v6018, %v6020
    %v6022 = vrot.slane %v6014, %v6021
    %v6024 = vunpack.c.l.s4 1983009808
    %v6025 = vunpack.c.0.s8 %v6024
    %v6026 = vlaneseq
    %v6027 = vshrl.u32 %v6026, 7
    %v6028 = vsub.s32 %v6025, %v6027
    %v6029 = vrot.slane %v6015, %v6028
    %v6030 = vcombine.low %v6022, %v6029
    %v6031 = vcombine.low %v5986, %v5987
    %v6032 = vcombine.low %v5988, %v5989
    %v6034 = vunpack.c.l.s4 1983009808
    %v6035 = vunpack.c.0.s8 %v6034
    %v6036 = vlaneseq
    %v6037 = vshrl.u32 %v6036, 7
    %v6038 = vsub.s32 %v6035, %v6037
    %v6039 = vrot.slane %v6031, %v6038
    %v6041 = vunpack.c.l.s4 1983009808
    %v6042 = vunpack.c.0.s8 %v6041
    %v6043 = vlaneseq
    %v6044 = vshrl.u32 %v6043, 7
    %v6045 = vsub.s32 %v6042, %v6044
    %v6046 = vrot.slane %v6032, %v6045
    %v6047 = vcombine.low %v6039, %v6046
    %v6048 = vcombine.low %v5990, %v5991
    %v6049 = vcombine.low %v5992, %v5993
    %v6051 = vunpack.c.l.s4 1983009808
    %v6052 = vunpack.c.0.s8 %v6051
    %v6053 = vlaneseq
    %v6054 = vshrl.u32 %v6053, 7
    %v6055 = vsub.s32 %v6052, %v6054
    %v6056 = vrot.slane %v6048, %v6055
    %v6058 = vunpack.c.l.s4 1983009808
    %v6059 = vunpack.c.0.s8 %v6058
    %v6060 = vlaneseq
    %v6061 = vshrl.u32 %v6060, 7
    %v6062 = vsub.s32 %v6059, %v6061
    %v6063 = vrot.slane %v6049, %v6062
    %v6064 = vcombine.low %v6056, %v6063
    %v6065 = vcombine.low %v5994, %v5995
    %v6066 = vcombine.low %v5996, %v5997
    %v6068 = vunpack.c.l.s4 1983009808
    %v6069 = vunpack.c.0.s8 %v6068
    %v6070 = vlaneseq
    %v6071 = vshrl.u32 %v6070, 7
    %v6072 = vsub.s32 %v6069, %v6071
    %v6073 = vrot.slane %v6065, %v6072
    %v6075 = vunpack.c.l.s4 1983009808
    %v6076 = vunpack.c.0.s8 %v6075
    %v6077 = vlaneseq
    %v6078 = vshrl.u32 %v6077, 7
    %v6079 = vsub.s32 %v6076, %v6078
    %v6080 = vrot.slane %v6066, %v6079
    %v6081 = vcombine.low %v6073, %v6080
    %6086 = vst [vmem:[%s7] sm:$0xff] %v6030
    %6087 = vst [vmem:[%s7 + $0x8] sm:$0xff] %v6047
    %6088 = vst [vmem:[%s7 + $0x10] sm:$0xff] %v6064
    %6089 = vst [vmem:[%s7 + $0x18] sm:$0xff] %v6081
    %v6090 = vld [vmem:[#allocation9] sm:$0xff]
    %v6091 = vld [vmem:[#allocation9 + $0x8] sm:$0xff]
    %v6092 = vld [vmem:[#allocation9 + $0x10] sm:$0xff]
    %v6093 = vld [vmem:[#allocation9 + $0x18] sm:$0xff]
    %v6094 = vld [vmem:[#allocation9 + $0x20] sm:$0xff]
    %v6095 = vld [vmem:[#allocation9 + $0x28] sm:$0xff]
    %v6096 = vld [vmem:[#allocation9 + $0x30] sm:$0xff]
    %v6097 = vld [vmem:[#allocation9 + $0x38] sm:$0xff]
    %v6098 = vld [vmem:[#allocation9 + $0x40] sm:$0xff]
    %v6099 = vld [vmem:[#allocation9 + $0x48] sm:$0xff]
    %v6100 = vld [vmem:[#allocation9 + $0x50] sm:$0xff]
    %v6101 = vld [vmem:[#allocation9 + $0x58] sm:$0xff]
    %v6102 = vld [vmem:[#allocation9 + $0x60] sm:$0xff]
    %v6103 = vld [vmem:[#allocation9 + $0x68] sm:$0xff]
    %v6104 = vld [vmem:[#allocation9 + $0x70] sm:$0xff]
    %v6105 = vld [vmem:[#allocation9 + $0x78] sm:$0xff]
    %v6106 = vld [vmem:[#allocation9 + $0x80] sm:$0xff]
    %v6107 = vld [vmem:[#allocation9 + $0x88] sm:$0xff]
    %v6108 = vld [vmem:[#allocation9 + $0x90] sm:$0xff]
    %v6109 = vld [vmem:[#allocation9 + $0x98] sm:$0xff]
    %v6110 = vld [vmem:[#allocation9 + $0xa0] sm:$0xff]
    %v6111 = vld [vmem:[#allocation9 + $0xa8] sm:$0xff]
    %v6112 = vld [vmem:[#allocation9 + $0xb0] sm:$0xff]
    %v6113 = vld [vmem:[#allocation9 + $0xb8] sm:$0xff]
    %v6114 = vld [vmem:[#allocation9 + $0xc0] sm:$0xff]
    %v6115 = vld [vmem:[#allocation9 + $0xc8] sm:$0xff]
    %v6116 = vld [vmem:[#allocation9 + $0xd0] sm:$0xff]
    %v6117 = vld [vmem:[#allocation9 + $0xd8] sm:$0xff]
    %v6118 = vld [vmem:[#allocation9 + $0xe0] sm:$0xff]
    %v6119 = vld [vmem:[#allocation9 + $0xe8] sm:$0xff]
    %v6120 = vld [vmem:[#allocation9 + $0xf0] sm:$0xff]
    %v6121 = vld [vmem:[#allocation9 + $0xf8] sm:$0xff]
    %v6122 = vld [vmem:[#allocation9 + $0x100] sm:$0xff]
    %v6123 = vld [vmem:[#allocation9 + $0x108] sm:$0xff]
    %v6124 = vld [vmem:[#allocation9 + $0x110] sm:$0xff]
    %v6125 = vld [vmem:[#allocation9 + $0x118] sm:$0xff]
    %v6126 = vld [vmem:[#allocation9 + $0x120] sm:$0xff]
    %v6127 = vld [vmem:[#allocation9 + $0x128] sm:$0xff]
    %v6128 = vld [vmem:[#allocation9 + $0x130] sm:$0xff]
    %v6129 = vld [vmem:[#allocation9 + $0x138] sm:$0xff]
    %v6130 = vld [vmem:[#allocation9 + $0x140] sm:$0xff]
    %v6131 = vld [vmem:[#allocation9 + $0x148] sm:$0xff]
    %v6132 = vld [vmem:[#allocation9 + $0x150] sm:$0xff]
    %v6133 = vld [vmem:[#allocation9 + $0x158] sm:$0xff]
    %v6134 = vld [vmem:[#allocation9 + $0x160] sm:$0xff]
    %v6135 = vld [vmem:[#allocation9 + $0x168] sm:$0xff]
    %v6136 = vld [vmem:[#allocation9 + $0x170] sm:$0xff]
    %v6137 = vld [vmem:[#allocation9 + $0x178] sm:$0xff]
    %v6138 = vld [vmem:[#allocation9 + $0x180] sm:$0xff]
    %v6139 = vld [vmem:[#allocation9 + $0x188] sm:$0xff]
    %v6140 = vld [vmem:[#allocation9 + $0x190] sm:$0xff]
    %v6141 = vld [vmem:[#allocation9 + $0x198] sm:$0xff]
    %v6142 = vld [vmem:[#allocation9 + $0x1a0] sm:$0xff]
    %v6143 = vld [vmem:[#allocation9 + $0x1a8] sm:$0xff]
    %v6144 = vld [vmem:[#allocation9 + $0x1b0] sm:$0xff]
    %v6145 = vld [vmem:[#allocation9 + $0x1b8] sm:$0xff]
    %v6146 = vld [vmem:[#allocation9 + $0x1c0] sm:$0xff]
    %v6147 = vld [vmem:[#allocation9 + $0x1c8] sm:$0xff]
    %v6148 = vld [vmem:[#allocation9 + $0x1d0] sm:$0xff]
    %v6149 = vld [vmem:[#allocation9 + $0x1d8] sm:$0xff]
    %v6150 = vld [vmem:[#allocation9 + $0x1e0] sm:$0xff]
    %v6151 = vld [vmem:[#allocation9 + $0x1e8] sm:$0xff]
    %v6152 = vld [vmem:[#allocation9 + $0x1f0] sm:$0xff]
    %v6153 = vld [vmem:[#allocation9 + $0x1f8] sm:$0xff]
    %v6154 = vld [vmem:[#allocation10] sm:$0x3]
    %v6156 = vlaneseq
    %v6157 = vshrl.u32 %v6156, 7
    %v6158 = vsub.s32 0, %v6157
    %v6159 = vrot.slane %v6154, %v6158
    %v6160 = vlaneseq
    %v6161 = vshrl.u32 %v6160, 7
    %v6162 = vsub.s32 1, %v6161
    %v6163 = vrot.slane %v6154, %v6162
    %6166 = vmatprep.subr.mxu0 %v6121
    %6167 = vmatpush1.xpose.msra.mxu0 %v6120
    %6168 = vmatprep.subr.mxu0 %v6119
    %6169 = vmatpush1.xpose.msra.mxu0 %v6118
    %6170 = vmatprep.subr.mxu0 %v6117
    %6171 = vmatpush1.xpose.msra.mxu0 %v6116
    %6172 = vmatprep.subr.mxu0 %v6115
    %6173 = vmatpush1.xpose.msra.mxu0 %v6114
    %6174 = vmatprep.subr.mxu0 %v6113
    %6175 = vmatpush1.xpose.msra.mxu0 %v6112
    %6176 = vmatprep.subr.mxu0 %v6111
    %6177 = vmatpush1.xpose.msra.mxu0 %v6110
    %6178 = vmatprep.subr.mxu0 %v6109
    %6179 = vmatpush1.xpose.msra.mxu0 %v6108
    %6180 = vmatprep.subr.mxu0 %v6107
    %6181 = vmatpush1.xpose.msra.mxu0 %v6106
    %6182 = vmatprep.subr.mxu0 %v6105
    %6183 = vmatpush1.xpose.msra.mxu0 %v6104
    %6184 = vmatprep.subr.mxu0 %v6103
    %6185 = vmatpush1.xpose.msra.mxu0 %v6102
    %6186 = vmatprep.subr.mxu0 %v6101
    %6187 = vmatpush1.xpose.msra.mxu0 %v6100
    %6188 = vmatprep.subr.mxu0 %v6099
    %6189 = vmatpush1.xpose.msra.mxu0 %v6098
    %6190 = vmatprep.subr.mxu0 %v6097
    %6191 = vmatpush1.xpose.msra.mxu0 %v6096
    %6192 = vmatprep.subr.mxu0 %v6095
    %6193 = vmatpush1.xpose.msra.mxu0 %v6094
    %6194 = vmatprep.subr.mxu0 %v6093
    %6195 = vmatpush1.xpose.msra.mxu0 %v6092
    %6196 = vmatprep.subr.mxu0 %v6091
    %6197 = vmatpush1.xpose.msra.mxu0 %v6090
    %6198 = vmatprep.subr.mxu0 %v6153
    %6199 = vmatpush2.xpose.msra.mxu0 %v6152
    %6200 = vmatprep.subr.mxu0 %v6151
    %6201 = vmatpush2.xpose.msra.mxu0 %v6150
    %6202 = vmatprep.subr.mxu0 %v6149
    %6203 = vmatpush2.xpose.msra.mxu0 %v6148
    %6204 = vmatprep.subr.mxu0 %v6147
    %6205 = vmatpush2.xpose.msra.mxu0 %v6146
    %6206 = vmatprep.subr.mxu0 %v6145
    %6207 = vmatpush2.xpose.msra.mxu0 %v6144
    %6208 = vmatprep.subr.mxu0 %v6143
    %6209 = vmatpush2.xpose.msra.mxu0 %v6142
    %6210 = vmatprep.subr.mxu0 %v6141
    %6211 = vmatpush2.xpose.msra.mxu0 %v6140
    %6212 = vmatprep.subr.mxu0 %v6139
    %6213 = vmatpush2.xpose.msra.mxu0 %v6138
    %6214 = vmatprep.subr.mxu0 %v6137
    %6215 = vmatpush2.xpose.msra.mxu0 %v6136
    %6216 = vmatprep.subr.mxu0 %v6135
    %6217 = vmatpush2.xpose.msra.mxu0 %v6134
    %6218 = vmatprep.subr.mxu0 %v6133
    %6219 = vmatpush2.xpose.msra.mxu0 %v6132
    %6220 = vmatprep.subr.mxu0 %v6131
    %6221 = vmatpush2.xpose.msra.mxu0 %v6130
    %6222 = vmatprep.subr.mxu0 %v6129
    %6223 = vmatpush2.xpose.msra.mxu0 %v6128
    %6224 = vmatprep.subr.mxu0 %v6127
    %6225 = vmatpush2.xpose.msra.mxu0 %v6126
    %6226 = vmatprep.subr.mxu0 %v6125
    %6227 = vmatpush2.xpose.msra.mxu0 %v6124
    %6228 = vmatprep.subr.mxu0 %v6123
    %6229 = vmatpush2.xpose.msra.mxu0 %v6122
    %6230 = vmatprep.mubr.f32.mxu0 %v369
    %6231 = vmatmul.mubr.f32.gmra.mxu0 %v368
    %v6232 = vpop.f32.mrf.mxu0
    %v6233 = vadd.f32 %v6159, %v6232
    %v6234 = vpop.f32.mrf.mxu0
    %v6235 = vadd.f32 %v6163, %v6234
    %6236 = vdwg.mxu0
    %v6239 = vcombine.low %v6233, %v6235
    %v6241 = vunpack.c.l.s4 1983009808
    %v6242 = vunpack.c.0.s8 %v6241
    %v6243 = vlaneseq
    %v6244 = vshrl.u32 %v6243, 7
    %v6245 = vsub.s32 %v6242, %v6244
    %v6246 = vrot.slane %v6239, %v6245
    %6248 = vst [vmem:[%s8] sm:$0xf] %v6246
    // Predicated region
    $region54: #{text_encoder_fc_forward.2} parent=1 // pred_check
      _
    $region55: #{text_encoder_fc_forward.2} parent=1 // pred_check_branch
      %6250 = sbr.rel (0) target = $region57
    $region56: #{text_encoder_fc_forward.2} parent=1 // pred_region
      _
    $region57: #{text_encoder_fc_forward.2} parent=1 // pred_fallthru
      _
    // Predicated region
    $region58: #{text_encoder_fc_forward.2} parent=1 // pred_check
      _
    $region59: #{text_encoder_fc_forward.2} parent=1 // pred_check_branch
      %6252 = sbr.rel (0) target = $region61
    $region60: #{text_encoder_fc_forward.2} parent=1 // pred_region
      _
    $region61: #{text_encoder_fc_forward.2} parent=1 // pred_fallthru
      _
    // Predicated region
    $region62: #{text_encoder_fc_forward.2} parent=1 // pred_check
      _
    $region63: #{text_encoder_fc_forward.2} parent=1 // pred_check_branch
      %6254 = sbr.rel (0) target = $region65
    $region64: #{text_encoder_fc_forward.2} parent=1 // pred_region
      _
    $region65: #{text_encoder_fc_forward.2} parent=1 // pred_fallthru
      _
    // Predicated region
    $region66: #{text_encoder_fc_forward.2} parent=1 // pred_check
      _
    $region67: #{text_encoder_fc_forward.2} parent=1 // pred_check_branch
      %6256 = sbr.rel (0) target = $region69
    $region68: #{text_encoder_fc_forward.2} parent=1 // pred_region
      _
    $region69: #{text_encoder_fc_forward.2} parent=1 // pred_fallthru
      _
    %6257 = vsyncpa [#allocation3], 1
    %6258 = vsyncpa [#allocation5], 1
    %6259 = vsyncpa [#allocation8], 1
    %6260 = vsyncpa [#allocation11], 1

// kernel: text_encoder_fc_forward.3
$region0: #{text_encoder_fc_forward.3}
  #allocation0 [shape = 'u32[]', space=smem, size = 0x4, offset = 0x4, fixed_abs, tag = 'smem constant byte address 0x4 - core index']
  #allocation1 [shape = 'u32[144,128]{1,0:T(1,128)}', space=vmem, size = 0x12000, scoped, tag = 'internal scratch']
  %s0 = inlined_call_operand.vmem [shape: f32[2,2048], index: 0, kind: input, shape index: {}]
  %s1 = inlined_call_operand.hbm [shape: f32[6144,2048], index: 1, kind: input, shape index: {}]
  %s2 = inlined_call_operand.hbm [shape: f32[1,6144], index: 2, kind: input, shape index: {}]
  %s3 = inlined_call_operand.vmem [shape: f32[2,6144], index: 3, kind: output, shape index: {}]
  %s4 = sld [smem:[#allocation0]]
  $region53: #{text_encoder_fc_forward.3} parent=0
    _
  %s6 = ssub.s32 1, %s4
  %s7 = scalar_select 0, %s6, %s4
  $region1: #{text_encoder_fc_forward.3} parent=0
    #allocation2 [shape = 'u8[8388608]{0}', space=vmem, size = 0x800000, scoped, tag = 'input window, operand 1']
    #allocation3 [shape = 's32[2]{0}', space=sflag, size = 0x8, scoped, tag = 'scoped memory for text_encoder_fc_forward.3']
    #allocation4 [shape = 'u8[4096]{0}', space=vmem, size = 0x1000, scoped, tag = 'input window, operand 2']
    #allocation5 [shape = 's32[2]{0}', space=sflag, size = 0x8, scoped, tag = 'scoped memory for text_encoder_fc_forward.3']
    %8 = vsyncpa [#allocation3], 0
    %s9 = scalar_lea.sflag [#allocation3], 1
    %10 = vsyncpa %s9, 0
    %11 = vsyncpa [#allocation5], 0
    %s12 = scalar_lea.sflag [#allocation5], 1
    %13 = vsyncpa %s12, 0
    loop: start=0, step=1, limit=14
    $region2: #{text_encoder_fc_forward.3} parent=1 // loop_pre_header
      _
    $region3: #{text_encoder_fc_forward.3} parent=1 // loop_header
      %s15 = sphi 0, %s19
      %p16 = scmp.ge.s32.totalorder %s15, 14
      %s23 = sphi 0, %s23
      %s25 = sphi 0, %s23
      %s26 = sphi 0, %s25
      %s40 = sphi 0, %s26
      %s46 = sphi 0, %s48
      %s49 = sphi 0, %s46
      %s50 = sphi 0, %s49
      %s66 = sphi 0, %s50
      %s72 = sphi 0, %s74
      %s75 = sphi 0, %s72
      %s76 = sphi 0, %s75
      %s92 = sphi 0, %s76
      %s98 = sphi 0, %s100
      %s101 = sphi 0, %s98
      %s102 = sphi 0, %s101
      %s118 = sphi 0, %s102
    $region4: #{text_encoder_fc_forward.3} parent=1 // loop_header_branch
      %18 = sbr.rel (%p16) target = $region8
    $region5: #{text_encoder_fc_forward.3} parent=1 // loop_body
      %s20 = ssub.s32 %s15, 1
      %s21 = ssub.s32 %s15, 2
      %s22 = sadd.s32 %s15, 1
      %s24 = sadd.s32 %s23, 1
      %p27 = scmp.eq.s32.totalorder %s15, 11
      %p28 = scmp.ne.s32.totalorder %s23, %s25
      %p29 = scmp.eq.s32.totalorder %s15, 0
      %p30 = por %p28, %p29
      %p31 = scmp.ne.s32.totalorder %s23, %s25
      %p32 = scmp.eq.s32.totalorder %s20, 11
      %p33 = por %p31, %p32
      %p34 = scmp.ne.s32.totalorder %s25, %s26
      %p35 = scmp.eq.s32.totalorder %s20, 0
      %p36 = por %p34, %p35
      %p37 = scmp.ne.s32.totalorder %s25, %s26
      %p38 = scmp.eq.s32.totalorder %s21, 11
      %p39 = por %p37, %p38
      %p41 = scmp.ne.s32.totalorder %s26, %s40
      %p42 = scmp.eq.s32.totalorder %s21, 0
      %p43 = por %p41, %p42
      %s44 = ssub.s32 %s15, %s22
      %p45 = scmp.eq.s32.totalorder %s44, 0
      %s47 = sadd.s32 %s46, 1
      %s48 = scalar_select %p45, %s46, %s47
      %p51 = pneg %p45
      %p52 = scmp.eq.s32.totalorder %s15, 11
      %p53 = por %p51, %p52
      %p54 = scmp.ne.s32.totalorder %s46, %s49
      %p55 = scmp.eq.s32.totalorder %s15, 0
      %p56 = por %p54, %p55
      %p57 = scmp.ne.s32.totalorder %s46, %s49
      %p58 = scmp.eq.s32.totalorder %s20, 11
      %p59 = por %p57, %p58
      %p60 = scmp.ne.s32.totalorder %s49, %s50
      %p61 = scmp.eq.s32.totalorder %s20, 0
      %p62 = por %p60, %p61
      %p63 = scmp.ne.s32.totalorder %s49, %s50
      %p64 = scmp.eq.s32.totalorder %s21, 11
      %p65 = por %p63, %p64
      %p67 = scmp.ne.s32.totalorder %s50, %s66
      %p68 = scmp.eq.s32.totalorder %s21, 0
      %p69 = por %p67, %p68
      %s70 = ssub.s32 %s15, %s22
      %p71 = scmp.eq.s32.totalorder %s70, 0
      %s73 = sadd.s32 %s72, 1
      %s74 = scalar_select %p71, %s72, %s73
      %p77 = pneg %p71
      %p78 = scmp.eq.s32.totalorder %s15, 11
      %p79 = por %p77, %p78
      %p80 = scmp.ne.s32.totalorder %s72, %s75
      %p81 = scmp.eq.s32.totalorder %s15, 0
      %p82 = por %p80, %p81
      %p83 = scmp.ne.s32.totalorder %s72, %s75
      %p84 = scmp.eq.s32.totalorder %s20, 11
      %p85 = por %p83, %p84
      %p86 = scmp.ne.s32.totalorder %s75, %s76
      %p87 = scmp.eq.s32.totalorder %s20, 0
      %p88 = por %p86, %p87
      %p89 = scmp.ne.s32.totalorder %s75, %s76
      %p90 = scmp.eq.s32.totalorder %s21, 11
      %p91 = por %p89, %p90
      %p93 = scmp.ne.s32.totalorder %s76, %s92
      %p94 = scmp.eq.s32.totalorder %s21, 0
      %p95 = por %p93, %p94
      %s96 = ssub.s32 %s15, %s22
      %p97 = scmp.eq.s32.totalorder %s96, 0
      %s99 = sadd.s32 %s98, 1
      %s100 = scalar_select %p97, %s98, %s99
      %p103 = pneg %p97
      %p104 = scmp.eq.s32.totalorder %s15, 11
      %p105 = por %p103, %p104
      %p106 = scmp.ne.s32.totalorder %s98, %s101
      %p107 = scmp.eq.s32.totalorder %s15, 0
      %p108 = por %p106, %p107
      %p109 = scmp.ne.s32.totalorder %s98, %s101
      %p110 = scmp.eq.s32.totalorder %s20, 11
      %p111 = por %p109, %p110
      %p112 = scmp.ne.s32.totalorder %s101, %s102
      %p113 = scmp.eq.s32.totalorder %s20, 0
      %p114 = por %p112, %p113
      %p115 = scmp.ne.s32.totalorder %s101, %s102
      %p116 = scmp.eq.s32.totalorder %s21, 11
      %p117 = por %p115, %p116
      %p119 = scmp.ne.s32.totalorder %s102, %s118
      %p120 = scmp.eq.s32.totalorder %s21, 0
      %p121 = por %p119, %p120
      %p122 = scmp.le.s32.totalorder 1, %s15
      %p123 = scmp.lt.s32.totalorder %s15, 13
      %p124 = pnand %p122, %p123
      %p125 = pneg %p124
      // Predicated region
      $region9: #{text_encoder_fc_forward.3} parent=5 // pred_check
        _
      $region10: #{text_encoder_fc_forward.3} parent=5 // pred_check_branch
        %127 = sbr.rel (%p124) target = $region12
      $region11: #{text_encoder_fc_forward.3} parent=5 // pred_region
        %s128 = ssub.s32 %s15, 1
        // Predicated region
        $region13: #{text_encoder_fc_forward.3} parent=11 // pred_check
          %p129 = pneg %p36
        $region14: #{text_encoder_fc_forward.3} parent=11 // pred_check_branch
          %131 = sbr.rel (%p129) target = $region16
        $region15: #{text_encoder_fc_forward.3} parent=11 // pred_region
          _
        $region16: #{text_encoder_fc_forward.3} parent=11 // pred_fallthru
          _
      $region12: #{text_encoder_fc_forward.3} parent=5 // pred_fallthru
        _
      %p132 = scmp.lt.s32.totalorder %s15, 12
      // Predicated region
      $region17: #{text_encoder_fc_forward.3} parent=5 // pred_check
        %p133 = pneg %p132
      $region18: #{text_encoder_fc_forward.3} parent=5 // pred_check_branch
        %135 = sbr.rel (%p133) target = $region20
      $region19: #{text_encoder_fc_forward.3} parent=5 // pred_region
        // Predicated region
        $region21: #{text_encoder_fc_forward.3} parent=19 // pred_check
          %p136 = pneg %p56
        $region22: #{text_encoder_fc_forward.3} parent=19 // pred_check_branch
          %138 = sbr.rel (%p136) target = $region24
        $region23: #{text_encoder_fc_forward.3} parent=19 // pred_region
          %s139 = sand.u32 %s46, 1
          %s140 = scalar_lea.sflag [#allocation3], %s139
          %s141 = sand.u32 %s46, 1
          %s142 = smul.addr %s141, 8192
          %s143 = scalar_lea.vmem [#allocation2], %s142
          %s144 = smul.u32 64, %s15
          %s146 = ssub.s32 131072, 131072
          %147 = vsyncadd %s140, %s146
          %s148 = smul.addr %s144, 16
          %s149 = smul.addr %s148, 128
          %s150 = scalar_lea.hbm %s1, %s149
          %s151 = sshll.u32 %s143, 4
          %s152 = int_to_ptr.vmem [resolvable:$true] %s151
          %157 = dma.hbm_to_vmem [thread:$0]  %s150, 131072, %s152, %s140, 2048, 2048, 128
        $region24: #{text_encoder_fc_forward.3} parent=19 // pred_fallthru
          _
        // Predicated region
        $region25: #{text_encoder_fc_forward.3} parent=19 // pred_check
          %p158 = pneg %p82
        $region26: #{text_encoder_fc_forward.3} parent=19 // pred_check_branch
          %160 = sbr.rel (%p158) target = $region28
        $region27: #{text_encoder_fc_forward.3} parent=19 // pred_region
          %s161 = sand.u32 %s72, 1
          %s162 = scalar_lea.sflag [#allocation5], %s161
          %s163 = sand.u32 %s72, 1
          %s164 = smul.addr %s163, 4
          %s165 = scalar_lea.vmem [#allocation4], %s164
          %s166 = smul.u32 4, %s15
          %s168 = ssub.s32 64, 64
          %169 = vsyncadd %s162, %s168
          %s170 = smul.addr %s166, 16
          %s171 = scalar_lea.hbm %s2, %s170
          %s173 = sshll.u32 %s165, 4
          %s174 = int_to_ptr.vmem [resolvable:$true] %s173
          %176 = dma.hbm_to_vmem [thread:$0]  %s171, 64, %s174, %s162
        $region28: #{text_encoder_fc_forward.3} parent=19 // pred_fallthru
          _
      $region20: #{text_encoder_fc_forward.3} parent=5 // pred_fallthru
        _
      %p177 = scmp.le.s32.totalorder 1, %s15
      %p178 = scmp.lt.s32.totalorder %s15, 13
      %p179 = pnand %p177, %p178
      %p180 = pneg %p179
      // Predicated region
      $region29: #{text_encoder_fc_forward.3} parent=5 // pred_check
        _
      $region30: #{text_encoder_fc_forward.3} parent=5 // pred_check_branch
        %182 = sbr.rel (%p179) target = $region32
      $region31: #{text_encoder_fc_forward.3} parent=5 // pred_region
        %s183 = ssub.s32 %s15, 1
        %s184 = sand.u32 %s49, 1
        %s185 = scalar_lea.sflag [#allocation3], %s184
        %s186 = sand.u32 %s49, 1
        %s187 = smul.addr %s186, 8192
        %s188 = scalar_lea.vmem [#allocation2], %s187
        // Predicated region
        $region33: #{text_encoder_fc_forward.3} parent=31 // pred_check
          %p189 = pneg %p62
        $region34: #{text_encoder_fc_forward.3} parent=31 // pred_check_branch
          %191 = sbr.rel (%p189) target = $region36
        $region35: #{text_encoder_fc_forward.3} parent=31 // pred_region
          %192 = dma.done %s185, 131072
        $region36: #{text_encoder_fc_forward.3} parent=31 // pred_fallthru
          _
        %s193 = sand.u32 %s75, 1
        %s194 = scalar_lea.sflag [#allocation5], %s193
        %s195 = sand.u32 %s75, 1
        %s196 = smul.addr %s195, 4
        %s197 = scalar_lea.vmem [#allocation4], %s196
        // Predicated region
        $region37: #{text_encoder_fc_forward.3} parent=31 // pred_check
          %p198 = pneg %p88
        $region38: #{text_encoder_fc_forward.3} parent=31 // pred_check_branch
          %200 = sbr.rel (%p198) target = $region40
        $region39: #{text_encoder_fc_forward.3} parent=31 // pred_region
          %201 = dma.done %s194, 64
        $region40: #{text_encoder_fc_forward.3} parent=31 // pred_fallthru
          _
        %p202 = pneg %p36
        %p203 = pneg %p33
        %s204 = sand.u32 %s49, 1
        %s205 = scalar_lea.sflag [#allocation3], %s204
        %s206 = sand.u32 %s49, 1
        %s207 = smul.addr %s206, 8192
        %s208 = scalar_lea.vmem [#allocation2], %s207
        %p209 = pneg %p62
        %p210 = pneg %p59
        %s211 = sand.u32 %s75, 1
        %s212 = scalar_lea.sflag [#allocation5], %s211
        %s213 = sand.u32 %s75, 1
        %s214 = smul.addr %s213, 4
        %s215 = scalar_lea.vmem [#allocation4], %s214
        %p216 = pneg %p88
        %p217 = pneg %p85
        %p218 = pneg %p114
        %p219 = pneg %p111
        %s220 = smul.u32 4, %s20
        %p221 = scmp.lt.s32.totalorder %s220, 47
        %s222 = scalar_select %p221, %s220, 47
        %s223 = smul.addr %s222, 2
        %s224 = scalar_lea.vmem %s3, %s223
        %s225 = smul.u32 64, %s20
        %s226 = smul.u32 4, %s20
        %s227 = smul.u32 4, %s20
        %p228 = scmp.lt.s32.totalorder %s227, 47
        %s229 = scalar_select %p228, %s227, 47
        %s230 = smul.addr %s229, 2
        %s231 = scalar_lea.vmem %s3, %s230
        %s232 = smul.u32 4, %s20
        %v233 = vld [vmem:[%s0] sm:$0xff]
        %v234 = vld [vmem:[%s0 + $0x8] sm:$0xff]
        %v235 = vld [vmem:[%s0 + $0x10] sm:$0xff]
        %v236 = vld [vmem:[%s0 + $0x18] sm:$0xff]
        %v237 = vld [vmem:[%s188] sm:$0xff]
        %v238 = vld [vmem:[%s188 + $0x8] sm:$0xff]
        %v239 = vld [vmem:[%s188 + $0x10] sm:$0xff]
        %v240 = vld [vmem:[%s188 + $0x18] sm:$0xff]
        %v241 = vld [vmem:[%s188 + $0x20] sm:$0xff]
        %v242 = vld [vmem:[%s188 + $0x28] sm:$0xff]
        %v243 = vld [vmem:[%s188 + $0x30] sm:$0xff]
        %v244 = vld [vmem:[%s188 + $0x38] sm:$0xff]
        %v245 = vld [vmem:[%s188 + $0x40] sm:$0xff]
        %v246 = vld [vmem:[%s188 + $0x48] sm:$0xff]
        %v247 = vld [vmem:[%s188 + $0x50] sm:$0xff]
        %v248 = vld [vmem:[%s188 + $0x58] sm:$0xff]
        %v249 = vld [vmem:[%s188 + $0x60] sm:$0xff]
        %v250 = vld [vmem:[%s188 + $0x68] sm:$0xff]
        %v251 = vld [vmem:[%s188 + $0x70] sm:$0xff]
        %v252 = vld [vmem:[%s188 + $0x78] sm:$0xff]
        %v253 = vld [vmem:[%s188 + $0x80] sm:$0xff]
        %v254 = vld [vmem:[%s188 + $0x88] sm:$0xff]
        %v255 = vld [vmem:[%s188 + $0x90] sm:$0xff]
        %v256 = vld [vmem:[%s188 + $0x98] sm:$0xff]
        %v257 = vld [vmem:[%s188 + $0xa0] sm:$0xff]
        %v258 = vld [vmem:[%s188 + $0xa8] sm:$0xff]
        %v259 = vld [vmem:[%s188 + $0xb0] sm:$0xff]
        %v260 = vld [vmem:[%s188 + $0xb8] sm:$0xff]
        %v261 = vld [vmem:[%s188 + $0xc0] sm:$0xff]
        %v262 = vld [vmem:[%s188 + $0xc8] sm:$0xff]
        %v263 = vld [vmem:[%s188 + $0xd0] sm:$0xff]
        %v264 = vld [vmem:[%s188 + $0xd8] sm:$0xff]
        %v265 = vld [vmem:[%s188 + $0xe0] sm:$0xff]
        %v266 = vld [vmem:[%s188 + $0xe8] sm:$0xff]
        %v267 = vld [vmem:[%s188 + $0xf0] sm:$0xff]
        %v268 = vld [vmem:[%s188 + $0xf8] sm:$0xff]
        %v269 = vld [vmem:[%s188 + $0x100] sm:$0xff]
        %v270 = vld [vmem:[%s188 + $0x108] sm:$0xff]
        %v271 = vld [vmem:[%s188 + $0x110] sm:$0xff]
        %v272 = vld [vmem:[%s188 + $0x118] sm:$0xff]
        %v273 = vld [vmem:[%s188 + $0x120] sm:$0xff]
        %v274 = vld [vmem:[%s188 + $0x128] sm:$0xff]
        %v275 = vld [vmem:[%s188 + $0x130] sm:$0xff]
        %v276 = vld [vmem:[%s188 + $0x138] sm:$0xff]
        %v277 = vld [vmem:[%s188 + $0x140] sm:$0xff]
        %v278 = vld [vmem:[%s188 + $0x148] sm:$0xff]
        %v279 = vld [vmem:[%s188 + $0x150] sm:$0xff]
        %v280 = vld [vmem:[%s188 + $0x158] sm:$0xff]
        %v281 = vld [vmem:[%s188 + $0x160] sm:$0xff]
        %v282 = vld [vmem:[%s188 + $0x168] sm:$0xff]
        %v283 = vld [vmem:[%s188 + $0x170] sm:$0xff]
        %v284 = vld [vmem:[%s188 + $0x178] sm:$0xff]
        %v285 = vld [vmem:[%s188 + $0x180] sm:$0xff]
        %v286 = vld [vmem:[%s188 + $0x188] sm:$0xff]
        %v287 = vld [vmem:[%s188 + $0x190] sm:$0xff]
        %v288 = vld [vmem:[%s188 + $0x198] sm:$0xff]
        %v289 = vld [vmem:[%s188 + $0x1a0] sm:$0xff]
        %v290 = vld [vmem:[%s188 + $0x1a8] sm:$0xff]
        %v291 = vld [vmem:[%s188 + $0x1b0] sm:$0xff]
        %v292 = vld [vmem:[%s188 + $0x1b8] sm:$0xff]
        %v293 = vld [vmem:[%s188 + $0x1c0] sm:$0xff]
        %v294 = vld [vmem:[%s188 + $0x1c8] sm:$0xff]
        %v295 = vld [vmem:[%s188 + $0x1d0] sm:$0xff]
        %v296 = vld [vmem:[%s188 + $0x1d8] sm:$0xff]
        %v297 = vld [vmem:[%s188 + $0x1e0] sm:$0xff]
        %v298 = vld [vmem:[%s188 + $0x1e8] sm:$0xff]
        %v299 = vld [vmem:[%s188 + $0x1f0] sm:$0xff]
        %v300 = vld [vmem:[%s188 + $0x1f8] sm:$0xff]
        %v301 = vld [vmem:[%s188 + $0x200] sm:$0xff]
        %v302 = vld [vmem:[%s188 + $0x208] sm:$0xff]
        %v303 = vld [vmem:[%s188 + $0x210] sm:$0xff]
        %v304 = vld [vmem:[%s188 + $0x218] sm:$0xff]
        %v305 = vld [vmem:[%s188 + $0x220] sm:$0xff]
        %v306 = vld [vmem:[%s188 + $0x228] sm:$0xff]
        %v307 = vld [vmem:[%s188 + $0x230] sm:$0xff]
        %v308 = vld [vmem:[%s188 + $0x238] sm:$0xff]
        %v309 = vld [vmem:[%s188 + $0x240] sm:$0xff]
        %v310 = vld [vmem:[%s188 + $0x248] sm:$0xff]
        %v311 = vld [vmem:[%s188 + $0x250] sm:$0xff]
        %v312 = vld [vmem:[%s188 + $0x258] sm:$0xff]
        %v313 = vld [vmem:[%s188 + $0x260] sm:$0xff]
        %v314 = vld [vmem:[%s188 + $0x268] sm:$0xff]
        %v315 = vld [vmem:[%s188 + $0x270] sm:$0xff]
        %v316 = vld [vmem:[%s188 + $0x278] sm:$0xff]
        %v317 = vld [vmem:[%s188 + $0x280] sm:$0xff]
        %v318 = vld [vmem:[%s188 + $0x288] sm:$0xff]
        %v319 = vld [vmem:[%s188 + $0x290] sm:$0xff]
        %v320 = vld [vmem:[%s188 + $0x298] sm:$0xff]
        %v321 = vld [vmem:[%s188 + $0x2a0] sm:$0xff]
        %v322 = vld [vmem:[%s188 + $0x2a8] sm:$0xff]
        %v323 = vld [vmem:[%s188 + $0x2b0] sm:$0xff]
        %v324 = vld [vmem:[%s188 + $0x2b8] sm:$0xff]
        %v325 = vld [vmem:[%s188 + $0x2c0] sm:$0xff]
        %v326 = vld [vmem:[%s188 + $0x2c8] sm:$0xff]
        %v327 = vld [vmem:[%s188 + $0x2d0] sm:$0xff]
        %v328 = vld [vmem:[%s188 + $0x2d8] sm:$0xff]
        %v329 = vld [vmem:[%s188 + $0x2e0] sm:$0xff]
        %v330 = vld [vmem:[%s188 + $0x2e8] sm:$0xff]
        %v331 = vld [vmem:[%s188 + $0x2f0] sm:$0xff]
        %v332 = vld [vmem:[%s188 + $0x2f8] sm:$0xff]
        %v333 = vld [vmem:[%s188 + $0x300] sm:$0xff]
        %v334 = vld [vmem:[%s188 + $0x308] sm:$0xff]
        %v335 = vld [vmem:[%s188 + $0x310] sm:$0xff]
        %v336 = vld [vmem:[%s188 + $0x318] sm:$0xff]
        %v337 = vld [vmem:[%s188 + $0x320] sm:$0xff]
        %v338 = vld [vmem:[%s188 + $0x328] sm:$0xff]
        %v339 = vld [vmem:[%s188 + $0x330] sm:$0xff]
        %v340 = vld [vmem:[%s188 + $0x338] sm:$0xff]
        %v341 = vld [vmem:[%s188 + $0x340] sm:$0xff]
        %v342 = vld [vmem:[%s188 + $0x348] sm:$0xff]
        %v343 = vld [vmem:[%s188 + $0x350] sm:$0xff]
        %v344 = vld [vmem:[%s188 + $0x358] sm:$0xff]
        %v345 = vld [vmem:[%s188 + $0x360] sm:$0xff]
        %v346 = vld [vmem:[%s188 + $0x368] sm:$0xff]
        %v347 = vld [vmem:[%s188 + $0x370] sm:$0xff]
        %v348 = vld [vmem:[%s188 + $0x378] sm:$0xff]
        %v349 = vld [vmem:[%s188 + $0x380] sm:$0xff]
        %v350 = vld [vmem:[%s188 + $0x388] sm:$0xff]
        %v351 = vld [vmem:[%s188 + $0x390] sm:$0xff]
        %v352 = vld [vmem:[%s188 + $0x398] sm:$0xff]
        %v353 = vld [vmem:[%s188 + $0x3a0] sm:$0xff]
        %v354 = vld [vmem:[%s188 + $0x3a8] sm:$0xff]
        %v355 = vld [vmem:[%s188 + $0x3b0] sm:$0xff]
        %v356 = vld [vmem:[%s188 + $0x3b8] sm:$0xff]
        %v357 = vld [vmem:[%s188 + $0x3c0] sm:$0xff]
        %v358 = vld [vmem:[%s188 + $0x3c8] sm:$0xff]
        %v359 = vld [vmem:[%s188 + $0x3d0] sm:$0xff]
        %v360 = vld [vmem:[%s188 + $0x3d8] sm:$0xff]
        %v361 = vld [vmem:[%s188 + $0x3e0] sm:$0xff]
        %v362 = vld [vmem:[%s188 + $0x3e8] sm:$0xff]
        %v363 = vld [vmem:[%s188 + $0x3f0] sm:$0xff]
        %v364 = vld [vmem:[%s188 + $0x3f8] sm:$0xff]
        %v365 = vld [vmem:[%s188 + $0x400] sm:$0xff]
        %v366 = vld [vmem:[%s188 + $0x408] sm:$0xff]
        %v367 = vld [vmem:[%s188 + $0x410] sm:$0xff]
        %v368 = vld [vmem:[%s188 + $0x418] sm:$0xff]
        %v369 = vld [vmem:[%s188 + $0x420] sm:$0xff]
        %v370 = vld [vmem:[%s188 + $0x428] sm:$0xff]
        %v371 = vld [vmem:[%s188 + $0x430] sm:$0xff]
        %v372 = vld [vmem:[%s188 + $0x438] sm:$0xff]
        %v373 = vld [vmem:[%s188 + $0x440] sm:$0xff]
        %v374 = vld [vmem:[%s188 + $0x448] sm:$0xff]
        %v375 = vld [vmem:[%s188 + $0x450] sm:$0xff]
        %v376 = vld [vmem:[%s188 + $0x458] sm:$0xff]
        %v377 = vld [vmem:[%s188 + $0x460] sm:$0xff]
        %v378 = vld [vmem:[%s188 + $0x468] sm:$0xff]
        %v379 = vld [vmem:[%s188 + $0x470] sm:$0xff]
        %v380 = vld [vmem:[%s188 + $0x478] sm:$0xff]
        %v381 = vld [vmem:[%s188 + $0x480] sm:$0xff]
        %v382 = vld [vmem:[%s188 + $0x488] sm:$0xff]
        %v383 = vld [vmem:[%s188 + $0x490] sm:$0xff]
        %v384 = vld [vmem:[%s188 + $0x498] sm:$0xff]
        %v385 = vld [vmem:[%s188 + $0x4a0] sm:$0xff]
        %v386 = vld [vmem:[%s188 + $0x4a8] sm:$0xff]
        %v387 = vld [vmem:[%s188 + $0x4b0] sm:$0xff]
        %v388 = vld [vmem:[%s188 + $0x4b8] sm:$0xff]
        %v389 = vld [vmem:[%s188 + $0x4c0] sm:$0xff]
        %v390 = vld [vmem:[%s188 + $0x4c8] sm:$0xff]
        %v391 = vld [vmem:[%s188 + $0x4d0] sm:$0xff]
        %v392 = vld [vmem:[%s188 + $0x4d8] sm:$0xff]
        %v393 = vld [vmem:[%s188 + $0x4e0] sm:$0xff]
        %v394 = vld [vmem:[%s188 + $0x4e8] sm:$0xff]
        %v395 = vld [vmem:[%s188 + $0x4f0] sm:$0xff]
        %v396 = vld [vmem:[%s188 + $0x4f8] sm:$0xff]
        %v397 = vld [vmem:[%s188 + $0x500] sm:$0xff]
        %v398 = vld [vmem:[%s188 + $0x508] sm:$0xff]
        %v399 = vld [vmem:[%s188 + $0x510] sm:$0xff]
        %v400 = vld [vmem:[%s188 + $0x518] sm:$0xff]
        %v401 = vld [vmem:[%s188 + $0x520] sm:$0xff]
        %v402 = vld [vmem:[%s188 + $0x528] sm:$0xff]
        %v403 = vld [vmem:[%s188 + $0x530] sm:$0xff]
        %v404 = vld [vmem:[%s188 + $0x538] sm:$0xff]
        %v405 = vld [vmem:[%s188 + $0x540] sm:$0xff]
        %v406 = vld [vmem:[%s188 + $0x548] sm:$0xff]
        %v407 = vld [vmem:[%s188 + $0x550] sm:$0xff]
        %v408 = vld [vmem:[%s188 + $0x558] sm:$0xff]
        %v409 = vld [vmem:[%s188 + $0x560] sm:$0xff]
        %v410 = vld [vmem:[%s188 + $0x568] sm:$0xff]
        %v411 = vld [vmem:[%s188 + $0x570] sm:$0xff]
        %v412 = vld [vmem:[%s188 + $0x578] sm:$0xff]
        %v413 = vld [vmem:[%s188 + $0x580] sm:$0xff]
        %v414 = vld [vmem:[%s188 + $0x588] sm:$0xff]
        %v415 = vld [vmem:[%s188 + $0x590] sm:$0xff]
        %v416 = vld [vmem:[%s188 + $0x598] sm:$0xff]
        %v417 = vld [vmem:[%s188 + $0x5a0] sm:$0xff]
        %v418 = vld [vmem:[%s188 + $0x5a8] sm:$0xff]
        %v419 = vld [vmem:[%s188 + $0x5b0] sm:$0xff]
        %v420 = vld [vmem:[%s188 + $0x5b8] sm:$0xff]
        %v421 = vld [vmem:[%s188 + $0x5c0] sm:$0xff]
        %v422 = vld [vmem:[%s188 + $0x5c8] sm:$0xff]
        %v423 = vld [vmem:[%s188 + $0x5d0] sm:$0xff]
        %v424 = vld [vmem:[%s188 + $0x5d8] sm:$0xff]
        %v425 = vld [vmem:[%s188 + $0x5e0] sm:$0xff]
        %v426 = vld [vmem:[%s188 + $0x5e8] sm:$0xff]
        %v427 = vld [vmem:[%s188 + $0x5f0] sm:$0xff]
        %v428 = vld [vmem:[%s188 + $0x5f8] sm:$0xff]
        %v429 = vld [vmem:[%s188 + $0x600] sm:$0xff]
        %v430 = vld [vmem:[%s188 + $0x608] sm:$0xff]
        %v431 = vld [vmem:[%s188 + $0x610] sm:$0xff]
        %v432 = vld [vmem:[%s188 + $0x618] sm:$0xff]
        %v433 = vld [vmem:[%s188 + $0x620] sm:$0xff]
        %v434 = vld [vmem:[%s188 + $0x628] sm:$0xff]
        %v435 = vld [vmem:[%s188 + $0x630] sm:$0xff]
        %v436 = vld [vmem:[%s188 + $0x638] sm:$0xff]
        %v437 = vld [vmem:[%s188 + $0x640] sm:$0xff]
        %v438 = vld [vmem:[%s188 + $0x648] sm:$0xff]
        %v439 = vld [vmem:[%s188 + $0x650] sm:$0xff]
        %v440 = vld [vmem:[%s188 + $0x658] sm:$0xff]
        %v441 = vld [vmem:[%s188 + $0x660] sm:$0xff]
        %v442 = vld [vmem:[%s188 + $0x668] sm:$0xff]
        %v443 = vld [vmem:[%s188 + $0x670] sm:$0xff]
        %v444 = vld [vmem:[%s188 + $0x678] sm:$0xff]
        %v445 = vld [vmem:[%s188 + $0x680] sm:$0xff]
        %v446 = vld [vmem:[%s188 + $0x688] sm:$0xff]
        %v447 = vld [vmem:[%s188 + $0x690] sm:$0xff]
        %v448 = vld [vmem:[%s188 + $0x698] sm:$0xff]
        %v449 = vld [vmem:[%s188 + $0x6a0] sm:$0xff]
        %v450 = vld [vmem:[%s188 + $0x6a8] sm:$0xff]
        %v451 = vld [vmem:[%s188 + $0x6b0] sm:$0xff]
        %v452 = vld [vmem:[%s188 + $0x6b8] sm:$0xff]
        %v453 = vld [vmem:[%s188 + $0x6c0] sm:$0xff]
        %v454 = vld [vmem:[%s188 + $0x6c8] sm:$0xff]
        %v455 = vld [vmem:[%s188 + $0x6d0] sm:$0xff]
        %v456 = vld [vmem:[%s188 + $0x6d8] sm:$0xff]
        %v457 = vld [vmem:[%s188 + $0x6e0] sm:$0xff]
        %v458 = vld [vmem:[%s188 + $0x6e8] sm:$0xff]
        %v459 = vld [vmem:[%s188 + $0x6f0] sm:$0xff]
        %v460 = vld [vmem:[%s188 + $0x6f8] sm:$0xff]
        %v461 = vld [vmem:[%s188 + $0x700] sm:$0xff]
        %v462 = vld [vmem:[%s188 + $0x708] sm:$0xff]
        %v463 = vld [vmem:[%s188 + $0x710] sm:$0xff]
        %v464 = vld [vmem:[%s188 + $0x718] sm:$0xff]
        %v465 = vld [vmem:[%s188 + $0x720] sm:$0xff]
        %v466 = vld [vmem:[%s188 + $0x728] sm:$0xff]
        %v467 = vld [vmem:[%s188 + $0x730] sm:$0xff]
        %v468 = vld [vmem:[%s188 + $0x738] sm:$0xff]
        %v469 = vld [vmem:[%s188 + $0x740] sm:$0xff]
        %v470 = vld [vmem:[%s188 + $0x748] sm:$0xff]
        %v471 = vld [vmem:[%s188 + $0x750] sm:$0xff]
        %v472 = vld [vmem:[%s188 + $0x758] sm:$0xff]
        %v473 = vld [vmem:[%s188 + $0x760] sm:$0xff]
        %v474 = vld [vmem:[%s188 + $0x768] sm:$0xff]
        %v475 = vld [vmem:[%s188 + $0x770] sm:$0xff]
        %v476 = vld [vmem:[%s188 + $0x778] sm:$0xff]
        %v477 = vld [vmem:[%s188 + $0x780] sm:$0xff]
        %v478 = vld [vmem:[%s188 + $0x788] sm:$0xff]
        %v479 = vld [vmem:[%s188 + $0x790] sm:$0xff]
        %v480 = vld [vmem:[%s188 + $0x798] sm:$0xff]
        %v481 = vld [vmem:[%s188 + $0x7a0] sm:$0xff]
        %v482 = vld [vmem:[%s188 + $0x7a8] sm:$0xff]
        %v483 = vld [vmem:[%s188 + $0x7b0] sm:$0xff]
        %v484 = vld [vmem:[%s188 + $0x7b8] sm:$0xff]
        %v485 = vld [vmem:[%s188 + $0x7c0] sm:$0xff]
        %v486 = vld [vmem:[%s188 + $0x7c8] sm:$0xff]
        %v487 = vld [vmem:[%s188 + $0x7d0] sm:$0xff]
        %v488 = vld [vmem:[%s188 + $0x7d8] sm:$0xff]
        %v489 = vld [vmem:[%s188 + $0x7e0] sm:$0xff]
        %v490 = vld [vmem:[%s188 + $0x7e8] sm:$0xff]
        %v491 = vld [vmem:[%s188 + $0x7f0] sm:$0xff]
        %v492 = vld [vmem:[%s188 + $0x7f8] sm:$0xff]
        %v493 = vld [vmem:[%s188 + $0x800] sm:$0xff]
        %v494 = vld [vmem:[%s188 + $0x808] sm:$0xff]
        %v495 = vld [vmem:[%s188 + $0x810] sm:$0xff]
        %v496 = vld [vmem:[%s188 + $0x818] sm:$0xff]
        %v497 = vld [vmem:[%s188 + $0x820] sm:$0xff]
        %v498 = vld [vmem:[%s188 + $0x828] sm:$0xff]
        %v499 = vld [vmem:[%s188 + $0x830] sm:$0xff]
        %v500 = vld [vmem:[%s188 + $0x838] sm:$0xff]
        %v501 = vld [vmem:[%s188 + $0x840] sm:$0xff]
        %v502 = vld [vmem:[%s188 + $0x848] sm:$0xff]
        %v503 = vld [vmem:[%s188 + $0x850] sm:$0xff]
        %v504 = vld [vmem:[%s188 + $0x858] sm:$0xff]
        %v505 = vld [vmem:[%s188 + $0x860] sm:$0xff]
        %v506 = vld [vmem:[%s188 + $0x868] sm:$0xff]
        %v507 = vld [vmem:[%s188 + $0x870] sm:$0xff]
        %v508 = vld [vmem:[%s188 + $0x878] sm:$0xff]
        %v509 = vld [vmem:[%s188 + $0x880] sm:$0xff]
        %v510 = vld [vmem:[%s188 + $0x888] sm:$0xff]
        %v511 = vld [vmem:[%s188 + $0x890] sm:$0xff]
        %v512 = vld [vmem:[%s188 + $0x898] sm:$0xff]
        %v513 = vld [vmem:[%s188 + $0x8a0] sm:$0xff]
        %v514 = vld [vmem:[%s188 + $0x8a8] sm:$0xff]
        %v515 = vld [vmem:[%s188 + $0x8b0] sm:$0xff]
        %v516 = vld [vmem:[%s188 + $0x8b8] sm:$0xff]
        %v517 = vld [vmem:[%s188 + $0x8c0] sm:$0xff]
        %v518 = vld [vmem:[%s188 + $0x8c8] sm:$0xff]
        %v519 = vld [vmem:[%s188 + $0x8d0] sm:$0xff]
        %v520 = vld [vmem:[%s188 + $0x8d8] sm:$0xff]
        %v521 = vld [vmem:[%s188 + $0x8e0] sm:$0xff]
        %v522 = vld [vmem:[%s188 + $0x8e8] sm:$0xff]
        %v523 = vld [vmem:[%s188 + $0x8f0] sm:$0xff]
        %v524 = vld [vmem:[%s188 + $0x8f8] sm:$0xff]
        %v525 = vld [vmem:[%s188 + $0x900] sm:$0xff]
        %v526 = vld [vmem:[%s188 + $0x908] sm:$0xff]
        %v527 = vld [vmem:[%s188 + $0x910] sm:$0xff]
        %v528 = vld [vmem:[%s188 + $0x918] sm:$0xff]
        %v529 = vld [vmem:[%s188 + $0x920] sm:$0xff]
        %v530 = vld [vmem:[%s188 + $0x928] sm:$0xff]
        %v531 = vld [vmem:[%s188 + $0x930] sm:$0xff]
        %v532 = vld [vmem:[%s188 + $0x938] sm:$0xff]
        %v533 = vld [vmem:[%s188 + $0x940] sm:$0xff]
        %v534 = vld [vmem:[%s188 + $0x948] sm:$0xff]
        %v535 = vld [vmem:[%s188 + $0x950] sm:$0xff]
        %v536 = vld [vmem:[%s188 + $0x958] sm:$0xff]
        %v537 = vld [vmem:[%s188 + $0x960] sm:$0xff]
        %v538 = vld [vmem:[%s188 + $0x968] sm:$0xff]
        %v539 = vld [vmem:[%s188 + $0x970] sm:$0xff]
        %v540 = vld [vmem:[%s188 + $0x978] sm:$0xff]
        %v541 = vld [vmem:[%s188 + $0x980] sm:$0xff]
        %v542 = vld [vmem:[%s188 + $0x988] sm:$0xff]
        %v543 = vld [vmem:[%s188 + $0x990] sm:$0xff]
        %v544 = vld [vmem:[%s188 + $0x998] sm:$0xff]
        %v545 = vld [vmem:[%s188 + $0x9a0] sm:$0xff]
        %v546 = vld [vmem:[%s188 + $0x9a8] sm:$0xff]
        %v547 = vld [vmem:[%s188 + $0x9b0] sm:$0xff]
        %v548 = vld [vmem:[%s188 + $0x9b8] sm:$0xff]
        %v549 = vld [vmem:[%s188 + $0x9c0] sm:$0xff]
        %v550 = vld [vmem:[%s188 + $0x9c8] sm:$0xff]
        %v551 = vld [vmem:[%s188 + $0x9d0] sm:$0xff]
        %v552 = vld [vmem:[%s188 + $0x9d8] sm:$0xff]
        %v553 = vld [vmem:[%s188 + $0x9e0] sm:$0xff]
        %v554 = vld [vmem:[%s188 + $0x9e8] sm:$0xff]
        %v555 = vld [vmem:[%s188 + $0x9f0] sm:$0xff]
        %v556 = vld [vmem:[%s188 + $0x9f8] sm:$0xff]
        %v557 = vld [vmem:[%s188 + $0xa00] sm:$0xff]
        %v558 = vld [vmem:[%s188 + $0xa08] sm:$0xff]
        %v559 = vld [vmem:[%s188 + $0xa10] sm:$0xff]
        %v560 = vld [vmem:[%s188 + $0xa18] sm:$0xff]
        %v561 = vld [vmem:[%s188 + $0xa20] sm:$0xff]
        %v562 = vld [vmem:[%s188 + $0xa28] sm:$0xff]
        %v563 = vld [vmem:[%s188 + $0xa30] sm:$0xff]
        %v564 = vld [vmem:[%s188 + $0xa38] sm:$0xff]
        %v565 = vld [vmem:[%s188 + $0xa40] sm:$0xff]
        %v566 = vld [vmem:[%s188 + $0xa48] sm:$0xff]
        %v567 = vld [vmem:[%s188 + $0xa50] sm:$0xff]
        %v568 = vld [vmem:[%s188 + $0xa58] sm:$0xff]
        %v569 = vld [vmem:[%s188 + $0xa60] sm:$0xff]
        %v570 = vld [vmem:[%s188 + $0xa68] sm:$0xff]
        %v571 = vld [vmem:[%s188 + $0xa70] sm:$0xff]
        %v572 = vld [vmem:[%s188 + $0xa78] sm:$0xff]
        %v573 = vld [vmem:[%s188 + $0xa80] sm:$0xff]
        %v574 = vld [vmem:[%s188 + $0xa88] sm:$0xff]
        %v575 = vld [vmem:[%s188 + $0xa90] sm:$0xff]
        %v576 = vld [vmem:[%s188 + $0xa98] sm:$0xff]
        %v577 = vld [vmem:[%s188 + $0xaa0] sm:$0xff]
        %v578 = vld [vmem:[%s188 + $0xaa8] sm:$0xff]
        %v579 = vld [vmem:[%s188 + $0xab0] sm:$0xff]
        %v580 = vld [vmem:[%s188 + $0xab8] sm:$0xff]
        %v581 = vld [vmem:[%s188 + $0xac0] sm:$0xff]
        %v582 = vld [vmem:[%s188 + $0xac8] sm:$0xff]
        %v583 = vld [vmem:[%s188 + $0xad0] sm:$0xff]
        %v584 = vld [vmem:[%s188 + $0xad8] sm:$0xff]
        %v585 = vld [vmem:[%s188 + $0xae0] sm:$0xff]
        %v586 = vld [vmem:[%s188 + $0xae8] sm:$0xff]
        %v587 = vld [vmem:[%s188 + $0xaf0] sm:$0xff]
        %v588 = vld [vmem:[%s188 + $0xaf8] sm:$0xff]
        %v589 = vld [vmem:[%s188 + $0xb00] sm:$0xff]
        %v590 = vld [vmem:[%s188 + $0xb08] sm:$0xff]
        %v591 = vld [vmem:[%s188 + $0xb10] sm:$0xff]
        %v592 = vld [vmem:[%s188 + $0xb18] sm:$0xff]
        %v593 = vld [vmem:[%s188 + $0xb20] sm:$0xff]
        %v594 = vld [vmem:[%s188 + $0xb28] sm:$0xff]
        %v595 = vld [vmem:[%s188 + $0xb30] sm:$0xff]
        %v596 = vld [vmem:[%s188 + $0xb38] sm:$0xff]
        %v597 = vld [vmem:[%s188 + $0xb40] sm:$0xff]
        %v598 = vld [vmem:[%s188 + $0xb48] sm:$0xff]
        %v599 = vld [vmem:[%s188 + $0xb50] sm:$0xff]
        %v600 = vld [vmem:[%s188 + $0xb58] sm:$0xff]
        %v601 = vld [vmem:[%s188 + $0xb60] sm:$0xff]
        %v602 = vld [vmem:[%s188 + $0xb68] sm:$0xff]
        %v603 = vld [vmem:[%s188 + $0xb70] sm:$0xff]
        %v604 = vld [vmem:[%s188 + $0xb78] sm:$0xff]
        %v605 = vld [vmem:[%s188 + $0xb80] sm:$0xff]
        %v606 = vld [vmem:[%s188 + $0xb88] sm:$0xff]
        %v607 = vld [vmem:[%s188 + $0xb90] sm:$0xff]
        %v608 = vld [vmem:[%s188 + $0xb98] sm:$0xff]
        %v609 = vld [vmem:[%s188 + $0xba0] sm:$0xff]
        %v610 = vld [vmem:[%s188 + $0xba8] sm:$0xff]
        %v611 = vld [vmem:[%s188 + $0xbb0] sm:$0xff]
        %v612 = vld [vmem:[%s188 + $0xbb8] sm:$0xff]
        %v613 = vld [vmem:[%s188 + $0xbc0] sm:$0xff]
        %v614 = vld [vmem:[%s188 + $0xbc8] sm:$0xff]
        %v615 = vld [vmem:[%s188 + $0xbd0] sm:$0xff]
        %v616 = vld [vmem:[%s188 + $0xbd8] sm:$0xff]
        %v617 = vld [vmem:[%s188 + $0xbe0] sm:$0xff]
        %v618 = vld [vmem:[%s188 + $0xbe8] sm:$0xff]
        %v619 = vld [vmem:[%s188 + $0xbf0] sm:$0xff]
        %v620 = vld [vmem:[%s188 + $0xbf8] sm:$0xff]
        %v621 = vld [vmem:[%s188 + $0xc00] sm:$0xff]
        %v622 = vld [vmem:[%s188 + $0xc08] sm:$0xff]
        %v623 = vld [vmem:[%s188 + $0xc10] sm:$0xff]
        %v624 = vld [vmem:[%s188 + $0xc18] sm:$0xff]
        %v625 = vld [vmem:[%s188 + $0xc20] sm:$0xff]
        %v626 = vld [vmem:[%s188 + $0xc28] sm:$0xff]
        %v627 = vld [vmem:[%s188 + $0xc30] sm:$0xff]
        %v628 = vld [vmem:[%s188 + $0xc38] sm:$0xff]
        %v629 = vld [vmem:[%s188 + $0xc40] sm:$0xff]
        %v630 = vld [vmem:[%s188 + $0xc48] sm:$0xff]
        %v631 = vld [vmem:[%s188 + $0xc50] sm:$0xff]
        %v632 = vld [vmem:[%s188 + $0xc58] sm:$0xff]
        %v633 = vld [vmem:[%s188 + $0xc60] sm:$0xff]
        %v634 = vld [vmem:[%s188 + $0xc68] sm:$0xff]
        %v635 = vld [vmem:[%s188 + $0xc70] sm:$0xff]
        %v636 = vld [vmem:[%s188 + $0xc78] sm:$0xff]
        %v637 = vld [vmem:[%s188 + $0xc80] sm:$0xff]
        %v638 = vld [vmem:[%s188 + $0xc88] sm:$0xff]
        %v639 = vld [vmem:[%s188 + $0xc90] sm:$0xff]
        %v640 = vld [vmem:[%s188 + $0xc98] sm:$0xff]
        %v641 = vld [vmem:[%s188 + $0xca0] sm:$0xff]
        %v642 = vld [vmem:[%s188 + $0xca8] sm:$0xff]
        %v643 = vld [vmem:[%s188 + $0xcb0] sm:$0xff]
        %v644 = vld [vmem:[%s188 + $0xcb8] sm:$0xff]
        %v645 = vld [vmem:[%s188 + $0xcc0] sm:$0xff]
        %v646 = vld [vmem:[%s188 + $0xcc8] sm:$0xff]
        %v647 = vld [vmem:[%s188 + $0xcd0] sm:$0xff]
        %v648 = vld [vmem:[%s188 + $0xcd8] sm:$0xff]
        %v649 = vld [vmem:[%s188 + $0xce0] sm:$0xff]
        %v650 = vld [vmem:[%s188 + $0xce8] sm:$0xff]
        %v651 = vld [vmem:[%s188 + $0xcf0] sm:$0xff]
        %v652 = vld [vmem:[%s188 + $0xcf8] sm:$0xff]
        %v653 = vld [vmem:[%s188 + $0xd00] sm:$0xff]
        %v654 = vld [vmem:[%s188 + $0xd08] sm:$0xff]
        %v655 = vld [vmem:[%s188 + $0xd10] sm:$0xff]
        %v656 = vld [vmem:[%s188 + $0xd18] sm:$0xff]
        %v657 = vld [vmem:[%s188 + $0xd20] sm:$0xff]
        %v658 = vld [vmem:[%s188 + $0xd28] sm:$0xff]
        %v659 = vld [vmem:[%s188 + $0xd30] sm:$0xff]
        %v660 = vld [vmem:[%s188 + $0xd38] sm:$0xff]
        %v661 = vld [vmem:[%s188 + $0xd40] sm:$0xff]
        %v662 = vld [vmem:[%s188 + $0xd48] sm:$0xff]
        %v663 = vld [vmem:[%s188 + $0xd50] sm:$0xff]
        %v664 = vld [vmem:[%s188 + $0xd58] sm:$0xff]
        %v665 = vld [vmem:[%s188 + $0xd60] sm:$0xff]
        %v666 = vld [vmem:[%s188 + $0xd68] sm:$0xff]
        %v667 = vld [vmem:[%s188 + $0xd70] sm:$0xff]
        %v668 = vld [vmem:[%s188 + $0xd78] sm:$0xff]
        %v669 = vld [vmem:[%s188 + $0xd80] sm:$0xff]
        %v670 = vld [vmem:[%s188 + $0xd88] sm:$0xff]
        %v671 = vld [vmem:[%s188 + $0xd90] sm:$0xff]
        %v672 = vld [vmem:[%s188 + $0xd98] sm:$0xff]
        %v673 = vld [vmem:[%s188 + $0xda0] sm:$0xff]
        %v674 = vld [vmem:[%s188 + $0xda8] sm:$0xff]
        %v675 = vld [vmem:[%s188 + $0xdb0] sm:$0xff]
        %v676 = vld [vmem:[%s188 + $0xdb8] sm:$0xff]
        %v677 = vld [vmem:[%s188 + $0xdc0] sm:$0xff]
        %v678 = vld [vmem:[%s188 + $0xdc8] sm:$0xff]
        %v679 = vld [vmem:[%s188 + $0xdd0] sm:$0xff]
        %v680 = vld [vmem:[%s188 + $0xdd8] sm:$0xff]
        %v681 = vld [vmem:[%s188 + $0xde0] sm:$0xff]
        %v682 = vld [vmem:[%s188 + $0xde8] sm:$0xff]
        %v683 = vld [vmem:[%s188 + $0xdf0] sm:$0xff]
        %v684 = vld [vmem:[%s188 + $0xdf8] sm:$0xff]
        %v685 = vld [vmem:[%s188 + $0xe00] sm:$0xff]
        %v686 = vld [vmem:[%s188 + $0xe08] sm:$0xff]
        %v687 = vld [vmem:[%s188 + $0xe10] sm:$0xff]
        %v688 = vld [vmem:[%s188 + $0xe18] sm:$0xff]
        %v689 = vld [vmem:[%s188 + $0xe20] sm:$0xff]
        %v690 = vld [vmem:[%s188 + $0xe28] sm:$0xff]
        %v691 = vld [vmem:[%s188 + $0xe30] sm:$0xff]
        %v692 = vld [vmem:[%s188 + $0xe38] sm:$0xff]
        %v693 = vld [vmem:[%s188 + $0xe40] sm:$0xff]
        %v694 = vld [vmem:[%s188 + $0xe48] sm:$0xff]
        %v695 = vld [vmem:[%s188 + $0xe50] sm:$0xff]
        %v696 = vld [vmem:[%s188 + $0xe58] sm:$0xff]
        %v697 = vld [vmem:[%s188 + $0xe60] sm:$0xff]
        %v698 = vld [vmem:[%s188 + $0xe68] sm:$0xff]
        %v699 = vld [vmem:[%s188 + $0xe70] sm:$0xff]
        %v700 = vld [vmem:[%s188 + $0xe78] sm:$0xff]
        %v701 = vld [vmem:[%s188 + $0xe80] sm:$0xff]
        %v702 = vld [vmem:[%s188 + $0xe88] sm:$0xff]
        %v703 = vld [vmem:[%s188 + $0xe90] sm:$0xff]
        %v704 = vld [vmem:[%s188 + $0xe98] sm:$0xff]
        %v705 = vld [vmem:[%s188 + $0xea0] sm:$0xff]
        %v706 = vld [vmem:[%s188 + $0xea8] sm:$0xff]
        %v707 = vld [vmem:[%s188 + $0xeb0] sm:$0xff]
        %v708 = vld [vmem:[%s188 + $0xeb8] sm:$0xff]
        %v709 = vld [vmem:[%s188 + $0xec0] sm:$0xff]
        %v710 = vld [vmem:[%s188 + $0xec8] sm:$0xff]
        %v711 = vld [vmem:[%s188 + $0xed0] sm:$0xff]
        %v712 = vld [vmem:[%s188 + $0xed8] sm:$0xff]
        %v713 = vld [vmem:[%s188 + $0xee0] sm:$0xff]
        %v714 = vld [vmem:[%s188 + $0xee8] sm:$0xff]
        %v715 = vld [vmem:[%s188 + $0xef0] sm:$0xff]
        %v716 = vld [vmem:[%s188 + $0xef8] sm:$0xff]
        %v717 = vld [vmem:[%s188 + $0xf00] sm:$0xff]
        %v718 = vld [vmem:[%s188 + $0xf08] sm:$0xff]
        %v719 = vld [vmem:[%s188 + $0xf10] sm:$0xff]
        %v720 = vld [vmem:[%s188 + $0xf18] sm:$0xff]
        %v721 = vld [vmem:[%s188 + $0xf20] sm:$0xff]
        %v722 = vld [vmem:[%s188 + $0xf28] sm:$0xff]
        %v723 = vld [vmem:[%s188 + $0xf30] sm:$0xff]
        %v724 = vld [vmem:[%s188 + $0xf38] sm:$0xff]
        %v725 = vld [vmem:[%s188 + $0xf40] sm:$0xff]
        %v726 = vld [vmem:[%s188 + $0xf48] sm:$0xff]
        %v727 = vld [vmem:[%s188 + $0xf50] sm:$0xff]
        %v728 = vld [vmem:[%s188 + $0xf58] sm:$0xff]
        %v729 = vld [vmem:[%s188 + $0xf60] sm:$0xff]
        %v730 = vld [vmem:[%s188 + $0xf68] sm:$0xff]
        %v731 = vld [vmem:[%s188 + $0xf70] sm:$0xff]
        %v732 = vld [vmem:[%s188 + $0xf78] sm:$0xff]
        %v733 = vld [vmem:[%s188 + $0xf80] sm:$0xff]
        %v734 = vld [vmem:[%s188 + $0xf88] sm:$0xff]
        %v735 = vld [vmem:[%s188 + $0xf90] sm:$0xff]
        %v736 = vld [vmem:[%s188 + $0xf98] sm:$0xff]
        %v737 = vld [vmem:[%s188 + $0xfa0] sm:$0xff]
        %v738 = vld [vmem:[%s188 + $0xfa8] sm:$0xff]
        %v739 = vld [vmem:[%s188 + $0xfb0] sm:$0xff]
        %v740 = vld [vmem:[%s188 + $0xfb8] sm:$0xff]
        %v741 = vld [vmem:[%s188 + $0xfc0] sm:$0xff]
        %v742 = vld [vmem:[%s188 + $0xfc8] sm:$0xff]
        %v743 = vld [vmem:[%s188 + $0xfd0] sm:$0xff]
        %v744 = vld [vmem:[%s188 + $0xfd8] sm:$0xff]
        %v745 = vld [vmem:[%s188 + $0xfe0] sm:$0xff]
        %v746 = vld [vmem:[%s188 + $0xfe8] sm:$0xff]
        %v747 = vld [vmem:[%s188 + $0xff0] sm:$0xff]
        %v748 = vld [vmem:[%s188 + $0xff8] sm:$0xff]
        %v749 = vld [vmem:[%s188 + $0x1000] sm:$0xff]
        %v750 = vld [vmem:[%s188 + $0x1008] sm:$0xff]
        %v751 = vld [vmem:[%s188 + $0x1010] sm:$0xff]
        %v752 = vld [vmem:[%s188 + $0x1018] sm:$0xff]
        %v753 = vld [vmem:[%s188 + $0x1020] sm:$0xff]
        %v754 = vld [vmem:[%s188 + $0x1028] sm:$0xff]
        %v755 = vld [vmem:[%s188 + $0x1030] sm:$0xff]
        %v756 = vld [vmem:[%s188 + $0x1038] sm:$0xff]
        %v757 = vld [vmem:[%s188 + $0x1040] sm:$0xff]
        %v758 = vld [vmem:[%s188 + $0x1048] sm:$0xff]
        %v759 = vld [vmem:[%s188 + $0x1050] sm:$0xff]
        %v760 = vld [vmem:[%s188 + $0x1058] sm:$0xff]
        %v761 = vld [vmem:[%s188 + $0x1060] sm:$0xff]
        %v762 = vld [vmem:[%s188 + $0x1068] sm:$0xff]
        %v763 = vld [vmem:[%s188 + $0x1070] sm:$0xff]
        %v764 = vld [vmem:[%s188 + $0x1078] sm:$0xff]
        %v765 = vld [vmem:[%s188 + $0x1080] sm:$0xff]
        %v766 = vld [vmem:[%s188 + $0x1088] sm:$0xff]
        %v767 = vld [vmem:[%s188 + $0x1090] sm:$0xff]
        %v768 = vld [vmem:[%s188 + $0x1098] sm:$0xff]
        %v769 = vld [vmem:[%s188 + $0x10a0] sm:$0xff]
        %v770 = vld [vmem:[%s188 + $0x10a8] sm:$0xff]
        %v771 = vld [vmem:[%s188 + $0x10b0] sm:$0xff]
        %v772 = vld [vmem:[%s188 + $0x10b8] sm:$0xff]
        %v773 = vld [vmem:[%s188 + $0x10c0] sm:$0xff]
        %v774 = vld [vmem:[%s188 + $0x10c8] sm:$0xff]
        %v775 = vld [vmem:[%s188 + $0x10d0] sm:$0xff]
        %v776 = vld [vmem:[%s188 + $0x10d8] sm:$0xff]
        %v777 = vld [vmem:[%s188 + $0x10e0] sm:$0xff]
        %v778 = vld [vmem:[%s188 + $0x10e8] sm:$0xff]
        %v779 = vld [vmem:[%s188 + $0x10f0] sm:$0xff]
        %v780 = vld [vmem:[%s188 + $0x10f8] sm:$0xff]
        %v781 = vld [vmem:[%s188 + $0x1100] sm:$0xff]
        %v782 = vld [vmem:[%s188 + $0x1108] sm:$0xff]
        %v783 = vld [vmem:[%s188 + $0x1110] sm:$0xff]
        %v784 = vld [vmem:[%s188 + $0x1118] sm:$0xff]
        %v785 = vld [vmem:[%s188 + $0x1120] sm:$0xff]
        %v786 = vld [vmem:[%s188 + $0x1128] sm:$0xff]
        %v787 = vld [vmem:[%s188 + $0x1130] sm:$0xff]
        %v788 = vld [vmem:[%s188 + $0x1138] sm:$0xff]
        %v789 = vld [vmem:[%s188 + $0x1140] sm:$0xff]
        %v790 = vld [vmem:[%s188 + $0x1148] sm:$0xff]
        %v791 = vld [vmem:[%s188 + $0x1150] sm:$0xff]
        %v792 = vld [vmem:[%s188 + $0x1158] sm:$0xff]
        %v793 = vld [vmem:[%s188 + $0x1160] sm:$0xff]
        %v794 = vld [vmem:[%s188 + $0x1168] sm:$0xff]
        %v795 = vld [vmem:[%s188 + $0x1170] sm:$0xff]
        %v796 = vld [vmem:[%s188 + $0x1178] sm:$0xff]
        %v797 = vld [vmem:[%s188 + $0x1180] sm:$0xff]
        %v798 = vld [vmem:[%s188 + $0x1188] sm:$0xff]
        %v799 = vld [vmem:[%s188 + $0x1190] sm:$0xff]
        %v800 = vld [vmem:[%s188 + $0x1198] sm:$0xff]
        %v801 = vld [vmem:[%s188 + $0x11a0] sm:$0xff]
        %v802 = vld [vmem:[%s188 + $0x11a8] sm:$0xff]
        %v803 = vld [vmem:[%s188 + $0x11b0] sm:$0xff]
        %v804 = vld [vmem:[%s188 + $0x11b8] sm:$0xff]
        %v805 = vld [vmem:[%s188 + $0x11c0] sm:$0xff]
        %v806 = vld [vmem:[%s188 + $0x11c8] sm:$0xff]
        %v807 = vld [vmem:[%s188 + $0x11d0] sm:$0xff]
        %v808 = vld [vmem:[%s188 + $0x11d8] sm:$0xff]
        %v809 = vld [vmem:[%s188 + $0x11e0] sm:$0xff]
        %v810 = vld [vmem:[%s188 + $0x11e8] sm:$0xff]
        %v811 = vld [vmem:[%s188 + $0x11f0] sm:$0xff]
        %v812 = vld [vmem:[%s188 + $0x11f8] sm:$0xff]
        %v813 = vld [vmem:[%s188 + $0x1200] sm:$0xff]
        %v814 = vld [vmem:[%s188 + $0x1208] sm:$0xff]
        %v815 = vld [vmem:[%s188 + $0x1210] sm:$0xff]
        %v816 = vld [vmem:[%s188 + $0x1218] sm:$0xff]
        %v817 = vld [vmem:[%s188 + $0x1220] sm:$0xff]
        %v818 = vld [vmem:[%s188 + $0x1228] sm:$0xff]
        %v819 = vld [vmem:[%s188 + $0x1230] sm:$0xff]
        %v820 = vld [vmem:[%s188 + $0x1238] sm:$0xff]
        %v821 = vld [vmem:[%s188 + $0x1240] sm:$0xff]
        %v822 = vld [vmem:[%s188 + $0x1248] sm:$0xff]
        %v823 = vld [vmem:[%s188 + $0x1250] sm:$0xff]
        %v824 = vld [vmem:[%s188 + $0x1258] sm:$0xff]
        %v825 = vld [vmem:[%s188 + $0x1260] sm:$0xff]
        %v826 = vld [vmem:[%s188 + $0x1268] sm:$0xff]
        %v827 = vld [vmem:[%s188 + $0x1270] sm:$0xff]
        %v828 = vld [vmem:[%s188 + $0x1278] sm:$0xff]
        %v829 = vld [vmem:[%s188 + $0x1280] sm:$0xff]
        %v830 = vld [vmem:[%s188 + $0x1288] sm:$0xff]
        %v831 = vld [vmem:[%s188 + $0x1290] sm:$0xff]
        %v832 = vld [vmem:[%s188 + $0x1298] sm:$0xff]
        %v833 = vld [vmem:[%s188 + $0x12a0] sm:$0xff]
        %v834 = vld [vmem:[%s188 + $0x12a8] sm:$0xff]
        %v835 = vld [vmem:[%s188 + $0x12b0] sm:$0xff]
        %v836 = vld [vmem:[%s188 + $0x12b8] sm:$0xff]
        %v837 = vld [vmem:[%s188 + $0x12c0] sm:$0xff]
        %v838 = vld [vmem:[%s188 + $0x12c8] sm:$0xff]
        %v839 = vld [vmem:[%s188 + $0x12d0] sm:$0xff]
        %v840 = vld [vmem:[%s188 + $0x12d8] sm:$0xff]
        %v841 = vld [vmem:[%s188 + $0x12e0] sm:$0xff]
        %v842 = vld [vmem:[%s188 + $0x12e8] sm:$0xff]
        %v843 = vld [vmem:[%s188 + $0x12f0] sm:$0xff]
        %v844 = vld [vmem:[%s188 + $0x12f8] sm:$0xff]
        %v845 = vld [vmem:[%s188 + $0x1300] sm:$0xff]
        %v846 = vld [vmem:[%s188 + $0x1308] sm:$0xff]
        %v847 = vld [vmem:[%s188 + $0x1310] sm:$0xff]
        %v848 = vld [vmem:[%s188 + $0x1318] sm:$0xff]
        %v849 = vld [vmem:[%s188 + $0x1320] sm:$0xff]
        %v850 = vld [vmem:[%s188 + $0x1328] sm:$0xff]
        %v851 = vld [vmem:[%s188 + $0x1330] sm:$0xff]
        %v852 = vld [vmem:[%s188 + $0x1338] sm:$0xff]
        %v853 = vld [vmem:[%s188 + $0x1340] sm:$0xff]
        %v854 = vld [vmem:[%s188 + $0x1348] sm:$0xff]
        %v855 = vld [vmem:[%s188 + $0x1350] sm:$0xff]
        %v856 = vld [vmem:[%s188 + $0x1358] sm:$0xff]
        %v857 = vld [vmem:[%s188 + $0x1360] sm:$0xff]
        %v858 = vld [vmem:[%s188 + $0x1368] sm:$0xff]
        %v859 = vld [vmem:[%s188 + $0x1370] sm:$0xff]
        %v860 = vld [vmem:[%s188 + $0x1378] sm:$0xff]
        %v861 = vld [vmem:[%s188 + $0x1380] sm:$0xff]
        %v862 = vld [vmem:[%s188 + $0x1388] sm:$0xff]
        %v863 = vld [vmem:[%s188 + $0x1390] sm:$0xff]
        %v864 = vld [vmem:[%s188 + $0x1398] sm:$0xff]
        %v865 = vld [vmem:[%s188 + $0x13a0] sm:$0xff]
        %v866 = vld [vmem:[%s188 + $0x13a8] sm:$0xff]
        %v867 = vld [vmem:[%s188 + $0x13b0] sm:$0xff]
        %v868 = vld [vmem:[%s188 + $0x13b8] sm:$0xff]
        %v869 = vld [vmem:[%s188 + $0x13c0] sm:$0xff]
        %v870 = vld [vmem:[%s188 + $0x13c8] sm:$0xff]
        %v871 = vld [vmem:[%s188 + $0x13d0] sm:$0xff]
        %v872 = vld [vmem:[%s188 + $0x13d8] sm:$0xff]
        %v873 = vld [vmem:[%s188 + $0x13e0] sm:$0xff]
        %v874 = vld [vmem:[%s188 + $0x13e8] sm:$0xff]
        %v875 = vld [vmem:[%s188 + $0x13f0] sm:$0xff]
        %v876 = vld [vmem:[%s188 + $0x13f8] sm:$0xff]
        %v877 = vld [vmem:[%s188 + $0x1400] sm:$0xff]
        %v878 = vld [vmem:[%s188 + $0x1408] sm:$0xff]
        %v879 = vld [vmem:[%s188 + $0x1410] sm:$0xff]
        %v880 = vld [vmem:[%s188 + $0x1418] sm:$0xff]
        %v881 = vld [vmem:[%s188 + $0x1420] sm:$0xff]
        %v882 = vld [vmem:[%s188 + $0x1428] sm:$0xff]
        %v883 = vld [vmem:[%s188 + $0x1430] sm:$0xff]
        %v884 = vld [vmem:[%s188 + $0x1438] sm:$0xff]
        %v885 = vld [vmem:[%s188 + $0x1440] sm:$0xff]
        %v886 = vld [vmem:[%s188 + $0x1448] sm:$0xff]
        %v887 = vld [vmem:[%s188 + $0x1450] sm:$0xff]
        %v888 = vld [vmem:[%s188 + $0x1458] sm:$0xff]
        %v889 = vld [vmem:[%s188 + $0x1460] sm:$0xff]
        %v890 = vld [vmem:[%s188 + $0x1468] sm:$0xff]
        %v891 = vld [vmem:[%s188 + $0x1470] sm:$0xff]
        %v892 = vld [vmem:[%s188 + $0x1478] sm:$0xff]
        %v893 = vld [vmem:[%s188 + $0x1480] sm:$0xff]
        %v894 = vld [vmem:[%s188 + $0x1488] sm:$0xff]
        %v895 = vld [vmem:[%s188 + $0x1490] sm:$0xff]
        %v896 = vld [vmem:[%s188 + $0x1498] sm:$0xff]
        %v897 = vld [vmem:[%s188 + $0x14a0] sm:$0xff]
        %v898 = vld [vmem:[%s188 + $0x14a8] sm:$0xff]
        %v899 = vld [vmem:[%s188 + $0x14b0] sm:$0xff]
        %v900 = vld [vmem:[%s188 + $0x14b8] sm:$0xff]
        %v901 = vld [vmem:[%s188 + $0x14c0] sm:$0xff]
        %v902 = vld [vmem:[%s188 + $0x14c8] sm:$0xff]
        %v903 = vld [vmem:[%s188 + $0x14d0] sm:$0xff]
        %v904 = vld [vmem:[%s188 + $0x14d8] sm:$0xff]
        %v905 = vld [vmem:[%s188 + $0x14e0] sm:$0xff]
        %v906 = vld [vmem:[%s188 + $0x14e8] sm:$0xff]
        %v907 = vld [vmem:[%s188 + $0x14f0] sm:$0xff]
        %v908 = vld [vmem:[%s188 + $0x14f8] sm:$0xff]
        %v909 = vld [vmem:[%s188 + $0x1500] sm:$0xff]
        %v910 = vld [vmem:[%s188 + $0x1508] sm:$0xff]
        %v911 = vld [vmem:[%s188 + $0x1510] sm:$0xff]
        %v912 = vld [vmem:[%s188 + $0x1518] sm:$0xff]
        %v913 = vld [vmem:[%s188 + $0x1520] sm:$0xff]
        %v914 = vld [vmem:[%s188 + $0x1528] sm:$0xff]
        %v915 = vld [vmem:[%s188 + $0x1530] sm:$0xff]
        %v916 = vld [vmem:[%s188 + $0x1538] sm:$0xff]
        %v917 = vld [vmem:[%s188 + $0x1540] sm:$0xff]
        %v918 = vld [vmem:[%s188 + $0x1548] sm:$0xff]
        %v919 = vld [vmem:[%s188 + $0x1550] sm:$0xff]
        %v920 = vld [vmem:[%s188 + $0x1558] sm:$0xff]
        %v921 = vld [vmem:[%s188 + $0x1560] sm:$0xff]
        %v922 = vld [vmem:[%s188 + $0x1568] sm:$0xff]
        %v923 = vld [vmem:[%s188 + $0x1570] sm:$0xff]
        %v924 = vld [vmem:[%s188 + $0x1578] sm:$0xff]
        %v925 = vld [vmem:[%s188 + $0x1580] sm:$0xff]
        %v926 = vld [vmem:[%s188 + $0x1588] sm:$0xff]
        %v927 = vld [vmem:[%s188 + $0x1590] sm:$0xff]
        %v928 = vld [vmem:[%s188 + $0x1598] sm:$0xff]
        %v929 = vld [vmem:[%s188 + $0x15a0] sm:$0xff]
        %v930 = vld [vmem:[%s188 + $0x15a8] sm:$0xff]
        %v931 = vld [vmem:[%s188 + $0x15b0] sm:$0xff]
        %v932 = vld [vmem:[%s188 + $0x15b8] sm:$0xff]
        %v933 = vld [vmem:[%s188 + $0x15c0] sm:$0xff]
        %v934 = vld [vmem:[%s188 + $0x15c8] sm:$0xff]
        %v935 = vld [vmem:[%s188 + $0x15d0] sm:$0xff]
        %v936 = vld [vmem:[%s188 + $0x15d8] sm:$0xff]
        %v937 = vld [vmem:[%s188 + $0x15e0] sm:$0xff]
        %v938 = vld [vmem:[%s188 + $0x15e8] sm:$0xff]
        %v939 = vld [vmem:[%s188 + $0x15f0] sm:$0xff]
        %v940 = vld [vmem:[%s188 + $0x15f8] sm:$0xff]
        %v941 = vld [vmem:[%s188 + $0x1600] sm:$0xff]
        %v942 = vld [vmem:[%s188 + $0x1608] sm:$0xff]
        %v943 = vld [vmem:[%s188 + $0x1610] sm:$0xff]
        %v944 = vld [vmem:[%s188 + $0x1618] sm:$0xff]
        %v945 = vld [vmem:[%s188 + $0x1620] sm:$0xff]
        %v946 = vld [vmem:[%s188 + $0x1628] sm:$0xff]
        %v947 = vld [vmem:[%s188 + $0x1630] sm:$0xff]
        %v948 = vld [vmem:[%s188 + $0x1638] sm:$0xff]
        %v949 = vld [vmem:[%s188 + $0x1640] sm:$0xff]
        %v950 = vld [vmem:[%s188 + $0x1648] sm:$0xff]
        %v951 = vld [vmem:[%s188 + $0x1650] sm:$0xff]
        %v952 = vld [vmem:[%s188 + $0x1658] sm:$0xff]
        %v953 = vld [vmem:[%s188 + $0x1660] sm:$0xff]
        %v954 = vld [vmem:[%s188 + $0x1668] sm:$0xff]
        %v955 = vld [vmem:[%s188 + $0x1670] sm:$0xff]
        %v956 = vld [vmem:[%s188 + $0x1678] sm:$0xff]
        %v957 = vld [vmem:[%s188 + $0x1680] sm:$0xff]
        %v958 = vld [vmem:[%s188 + $0x1688] sm:$0xff]
        %v959 = vld [vmem:[%s188 + $0x1690] sm:$0xff]
        %v960 = vld [vmem:[%s188 + $0x1698] sm:$0xff]
        %v961 = vld [vmem:[%s188 + $0x16a0] sm:$0xff]
        %v962 = vld [vmem:[%s188 + $0x16a8] sm:$0xff]
        %v963 = vld [vmem:[%s188 + $0x16b0] sm:$0xff]
        %v964 = vld [vmem:[%s188 + $0x16b8] sm:$0xff]
        %v965 = vld [vmem:[%s188 + $0x16c0] sm:$0xff]
        %v966 = vld [vmem:[%s188 + $0x16c8] sm:$0xff]
        %v967 = vld [vmem:[%s188 + $0x16d0] sm:$0xff]
        %v968 = vld [vmem:[%s188 + $0x16d8] sm:$0xff]
        %v969 = vld [vmem:[%s188 + $0x16e0] sm:$0xff]
        %v970 = vld [vmem:[%s188 + $0x16e8] sm:$0xff]
        %v971 = vld [vmem:[%s188 + $0x16f0] sm:$0xff]
        %v972 = vld [vmem:[%s188 + $0x16f8] sm:$0xff]
        %v973 = vld [vmem:[%s188 + $0x1700] sm:$0xff]
        %v974 = vld [vmem:[%s188 + $0x1708] sm:$0xff]
        %v975 = vld [vmem:[%s188 + $0x1710] sm:$0xff]
        %v976 = vld [vmem:[%s188 + $0x1718] sm:$0xff]
        %v977 = vld [vmem:[%s188 + $0x1720] sm:$0xff]
        %v978 = vld [vmem:[%s188 + $0x1728] sm:$0xff]
        %v979 = vld [vmem:[%s188 + $0x1730] sm:$0xff]
        %v980 = vld [vmem:[%s188 + $0x1738] sm:$0xff]
        %v981 = vld [vmem:[%s188 + $0x1740] sm:$0xff]
        %v982 = vld [vmem:[%s188 + $0x1748] sm:$0xff]
        %v983 = vld [vmem:[%s188 + $0x1750] sm:$0xff]
        %v984 = vld [vmem:[%s188 + $0x1758] sm:$0xff]
        %v985 = vld [vmem:[%s188 + $0x1760] sm:$0xff]
        %v986 = vld [vmem:[%s188 + $0x1768] sm:$0xff]
        %v987 = vld [vmem:[%s188 + $0x1770] sm:$0xff]
        %v988 = vld [vmem:[%s188 + $0x1778] sm:$0xff]
        %v989 = vld [vmem:[%s188 + $0x1780] sm:$0xff]
        %v990 = vld [vmem:[%s188 + $0x1788] sm:$0xff]
        %v991 = vld [vmem:[%s188 + $0x1790] sm:$0xff]
        %v992 = vld [vmem:[%s188 + $0x1798] sm:$0xff]
        %v993 = vld [vmem:[%s188 + $0x17a0] sm:$0xff]
        %v994 = vld [vmem:[%s188 + $0x17a8] sm:$0xff]
        %v995 = vld [vmem:[%s188 + $0x17b0] sm:$0xff]
        %v996 = vld [vmem:[%s188 + $0x17b8] sm:$0xff]
        %v997 = vld [vmem:[%s188 + $0x17c0] sm:$0xff]
        %v998 = vld [vmem:[%s188 + $0x17c8] sm:$0xff]
        %v999 = vld [vmem:[%s188 + $0x17d0] sm:$0xff]
        %v1000 = vld [vmem:[%s188 + $0x17d8] sm:$0xff]
        %v1001 = vld [vmem:[%s188 + $0x17e0] sm:$0xff]
        %v1002 = vld [vmem:[%s188 + $0x17e8] sm:$0xff]
        %v1003 = vld [vmem:[%s188 + $0x17f0] sm:$0xff]
        %v1004 = vld [vmem:[%s188 + $0x17f8] sm:$0xff]
        %v1005 = vld [vmem:[%s188 + $0x1800] sm:$0xff]
        %v1006 = vld [vmem:[%s188 + $0x1808] sm:$0xff]
        %v1007 = vld [vmem:[%s188 + $0x1810] sm:$0xff]
        %v1008 = vld [vmem:[%s188 + $0x1818] sm:$0xff]
        %v1009 = vld [vmem:[%s188 + $0x1820] sm:$0xff]
        %v1010 = vld [vmem:[%s188 + $0x1828] sm:$0xff]
        %v1011 = vld [vmem:[%s188 + $0x1830] sm:$0xff]
        %v1012 = vld [vmem:[%s188 + $0x1838] sm:$0xff]
        %v1013 = vld [vmem:[%s188 + $0x1840] sm:$0xff]
        %v1014 = vld [vmem:[%s188 + $0x1848] sm:$0xff]
        %v1015 = vld [vmem:[%s188 + $0x1850] sm:$0xff]
        %v1016 = vld [vmem:[%s188 + $0x1858] sm:$0xff]
        %v1017 = vld [vmem:[%s188 + $0x1860] sm:$0xff]
        %v1018 = vld [vmem:[%s188 + $0x1868] sm:$0xff]
        %v1019 = vld [vmem:[%s188 + $0x1870] sm:$0xff]
        %v1020 = vld [vmem:[%s188 + $0x1878] sm:$0xff]
        %v1021 = vld [vmem:[%s188 + $0x1880] sm:$0xff]
        %v1022 = vld [vmem:[%s188 + $0x1888] sm:$0xff]
        %v1023 = vld [vmem:[%s188 + $0x1890] sm:$0xff]
        %v1024 = vld [vmem:[%s188 + $0x1898] sm:$0xff]
        %v1025 = vld [vmem:[%s188 + $0x18a0] sm:$0xff]
        %v1026 = vld [vmem:[%s188 + $0x18a8] sm:$0xff]
        %v1027 = vld [vmem:[%s188 + $0x18b0] sm:$0xff]
        %v1028 = vld [vmem:[%s188 + $0x18b8] sm:$0xff]
        %v1029 = vld [vmem:[%s188 + $0x18c0] sm:$0xff]
        %v1030 = vld [vmem:[%s188 + $0x18c8] sm:$0xff]
        %v1031 = vld [vmem:[%s188 + $0x18d0] sm:$0xff]
        %v1032 = vld [vmem:[%s188 + $0x18d8] sm:$0xff]
        %v1033 = vld [vmem:[%s188 + $0x18e0] sm:$0xff]
        %v1034 = vld [vmem:[%s188 + $0x18e8] sm:$0xff]
        %v1035 = vld [vmem:[%s188 + $0x18f0] sm:$0xff]
        %v1036 = vld [vmem:[%s188 + $0x18f8] sm:$0xff]
        %v1037 = vld [vmem:[%s188 + $0x1900] sm:$0xff]
        %v1038 = vld [vmem:[%s188 + $0x1908] sm:$0xff]
        %v1039 = vld [vmem:[%s188 + $0x1910] sm:$0xff]
        %v1040 = vld [vmem:[%s188 + $0x1918] sm:$0xff]
        %v1041 = vld [vmem:[%s188 + $0x1920] sm:$0xff]
        %v1042 = vld [vmem:[%s188 + $0x1928] sm:$0xff]
        %v1043 = vld [vmem:[%s188 + $0x1930] sm:$0xff]
        %v1044 = vld [vmem:[%s188 + $0x1938] sm:$0xff]
        %v1045 = vld [vmem:[%s188 + $0x1940] sm:$0xff]
        %v1046 = vld [vmem:[%s188 + $0x1948] sm:$0xff]
        %v1047 = vld [vmem:[%s188 + $0x1950] sm:$0xff]
        %v1048 = vld [vmem:[%s188 + $0x1958] sm:$0xff]
        %v1049 = vld [vmem:[%s188 + $0x1960] sm:$0xff]
        %v1050 = vld [vmem:[%s188 + $0x1968] sm:$0xff]
        %v1051 = vld [vmem:[%s188 + $0x1970] sm:$0xff]
        %v1052 = vld [vmem:[%s188 + $0x1978] sm:$0xff]
        %v1053 = vld [vmem:[%s188 + $0x1980] sm:$0xff]
        %v1054 = vld [vmem:[%s188 + $0x1988] sm:$0xff]
        %v1055 = vld [vmem:[%s188 + $0x1990] sm:$0xff]
        %v1056 = vld [vmem:[%s188 + $0x1998] sm:$0xff]
        %v1057 = vld [vmem:[%s188 + $0x19a0] sm:$0xff]
        %v1058 = vld [vmem:[%s188 + $0x19a8] sm:$0xff]
        %v1059 = vld [vmem:[%s188 + $0x19b0] sm:$0xff]
        %v1060 = vld [vmem:[%s188 + $0x19b8] sm:$0xff]
        %v1061 = vld [vmem:[%s188 + $0x19c0] sm:$0xff]
        %v1062 = vld [vmem:[%s188 + $0x19c8] sm:$0xff]
        %v1063 = vld [vmem:[%s188 + $0x19d0] sm:$0xff]
        %v1064 = vld [vmem:[%s188 + $0x19d8] sm:$0xff]
        %v1065 = vld [vmem:[%s188 + $0x19e0] sm:$0xff]
        %v1066 = vld [vmem:[%s188 + $0x19e8] sm:$0xff]
        %v1067 = vld [vmem:[%s188 + $0x19f0] sm:$0xff]
        %v1068 = vld [vmem:[%s188 + $0x19f8] sm:$0xff]
        %v1069 = vld [vmem:[%s188 + $0x1a00] sm:$0xff]
        %v1070 = vld [vmem:[%s188 + $0x1a08] sm:$0xff]
        %v1071 = vld [vmem:[%s188 + $0x1a10] sm:$0xff]
        %v1072 = vld [vmem:[%s188 + $0x1a18] sm:$0xff]
        %v1073 = vld [vmem:[%s188 + $0x1a20] sm:$0xff]
        %v1074 = vld [vmem:[%s188 + $0x1a28] sm:$0xff]
        %v1075 = vld [vmem:[%s188 + $0x1a30] sm:$0xff]
        %v1076 = vld [vmem:[%s188 + $0x1a38] sm:$0xff]
        %v1077 = vld [vmem:[%s188 + $0x1a40] sm:$0xff]
        %v1078 = vld [vmem:[%s188 + $0x1a48] sm:$0xff]
        %v1079 = vld [vmem:[%s188 + $0x1a50] sm:$0xff]
        %v1080 = vld [vmem:[%s188 + $0x1a58] sm:$0xff]
        %v1081 = vld [vmem:[%s188 + $0x1a60] sm:$0xff]
        %v1082 = vld [vmem:[%s188 + $0x1a68] sm:$0xff]
        %v1083 = vld [vmem:[%s188 + $0x1a70] sm:$0xff]
        %v1084 = vld [vmem:[%s188 + $0x1a78] sm:$0xff]
        %v1085 = vld [vmem:[%s188 + $0x1a80] sm:$0xff]
        %v1086 = vld [vmem:[%s188 + $0x1a88] sm:$0xff]
        %v1087 = vld [vmem:[%s188 + $0x1a90] sm:$0xff]
        %v1088 = vld [vmem:[%s188 + $0x1a98] sm:$0xff]
        %v1089 = vld [vmem:[%s188 + $0x1aa0] sm:$0xff]
        %v1090 = vld [vmem:[%s188 + $0x1aa8] sm:$0xff]
        %v1091 = vld [vmem:[%s188 + $0x1ab0] sm:$0xff]
        %v1092 = vld [vmem:[%s188 + $0x1ab8] sm:$0xff]
        %v1093 = vld [vmem:[%s188 + $0x1ac0] sm:$0xff]
        %v1094 = vld [vmem:[%s188 + $0x1ac8] sm:$0xff]
        %v1095 = vld [vmem:[%s188 + $0x1ad0] sm:$0xff]
        %v1096 = vld [vmem:[%s188 + $0x1ad8] sm:$0xff]
        %v1097 = vld [vmem:[%s188 + $0x1ae0] sm:$0xff]
        %v1098 = vld [vmem:[%s188 + $0x1ae8] sm:$0xff]
        %v1099 = vld [vmem:[%s188 + $0x1af0] sm:$0xff]
        %v1100 = vld [vmem:[%s188 + $0x1af8] sm:$0xff]
        %v1101 = vld [vmem:[%s188 + $0x1b00] sm:$0xff]
        %v1102 = vld [vmem:[%s188 + $0x1b08] sm:$0xff]
        %v1103 = vld [vmem:[%s188 + $0x1b10] sm:$0xff]
        %v1104 = vld [vmem:[%s188 + $0x1b18] sm:$0xff]
        %v1105 = vld [vmem:[%s188 + $0x1b20] sm:$0xff]
        %v1106 = vld [vmem:[%s188 + $0x1b28] sm:$0xff]
        %v1107 = vld [vmem:[%s188 + $0x1b30] sm:$0xff]
        %v1108 = vld [vmem:[%s188 + $0x1b38] sm:$0xff]
        %v1109 = vld [vmem:[%s188 + $0x1b40] sm:$0xff]
        %v1110 = vld [vmem:[%s188 + $0x1b48] sm:$0xff]
        %v1111 = vld [vmem:[%s188 + $0x1b50] sm:$0xff]
        %v1112 = vld [vmem:[%s188 + $0x1b58] sm:$0xff]
        %v1113 = vld [vmem:[%s188 + $0x1b60] sm:$0xff]
        %v1114 = vld [vmem:[%s188 + $0x1b68] sm:$0xff]
        %v1115 = vld [vmem:[%s188 + $0x1b70] sm:$0xff]
        %v1116 = vld [vmem:[%s188 + $0x1b78] sm:$0xff]
        %v1117 = vld [vmem:[%s188 + $0x1b80] sm:$0xff]
        %v1118 = vld [vmem:[%s188 + $0x1b88] sm:$0xff]
        %v1119 = vld [vmem:[%s188 + $0x1b90] sm:$0xff]
        %v1120 = vld [vmem:[%s188 + $0x1b98] sm:$0xff]
        %v1121 = vld [vmem:[%s188 + $0x1ba0] sm:$0xff]
        %v1122 = vld [vmem:[%s188 + $0x1ba8] sm:$0xff]
        %v1123 = vld [vmem:[%s188 + $0x1bb0] sm:$0xff]
        %v1124 = vld [vmem:[%s188 + $0x1bb8] sm:$0xff]
        %v1125 = vld [vmem:[%s188 + $0x1bc0] sm:$0xff]
        %v1126 = vld [vmem:[%s188 + $0x1bc8] sm:$0xff]
        %v1127 = vld [vmem:[%s188 + $0x1bd0] sm:$0xff]
        %v1128 = vld [vmem:[%s188 + $0x1bd8] sm:$0xff]
        %v1129 = vld [vmem:[%s188 + $0x1be0] sm:$0xff]
        %v1130 = vld [vmem:[%s188 + $0x1be8] sm:$0xff]
        %v1131 = vld [vmem:[%s188 + $0x1bf0] sm:$0xff]
        %v1132 = vld [vmem:[%s188 + $0x1bf8] sm:$0xff]
        %v1133 = vld [vmem:[%s188 + $0x1c00] sm:$0xff]
        %v1134 = vld [vmem:[%s188 + $0x1c08] sm:$0xff]
        %v1135 = vld [vmem:[%s188 + $0x1c10] sm:$0xff]
        %v1136 = vld [vmem:[%s188 + $0x1c18] sm:$0xff]
        %v1137 = vld [vmem:[%s188 + $0x1c20] sm:$0xff]
        %v1138 = vld [vmem:[%s188 + $0x1c28] sm:$0xff]
        %v1139 = vld [vmem:[%s188 + $0x1c30] sm:$0xff]
        %v1140 = vld [vmem:[%s188 + $0x1c38] sm:$0xff]
        %v1141 = vld [vmem:[%s188 + $0x1c40] sm:$0xff]
        %v1142 = vld [vmem:[%s188 + $0x1c48] sm:$0xff]
        %v1143 = vld [vmem:[%s188 + $0x1c50] sm:$0xff]
        %v1144 = vld [vmem:[%s188 + $0x1c58] sm:$0xff]
        %v1145 = vld [vmem:[%s188 + $0x1c60] sm:$0xff]
        %v1146 = vld [vmem:[%s188 + $0x1c68] sm:$0xff]
        %v1147 = vld [vmem:[%s188 + $0x1c70] sm:$0xff]
        %v1148 = vld [vmem:[%s188 + $0x1c78] sm:$0xff]
        %v1149 = vld [vmem:[%s188 + $0x1c80] sm:$0xff]
        %v1150 = vld [vmem:[%s188 + $0x1c88] sm:$0xff]
        %v1151 = vld [vmem:[%s188 + $0x1c90] sm:$0xff]
        %v1152 = vld [vmem:[%s188 + $0x1c98] sm:$0xff]
        %v1153 = vld [vmem:[%s188 + $0x1ca0] sm:$0xff]
        %v1154 = vld [vmem:[%s188 + $0x1ca8] sm:$0xff]
        %v1155 = vld [vmem:[%s188 + $0x1cb0] sm:$0xff]
        %v1156 = vld [vmem:[%s188 + $0x1cb8] sm:$0xff]
        %v1157 = vld [vmem:[%s188 + $0x1cc0] sm:$0xff]
        %v1158 = vld [vmem:[%s188 + $0x1cc8] sm:$0xff]
        %v1159 = vld [vmem:[%s188 + $0x1cd0] sm:$0xff]
        %v1160 = vld [vmem:[%s188 + $0x1cd8] sm:$0xff]
        %v1161 = vld [vmem:[%s188 + $0x1ce0] sm:$0xff]
        %v1162 = vld [vmem:[%s188 + $0x1ce8] sm:$0xff]
        %v1163 = vld [vmem:[%s188 + $0x1cf0] sm:$0xff]
        %v1164 = vld [vmem:[%s188 + $0x1cf8] sm:$0xff]
        %v1165 = vld [vmem:[%s188 + $0x1d00] sm:$0xff]
        %v1166 = vld [vmem:[%s188 + $0x1d08] sm:$0xff]
        %v1167 = vld [vmem:[%s188 + $0x1d10] sm:$0xff]
        %v1168 = vld [vmem:[%s188 + $0x1d18] sm:$0xff]
        %v1169 = vld [vmem:[%s188 + $0x1d20] sm:$0xff]
        %v1170 = vld [vmem:[%s188 + $0x1d28] sm:$0xff]
        %v1171 = vld [vmem:[%s188 + $0x1d30] sm:$0xff]
        %v1172 = vld [vmem:[%s188 + $0x1d38] sm:$0xff]
        %v1173 = vld [vmem:[%s188 + $0x1d40] sm:$0xff]
        %v1174 = vld [vmem:[%s188 + $0x1d48] sm:$0xff]
        %v1175 = vld [vmem:[%s188 + $0x1d50] sm:$0xff]
        %v1176 = vld [vmem:[%s188 + $0x1d58] sm:$0xff]
        %v1177 = vld [vmem:[%s188 + $0x1d60] sm:$0xff]
        %v1178 = vld [vmem:[%s188 + $0x1d68] sm:$0xff]
        %v1179 = vld [vmem:[%s188 + $0x1d70] sm:$0xff]
        %v1180 = vld [vmem:[%s188 + $0x1d78] sm:$0xff]
        %v1181 = vld [vmem:[%s188 + $0x1d80] sm:$0xff]
        %v1182 = vld [vmem:[%s188 + $0x1d88] sm:$0xff]
        %v1183 = vld [vmem:[%s188 + $0x1d90] sm:$0xff]
        %v1184 = vld [vmem:[%s188 + $0x1d98] sm:$0xff]
        %v1185 = vld [vmem:[%s188 + $0x1da0] sm:$0xff]
        %v1186 = vld [vmem:[%s188 + $0x1da8] sm:$0xff]
        %v1187 = vld [vmem:[%s188 + $0x1db0] sm:$0xff]
        %v1188 = vld [vmem:[%s188 + $0x1db8] sm:$0xff]
        %v1189 = vld [vmem:[%s188 + $0x1dc0] sm:$0xff]
        %v1190 = vld [vmem:[%s188 + $0x1dc8] sm:$0xff]
        %v1191 = vld [vmem:[%s188 + $0x1dd0] sm:$0xff]
        %v1192 = vld [vmem:[%s188 + $0x1dd8] sm:$0xff]
        %v1193 = vld [vmem:[%s188 + $0x1de0] sm:$0xff]
        %v1194 = vld [vmem:[%s188 + $0x1de8] sm:$0xff]
        %v1195 = vld [vmem:[%s188 + $0x1df0] sm:$0xff]
        %v1196 = vld [vmem:[%s188 + $0x1df8] sm:$0xff]
        %v1197 = vld [vmem:[%s188 + $0x1e00] sm:$0xff]
        %v1198 = vld [vmem:[%s188 + $0x1e08] sm:$0xff]
        %v1199 = vld [vmem:[%s188 + $0x1e10] sm:$0xff]
        %v1200 = vld [vmem:[%s188 + $0x1e18] sm:$0xff]
        %v1201 = vld [vmem:[%s188 + $0x1e20] sm:$0xff]
        %v1202 = vld [vmem:[%s188 + $0x1e28] sm:$0xff]
        %v1203 = vld [vmem:[%s188 + $0x1e30] sm:$0xff]
        %v1204 = vld [vmem:[%s188 + $0x1e38] sm:$0xff]
        %v1205 = vld [vmem:[%s188 + $0x1e40] sm:$0xff]
        %v1206 = vld [vmem:[%s188 + $0x1e48] sm:$0xff]
        %v1207 = vld [vmem:[%s188 + $0x1e50] sm:$0xff]
        %v1208 = vld [vmem:[%s188 + $0x1e58] sm:$0xff]
        %v1209 = vld [vmem:[%s188 + $0x1e60] sm:$0xff]
        %v1210 = vld [vmem:[%s188 + $0x1e68] sm:$0xff]
        %v1211 = vld [vmem:[%s188 + $0x1e70] sm:$0xff]
        %v1212 = vld [vmem:[%s188 + $0x1e78] sm:$0xff]
        %v1213 = vld [vmem:[%s188 + $0x1e80] sm:$0xff]
        %v1214 = vld [vmem:[%s188 + $0x1e88] sm:$0xff]
        %v1215 = vld [vmem:[%s188 + $0x1e90] sm:$0xff]
        %v1216 = vld [vmem:[%s188 + $0x1e98] sm:$0xff]
        %v1217 = vld [vmem:[%s188 + $0x1ea0] sm:$0xff]
        %v1218 = vld [vmem:[%s188 + $0x1ea8] sm:$0xff]
        %v1219 = vld [vmem:[%s188 + $0x1eb0] sm:$0xff]
        %v1220 = vld [vmem:[%s188 + $0x1eb8] sm:$0xff]
        %v1221 = vld [vmem:[%s188 + $0x1ec0] sm:$0xff]
        %v1222 = vld [vmem:[%s188 + $0x1ec8] sm:$0xff]
        %v1223 = vld [vmem:[%s188 + $0x1ed0] sm:$0xff]
        %v1224 = vld [vmem:[%s188 + $0x1ed8] sm:$0xff]
        %v1225 = vld [vmem:[%s188 + $0x1ee0] sm:$0xff]
        %v1226 = vld [vmem:[%s188 + $0x1ee8] sm:$0xff]
        %v1227 = vld [vmem:[%s188 + $0x1ef0] sm:$0xff]
        %v1228 = vld [vmem:[%s188 + $0x1ef8] sm:$0xff]
        %v1229 = vld [vmem:[%s188 + $0x1f00] sm:$0xff]
        %v1230 = vld [vmem:[%s188 + $0x1f08] sm:$0xff]
        %v1231 = vld [vmem:[%s188 + $0x1f10] sm:$0xff]
        %v1232 = vld [vmem:[%s188 + $0x1f18] sm:$0xff]
        %v1233 = vld [vmem:[%s188 + $0x1f20] sm:$0xff]
        %v1234 = vld [vmem:[%s188 + $0x1f28] sm:$0xff]
        %v1235 = vld [vmem:[%s188 + $0x1f30] sm:$0xff]
        %v1236 = vld [vmem:[%s188 + $0x1f38] sm:$0xff]
        %v1237 = vld [vmem:[%s188 + $0x1f40] sm:$0xff]
        %v1238 = vld [vmem:[%s188 + $0x1f48] sm:$0xff]
        %v1239 = vld [vmem:[%s188 + $0x1f50] sm:$0xff]
        %v1240 = vld [vmem:[%s188 + $0x1f58] sm:$0xff]
        %v1241 = vld [vmem:[%s188 + $0x1f60] sm:$0xff]
        %v1242 = vld [vmem:[%s188 + $0x1f68] sm:$0xff]
        %v1243 = vld [vmem:[%s188 + $0x1f70] sm:$0xff]
        %v1244 = vld [vmem:[%s188 + $0x1f78] sm:$0xff]
        %v1245 = vld [vmem:[%s188 + $0x1f80] sm:$0xff]
        %v1246 = vld [vmem:[%s188 + $0x1f88] sm:$0xff]
        %v1247 = vld [vmem:[%s188 + $0x1f90] sm:$0xff]
        %v1248 = vld [vmem:[%s188 + $0x1f98] sm:$0xff]
        %v1249 = vld [vmem:[%s188 + $0x1fa0] sm:$0xff]
        %v1250 = vld [vmem:[%s188 + $0x1fa8] sm:$0xff]
        %v1251 = vld [vmem:[%s188 + $0x1fb0] sm:$0xff]
        %v1252 = vld [vmem:[%s188 + $0x1fb8] sm:$0xff]
        %v1253 = vld [vmem:[%s188 + $0x1fc0] sm:$0xff]
        %v1254 = vld [vmem:[%s188 + $0x1fc8] sm:$0xff]
        %v1255 = vld [vmem:[%s188 + $0x1fd0] sm:$0xff]
        %v1256 = vld [vmem:[%s188 + $0x1fd8] sm:$0xff]
        %v1257 = vld [vmem:[%s188 + $0x1fe0] sm:$0xff]
        %v1258 = vld [vmem:[%s188 + $0x1fe8] sm:$0xff]
        %v1259 = vld [vmem:[%s188 + $0x1ff0] sm:$0xff]
        %v1260 = vld [vmem:[%s188 + $0x1ff8] sm:$0xff]
        %v1261 = vld [vmem:[%s197] sm:$0xf]
        %v1263 = vlaneseq
        %v1264 = vshrl.u32 %v1263, 7
        %v1265 = vsub.s32 0, %v1264
        %v1266 = vrot.slane %v1261, %v1265
        %v1267 = vlaneseq
        %v1268 = vshrl.u32 %v1267, 7
        %v1269 = vsub.s32 1, %v1268
        %v1270 = vrot.slane %v1261, %v1269
        %v1271 = vlaneseq
        %v1272 = vshrl.u32 %v1271, 7
        %v1273 = vsub.s32 2, %v1272
        %v1274 = vrot.slane %v1261, %v1273
        %v1275 = vlaneseq
        %v1276 = vshrl.u32 %v1275, 7
        %v1277 = vsub.s32 3, %v1276
        %v1278 = vrot.slane %v1261, %v1277
        %v1287 = vcombine.high %v233, %v233
        %v1289 = vunpack.c.l.s4 1983009808
        %v1290 = vunpack.c.0.s8 %v1289
        %v1291 = vlaneseq
        %v1292 = vshrl.u32 %v1291, 7
        %v1293 = vsub.s32 %v1290, %v1292
        %v1294 = vrot.slane %v233, %v1293
        %v1296 = vunpack.c.l.s4 1983009808
        %v1297 = vunpack.c.0.s8 %v1296
        %v1298 = vlaneseq
        %v1299 = vshrl.u32 %v1298, 7
        %v1300 = vsub.s32 %v1297, %v1299
        %v1301 = vrot.slane %v1287, %v1300
        %v1302 = vcombine.high %v1294, %v1294
        %v1303 = vcombine.high %v1301, %v1301
        %v1304 = vcombine.high %v234, %v234
        %v1306 = vunpack.c.l.s4 1983009808
        %v1307 = vunpack.c.0.s8 %v1306
        %v1308 = vlaneseq
        %v1309 = vshrl.u32 %v1308, 7
        %v1310 = vsub.s32 %v1307, %v1309
        %v1311 = vrot.slane %v234, %v1310
        %v1313 = vunpack.c.l.s4 1983009808
        %v1314 = vunpack.c.0.s8 %v1313
        %v1315 = vlaneseq
        %v1316 = vshrl.u32 %v1315, 7
        %v1317 = vsub.s32 %v1314, %v1316
        %v1318 = vrot.slane %v1304, %v1317
        %v1319 = vcombine.high %v1311, %v1311
        %v1320 = vcombine.high %v1318, %v1318
        %v1321 = vcombine.high %v235, %v235
        %v1323 = vunpack.c.l.s4 1983009808
        %v1324 = vunpack.c.0.s8 %v1323
        %v1325 = vlaneseq
        %v1326 = vshrl.u32 %v1325, 7
        %v1327 = vsub.s32 %v1324, %v1326
        %v1328 = vrot.slane %v235, %v1327
        %v1330 = vunpack.c.l.s4 1983009808
        %v1331 = vunpack.c.0.s8 %v1330
        %v1332 = vlaneseq
        %v1333 = vshrl.u32 %v1332, 7
        %v1334 = vsub.s32 %v1331, %v1333
        %v1335 = vrot.slane %v1321, %v1334
        %v1336 = vcombine.high %v1328, %v1328
        %v1337 = vcombine.high %v1335, %v1335
        %v1338 = vcombine.high %v236, %v236
        %v1340 = vunpack.c.l.s4 1983009808
        %v1341 = vunpack.c.0.s8 %v1340
        %v1342 = vlaneseq
        %v1343 = vshrl.u32 %v1342, 7
        %v1344 = vsub.s32 %v1341, %v1343
        %v1345 = vrot.slane %v236, %v1344
        %v1347 = vunpack.c.l.s4 1983009808
        %v1348 = vunpack.c.0.s8 %v1347
        %v1349 = vlaneseq
        %v1350 = vshrl.u32 %v1349, 7
        %v1351 = vsub.s32 %v1348, %v1350
        %v1352 = vrot.slane %v1338, %v1351
        %v1353 = vcombine.high %v1345, %v1345
        %v1354 = vcombine.high %v1352, %v1352
        %1371 = vmatprep.subr.mxu0 %v478
        %1372 = vmatpush1.xpose.msra.mxu0 %v477
        %1373 = vmatprep.subr.mxu0 %v462
        %1374 = vmatpush1.xpose.msra.mxu0 %v461
        %1375 = vmatprep.subr.mxu0 %v446
        %1376 = vmatpush1.xpose.msra.mxu0 %v445
        %1377 = vmatprep.subr.mxu0 %v430
        %1378 = vmatpush1.xpose.msra.mxu0 %v429
        %1379 = vmatprep.subr.mxu0 %v414
        %1380 = vmatpush1.xpose.msra.mxu0 %v413
        %1381 = vmatprep.subr.mxu0 %v398
        %1382 = vmatpush1.xpose.msra.mxu0 %v397
        %1383 = vmatprep.subr.mxu0 %v382
        %1384 = vmatpush1.xpose.msra.mxu0 %v381
        %1385 = vmatprep.subr.mxu0 %v366
        %1386 = vmatpush1.xpose.msra.mxu0 %v365
        %1387 = vmatprep.subr.mxu0 %v350
        %1388 = vmatpush1.xpose.msra.mxu0 %v349
        %1389 = vmatprep.subr.mxu0 %v334
        %1390 = vmatpush1.xpose.msra.mxu0 %v333
        %1391 = vmatprep.subr.mxu0 %v318
        %1392 = vmatpush1.xpose.msra.mxu0 %v317
        %1393 = vmatprep.subr.mxu0 %v302
        %1394 = vmatpush1.xpose.msra.mxu0 %v301
        %1395 = vmatprep.subr.mxu0 %v286
        %1396 = vmatpush1.xpose.msra.mxu0 %v285
        %1397 = vmatprep.subr.mxu0 %v270
        %1398 = vmatpush1.xpose.msra.mxu0 %v269
        %1399 = vmatprep.subr.mxu0 %v254
        %1400 = vmatpush1.xpose.msra.mxu0 %v253
        %1401 = vmatprep.subr.mxu0 %v238
        %1402 = vmatpush1.xpose.msra.mxu0 %v237
        %1403 = vmatprep.subr.mxu0 %v734
        %1404 = vmatpush2.xpose.msra.mxu0 %v733
        %1405 = vmatprep.subr.mxu0 %v718
        %1406 = vmatpush2.xpose.msra.mxu0 %v717
        %1407 = vmatprep.subr.mxu0 %v702
        %1408 = vmatpush2.xpose.msra.mxu0 %v701
        %1409 = vmatprep.subr.mxu0 %v686
        %1410 = vmatpush2.xpose.msra.mxu0 %v685
        %1411 = vmatprep.subr.mxu0 %v670
        %1412 = vmatpush2.xpose.msra.mxu0 %v669
        %1413 = vmatprep.subr.mxu0 %v654
        %1414 = vmatpush2.xpose.msra.mxu0 %v653
        %1415 = vmatprep.subr.mxu0 %v638
        %1416 = vmatpush2.xpose.msra.mxu0 %v637
        %1417 = vmatprep.subr.mxu0 %v622
        %1418 = vmatpush2.xpose.msra.mxu0 %v621
        %1419 = vmatprep.subr.mxu0 %v606
        %1420 = vmatpush2.xpose.msra.mxu0 %v605
        %1421 = vmatprep.subr.mxu0 %v590
        %1422 = vmatpush2.xpose.msra.mxu0 %v589
        %1423 = vmatprep.subr.mxu0 %v574
        %1424 = vmatpush2.xpose.msra.mxu0 %v573
        %1425 = vmatprep.subr.mxu0 %v558
        %1426 = vmatpush2.xpose.msra.mxu0 %v557
        %1427 = vmatprep.subr.mxu0 %v542
        %1428 = vmatpush2.xpose.msra.mxu0 %v541
        %1429 = vmatprep.subr.mxu0 %v526
        %1430 = vmatpush2.xpose.msra.mxu0 %v525
        %1431 = vmatprep.subr.mxu0 %v510
        %1432 = vmatpush2.xpose.msra.mxu0 %v509
        %1433 = vmatprep.subr.mxu0 %v494
        %1434 = vmatpush2.xpose.msra.mxu0 %v493
        %1435 = vmatprep.mubr.f32.mxu0 %v1302
        %1436 = vmatmul.mubr.f32.gmra.mxu0 %v1294
        %v1437 = vpop.f32.mrf.mxu0
        %v1438 = vadd.f32 %v1266, %v1437
        %v1439 = vpop.f32.mrf.mxu0
        %v1440 = vadd.f32 %v1270, %v1439
        %1441 = vdwg.mxu0
        %1442 = vmatprep.subr.mxu0 %v480
        %1443 = vmatpush1.xpose.msra.mxu0 %v479
        %1444 = vmatprep.subr.mxu0 %v464
        %1445 = vmatpush1.xpose.msra.mxu0 %v463
        %1446 = vmatprep.subr.mxu0 %v448
        %1447 = vmatpush1.xpose.msra.mxu0 %v447
        %1448 = vmatprep.subr.mxu0 %v432
        %1449 = vmatpush1.xpose.msra.mxu0 %v431
        %1450 = vmatprep.subr.mxu0 %v416
        %1451 = vmatpush1.xpose.msra.mxu0 %v415
        %1452 = vmatprep.subr.mxu0 %v400
        %1453 = vmatpush1.xpose.msra.mxu0 %v399
        %1454 = vmatprep.subr.mxu0 %v384
        %1455 = vmatpush1.xpose.msra.mxu0 %v383
        %1456 = vmatprep.subr.mxu0 %v368
        %1457 = vmatpush1.xpose.msra.mxu0 %v367
        %1458 = vmatprep.subr.mxu0 %v352
        %1459 = vmatpush1.xpose.msra.mxu0 %v351
        %1460 = vmatprep.subr.mxu0 %v336
        %1461 = vmatpush1.xpose.msra.mxu0 %v335
        %1462 = vmatprep.subr.mxu0 %v320
        %1463 = vmatpush1.xpose.msra.mxu0 %v319
        %1464 = vmatprep.subr.mxu0 %v304
        %1465 = vmatpush1.xpose.msra.mxu0 %v303
        %1466 = vmatprep.subr.mxu0 %v288
        %1467 = vmatpush1.xpose.msra.mxu0 %v287
        %1468 = vmatprep.subr.mxu0 %v272
        %1469 = vmatpush1.xpose.msra.mxu0 %v271
        %1470 = vmatprep.subr.mxu0 %v256
        %1471 = vmatpush1.xpose.msra.mxu0 %v255
        %1472 = vmatprep.subr.mxu0 %v240
        %1473 = vmatpush1.xpose.msra.mxu0 %v239
        %1474 = vmatprep.subr.mxu0 %v736
        %1475 = vmatpush2.xpose.msra.mxu0 %v735
        %1476 = vmatprep.subr.mxu0 %v720
        %1477 = vmatpush2.xpose.msra.mxu0 %v719
        %1478 = vmatprep.subr.mxu0 %v704
        %1479 = vmatpush2.xpose.msra.mxu0 %v703
        %1480 = vmatprep.subr.mxu0 %v688
        %1481 = vmatpush2.xpose.msra.mxu0 %v687
        %1482 = vmatprep.subr.mxu0 %v672
        %1483 = vmatpush2.xpose.msra.mxu0 %v671
        %1484 = vmatprep.subr.mxu0 %v656
        %1485 = vmatpush2.xpose.msra.mxu0 %v655
        %1486 = vmatprep.subr.mxu0 %v640
        %1487 = vmatpush2.xpose.msra.mxu0 %v639
        %1488 = vmatprep.subr.mxu0 %v624
        %1489 = vmatpush2.xpose.msra.mxu0 %v623
        %1490 = vmatprep.subr.mxu0 %v608
        %1491 = vmatpush2.xpose.msra.mxu0 %v607
        %1492 = vmatprep.subr.mxu0 %v592
        %1493 = vmatpush2.xpose.msra.mxu0 %v591
        %1494 = vmatprep.subr.mxu0 %v576
        %1495 = vmatpush2.xpose.msra.mxu0 %v575
        %1496 = vmatprep.subr.mxu0 %v560
        %1497 = vmatpush2.xpose.msra.mxu0 %v559
        %1498 = vmatprep.subr.mxu0 %v544
        %1499 = vmatpush2.xpose.msra.mxu0 %v543
        %1500 = vmatprep.subr.mxu0 %v528
        %1501 = vmatpush2.xpose.msra.mxu0 %v527
        %1502 = vmatprep.subr.mxu0 %v512
        %1503 = vmatpush2.xpose.msra.mxu0 %v511
        %1504 = vmatprep.subr.mxu0 %v496
        %1505 = vmatpush2.xpose.msra.mxu0 %v495
        %1506 = vmatprep.mubr.f32.mxu0 %v1303
        %1507 = vmatmul.mubr.f32.gmra.mxu0 %v1301
        %v1508 = vpop.f32.mrf.mxu0
        %v1509 = vadd.f32 %v1438, %v1508
        %v1510 = vpop.f32.mrf.mxu0
        %v1511 = vadd.f32 %v1440, %v1510
        %1512 = vdwg.mxu0
        %1513 = vmatprep.subr.mxu0 %v482
        %1514 = vmatpush1.xpose.msra.mxu0 %v481
        %1515 = vmatprep.subr.mxu0 %v466
        %1516 = vmatpush1.xpose.msra.mxu0 %v465
        %1517 = vmatprep.subr.mxu0 %v450
        %1518 = vmatpush1.xpose.msra.mxu0 %v449
        %1519 = vmatprep.subr.mxu0 %v434
        %1520 = vmatpush1.xpose.msra.mxu0 %v433
        %1521 = vmatprep.subr.mxu0 %v418
        %1522 = vmatpush1.xpose.msra.mxu0 %v417
        %1523 = vmatprep.subr.mxu0 %v402
        %1524 = vmatpush1.xpose.msra.mxu0 %v401
        %1525 = vmatprep.subr.mxu0 %v386
        %1526 = vmatpush1.xpose.msra.mxu0 %v385
        %1527 = vmatprep.subr.mxu0 %v370
        %1528 = vmatpush1.xpose.msra.mxu0 %v369
        %1529 = vmatprep.subr.mxu0 %v354
        %1530 = vmatpush1.xpose.msra.mxu0 %v353
        %1531 = vmatprep.subr.mxu0 %v338
        %1532 = vmatpush1.xpose.msra.mxu0 %v337
        %1533 = vmatprep.subr.mxu0 %v322
        %1534 = vmatpush1.xpose.msra.mxu0 %v321
        %1535 = vmatprep.subr.mxu0 %v306
        %1536 = vmatpush1.xpose.msra.mxu0 %v305
        %1537 = vmatprep.subr.mxu0 %v290
        %1538 = vmatpush1.xpose.msra.mxu0 %v289
        %1539 = vmatprep.subr.mxu0 %v274
        %1540 = vmatpush1.xpose.msra.mxu0 %v273
        %1541 = vmatprep.subr.mxu0 %v258
        %1542 = vmatpush1.xpose.msra.mxu0 %v257
        %1543 = vmatprep.subr.mxu0 %v242
        %1544 = vmatpush1.xpose.msra.mxu0 %v241
        %1545 = vmatprep.subr.mxu0 %v738
        %1546 = vmatpush2.xpose.msra.mxu0 %v737
        %1547 = vmatprep.subr.mxu0 %v722
        %1548 = vmatpush2.xpose.msra.mxu0 %v721
        %1549 = vmatprep.subr.mxu0 %v706
        %1550 = vmatpush2.xpose.msra.mxu0 %v705
        %1551 = vmatprep.subr.mxu0 %v690
        %1552 = vmatpush2.xpose.msra.mxu0 %v689
        %1553 = vmatprep.subr.mxu0 %v674
        %1554 = vmatpush2.xpose.msra.mxu0 %v673
        %1555 = vmatprep.subr.mxu0 %v658
        %1556 = vmatpush2.xpose.msra.mxu0 %v657
        %1557 = vmatprep.subr.mxu0 %v642
        %1558 = vmatpush2.xpose.msra.mxu0 %v641
        %1559 = vmatprep.subr.mxu0 %v626
        %1560 = vmatpush2.xpose.msra.mxu0 %v625
        %1561 = vmatprep.subr.mxu0 %v610
        %1562 = vmatpush2.xpose.msra.mxu0 %v609
        %1563 = vmatprep.subr.mxu0 %v594
        %1564 = vmatpush2.xpose.msra.mxu0 %v593
        %1565 = vmatprep.subr.mxu0 %v578
        %1566 = vmatpush2.xpose.msra.mxu0 %v577
        %1567 = vmatprep.subr.mxu0 %v562
        %1568 = vmatpush2.xpose.msra.mxu0 %v561
        %1569 = vmatprep.subr.mxu0 %v546
        %1570 = vmatpush2.xpose.msra.mxu0 %v545
        %1571 = vmatprep.subr.mxu0 %v530
        %1572 = vmatpush2.xpose.msra.mxu0 %v529
        %1573 = vmatprep.subr.mxu0 %v514
        %1574 = vmatpush2.xpose.msra.mxu0 %v513
        %1575 = vmatprep.subr.mxu0 %v498
        %1576 = vmatpush2.xpose.msra.mxu0 %v497
        %1577 = vmatprep.mubr.f32.mxu0 %v1319
        %1578 = vmatmul.mubr.f32.gmra.mxu0 %v1311
        %v1579 = vpop.f32.mrf.mxu0
        %v1580 = vadd.f32 %v1509, %v1579
        %v1581 = vpop.f32.mrf.mxu0
        %v1582 = vadd.f32 %v1511, %v1581
        %1583 = vdwg.mxu0
        %1584 = vmatprep.subr.mxu0 %v484
        %1585 = vmatpush1.xpose.msra.mxu0 %v483
        %1586 = vmatprep.subr.mxu0 %v468
        %1587 = vmatpush1.xpose.msra.mxu0 %v467
        %1588 = vmatprep.subr.mxu0 %v452
        %1589 = vmatpush1.xpose.msra.mxu0 %v451
        %1590 = vmatprep.subr.mxu0 %v436
        %1591 = vmatpush1.xpose.msra.mxu0 %v435
        %1592 = vmatprep.subr.mxu0 %v420
        %1593 = vmatpush1.xpose.msra.mxu0 %v419
        %1594 = vmatprep.subr.mxu0 %v404
        %1595 = vmatpush1.xpose.msra.mxu0 %v403
        %1596 = vmatprep.subr.mxu0 %v388
        %1597 = vmatpush1.xpose.msra.mxu0 %v387
        %1598 = vmatprep.subr.mxu0 %v372
        %1599 = vmatpush1.xpose.msra.mxu0 %v371
        %1600 = vmatprep.subr.mxu0 %v356
        %1601 = vmatpush1.xpose.msra.mxu0 %v355
        %1602 = vmatprep.subr.mxu0 %v340
        %1603 = vmatpush1.xpose.msra.mxu0 %v339
        %1604 = vmatprep.subr.mxu0 %v324
        %1605 = vmatpush1.xpose.msra.mxu0 %v323
        %1606 = vmatprep.subr.mxu0 %v308
        %1607 = vmatpush1.xpose.msra.mxu0 %v307
        %1608 = vmatprep.subr.mxu0 %v292
        %1609 = vmatpush1.xpose.msra.mxu0 %v291
        %1610 = vmatprep.subr.mxu0 %v276
        %1611 = vmatpush1.xpose.msra.mxu0 %v275
        %1612 = vmatprep.subr.mxu0 %v260
        %1613 = vmatpush1.xpose.msra.mxu0 %v259
        %1614 = vmatprep.subr.mxu0 %v244
        %1615 = vmatpush1.xpose.msra.mxu0 %v243
        %1616 = vmatprep.subr.mxu0 %v740
        %1617 = vmatpush2.xpose.msra.mxu0 %v739
        %1618 = vmatprep.subr.mxu0 %v724
        %1619 = vmatpush2.xpose.msra.mxu0 %v723
        %1620 = vmatprep.subr.mxu0 %v708
        %1621 = vmatpush2.xpose.msra.mxu0 %v707
        %1622 = vmatprep.subr.mxu0 %v692
        %1623 = vmatpush2.xpose.msra.mxu0 %v691
        %1624 = vmatprep.subr.mxu0 %v676
        %1625 = vmatpush2.xpose.msra.mxu0 %v675
        %1626 = vmatprep.subr.mxu0 %v660
        %1627 = vmatpush2.xpose.msra.mxu0 %v659
        %1628 = vmatprep.subr.mxu0 %v644
        %1629 = vmatpush2.xpose.msra.mxu0 %v643
        %1630 = vmatprep.subr.mxu0 %v628
        %1631 = vmatpush2.xpose.msra.mxu0 %v627
        %1632 = vmatprep.subr.mxu0 %v612
        %1633 = vmatpush2.xpose.msra.mxu0 %v611
        %1634 = vmatprep.subr.mxu0 %v596
        %1635 = vmatpush2.xpose.msra.mxu0 %v595
        %1636 = vmatprep.subr.mxu0 %v580
        %1637 = vmatpush2.xpose.msra.mxu0 %v579
        %1638 = vmatprep.subr.mxu0 %v564
        %1639 = vmatpush2.xpose.msra.mxu0 %v563
        %1640 = vmatprep.subr.mxu0 %v548
        %1641 = vmatpush2.xpose.msra.mxu0 %v547
        %1642 = vmatprep.subr.mxu0 %v532
        %1643 = vmatpush2.xpose.msra.mxu0 %v531
        %1644 = vmatprep.subr.mxu0 %v516
        %1645 = vmatpush2.xpose.msra.mxu0 %v515
        %1646 = vmatprep.subr.mxu0 %v500
        %1647 = vmatpush2.xpose.msra.mxu0 %v499
        %1648 = vmatprep.mubr.f32.mxu0 %v1320
        %1649 = vmatmul.mubr.f32.gmra.mxu0 %v1318
        %v1650 = vpop.f32.mrf.mxu0
        %v1651 = vadd.f32 %v1580, %v1650
        %v1652 = vpop.f32.mrf.mxu0
        %v1653 = vadd.f32 %v1582, %v1652
        %1654 = vdwg.mxu0
        %1655 = vmatprep.subr.mxu0 %v486
        %1656 = vmatpush1.xpose.msra.mxu0 %v485
        %1657 = vmatprep.subr.mxu0 %v470
        %1658 = vmatpush1.xpose.msra.mxu0 %v469
        %1659 = vmatprep.subr.mxu0 %v454
        %1660 = vmatpush1.xpose.msra.mxu0 %v453
        %1661 = vmatprep.subr.mxu0 %v438
        %1662 = vmatpush1.xpose.msra.mxu0 %v437
        %1663 = vmatprep.subr.mxu0 %v422
        %1664 = vmatpush1.xpose.msra.mxu0 %v421
        %1665 = vmatprep.subr.mxu0 %v406
        %1666 = vmatpush1.xpose.msra.mxu0 %v405
        %1667 = vmatprep.subr.mxu0 %v390
        %1668 = vmatpush1.xpose.msra.mxu0 %v389
        %1669 = vmatprep.subr.mxu0 %v374
        %1670 = vmatpush1.xpose.msra.mxu0 %v373
        %1671 = vmatprep.subr.mxu0 %v358
        %1672 = vmatpush1.xpose.msra.mxu0 %v357
        %1673 = vmatprep.subr.mxu0 %v342
        %1674 = vmatpush1.xpose.msra.mxu0 %v341
        %1675 = vmatprep.subr.mxu0 %v326
        %1676 = vmatpush1.xpose.msra.mxu0 %v325
        %1677 = vmatprep.subr.mxu0 %v310
        %1678 = vmatpush1.xpose.msra.mxu0 %v309
        %1679 = vmatprep.subr.mxu0 %v294
        %1680 = vmatpush1.xpose.msra.mxu0 %v293
        %1681 = vmatprep.subr.mxu0 %v278
        %1682 = vmatpush1.xpose.msra.mxu0 %v277
        %1683 = vmatprep.subr.mxu0 %v262
        %1684 = vmatpush1.xpose.msra.mxu0 %v261
        %1685 = vmatprep.subr.mxu0 %v246
        %1686 = vmatpush1.xpose.msra.mxu0 %v245
        %1687 = vmatprep.subr.mxu0 %v742
        %1688 = vmatpush2.xpose.msra.mxu0 %v741
        %1689 = vmatprep.subr.mxu0 %v726
        %1690 = vmatpush2.xpose.msra.mxu0 %v725
        %1691 = vmatprep.subr.mxu0 %v710
        %1692 = vmatpush2.xpose.msra.mxu0 %v709
        %1693 = vmatprep.subr.mxu0 %v694
        %1694 = vmatpush2.xpose.msra.mxu0 %v693
        %1695 = vmatprep.subr.mxu0 %v678
        %1696 = vmatpush2.xpose.msra.mxu0 %v677
        %1697 = vmatprep.subr.mxu0 %v662
        %1698 = vmatpush2.xpose.msra.mxu0 %v661
        %1699 = vmatprep.subr.mxu0 %v646
        %1700 = vmatpush2.xpose.msra.mxu0 %v645
        %1701 = vmatprep.subr.mxu0 %v630
        %1702 = vmatpush2.xpose.msra.mxu0 %v629
        %1703 = vmatprep.subr.mxu0 %v614
        %1704 = vmatpush2.xpose.msra.mxu0 %v613
        %1705 = vmatprep.subr.mxu0 %v598
        %1706 = vmatpush2.xpose.msra.mxu0 %v597
        %1707 = vmatprep.subr.mxu0 %v582
        %1708 = vmatpush2.xpose.msra.mxu0 %v581
        %1709 = vmatprep.subr.mxu0 %v566
        %1710 = vmatpush2.xpose.msra.mxu0 %v565
        %1711 = vmatprep.subr.mxu0 %v550
        %1712 = vmatpush2.xpose.msra.mxu0 %v549
        %1713 = vmatprep.subr.mxu0 %v534
        %1714 = vmatpush2.xpose.msra.mxu0 %v533
        %1715 = vmatprep.subr.mxu0 %v518
        %1716 = vmatpush2.xpose.msra.mxu0 %v517
        %1717 = vmatprep.subr.mxu0 %v502
        %1718 = vmatpush2.xpose.msra.mxu0 %v501
        %1719 = vmatprep.mubr.f32.mxu0 %v1336
        %1720 = vmatmul.mubr.f32.gmra.mxu0 %v1328
        %v1721 = vpop.f32.mrf.mxu0
        %v1722 = vadd.f32 %v1651, %v1721
        %v1723 = vpop.f32.mrf.mxu0
        %v1724 = vadd.f32 %v1653, %v1723
        %1725 = vdwg.mxu0
        %1726 = vmatprep.subr.mxu0 %v488
        %1727 = vmatpush1.xpose.msra.mxu0 %v487
        %1728 = vmatprep.subr.mxu0 %v472
        %1729 = vmatpush1.xpose.msra.mxu0 %v471
        %1730 = vmatprep.subr.mxu0 %v456
        %1731 = vmatpush1.xpose.msra.mxu0 %v455
        %1732 = vmatprep.subr.mxu0 %v440
        %1733 = vmatpush1.xpose.msra.mxu0 %v439
        %1734 = vmatprep.subr.mxu0 %v424
        %1735 = vmatpush1.xpose.msra.mxu0 %v423
        %1736 = vmatprep.subr.mxu0 %v408
        %1737 = vmatpush1.xpose.msra.mxu0 %v407
        %1738 = vmatprep.subr.mxu0 %v392
        %1739 = vmatpush1.xpose.msra.mxu0 %v391
        %1740 = vmatprep.subr.mxu0 %v376
        %1741 = vmatpush1.xpose.msra.mxu0 %v375
        %1742 = vmatprep.subr.mxu0 %v360
        %1743 = vmatpush1.xpose.msra.mxu0 %v359
        %1744 = vmatprep.subr.mxu0 %v344
        %1745 = vmatpush1.xpose.msra.mxu0 %v343
        %1746 = vmatprep.subr.mxu0 %v328
        %1747 = vmatpush1.xpose.msra.mxu0 %v327
        %1748 = vmatprep.subr.mxu0 %v312
        %1749 = vmatpush1.xpose.msra.mxu0 %v311
        %1750 = vmatprep.subr.mxu0 %v296
        %1751 = vmatpush1.xpose.msra.mxu0 %v295
        %1752 = vmatprep.subr.mxu0 %v280
        %1753 = vmatpush1.xpose.msra.mxu0 %v279
        %1754 = vmatprep.subr.mxu0 %v264
        %1755 = vmatpush1.xpose.msra.mxu0 %v263
        %1756 = vmatprep.subr.mxu0 %v248
        %1757 = vmatpush1.xpose.msra.mxu0 %v247
        %1758 = vmatprep.subr.mxu0 %v744
        %1759 = vmatpush2.xpose.msra.mxu0 %v743
        %1760 = vmatprep.subr.mxu0 %v728
        %1761 = vmatpush2.xpose.msra.mxu0 %v727
        %1762 = vmatprep.subr.mxu0 %v712
        %1763 = vmatpush2.xpose.msra.mxu0 %v711
        %1764 = vmatprep.subr.mxu0 %v696
        %1765 = vmatpush2.xpose.msra.mxu0 %v695
        %1766 = vmatprep.subr.mxu0 %v680
        %1767 = vmatpush2.xpose.msra.mxu0 %v679
        %1768 = vmatprep.subr.mxu0 %v664
        %1769 = vmatpush2.xpose.msra.mxu0 %v663
        %1770 = vmatprep.subr.mxu0 %v648
        %1771 = vmatpush2.xpose.msra.mxu0 %v647
        %1772 = vmatprep.subr.mxu0 %v632
        %1773 = vmatpush2.xpose.msra.mxu0 %v631
        %1774 = vmatprep.subr.mxu0 %v616
        %1775 = vmatpush2.xpose.msra.mxu0 %v615
        %1776 = vmatprep.subr.mxu0 %v600
        %1777 = vmatpush2.xpose.msra.mxu0 %v599
        %1778 = vmatprep.subr.mxu0 %v584
        %1779 = vmatpush2.xpose.msra.mxu0 %v583
        %1780 = vmatprep.subr.mxu0 %v568
        %1781 = vmatpush2.xpose.msra.mxu0 %v567
        %1782 = vmatprep.subr.mxu0 %v552
        %1783 = vmatpush2.xpose.msra.mxu0 %v551
        %1784 = vmatprep.subr.mxu0 %v536
        %1785 = vmatpush2.xpose.msra.mxu0 %v535
        %1786 = vmatprep.subr.mxu0 %v520
        %1787 = vmatpush2.xpose.msra.mxu0 %v519
        %1788 = vmatprep.subr.mxu0 %v504
        %1789 = vmatpush2.xpose.msra.mxu0 %v503
        %1790 = vmatprep.mubr.f32.mxu0 %v1337
        %1791 = vmatmul.mubr.f32.gmra.mxu0 %v1335
        %v1792 = vpop.f32.mrf.mxu0
        %v1793 = vadd.f32 %v1722, %v1792
        %v1794 = vpop.f32.mrf.mxu0
        %v1795 = vadd.f32 %v1724, %v1794
        %1796 = vdwg.mxu0
        %1797 = vmatprep.subr.mxu0 %v490
        %1798 = vmatpush1.xpose.msra.mxu0 %v489
        %1799 = vmatprep.subr.mxu0 %v474
        %1800 = vmatpush1.xpose.msra.mxu0 %v473
        %1801 = vmatprep.subr.mxu0 %v458
        %1802 = vmatpush1.xpose.msra.mxu0 %v457
        %1803 = vmatprep.subr.mxu0 %v442
        %1804 = vmatpush1.xpose.msra.mxu0 %v441
        %1805 = vmatprep.subr.mxu0 %v426
        %1806 = vmatpush1.xpose.msra.mxu0 %v425
        %1807 = vmatprep.subr.mxu0 %v410
        %1808 = vmatpush1.xpose.msra.mxu0 %v409
        %1809 = vmatprep.subr.mxu0 %v394
        %1810 = vmatpush1.xpose.msra.mxu0 %v393
        %1811 = vmatprep.subr.mxu0 %v378
        %1812 = vmatpush1.xpose.msra.mxu0 %v377
        %1813 = vmatprep.subr.mxu0 %v362
        %1814 = vmatpush1.xpose.msra.mxu0 %v361
        %1815 = vmatprep.subr.mxu0 %v346
        %1816 = vmatpush1.xpose.msra.mxu0 %v345
        %1817 = vmatprep.subr.mxu0 %v330
        %1818 = vmatpush1.xpose.msra.mxu0 %v329
        %1819 = vmatprep.subr.mxu0 %v314
        %1820 = vmatpush1.xpose.msra.mxu0 %v313
        %1821 = vmatprep.subr.mxu0 %v298
        %1822 = vmatpush1.xpose.msra.mxu0 %v297
        %1823 = vmatprep.subr.mxu0 %v282
        %1824 = vmatpush1.xpose.msra.mxu0 %v281
        %1825 = vmatprep.subr.mxu0 %v266
        %1826 = vmatpush1.xpose.msra.mxu0 %v265
        %1827 = vmatprep.subr.mxu0 %v250
        %1828 = vmatpush1.xpose.msra.mxu0 %v249
        %1829 = vmatprep.subr.mxu0 %v746
        %1830 = vmatpush2.xpose.msra.mxu0 %v745
        %1831 = vmatprep.subr.mxu0 %v730
        %1832 = vmatpush2.xpose.msra.mxu0 %v729
        %1833 = vmatprep.subr.mxu0 %v714
        %1834 = vmatpush2.xpose.msra.mxu0 %v713
        %1835 = vmatprep.subr.mxu0 %v698
        %1836 = vmatpush2.xpose.msra.mxu0 %v697
        %1837 = vmatprep.subr.mxu0 %v682
        %1838 = vmatpush2.xpose.msra.mxu0 %v681
        %1839 = vmatprep.subr.mxu0 %v666
        %1840 = vmatpush2.xpose.msra.mxu0 %v665
        %1841 = vmatprep.subr.mxu0 %v650
        %1842 = vmatpush2.xpose.msra.mxu0 %v649
        %1843 = vmatprep.subr.mxu0 %v634
        %1844 = vmatpush2.xpose.msra.mxu0 %v633
        %1845 = vmatprep.subr.mxu0 %v618
        %1846 = vmatpush2.xpose.msra.mxu0 %v617
        %1847 = vmatprep.subr.mxu0 %v602
        %1848 = vmatpush2.xpose.msra.mxu0 %v601
        %1849 = vmatprep.subr.mxu0 %v586
        %1850 = vmatpush2.xpose.msra.mxu0 %v585
        %1851 = vmatprep.subr.mxu0 %v570
        %1852 = vmatpush2.xpose.msra.mxu0 %v569
        %1853 = vmatprep.subr.mxu0 %v554
        %1854 = vmatpush2.xpose.msra.mxu0 %v553
        %1855 = vmatprep.subr.mxu0 %v538
        %1856 = vmatpush2.xpose.msra.mxu0 %v537
        %1857 = vmatprep.subr.mxu0 %v522
        %1858 = vmatpush2.xpose.msra.mxu0 %v521
        %1859 = vmatprep.subr.mxu0 %v506
        %1860 = vmatpush2.xpose.msra.mxu0 %v505
        %1861 = vmatprep.mubr.f32.mxu0 %v1353
        %1862 = vmatmul.mubr.f32.gmra.mxu0 %v1345
        %v1863 = vpop.f32.mrf.mxu0
        %v1864 = vadd.f32 %v1793, %v1863
        %v1865 = vpop.f32.mrf.mxu0
        %v1866 = vadd.f32 %v1795, %v1865
        %1867 = vdwg.mxu0
        %1868 = vmatprep.subr.mxu0 %v492
        %1869 = vmatpush1.xpose.msra.mxu0 %v491
        %1870 = vmatprep.subr.mxu0 %v476
        %1871 = vmatpush1.xpose.msra.mxu0 %v475
        %1872 = vmatprep.subr.mxu0 %v460
        %1873 = vmatpush1.xpose.msra.mxu0 %v459
        %1874 = vmatprep.subr.mxu0 %v444
        %1875 = vmatpush1.xpose.msra.mxu0 %v443
        %1876 = vmatprep.subr.mxu0 %v428
        %1877 = vmatpush1.xpose.msra.mxu0 %v427
        %1878 = vmatprep.subr.mxu0 %v412
        %1879 = vmatpush1.xpose.msra.mxu0 %v411
        %1880 = vmatprep.subr.mxu0 %v396
        %1881 = vmatpush1.xpose.msra.mxu0 %v395
        %1882 = vmatprep.subr.mxu0 %v380
        %1883 = vmatpush1.xpose.msra.mxu0 %v379
        %1884 = vmatprep.subr.mxu0 %v364
        %1885 = vmatpush1.xpose.msra.mxu0 %v363
        %1886 = vmatprep.subr.mxu0 %v348
        %1887 = vmatpush1.xpose.msra.mxu0 %v347
        %1888 = vmatprep.subr.mxu0 %v332
        %1889 = vmatpush1.xpose.msra.mxu0 %v331
        %1890 = vmatprep.subr.mxu0 %v316
        %1891 = vmatpush1.xpose.msra.mxu0 %v315
        %1892 = vmatprep.subr.mxu0 %v300
        %1893 = vmatpush1.xpose.msra.mxu0 %v299
        %1894 = vmatprep.subr.mxu0 %v284
        %1895 = vmatpush1.xpose.msra.mxu0 %v283
        %1896 = vmatprep.subr.mxu0 %v268
        %1897 = vmatpush1.xpose.msra.mxu0 %v267
        %1898 = vmatprep.subr.mxu0 %v252
        %1899 = vmatpush1.xpose.msra.mxu0 %v251
        %1900 = vmatprep.subr.mxu0 %v748
        %1901 = vmatpush2.xpose.msra.mxu0 %v747
        %1902 = vmatprep.subr.mxu0 %v732
        %1903 = vmatpush2.xpose.msra.mxu0 %v731
        %1904 = vmatprep.subr.mxu0 %v716
        %1905 = vmatpush2.xpose.msra.mxu0 %v715
        %1906 = vmatprep.subr.mxu0 %v700
        %1907 = vmatpush2.xpose.msra.mxu0 %v699
        %1908 = vmatprep.subr.mxu0 %v684
        %1909 = vmatpush2.xpose.msra.mxu0 %v683
        %1910 = vmatprep.subr.mxu0 %v668
        %1911 = vmatpush2.xpose.msra.mxu0 %v667
        %1912 = vmatprep.subr.mxu0 %v652
        %1913 = vmatpush2.xpose.msra.mxu0 %v651
        %1914 = vmatprep.subr.mxu0 %v636
        %1915 = vmatpush2.xpose.msra.mxu0 %v635
        %1916 = vmatprep.subr.mxu0 %v620
        %1917 = vmatpush2.xpose.msra.mxu0 %v619
        %1918 = vmatprep.subr.mxu0 %v604
        %1919 = vmatpush2.xpose.msra.mxu0 %v603
        %1920 = vmatprep.subr.mxu0 %v588
        %1921 = vmatpush2.xpose.msra.mxu0 %v587
        %1922 = vmatprep.subr.mxu0 %v572
        %1923 = vmatpush2.xpose.msra.mxu0 %v571
        %1924 = vmatprep.subr.mxu0 %v556
        %1925 = vmatpush2.xpose.msra.mxu0 %v555
        %1926 = vmatprep.subr.mxu0 %v540
        %1927 = vmatpush2.xpose.msra.mxu0 %v539
        %1928 = vmatprep.subr.mxu0 %v524
        %1929 = vmatpush2.xpose.msra.mxu0 %v523
        %1930 = vmatprep.subr.mxu0 %v508
        %1931 = vmatpush2.xpose.msra.mxu0 %v507
        %1932 = vmatprep.mubr.f32.mxu0 %v1354
        %1933 = vmatmul.mubr.f32.gmra.mxu0 %v1352
        %v1934 = vpop.f32.mrf.mxu0
        %v1935 = vadd.f32 %v1864, %v1934
        %v1936 = vpop.f32.mrf.mxu0
        %v1937 = vadd.f32 %v1866, %v1936
        %1938 = vdwg.mxu0
        %1939 = vmatprep.subr.mxu0 %v990
        %1940 = vmatpush1.xpose.msra.mxu0 %v989
        %1941 = vmatprep.subr.mxu0 %v974
        %1942 = vmatpush1.xpose.msra.mxu0 %v973
        %1943 = vmatprep.subr.mxu0 %v958
        %1944 = vmatpush1.xpose.msra.mxu0 %v957
        %1945 = vmatprep.subr.mxu0 %v942
        %1946 = vmatpush1.xpose.msra.mxu0 %v941
        %1947 = vmatprep.subr.mxu0 %v926
        %1948 = vmatpush1.xpose.msra.mxu0 %v925
        %1949 = vmatprep.subr.mxu0 %v910
        %1950 = vmatpush1.xpose.msra.mxu0 %v909
        %1951 = vmatprep.subr.mxu0 %v894
        %1952 = vmatpush1.xpose.msra.mxu0 %v893
        %1953 = vmatprep.subr.mxu0 %v878
        %1954 = vmatpush1.xpose.msra.mxu0 %v877
        %1955 = vmatprep.subr.mxu0 %v862
        %1956 = vmatpush1.xpose.msra.mxu0 %v861
        %1957 = vmatprep.subr.mxu0 %v846
        %1958 = vmatpush1.xpose.msra.mxu0 %v845
        %1959 = vmatprep.subr.mxu0 %v830
        %1960 = vmatpush1.xpose.msra.mxu0 %v829
        %1961 = vmatprep.subr.mxu0 %v814
        %1962 = vmatpush1.xpose.msra.mxu0 %v813
        %1963 = vmatprep.subr.mxu0 %v798
        %1964 = vmatpush1.xpose.msra.mxu0 %v797
        %1965 = vmatprep.subr.mxu0 %v782
        %1966 = vmatpush1.xpose.msra.mxu0 %v781
        %1967 = vmatprep.subr.mxu0 %v766
        %1968 = vmatpush1.xpose.msra.mxu0 %v765
        %1969 = vmatprep.subr.mxu0 %v750
        %1970 = vmatpush1.xpose.msra.mxu0 %v749
        %1971 = vmatprep.subr.mxu0 %v1246
        %1972 = vmatpush2.xpose.msra.mxu0 %v1245
        %1973 = vmatprep.subr.mxu0 %v1230
        %1974 = vmatpush2.xpose.msra.mxu0 %v1229
        %1975 = vmatprep.subr.mxu0 %v1214
        %1976 = vmatpush2.xpose.msra.mxu0 %v1213
        %1977 = vmatprep.subr.mxu0 %v1198
        %1978 = vmatpush2.xpose.msra.mxu0 %v1197
        %1979 = vmatprep.subr.mxu0 %v1182
        %1980 = vmatpush2.xpose.msra.mxu0 %v1181
        %1981 = vmatprep.subr.mxu0 %v1166
        %1982 = vmatpush2.xpose.msra.mxu0 %v1165
        %1983 = vmatprep.subr.mxu0 %v1150
        %1984 = vmatpush2.xpose.msra.mxu0 %v1149
        %1985 = vmatprep.subr.mxu0 %v1134
        %1986 = vmatpush2.xpose.msra.mxu0 %v1133
        %1987 = vmatprep.subr.mxu0 %v1118
        %1988 = vmatpush2.xpose.msra.mxu0 %v1117
        %1989 = vmatprep.subr.mxu0 %v1102
        %1990 = vmatpush2.xpose.msra.mxu0 %v1101
        %1991 = vmatprep.subr.mxu0 %v1086
        %1992 = vmatpush2.xpose.msra.mxu0 %v1085
        %1993 = vmatprep.subr.mxu0 %v1070
        %1994 = vmatpush2.xpose.msra.mxu0 %v1069
        %1995 = vmatprep.subr.mxu0 %v1054
        %1996 = vmatpush2.xpose.msra.mxu0 %v1053
        %1997 = vmatprep.subr.mxu0 %v1038
        %1998 = vmatpush2.xpose.msra.mxu0 %v1037
        %1999 = vmatprep.subr.mxu0 %v1022
        %2000 = vmatpush2.xpose.msra.mxu0 %v1021
        %2001 = vmatprep.subr.mxu0 %v1006
        %2002 = vmatpush2.xpose.msra.mxu0 %v1005
        %2003 = vmatprep.mubr.f32.mxu0 %v1302
        %2004 = vmatmul.mubr.f32.gmra.mxu0 %v1294
        %v2005 = vpop.f32.mrf.mxu0
        %v2006 = vadd.f32 %v1274, %v2005
        %v2007 = vpop.f32.mrf.mxu0
        %v2008 = vadd.f32 %v1278, %v2007
        %2009 = vdwg.mxu0
        %2010 = vmatprep.subr.mxu0 %v992
        %2011 = vmatpush1.xpose.msra.mxu0 %v991
        %2012 = vmatprep.subr.mxu0 %v976
        %2013 = vmatpush1.xpose.msra.mxu0 %v975
        %2014 = vmatprep.subr.mxu0 %v960
        %2015 = vmatpush1.xpose.msra.mxu0 %v959
        %2016 = vmatprep.subr.mxu0 %v944
        %2017 = vmatpush1.xpose.msra.mxu0 %v943
        %2018 = vmatprep.subr.mxu0 %v928
        %2019 = vmatpush1.xpose.msra.mxu0 %v927
        %2020 = vmatprep.subr.mxu0 %v912
        %2021 = vmatpush1.xpose.msra.mxu0 %v911
        %2022 = vmatprep.subr.mxu0 %v896
        %2023 = vmatpush1.xpose.msra.mxu0 %v895
        %2024 = vmatprep.subr.mxu0 %v880
        %2025 = vmatpush1.xpose.msra.mxu0 %v879
        %2026 = vmatprep.subr.mxu0 %v864
        %2027 = vmatpush1.xpose.msra.mxu0 %v863
        %2028 = vmatprep.subr.mxu0 %v848
        %2029 = vmatpush1.xpose.msra.mxu0 %v847
        %2030 = vmatprep.subr.mxu0 %v832
        %2031 = vmatpush1.xpose.msra.mxu0 %v831
        %2032 = vmatprep.subr.mxu0 %v816
        %2033 = vmatpush1.xpose.msra.mxu0 %v815
        %2034 = vmatprep.subr.mxu0 %v800
        %2035 = vmatpush1.xpose.msra.mxu0 %v799
        %2036 = vmatprep.subr.mxu0 %v784
        %2037 = vmatpush1.xpose.msra.mxu0 %v783
        %2038 = vmatprep.subr.mxu0 %v768
        %2039 = vmatpush1.xpose.msra.mxu0 %v767
        %2040 = vmatprep.subr.mxu0 %v752
        %2041 = vmatpush1.xpose.msra.mxu0 %v751
        %2042 = vmatprep.subr.mxu0 %v1248
        %2043 = vmatpush2.xpose.msra.mxu0 %v1247
        %2044 = vmatprep.subr.mxu0 %v1232
        %2045 = vmatpush2.xpose.msra.mxu0 %v1231
        %2046 = vmatprep.subr.mxu0 %v1216
        %2047 = vmatpush2.xpose.msra.mxu0 %v1215
        %2048 = vmatprep.subr.mxu0 %v1200
        %2049 = vmatpush2.xpose.msra.mxu0 %v1199
        %2050 = vmatprep.subr.mxu0 %v1184
        %2051 = vmatpush2.xpose.msra.mxu0 %v1183
        %2052 = vmatprep.subr.mxu0 %v1168
        %2053 = vmatpush2.xpose.msra.mxu0 %v1167
        %2054 = vmatprep.subr.mxu0 %v1152
        %2055 = vmatpush2.xpose.msra.mxu0 %v1151
        %2056 = vmatprep.subr.mxu0 %v1136
        %2057 = vmatpush2.xpose.msra.mxu0 %v1135
        %2058 = vmatprep.subr.mxu0 %v1120
        %2059 = vmatpush2.xpose.msra.mxu0 %v1119
        %2060 = vmatprep.subr.mxu0 %v1104
        %2061 = vmatpush2.xpose.msra.mxu0 %v1103
        %2062 = vmatprep.subr.mxu0 %v1088
        %2063 = vmatpush2.xpose.msra.mxu0 %v1087
        %2064 = vmatprep.subr.mxu0 %v1072
        %2065 = vmatpush2.xpose.msra.mxu0 %v1071
        %2066 = vmatprep.subr.mxu0 %v1056
        %2067 = vmatpush2.xpose.msra.mxu0 %v1055
        %2068 = vmatprep.subr.mxu0 %v1040
        %2069 = vmatpush2.xpose.msra.mxu0 %v1039
        %2070 = vmatprep.subr.mxu0 %v1024
        %2071 = vmatpush2.xpose.msra.mxu0 %v1023
        %2072 = vmatprep.subr.mxu0 %v1008
        %2073 = vmatpush2.xpose.msra.mxu0 %v1007
        %2074 = vmatprep.mubr.f32.mxu0 %v1303
        %2075 = vmatmul.mubr.f32.gmra.mxu0 %v1301
        %v2076 = vpop.f32.mrf.mxu0
        %v2077 = vadd.f32 %v2006, %v2076
        %v2078 = vpop.f32.mrf.mxu0
        %v2079 = vadd.f32 %v2008, %v2078
        %2080 = vdwg.mxu0
        %2081 = vmatprep.subr.mxu0 %v994
        %2082 = vmatpush1.xpose.msra.mxu0 %v993
        %2083 = vmatprep.subr.mxu0 %v978
        %2084 = vmatpush1.xpose.msra.mxu0 %v977
        %2085 = vmatprep.subr.mxu0 %v962
        %2086 = vmatpush1.xpose.msra.mxu0 %v961
        %2087 = vmatprep.subr.mxu0 %v946
        %2088 = vmatpush1.xpose.msra.mxu0 %v945
        %2089 = vmatprep.subr.mxu0 %v930
        %2090 = vmatpush1.xpose.msra.mxu0 %v929
        %2091 = vmatprep.subr.mxu0 %v914
        %2092 = vmatpush1.xpose.msra.mxu0 %v913
        %2093 = vmatprep.subr.mxu0 %v898
        %2094 = vmatpush1.xpose.msra.mxu0 %v897
        %2095 = vmatprep.subr.mxu0 %v882
        %2096 = vmatpush1.xpose.msra.mxu0 %v881
        %2097 = vmatprep.subr.mxu0 %v866
        %2098 = vmatpush1.xpose.msra.mxu0 %v865
        %2099 = vmatprep.subr.mxu0 %v850
        %2100 = vmatpush1.xpose.msra.mxu0 %v849
        %2101 = vmatprep.subr.mxu0 %v834
        %2102 = vmatpush1.xpose.msra.mxu0 %v833
        %2103 = vmatprep.subr.mxu0 %v818
        %2104 = vmatpush1.xpose.msra.mxu0 %v817
        %2105 = vmatprep.subr.mxu0 %v802
        %2106 = vmatpush1.xpose.msra.mxu0 %v801
        %2107 = vmatprep.subr.mxu0 %v786
        %2108 = vmatpush1.xpose.msra.mxu0 %v785
        %2109 = vmatprep.subr.mxu0 %v770
        %2110 = vmatpush1.xpose.msra.mxu0 %v769
        %2111 = vmatprep.subr.mxu0 %v754
        %2112 = vmatpush1.xpose.msra.mxu0 %v753
        %2113 = vmatprep.subr.mxu0 %v1250
        %2114 = vmatpush2.xpose.msra.mxu0 %v1249
        %2115 = vmatprep.subr.mxu0 %v1234
        %2116 = vmatpush2.xpose.msra.mxu0 %v1233
        %2117 = vmatprep.subr.mxu0 %v1218
        %2118 = vmatpush2.xpose.msra.mxu0 %v1217
        %2119 = vmatprep.subr.mxu0 %v1202
        %2120 = vmatpush2.xpose.msra.mxu0 %v1201
        %2121 = vmatprep.subr.mxu0 %v1186
        %2122 = vmatpush2.xpose.msra.mxu0 %v1185
        %2123 = vmatprep.subr.mxu0 %v1170
        %2124 = vmatpush2.xpose.msra.mxu0 %v1169
        %2125 = vmatprep.subr.mxu0 %v1154
        %2126 = vmatpush2.xpose.msra.mxu0 %v1153
        %2127 = vmatprep.subr.mxu0 %v1138
        %2128 = vmatpush2.xpose.msra.mxu0 %v1137
        %2129 = vmatprep.subr.mxu0 %v1122
        %2130 = vmatpush2.xpose.msra.mxu0 %v1121
        %2131 = vmatprep.subr.mxu0 %v1106
        %2132 = vmatpush2.xpose.msra.mxu0 %v1105
        %2133 = vmatprep.subr.mxu0 %v1090
        %2134 = vmatpush2.xpose.msra.mxu0 %v1089
        %2135 = vmatprep.subr.mxu0 %v1074
        %2136 = vmatpush2.xpose.msra.mxu0 %v1073
        %2137 = vmatprep.subr.mxu0 %v1058
        %2138 = vmatpush2.xpose.msra.mxu0 %v1057
        %2139 = vmatprep.subr.mxu0 %v1042
        %2140 = vmatpush2.xpose.msra.mxu0 %v1041
        %2141 = vmatprep.subr.mxu0 %v1026
        %2142 = vmatpush2.xpose.msra.mxu0 %v1025
        %2143 = vmatprep.subr.mxu0 %v1010
        %2144 = vmatpush2.xpose.msra.mxu0 %v1009
        %2145 = vmatprep.mubr.f32.mxu0 %v1319
        %2146 = vmatmul.mubr.f32.gmra.mxu0 %v1311
        %v2147 = vpop.f32.mrf.mxu0
        %v2148 = vadd.f32 %v2077, %v2147
        %v2149 = vpop.f32.mrf.mxu0
        %v2150 = vadd.f32 %v2079, %v2149
        %2151 = vdwg.mxu0
        %2152 = vmatprep.subr.mxu0 %v996
        %2153 = vmatpush1.xpose.msra.mxu0 %v995
        %2154 = vmatprep.subr.mxu0 %v980
        %2155 = vmatpush1.xpose.msra.mxu0 %v979
        %2156 = vmatprep.subr.mxu0 %v964
        %2157 = vmatpush1.xpose.msra.mxu0 %v963
        %2158 = vmatprep.subr.mxu0 %v948
        %2159 = vmatpush1.xpose.msra.mxu0 %v947
        %2160 = vmatprep.subr.mxu0 %v932
        %2161 = vmatpush1.xpose.msra.mxu0 %v931
        %2162 = vmatprep.subr.mxu0 %v916
        %2163 = vmatpush1.xpose.msra.mxu0 %v915
        %2164 = vmatprep.subr.mxu0 %v900
        %2165 = vmatpush1.xpose.msra.mxu0 %v899
        %2166 = vmatprep.subr.mxu0 %v884
        %2167 = vmatpush1.xpose.msra.mxu0 %v883
        %2168 = vmatprep.subr.mxu0 %v868
        %2169 = vmatpush1.xpose.msra.mxu0 %v867
        %2170 = vmatprep.subr.mxu0 %v852
        %2171 = vmatpush1.xpose.msra.mxu0 %v851
        %2172 = vmatprep.subr.mxu0 %v836
        %2173 = vmatpush1.xpose.msra.mxu0 %v835
        %2174 = vmatprep.subr.mxu0 %v820
        %2175 = vmatpush1.xpose.msra.mxu0 %v819
        %2176 = vmatprep.subr.mxu0 %v804
        %2177 = vmatpush1.xpose.msra.mxu0 %v803
        %2178 = vmatprep.subr.mxu0 %v788
        %2179 = vmatpush1.xpose.msra.mxu0 %v787
        %2180 = vmatprep.subr.mxu0 %v772
        %2181 = vmatpush1.xpose.msra.mxu0 %v771
        %2182 = vmatprep.subr.mxu0 %v756
        %2183 = vmatpush1.xpose.msra.mxu0 %v755
        %2184 = vmatprep.subr.mxu0 %v1252
        %2185 = vmatpush2.xpose.msra.mxu0 %v1251
        %2186 = vmatprep.subr.mxu0 %v1236
        %2187 = vmatpush2.xpose.msra.mxu0 %v1235
        %2188 = vmatprep.subr.mxu0 %v1220
        %2189 = vmatpush2.xpose.msra.mxu0 %v1219
        %2190 = vmatprep.subr.mxu0 %v1204
        %2191 = vmatpush2.xpose.msra.mxu0 %v1203
        %2192 = vmatprep.subr.mxu0 %v1188
        %2193 = vmatpush2.xpose.msra.mxu0 %v1187
        %2194 = vmatprep.subr.mxu0 %v1172
        %2195 = vmatpush2.xpose.msra.mxu0 %v1171
        %2196 = vmatprep.subr.mxu0 %v1156
        %2197 = vmatpush2.xpose.msra.mxu0 %v1155
        %2198 = vmatprep.subr.mxu0 %v1140
        %2199 = vmatpush2.xpose.msra.mxu0 %v1139
        %2200 = vmatprep.subr.mxu0 %v1124
        %2201 = vmatpush2.xpose.msra.mxu0 %v1123
        %2202 = vmatprep.subr.mxu0 %v1108
        %2203 = vmatpush2.xpose.msra.mxu0 %v1107
        %2204 = vmatprep.subr.mxu0 %v1092
        %2205 = vmatpush2.xpose.msra.mxu0 %v1091
        %2206 = vmatprep.subr.mxu0 %v1076
        %2207 = vmatpush2.xpose.msra.mxu0 %v1075
        %2208 = vmatprep.subr.mxu0 %v1060
        %2209 = vmatpush2.xpose.msra.mxu0 %v1059
        %2210 = vmatprep.subr.mxu0 %v1044
        %2211 = vmatpush2.xpose.msra.mxu0 %v1043
        %2212 = vmatprep.subr.mxu0 %v1028
        %2213 = vmatpush2.xpose.msra.mxu0 %v1027
        %2214 = vmatprep.subr.mxu0 %v1012
        %2215 = vmatpush2.xpose.msra.mxu0 %v1011
        %2216 = vmatprep.mubr.f32.mxu0 %v1320
        %2217 = vmatmul.mubr.f32.gmra.mxu0 %v1318
        %v2218 = vpop.f32.mrf.mxu0
        %v2219 = vadd.f32 %v2148, %v2218
        %v2220 = vpop.f32.mrf.mxu0
        %v2221 = vadd.f32 %v2150, %v2220
        %2222 = vdwg.mxu0
        %2223 = vmatprep.subr.mxu0 %v998
        %2224 = vmatpush1.xpose.msra.mxu0 %v997
        %2225 = vmatprep.subr.mxu0 %v982
        %2226 = vmatpush1.xpose.msra.mxu0 %v981
        %2227 = vmatprep.subr.mxu0 %v966
        %2228 = vmatpush1.xpose.msra.mxu0 %v965
        %2229 = vmatprep.subr.mxu0 %v950
        %2230 = vmatpush1.xpose.msra.mxu0 %v949
        %2231 = vmatprep.subr.mxu0 %v934
        %2232 = vmatpush1.xpose.msra.mxu0 %v933
        %2233 = vmatprep.subr.mxu0 %v918
        %2234 = vmatpush1.xpose.msra.mxu0 %v917
        %2235 = vmatprep.subr.mxu0 %v902
        %2236 = vmatpush1.xpose.msra.mxu0 %v901
        %2237 = vmatprep.subr.mxu0 %v886
        %2238 = vmatpush1.xpose.msra.mxu0 %v885
        %2239 = vmatprep.subr.mxu0 %v870
        %2240 = vmatpush1.xpose.msra.mxu0 %v869
        %2241 = vmatprep.subr.mxu0 %v854
        %2242 = vmatpush1.xpose.msra.mxu0 %v853
        %2243 = vmatprep.subr.mxu0 %v838
        %2244 = vmatpush1.xpose.msra.mxu0 %v837
        %2245 = vmatprep.subr.mxu0 %v822
        %2246 = vmatpush1.xpose.msra.mxu0 %v821
        %2247 = vmatprep.subr.mxu0 %v806
        %2248 = vmatpush1.xpose.msra.mxu0 %v805
        %2249 = vmatprep.subr.mxu0 %v790
        %2250 = vmatpush1.xpose.msra.mxu0 %v789
        %2251 = vmatprep.subr.mxu0 %v774
        %2252 = vmatpush1.xpose.msra.mxu0 %v773
        %2253 = vmatprep.subr.mxu0 %v758
        %2254 = vmatpush1.xpose.msra.mxu0 %v757
        %2255 = vmatprep.subr.mxu0 %v1254
        %2256 = vmatpush2.xpose.msra.mxu0 %v1253
        %2257 = vmatprep.subr.mxu0 %v1238
        %2258 = vmatpush2.xpose.msra.mxu0 %v1237
        %2259 = vmatprep.subr.mxu0 %v1222
        %2260 = vmatpush2.xpose.msra.mxu0 %v1221
        %2261 = vmatprep.subr.mxu0 %v1206
        %2262 = vmatpush2.xpose.msra.mxu0 %v1205
        %2263 = vmatprep.subr.mxu0 %v1190
        %2264 = vmatpush2.xpose.msra.mxu0 %v1189
        %2265 = vmatprep.subr.mxu0 %v1174
        %2266 = vmatpush2.xpose.msra.mxu0 %v1173
        %2267 = vmatprep.subr.mxu0 %v1158
        %2268 = vmatpush2.xpose.msra.mxu0 %v1157
        %2269 = vmatprep.subr.mxu0 %v1142
        %2270 = vmatpush2.xpose.msra.mxu0 %v1141
        %2271 = vmatprep.subr.mxu0 %v1126
        %2272 = vmatpush2.xpose.msra.mxu0 %v1125
        %2273 = vmatprep.subr.mxu0 %v1110
        %2274 = vmatpush2.xpose.msra.mxu0 %v1109
        %2275 = vmatprep.subr.mxu0 %v1094
        %2276 = vmatpush2.xpose.msra.mxu0 %v1093
        %2277 = vmatprep.subr.mxu0 %v1078
        %2278 = vmatpush2.xpose.msra.mxu0 %v1077
        %2279 = vmatprep.subr.mxu0 %v1062
        %2280 = vmatpush2.xpose.msra.mxu0 %v1061
        %2281 = vmatprep.subr.mxu0 %v1046
        %2282 = vmatpush2.xpose.msra.mxu0 %v1045
        %2283 = vmatprep.subr.mxu0 %v1030
        %2284 = vmatpush2.xpose.msra.mxu0 %v1029
        %2285 = vmatprep.subr.mxu0 %v1014
        %2286 = vmatpush2.xpose.msra.mxu0 %v1013
        %2287 = vmatprep.mubr.f32.mxu0 %v1336
        %2288 = vmatmul.mubr.f32.gmra.mxu0 %v1328
        %v2289 = vpop.f32.mrf.mxu0
        %v2290 = vadd.f32 %v2219, %v2289
        %v2291 = vpop.f32.mrf.mxu0
        %v2292 = vadd.f32 %v2221, %v2291
        %2293 = vdwg.mxu0
        %2294 = vmatprep.subr.mxu0 %v1000
        %2295 = vmatpush1.xpose.msra.mxu0 %v999
        %2296 = vmatprep.subr.mxu0 %v984
        %2297 = vmatpush1.xpose.msra.mxu0 %v983
        %2298 = vmatprep.subr.mxu0 %v968
        %2299 = vmatpush1.xpose.msra.mxu0 %v967
        %2300 = vmatprep.subr.mxu0 %v952
        %2301 = vmatpush1.xpose.msra.mxu0 %v951
        %2302 = vmatprep.subr.mxu0 %v936
        %2303 = vmatpush1.xpose.msra.mxu0 %v935
        %2304 = vmatprep.subr.mxu0 %v920
        %2305 = vmatpush1.xpose.msra.mxu0 %v919
        %2306 = vmatprep.subr.mxu0 %v904
        %2307 = vmatpush1.xpose.msra.mxu0 %v903
        %2308 = vmatprep.subr.mxu0 %v888
        %2309 = vmatpush1.xpose.msra.mxu0 %v887
        %2310 = vmatprep.subr.mxu0 %v872
        %2311 = vmatpush1.xpose.msra.mxu0 %v871
        %2312 = vmatprep.subr.mxu0 %v856
        %2313 = vmatpush1.xpose.msra.mxu0 %v855
        %2314 = vmatprep.subr.mxu0 %v840
        %2315 = vmatpush1.xpose.msra.mxu0 %v839
        %2316 = vmatprep.subr.mxu0 %v824
        %2317 = vmatpush1.xpose.msra.mxu0 %v823
        %2318 = vmatprep.subr.mxu0 %v808
        %2319 = vmatpush1.xpose.msra.mxu0 %v807
        %2320 = vmatprep.subr.mxu0 %v792
        %2321 = vmatpush1.xpose.msra.mxu0 %v791
        %2322 = vmatprep.subr.mxu0 %v776
        %2323 = vmatpush1.xpose.msra.mxu0 %v775
        %2324 = vmatprep.subr.mxu0 %v760
        %2325 = vmatpush1.xpose.msra.mxu0 %v759
        %2326 = vmatprep.subr.mxu0 %v1256
        %2327 = vmatpush2.xpose.msra.mxu0 %v1255
        %2328 = vmatprep.subr.mxu0 %v1240
        %2329 = vmatpush2.xpose.msra.mxu0 %v1239
        %2330 = vmatprep.subr.mxu0 %v1224
        %2331 = vmatpush2.xpose.msra.mxu0 %v1223
        %2332 = vmatprep.subr.mxu0 %v1208
        %2333 = vmatpush2.xpose.msra.mxu0 %v1207
        %2334 = vmatprep.subr.mxu0 %v1192
        %2335 = vmatpush2.xpose.msra.mxu0 %v1191
        %2336 = vmatprep.subr.mxu0 %v1176
        %2337 = vmatpush2.xpose.msra.mxu0 %v1175
        %2338 = vmatprep.subr.mxu0 %v1160
        %2339 = vmatpush2.xpose.msra.mxu0 %v1159
        %2340 = vmatprep.subr.mxu0 %v1144
        %2341 = vmatpush2.xpose.msra.mxu0 %v1143
        %2342 = vmatprep.subr.mxu0 %v1128
        %2343 = vmatpush2.xpose.msra.mxu0 %v1127
        %2344 = vmatprep.subr.mxu0 %v1112
        %2345 = vmatpush2.xpose.msra.mxu0 %v1111
        %2346 = vmatprep.subr.mxu0 %v1096
        %2347 = vmatpush2.xpose.msra.mxu0 %v1095
        %2348 = vmatprep.subr.mxu0 %v1080
        %2349 = vmatpush2.xpose.msra.mxu0 %v1079
        %2350 = vmatprep.subr.mxu0 %v1064
        %2351 = vmatpush2.xpose.msra.mxu0 %v1063
        %2352 = vmatprep.subr.mxu0 %v1048
        %2353 = vmatpush2.xpose.msra.mxu0 %v1047
        %2354 = vmatprep.subr.mxu0 %v1032
        %2355 = vmatpush2.xpose.msra.mxu0 %v1031
        %2356 = vmatprep.subr.mxu0 %v1016
        %2357 = vmatpush2.xpose.msra.mxu0 %v1015
        %2358 = vmatprep.mubr.f32.mxu0 %v1337
        %2359 = vmatmul.mubr.f32.gmra.mxu0 %v1335
        %v2360 = vpop.f32.mrf.mxu0
        %v2361 = vadd.f32 %v2290, %v2360
        %v2362 = vpop.f32.mrf.mxu0
        %v2363 = vadd.f32 %v2292, %v2362
        %2364 = vdwg.mxu0
        %2365 = vmatprep.subr.mxu0 %v1002
        %2366 = vmatpush1.xpose.msra.mxu0 %v1001
        %2367 = vmatprep.subr.mxu0 %v986
        %2368 = vmatpush1.xpose.msra.mxu0 %v985
        %2369 = vmatprep.subr.mxu0 %v970
        %2370 = vmatpush1.xpose.msra.mxu0 %v969
        %2371 = vmatprep.subr.mxu0 %v954
        %2372 = vmatpush1.xpose.msra.mxu0 %v953
        %2373 = vmatprep.subr.mxu0 %v938
        %2374 = vmatpush1.xpose.msra.mxu0 %v937
        %2375 = vmatprep.subr.mxu0 %v922
        %2376 = vmatpush1.xpose.msra.mxu0 %v921
        %2377 = vmatprep.subr.mxu0 %v906
        %2378 = vmatpush1.xpose.msra.mxu0 %v905
        %2379 = vmatprep.subr.mxu0 %v890
        %2380 = vmatpush1.xpose.msra.mxu0 %v889
        %2381 = vmatprep.subr.mxu0 %v874
        %2382 = vmatpush1.xpose.msra.mxu0 %v873
        %2383 = vmatprep.subr.mxu0 %v858
        %2384 = vmatpush1.xpose.msra.mxu0 %v857
        %2385 = vmatprep.subr.mxu0 %v842
        %2386 = vmatpush1.xpose.msra.mxu0 %v841
        %2387 = vmatprep.subr.mxu0 %v826
        %2388 = vmatpush1.xpose.msra.mxu0 %v825
        %2389 = vmatprep.subr.mxu0 %v810
        %2390 = vmatpush1.xpose.msra.mxu0 %v809
        %2391 = vmatprep.subr.mxu0 %v794
        %2392 = vmatpush1.xpose.msra.mxu0 %v793
        %2393 = vmatprep.subr.mxu0 %v778
        %2394 = vmatpush1.xpose.msra.mxu0 %v777
        %2395 = vmatprep.subr.mxu0 %v762
        %2396 = vmatpush1.xpose.msra.mxu0 %v761
        %2397 = vmatprep.subr.mxu0 %v1258
        %2398 = vmatpush2.xpose.msra.mxu0 %v1257
        %2399 = vmatprep.subr.mxu0 %v1242
        %2400 = vmatpush2.xpose.msra.mxu0 %v1241
        %2401 = vmatprep.subr.mxu0 %v1226
        %2402 = vmatpush2.xpose.msra.mxu0 %v1225
        %2403 = vmatprep.subr.mxu0 %v1210
        %2404 = vmatpush2.xpose.msra.mxu0 %v1209
        %2405 = vmatprep.subr.mxu0 %v1194
        %2406 = vmatpush2.xpose.msra.mxu0 %v1193
        %2407 = vmatprep.subr.mxu0 %v1178
        %2408 = vmatpush2.xpose.msra.mxu0 %v1177
        %2409 = vmatprep.subr.mxu0 %v1162
        %2410 = vmatpush2.xpose.msra.mxu0 %v1161
        %2411 = vmatprep.subr.mxu0 %v1146
        %2412 = vmatpush2.xpose.msra.mxu0 %v1145
        %2413 = vmatprep.subr.mxu0 %v1130
        %2414 = vmatpush2.xpose.msra.mxu0 %v1129
        %2415 = vmatprep.subr.mxu0 %v1114
        %2416 = vmatpush2.xpose.msra.mxu0 %v1113
        %2417 = vmatprep.subr.mxu0 %v1098
        %2418 = vmatpush2.xpose.msra.mxu0 %v1097
        %2419 = vmatprep.subr.mxu0 %v1082
        %2420 = vmatpush2.xpose.msra.mxu0 %v1081
        %2421 = vmatprep.subr.mxu0 %v1066
        %2422 = vmatpush2.xpose.msra.mxu0 %v1065
        %2423 = vmatprep.subr.mxu0 %v1050
        %2424 = vmatpush2.xpose.msra.mxu0 %v1049
        %2425 = vmatprep.subr.mxu0 %v1034
        %2426 = vmatpush2.xpose.msra.mxu0 %v1033
        %2427 = vmatprep.subr.mxu0 %v1018
        %2428 = vmatpush2.xpose.msra.mxu0 %v1017
        %2429 = vmatprep.mubr.f32.mxu0 %v1353
        %2430 = vmatmul.mubr.f32.gmra.mxu0 %v1345
        %v2431 = vpop.f32.mrf.mxu0
        %v2432 = vadd.f32 %v2361, %v2431
        %v2433 = vpop.f32.mrf.mxu0
        %v2434 = vadd.f32 %v2363, %v2433
        %2435 = vdwg.mxu0
        %2436 = vmatprep.subr.mxu0 %v1004
        %2437 = vmatpush1.xpose.msra.mxu0 %v1003
        %2438 = vmatprep.subr.mxu0 %v988
        %2439 = vmatpush1.xpose.msra.mxu0 %v987
        %2440 = vmatprep.subr.mxu0 %v972
        %2441 = vmatpush1.xpose.msra.mxu0 %v971
        %2442 = vmatprep.subr.mxu0 %v956
        %2443 = vmatpush1.xpose.msra.mxu0 %v955
        %2444 = vmatprep.subr.mxu0 %v940
        %2445 = vmatpush1.xpose.msra.mxu0 %v939
        %2446 = vmatprep.subr.mxu0 %v924
        %2447 = vmatpush1.xpose.msra.mxu0 %v923
        %2448 = vmatprep.subr.mxu0 %v908
        %2449 = vmatpush1.xpose.msra.mxu0 %v907
        %2450 = vmatprep.subr.mxu0 %v892
        %2451 = vmatpush1.xpose.msra.mxu0 %v891
        %2452 = vmatprep.subr.mxu0 %v876
        %2453 = vmatpush1.xpose.msra.mxu0 %v875
        %2454 = vmatprep.subr.mxu0 %v860
        %2455 = vmatpush1.xpose.msra.mxu0 %v859
        %2456 = vmatprep.subr.mxu0 %v844
        %2457 = vmatpush1.xpose.msra.mxu0 %v843
        %2458 = vmatprep.subr.mxu0 %v828
        %2459 = vmatpush1.xpose.msra.mxu0 %v827
        %2460 = vmatprep.subr.mxu0 %v812
        %2461 = vmatpush1.xpose.msra.mxu0 %v811
        %2462 = vmatprep.subr.mxu0 %v796
        %2463 = vmatpush1.xpose.msra.mxu0 %v795
        %2464 = vmatprep.subr.mxu0 %v780
        %2465 = vmatpush1.xpose.msra.mxu0 %v779
        %2466 = vmatprep.subr.mxu0 %v764
        %2467 = vmatpush1.xpose.msra.mxu0 %v763
        %2468 = vmatprep.subr.mxu0 %v1260
        %2469 = vmatpush2.xpose.msra.mxu0 %v1259
        %2470 = vmatprep.subr.mxu0 %v1244
        %2471 = vmatpush2.xpose.msra.mxu0 %v1243
        %2472 = vmatprep.subr.mxu0 %v1228
        %2473 = vmatpush2.xpose.msra.mxu0 %v1227
        %2474 = vmatprep.subr.mxu0 %v1212
        %2475 = vmatpush2.xpose.msra.mxu0 %v1211
        %2476 = vmatprep.subr.mxu0 %v1196
        %2477 = vmatpush2.xpose.msra.mxu0 %v1195
        %2478 = vmatprep.subr.mxu0 %v1180
        %2479 = vmatpush2.xpose.msra.mxu0 %v1179
        %2480 = vmatprep.subr.mxu0 %v1164
        %2481 = vmatpush2.xpose.msra.mxu0 %v1163
        %2482 = vmatprep.subr.mxu0 %v1148
        %2483 = vmatpush2.xpose.msra.mxu0 %v1147
        %2484 = vmatprep.subr.mxu0 %v1132
        %2485 = vmatpush2.xpose.msra.mxu0 %v1131
        %2486 = vmatprep.subr.mxu0 %v1116
        %2487 = vmatpush2.xpose.msra.mxu0 %v1115
        %2488 = vmatprep.subr.mxu0 %v1100
        %2489 = vmatpush2.xpose.msra.mxu0 %v1099
        %2490 = vmatprep.subr.mxu0 %v1084
        %2491 = vmatpush2.xpose.msra.mxu0 %v1083
        %2492 = vmatprep.subr.mxu0 %v1068
        %2493 = vmatpush2.xpose.msra.mxu0 %v1067
        %2494 = vmatprep.subr.mxu0 %v1052
        %2495 = vmatpush2.xpose.msra.mxu0 %v1051
        %2496 = vmatprep.subr.mxu0 %v1036
        %2497 = vmatpush2.xpose.msra.mxu0 %v1035
        %2498 = vmatprep.subr.mxu0 %v1020
        %2499 = vmatpush2.xpose.msra.mxu0 %v1019
        %2500 = vmatprep.mubr.f32.mxu0 %v1354
        %2501 = vmatmul.mubr.f32.gmra.mxu0 %v1352
        %v2502 = vpop.f32.mrf.mxu0
        %v2503 = vadd.f32 %v2432, %v2502
        %v2504 = vpop.f32.mrf.mxu0
        %v2505 = vadd.f32 %v2434, %v2504
        %2506 = vdwg.mxu0
        %v2511 = vcombine.low %v1935, %v1937
        %v2512 = vcombine.low %v2503, %v2505
        %v2514 = vunpack.c.l.s4 1983009808
        %v2515 = vunpack.c.0.s8 %v2514
        %v2516 = vlaneseq
        %v2517 = vshrl.u32 %v2516, 7
        %v2518 = vsub.s32 %v2515, %v2517
        %v2519 = vrot.slane %v2511, %v2518
        %v2521 = vunpack.c.l.s4 1983009808
        %v2522 = vunpack.c.0.s8 %v2521
        %v2523 = vlaneseq
        %v2524 = vshrl.u32 %v2523, 7
        %v2525 = vsub.s32 %v2522, %v2524
        %v2526 = vrot.slane %v2512, %v2525
        %v2527 = vcombine.low %v2519, %v2526
        %2529 = vst [vmem:[%s231] sm:$0xff] %v2527
        %s2530 = smul.u32 4, %s20
        %p2531 = scmp.lt.s32.totalorder %s2530, 47
        %s2532 = scalar_select %p2531, %s2530, 47
        %s2533 = smul.addr %s2532, 2
        %s2534 = scalar_lea.vmem %s3, %s2533
        // Predicated region
        $region41: #{text_encoder_fc_forward.3} parent=31 // pred_check
          %p2535 = pneg %p111
        $region42: #{text_encoder_fc_forward.3} parent=31 // pred_check_branch
          %2537 = sbr.rel (%p2535) target = $region44
        $region43: #{text_encoder_fc_forward.3} parent=31 // pred_region
          %s2538 = smul.u32 4, %s20
        $region44: #{text_encoder_fc_forward.3} parent=31 // pred_fallthru
          _
      $region32: #{text_encoder_fc_forward.3} parent=5 // pred_fallthru
        _
      %p2539 = scmp.le.s32.totalorder 2, %s15
      // Predicated region
      $region45: #{text_encoder_fc_forward.3} parent=5 // pred_check
        %p2540 = pneg %p2539
      $region46: #{text_encoder_fc_forward.3} parent=5 // pred_check_branch
        %2542 = sbr.rel (%p2540) target = $region48
      $region47: #{text_encoder_fc_forward.3} parent=5 // pred_region
        %s2543 = ssub.s32 %s15, 2
        // Predicated region
        $region49: #{text_encoder_fc_forward.3} parent=47 // pred_check
          %p2544 = pneg %p117
        $region50: #{text_encoder_fc_forward.3} parent=47 // pred_check_branch
          %2546 = sbr.rel (%p2544) target = $region52
        $region51: #{text_encoder_fc_forward.3} parent=47 // pred_region
          %s2547 = smul.u32 4, %s21
          %p2548 = scmp.lt.s32.totalorder %s2547, 47
          %s2549 = scalar_select %p2548, %s2547, 47
          %s2550 = smul.addr %s2549, 2
          %s2551 = scalar_lea.vmem %s3, %s2550
        $region52: #{text_encoder_fc_forward.3} parent=47 // pred_fallthru
          _
      $region48: #{text_encoder_fc_forward.3} parent=5 // pred_fallthru
        _
    $region6: #{text_encoder_fc_forward.3} parent=1 // loop_footer
      %s19 = sadd.s32 1, %s15
    $region7: #{text_encoder_fc_forward.3} parent=1 // loop_footer_branch
      %14 = sbr.rel target = $region3
    $region8: #{text_encoder_fc_forward.3} parent=1 // loop_exit
      _
    %2552 = vsyncpa [#allocation3], 1
    %s2553 = scalar_lea.sflag [#allocation3], 1
    %2554 = vsyncpa %s2553, 1
    %2555 = vsyncpa [#allocation5], 1
    %s2556 = scalar_lea.sflag [#allocation5], 1
    %2557 = vsyncpa %s2556, 1

</llo_original>
